<compile_context>
chip_gen: v5e
topology: v5e:2x2
jax: 0.10.0
libtpu: 0.0.40
codegen_flags: <defaults>
</compile_context>

<pallas_src>
import functools

import numpy as np
import jax
import jax.numpy as jnp
from jax.experimental import pallas as pl
from jax.experimental.pallas import tpu as pltpu

LRELU_SLOPE = 0.02


# ------------------------------ activations ---------------------------------

def _apply_act(y, act):
    if act == "none":
        return y
    if act == "relu":
        return jnp.maximum(y, 0.0)
    if act == "lrelu":
        return jnp.where(y > 0.0, y, LRELU_SLOPE * y)
    if act == "tanh":
        return jnp.tanh(y)
    if act == "elu":
        return jnp.where(y > 0.0, y, jnp.exp(y) - 1.0)
    # TODO(synk): 'prelu' has a learnable parameter; not implemented here.
    raise ValueError(act)


# ----------------------------- Pallas kernels --------------------------------

def _conv_mm_kernel(x_ref, w_ref, b_ref, o_ref, *, act):
    """o = act(W @ x + b), fused matmul / bias / activation.

    x_ref: (K, tn)    channel(-tap)-by-(batch*voxel) slab
    w_ref: (Cout, K)  flattened conv weight
    b_ref: (Cout, 1)
    o_ref: (Cout, tn) lane-dense output (voxels on lanes).
    """
    y = jax.lax.dot_general(
        w_ref[...], x_ref[...],
        dimension_numbers=(((1,), (0,)), ((), ())),
        preferred_element_type=jnp.float32)
    o_ref[...] = _apply_act(y + b_ref[...], act)


def pallas_conv_matmul(x, w, b, act="none", tile_n=2048):
    """x: (K, N); w: (Cout, K); b: (Cout,) -> act(W @ x + b): (Cout, N)."""
    K, N = x.shape
    Cout = w.shape[0]
    tn = N if N <= tile_n else tile_n              # tile lane axis if large
    return pl.pallas_call(
        functools.partial(_conv_mm_kernel, act=act),
        grid=(pl.cdiv(N, tn),),
        in_specs=[
            pl.BlockSpec((K, tn), lambda j: (0, j)),
            pl.BlockSpec((Cout, K), lambda j: (0, 0)),
            pl.BlockSpec((Cout, 1), lambda j: (0, 0)),
        ],
        out_specs=pl.BlockSpec((Cout, tn), lambda j: (0, j)),
        out_shape=jax.ShapeDtypeStruct((Cout, N), jnp.float32),
        compiler_params=pltpu.CompilerParams(
            dimension_semantics=("parallel",)),
    )(x.astype(jnp.float32), w.astype(jnp.float32),
      b.reshape(Cout, 1).astype(jnp.float32))


def _upsample_stem_kernel(x_ref, ut_ref, w_ref, b_ref, o_ref, *, act):
    """o = act(W @ (x @ Ut) + b): trilinear upsample fused with 1x1 stem conv.

    x_ref:  (Cin, BNin)   pre-upsample activation slab
    ut_ref: (BNin, tn)    transposed (batch-block-diagonal) interp matrix tile
    w_ref:  (Cout, Cin)   fused 1x1 stem weight of the second block
    b_ref:  (Cout, 1)
    o_ref:  (Cout, tn)
    """
    up = jax.lax.dot_general(
        x_ref[...], ut_ref[...],
        dimension_numbers=(((1,), (0,)), ((), ())),
        preferred_element_type=jnp.float32)
    y = jax.lax.dot_general(
        w_ref[...], up,
        dimension_numbers=(((1,), (0,)), ((), ())),
        preferred_element_type=jnp.float32)
    o_ref[...] = _apply_act(y + b_ref[...], act)


def pallas_upsample_stem(x, ut, w, b, act="none", tile_n=2048):
    """x: (Cin, BNin); ut: (BNin, BNout); w: (Cout, Cin) -> (Cout, BNout)."""
    Cin, BNin = x.shape
    BNout = ut.shape[1]
    Cout = w.shape[0]
    tn = BNout if BNout <= tile_n else tile_n
    return pl.pallas_call(
        functools.partial(_upsample_stem_kernel, act=act),
        grid=(pl.cdiv(BNout, tn),),
        in_specs=[
            pl.BlockSpec((Cin, BNin), lambda j: (0, 0)),
            pl.BlockSpec((BNin, tn), lambda j: (0, j)),
            pl.BlockSpec((Cout, Cin), lambda j: (0, 0)),
            pl.BlockSpec((Cout, 1), lambda j: (0, 0)),
        ],
        out_specs=pl.BlockSpec((Cout, tn), lambda j: (0, j)),
        out_shape=jax.ShapeDtypeStruct((Cout, BNout), jnp.float32),
        compiler_params=pltpu.CompilerParams(
            dimension_semantics=("parallel",)),
    )(x.astype(jnp.float32), ut.astype(jnp.float32),
      w.astype(jnp.float32), b.reshape(Cout, 1).astype(jnp.float32))


# ------------------------------ conv helpers ---------------------------------

def _tap_stack_3x3x3(x):
    """x: (C, B, D, H, W) -> (27*C, B*D*H*W) with replicate ('edge') padding.

    TODO(synk): for large volumes the 27x tap slab should be built inside the
    kernel (shifted accumulating matmuls) to avoid the HBM blowup.
    """
    C, B, D, H, W = x.shape
    xp = jnp.pad(x, ((0, 0), (0, 0), (1, 1), (1, 1), (1, 1)), mode="edge")
    taps = []
    for kd in range(3):
        for kh in range(3):
            for kw in range(3):
                taps.append(
                    jax.lax.slice(xp, (0, 0, kd, kh, kw),
                                  (C, B, kd + D, kh + H, kw + W)
                                  ).reshape(C, B * D * H * W))
    return jnp.concatenate(taps, axis=0)


def conv3d_k3(x, w, b, act):
    """Conv3d(kernel=3, stride=1, pad=1, padding_mode='replicate') + act.

    x: (Cin, B, D, H, W); w: (Cout, Cin, 3, 3, 3) -> (Cout, B*D*H*W)."""
    Cin = x.shape[0]
    Cout = w.shape[0]
    k = _tap_stack_3x3x3(x)                                       # (27*Cin, BN)
    w_mat = jnp.transpose(w, (0, 2, 3, 4, 1)).reshape(Cout, 27 * Cin)
    return pallas_conv_matmul(k, w_mat, b, act)


def inception_block(x2d, spatial, p, act, stem=None):
    """Conv3DInceptionBlock.forward (residual=False) in (C, B*N) layout.

    x2d:  (Cin, B*N) activation slab (ignored when `stem` is provided).
    stem: optional precomputed fused-stem output (upsample+stem fusion path).
    """
    D, H, W = spatial
    cs2 = p["cs2"]
    if stem is None:
        # Fused 1x1 stems: _1x1conv || _1x1conv_a || _1x1conv_b in ONE matmul.
        stem = pallas_conv_matmul(x2d, p["stem_w"], p["stem_b"], act)
    BN = stem.shape[1]
    B = BN // (D * H * W)
    y1 = stem[:cs2]                                                # _1x1conv
    a = stem[cs2:cs2 + 32].reshape(32, B, D, H, W)                 # _1x1conv_a
    bb = stem[cs2 + 32:].reshape(32, B, D, H, W)                   # _1x1conv_b
    y2 = conv3d_k3(a, p["w_3x3"], p["b_3x3"], act)                 # _3x3conv
    t = conv3d_k3(bb, p["w_5a"], p["b_5a"], act)                   # _5x5..._a
    t = t.reshape(32, B, D, H, W)
    y3 = conv3d_k3(t, p["w_5b"], p["b_5b"], act)                   # _5x5..._b
    return jnp.concatenate([y1, y2, y3], axis=0)


# ---------------------- trilinear upsample (matrix form) ---------------------

def _linear_resize_matrix(in_size, out_size):
    """PyTorch Upsample(mode='*linear', align_corners=False) 1-D weights."""
    m = np.zeros((out_size, in_size), np.float32)
    scale = in_size / out_size
    for i in range(out_size):
        src = max((i + 0.5) * scale - 0.5, 0.0)
        i0 = min(int(np.floor(src)), in_size - 1)
        i1 = min(i0 + 1, in_size - 1)
        frac = src - i0
        m[i, i0] += 1.0 - frac
        m[i, i1] += frac
    return m


def trilinear_upsample_matrices(d, h, w, scale_factor):
    do, ho, wo = d * scale_factor, h * scale_factor, w * scale_factor
    md = _linear_resize_matrix(d, do)
    mh = _linear_resize_matrix(h, ho)
    mw = _linear_resize_matrix(w, wo)
    u_vox = np.kron(np.kron(md, mh), mw)          # (do*ho*wo, d*h*w)
    one_d = (jnp.asarray(md), jnp.asarray(mh), jnp.asarray(mw))
    return jnp.asarray(u_vox), one_d, (do, ho, wo)


# ------------------------------- full forward --------------------------------

def conv3d_inception_upsample_forward(params, x):
    """x: (B, Cin, D, H, W) -> (B, Cout, D*s, H*s, W*s)."""
    act = params["activation"]
    B, Cin, D, H, W = x.shape
    # canonical channel-first 2-D slab: channels on sublanes, B*voxels on lanes
    x2d = jnp.transpose(x, (1, 0, 2, 3, 4)).reshape(Cin, B * D * H * W)

    y = inception_block(x2d, (D, H, W), params["block1"], act)

    if params["scale_factor"] > 1:
        u_vox, (Do, Ho, Wo) = params["upsample"]
        # Batch-preserving (block-diagonal) interpolation matrix, transposed.
        # TODO(synk): for large batch/volume switch to a separable per-axis
        # resize instead of the dense Kronecker matrix.
        ut = jnp.kron(jnp.eye(B, dtype=jnp.float32), u_vox).T   # (B*Nin, B*Nout)
        p2 = params["block2"]
        stem2 = pallas_upsample_stem(y, ut, p2["stem_w"], p2["stem_b"], act)
        out2d = inception_block(None, (Do, Ho, Wo), p2, act, stem=stem2)
        D, H, W = Do, Ho, Wo
    else:
        out2d = inception_block(y, (D, H, W), params["block2"], act)

    Cout = out2d.shape[0]
    out = out2d.reshape(Cout, B, D, H, W)
    return jnp.transpose(out, (1, 0, 2, 3, 4))


# --------------------------- pure-XLA reference -------------------------------

def reference_forward(params, x):
    """Reference using lax conv + separable trilinear resize (no Pallas)."""
    act = params["activation"]
    hp = jax.lax.Precision.HIGHEST

    def conv1x1(x, w, b):
        y = jnp.einsum("oc,bcdhw->bodhw", w, x, precision=hp)
        return _apply_act(y + b[None, :, None, None, None], act)

    def conv3(x, w, b):
        xp = jnp.pad(x, ((0, 0), (0, 0), (1, 1), (1, 1), (1, 1)), mode="edge")
        y = jax.lax.conv_general_dilated(
            xp, w, window_strides=(1, 1, 1), padding="VALID",
            dimension_numbers=("NCDHW", "OIDHW", "NCDHW"), precision=hp)
        return _apply_act(y + b[None, :, None, None, None], act)

    def block(x, p):
        cs2 = p["cs2"]
        ws, bs = p["stem_w"], p["stem_b"]
        y1 = conv1x1(x, ws[:cs2], bs[:cs2])
        a = conv1x1(x, ws[cs2:cs2 + 32], bs[cs2:cs2 + 32])
        bbx = conv1x1(x, ws[cs2 + 32:], bs[cs2 + 32:])
        y2 = conv3(a, p["w_3x3"], p["b_3x3"])
        y3 = conv3(conv3(bbx, p["w_5a"], p["b_5a"]), p["w_5b"], p["b_5b"])
        return jnp.concatenate([y1, y2, y3], axis=1)

    x = block(x, params["block1"])
    if params["scale_factor"] > 1:
        md, mh, mw = params["upsample_1d"]
        x = jnp.einsum("pd,bcdhw->bcphw", md, x, precision=hp)
        x = jnp.einsum("qh,bcphw->bcpqw", mh, x, precision=hp)
        x = jnp.einsum("rw,bcpqw->bcpqr", mw, x, precision=hp)
    return block(x, params["block2"])


# ----------------------------- parameter creation ----------------------------

def init_params(key, in_channels, out_channels, spatial, scale_factor,
                activation=None):
    assert out_channels % 4 == 0
    act = "none" if activation is None else activation

    keys = [key]

    def next_key():
        keys[0], k = jax.random.split(keys[0])
        return k

    def conv_w(cout, cin, ks):
        fan_in = cin * ks ** 3
        fan_out = cout * ks ** 3
        if act in ("relu", "lrelu"):
            a = LRELU_SLOPE if act == "lrelu" else 0.0
            gain = float(np.sqrt(2.0 / (1.0 + a * a)))
            lim = gain * float(np.sqrt(3.0 / fan_in))                 # kaiming_uniform
        else:
            gain = 5.0 / 3.0 if act == "tanh" else 1.0
            lim = gain * float(np.sqrt(6.0 / (fan_in + fan_out)))     # xavier_uniform
        shape = (cout, cin) if ks == 1 else (cout, cin, ks, ks, ks)
        return jax.random.uniform(next_key(), shape, jnp.float32, -lim, lim)

    def block(cin, cout):
        cs = cout // 4
        latent = 32
        stem_w = jnp.concatenate(
            [conv_w(cs * 2, cin, 1),        # _1x1conv
             conv_w(latent, cin, 1),        # _1x1conv_a
             conv_w(latent, cin, 1)],       # _1x1conv_b
            axis=0)
        return {
            "cs2": cs * 2,
            "stem_w": stem_w,
            "stem_b": jnp.zeros((cs * 2 + 2 * latent,), jnp.float32),
            "w_3x3": conv_w(cs, latent, 3),
            "b_3x3": jnp.zeros((cs,), jnp.float32),
            "w_5a": conv_w(latent, latent, 3),
            "b_5a": jnp.zeros((latent,), jnp.float32),
            "w_5b": conv_w(cs, latent, 3),
            "b_5b": jnp.zeros((cs,), jnp.float32),
        }

    d, h, w = spatial
    params = {
        "activation": act,
        "scale_factor": scale_factor,
        "block1": block(in_channels, out_channels),
        "block2": block(out_channels, out_channels),
    }
    if scale_factor > 1:
        u_vox, one_d, out_sp = trilinear_upsample_matrices(d, h, w, scale_factor)
        params["upsample"] = (u_vox, out_sp)
        params["upsample_1d"] = one_d
    return params


# ---------------------------------- main --------------------------------------

if __name__ == "__main__":
    root = jax.random.PRNGKey(0)

    # ---- config 1: scale_factor=2, relu (exercises the fused upsample path)
    B, in_channels, out_channels = 2, 4, 16
    D = H = W = 4
    scale_factor = 2
    k_param, k_x, root = jax.random.split(root, 3)
    params = init_params(k_param, in_channels, out_channels, (D, H, W),
                         scale_factor, "relu")
    x = jax.random.normal(k_x, (B, in_channels, D, H, W), jnp.float32)

    fwd = jax.jit(lambda inp: conv3d_inception_upsample_forward(params, inp))
    out = jax.block_until_ready(fwd(x))
    assert out.shape == (B, out_channels, D * scale_factor, H * scale_factor,
                         W * scale_factor), out.shape
    ref = jax.block_until_ready(
        jax.jit(lambda inp: reference_forward(params, inp))(x))
    err = float(jnp.max(jnp.abs(out - ref)))
    assert err < 2e-3, err
    assert bool(jnp.all(jnp.isfinite(out)))

    # ---- config 2: scale_factor=1, no activation (module defaults path)
    k_param2, k_x2, root = jax.random.split(root, 3)
    params2 = init_params(k_param2, 8, 8, (D, H, W), 1, None)
    x2 = jax.random.normal(k_x2, (B, 8, D, H, W), jnp.float32)
    out2 = jax.block_until_ready(
        jax.jit(lambda inp: conv3d_inception_upsample_forward(params2, inp))(x2))
    assert out2.shape == (B, 8, D, H, W), out2.shape
    ref2 = jax.block_until_ready(
        jax.jit(lambda inp: reference_forward(params2, inp))(x2))
    err2 = float(jnp.max(jnp.abs(out2 - ref2)))
    assert err2 < 2e-3, err2
    assert bool(jnp.all(jnp.isfinite(out2)))

    print("KERNEL_OK")
</pallas_src>

<mosaic_0001>
module attributes {stable_mosaic.version = 11 : i64} {
  func.func @_conv_mm_kernel(%arg0: i32, %arg1: memref<4x128xf32, #tpu.memory_space<vmem>>, %arg2: memref<72x4xf32, #tpu.memory_space<vmem>>, %arg3: memref<72x1xf32, #tpu.memory_space<vmem>>, %arg4: memref<72x128xf32, #tpu.memory_space<vmem>>) attributes {dimension_semantics = [#tpu.dimension_semantics<parallel>], iteration_bounds = array<i64: 1>, scalar_prefetch = 0 : i64, scratch_operands = 0 : i64, tpu.core_type = #tpu.core_type<tc>, window_params = [{transform_indices = @transform_0, window_bounds = array<i64: 4, 128>}, {pipeline_mode = #tpu.pipeline_mode<synchronous>, transform_indices = @transform_1, window_bounds = array<i64: 72, 4>}, {pipeline_mode = #tpu.pipeline_mode<synchronous>, transform_indices = @transform_2, window_bounds = array<i64: 72, 1>}, {transform_indices = @transform_3, window_bounds = array<i64: 72, 128>}]} {
    %c0 = arith.constant 0 : index
    %c0_0 = arith.constant 0 : index
    %0 = vector.load %arg2[%c0, %c0_0] : memref<72x4xf32, #tpu.memory_space<vmem>>, vector<72x4xf32>
    %c0_1 = arith.constant 0 : index
    %c0_2 = arith.constant 0 : index
    %1 = vector.load %arg1[%c0_1, %c0_2] : memref<4x128xf32, #tpu.memory_space<vmem>>, vector<4x128xf32>
    %cst = arith.constant dense<0.000000e+00> : vector<72x128xf32>
    %2 = tpu.matmul %0, %1, %cst {dimension_numbers = #tpu.dot_dimension_numbers<[1], [0], [0], [1], [0, 0, 1, 1], [], []>} : vector<72x4xf32>, vector<4x128xf32>, vector<72x128xf32> -> vector<72x128xf32>
    %c0_3 = arith.constant 0 : index
    %c0_4 = arith.constant 0 : index
    %3 = vector.load %arg3[%c0_3, %c0_4] : memref<72x1xf32, #tpu.memory_space<vmem>>, vector<72x1xf32>
    %4 = vector.broadcast %3 : vector<72x1xf32> to vector<72x128xf32>
    %5 = arith.addf %2, %4 : vector<72x128xf32>
    %cst_5 = arith.constant 0.000000e+00 : f32
    %6 = vector.broadcast %cst_5 : f32 to vector<72x128xf32>
    %7 = arith.maximumf %5, %6 : vector<72x128xf32>
    %c0_6 = arith.constant 0 : index
    %c0_7 = arith.constant 0 : index
    %8 = vector.load %arg4[%c0_6, %c0_7] : memref<72x128xf32, #tpu.memory_space<vmem>>, vector<72x128xf32>
    tpu.vector_store %arg4[%c0_6, %c0_7], %7 {strides = array<i32>} : memref<72x128xf32, #tpu.memory_space<vmem>>, vector<72x128xf32>,
    return
  }
  func.func @transform_0(%arg0: i32) -> (i32, i32) {
    %c0_i32 = arith.constant 0 : i32
    %c0_i32_0 = arith.constant 0 : i32
    return %c0_i32, %arg0 : i32, i32
  }
  func.func @transform_1(%arg0: i32) -> (i32, i32) {
    %c0_i32 = arith.constant 0 : i32
    %c0_i32_0 = arith.constant 0 : i32
    %c0_i32_1 = arith.constant 0 : i32
    return %c0_i32, %c0_i32_0 : i32, i32
  }
  func.func @transform_2(%arg0: i32) -> (i32, i32) {
    %c0_i32 = arith.constant 0 : i32
    %c0_i32_0 = arith.constant 0 : i32
    %c0_i32_1 = arith.constant 0 : i32
    return %c0_i32, %c0_i32_0 : i32, i32
  }
  func.func @transform_3(%arg0: i32) -> (i32, i32) {
    %c0_i32 = arith.constant 0 : i32
    %c0_i32_0 = arith.constant 0 : i32
    return %c0_i32, %arg0 : i32, i32
  }
}

module attributes {stable_mosaic.version = 11 : i64} {
  func.func @_conv_mm_kernel(%arg0: i32, %arg1: memref<864x128xf32, #tpu.memory_space<vmem>>, %arg2: memref<4x864xf32, #tpu.memory_space<vmem>>, %arg3: memref<4x1xf32, #tpu.memory_space<vmem>>, %arg4: memref<4x128xf32, #tpu.memory_space<vmem>>) attributes {dimension_semantics = [#tpu.dimension_semantics<parallel>], iteration_bounds = array<i64: 1>, scalar_prefetch = 0 : i64, scratch_operands = 0 : i64, tpu.core_type = #tpu.core_type<tc>, window_params = [{transform_indices = @transform_0, window_bounds = array<i64: 864, 128>}, {pipeline_mode = #tpu.pipeline_mode<synchronous>, transform_indices = @transform_1, window_bounds = array<i64: 4, 864>}, {pipeline_mode = #tpu.pipeline_mode<synchronous>, transform_indices = @transform_2, window_bounds = array<i64: 4, 1>}, {transform_indices = @transform_3, window_bounds = array<i64: 4, 128>}]} {
    %c0 = arith.constant 0 : index
    %c0_0 = arith.constant 0 : index
    %0 = vector.load %arg2[%c0, %c0_0] : memref<4x864xf32, #tpu.memory_space<vmem>>, vector<4x864xf32>
    %c0_1 = arith.constant 0 : index
    %c0_2 = arith.constant 0 : index
    %1 = vector.load %arg1[%c0_1, %c0_2] : memref<864x128xf32, #tpu.memory_space<vmem>>, vector<864x128xf32>
    %cst = arith.constant dense<0.000000e+00> : vector<4x128xf32>
    %2 = tpu.matmul %0, %1, %cst {dimension_numbers = #tpu.dot_dimension_numbers<[1], [0], [0], [1], [0, 0, 1, 1], [], []>} : vector<4x864xf32>, vector<864x128xf32>, vector<4x128xf32> -> vector<4x128xf32>
    %c0_3 = arith.constant 0 : index
    %c0_4 = arith.constant 0 : index
    %3 = vector.load %arg3[%c0_3, %c0_4] : memref<4x1xf32, #tpu.memory_space<vmem>>, vector<4x1xf32>
    %4 = vector.broadcast %3 : vector<4x1xf32> to vector<4x128xf32>
    %5 = arith.addf %2, %4 : vector<4x128xf32>
    %cst_5 = arith.constant 0.000000e+00 : f32
    %6 = vector.broadcast %cst_5 : f32 to vector<4x128xf32>
    %7 = arith.maximumf %5, %6 : vector<4x128xf32>
    %c0_6 = arith.constant 0 : index
    %c0_7 = arith.constant 0 : index
    %8 = vector.load %arg4[%c0_6, %c0_7] : memref<4x128xf32, #tpu.memory_space<vmem>>, vector<4x128xf32>
    tpu.vector_store %arg4[%c0_6, %c0_7], %7 {strides = array<i32>} : memref<4x128xf32, #tpu.memory_space<vmem>>, vector<4x128xf32>,
    return
  }
  func.func @transform_0(%arg0: i32) -> (i32, i32) {
    %c0_i32 = arith.constant 0 : i32
    %c0_i32_0 = arith.constant 0 : i32
    return %c0_i32, %arg0 : i32, i32
  }
  func.func @transform_1(%arg0: i32) -> (i32, i32) {
    %c0_i32 = arith.constant 0 : i32
    %c0_i32_0 = arith.constant 0 : i32
    %c0_i32_1 = arith.constant 0 : i32
    return %c0_i32, %c0_i32_0 : i32, i32
  }
  func.func @transform_2(%arg0: i32) -> (i32, i32) {
    %c0_i32 = arith.constant 0 : i32
    %c0_i32_0 = arith.constant 0 : i32
    %c0_i32_1 = arith.constant 0 : i32
    return %c0_i32, %c0_i32_0 : i32, i32
  }
  func.func @transform_3(%arg0: i32) -> (i32, i32) {
    %c0_i32 = arith.constant 0 : i32
    %c0_i32_0 = arith.constant 0 : i32
    return %c0_i32, %arg0 : i32, i32
  }
}

module attributes {stable_mosaic.version = 11 : i64} {
  func.func @_conv_mm_kernel(%arg0: i32, %arg1: memref<864x128xf32, #tpu.memory_space<vmem>>, %arg2: memref<32x864xf32, #tpu.memory_space<vmem>>, %arg3: memref<32x1xf32, #tpu.memory_space<vmem>>, %arg4: memref<32x128xf32, #tpu.memory_space<vmem>>) attributes {dimension_semantics = [#tpu.dimension_semantics<parallel>], iteration_bounds = array<i64: 1>, scalar_prefetch = 0 : i64, scratch_operands = 0 : i64, tpu.core_type = #tpu.core_type<tc>, window_params = [{transform_indices = @transform_0, window_bounds = array<i64: 864, 128>}, {pipeline_mode = #tpu.pipeline_mode<synchronous>, transform_indices = @transform_1, window_bounds = array<i64: 32, 864>}, {pipeline_mode = #tpu.pipeline_mode<synchronous>, transform_indices = @transform_2, window_bounds = array<i64: 32, 1>}, {transform_indices = @transform_3, window_bounds = array<i64: 32, 128>}]} {
    %c0 = arith.constant 0 : index
    %c0_0 = arith.constant 0 : index
    %0 = vector.load %arg2[%c0, %c0_0] : memref<32x864xf32, #tpu.memory_space<vmem>>, vector<32x864xf32>
    %c0_1 = arith.constant 0 : index
    %c0_2 = arith.constant 0 : index
    %1 = vector.load %arg1[%c0_1, %c0_2] : memref<864x128xf32, #tpu.memory_space<vmem>>, vector<864x128xf32>
    %cst = arith.constant dense<0.000000e+00> : vector<32x128xf32>
    %2 = tpu.matmul %0, %1, %cst {dimension_numbers = #tpu.dot_dimension_numbers<[1], [0], [0], [1], [0, 0, 1, 1], [], []>} : vector<32x864xf32>, vector<864x128xf32>, vector<32x128xf32> -> vector<32x128xf32>
    %c0_3 = arith.constant 0 : index
    %c0_4 = arith.constant 0 : index
    %3 = vector.load %arg3[%c0_3, %c0_4] : memref<32x1xf32, #tpu.memory_space<vmem>>, vector<32x1xf32>
    %4 = vector.broadcast %3 : vector<32x1xf32> to vector<32x128xf32>
    %5 = arith.addf %2, %4 : vector<32x128xf32>
    %cst_5 = arith.constant 0.000000e+00 : f32
    %6 = vector.broadcast %cst_5 : f32 to vector<32x128xf32>
    %7 = arith.maximumf %5, %6 : vector<32x128xf32>
    %c0_6 = arith.constant 0 : index
    %c0_7 = arith.constant 0 : index
    %8 = vector.load %arg4[%c0_6, %c0_7] : memref<32x128xf32, #tpu.memory_space<vmem>>, vector<32x128xf32>
    tpu.vector_store %arg4[%c0_6, %c0_7], %7 {strides = array<i32>} : memref<32x128xf32, #tpu.memory_space<vmem>>, vector<32x128xf32>,
    return
  }
  func.func @transform_0(%arg0: i32) -> (i32, i32) {
    %c0_i32 = arith.constant 0 : i32
    %c0_i32_0 = arith.constant 0 : i32
    return %c0_i32, %arg0 : i32, i32
  }
  func.func @transform_1(%arg0: i32) -> (i32, i32) {
    %c0_i32 = arith.constant 0 : i32
    %c0_i32_0 = arith.constant 0 : i32
    %c0_i32_1 = arith.constant 0 : i32
    return %c0_i32, %c0_i32_0 : i32, i32
  }
  func.func @transform_2(%arg0: i32) -> (i32, i32) {
    %c0_i32 = arith.constant 0 : i32
    %c0_i32_0 = arith.constant 0 : i32
    %c0_i32_1 = arith.constant 0 : i32
    return %c0_i32, %c0_i32_0 : i32, i32
  }
  func.func @transform_3(%arg0: i32) -> (i32, i32) {
    %c0_i32 = arith.constant 0 : i32
    %c0_i32_0 = arith.constant 0 : i32
    return %c0_i32, %arg0 : i32, i32
  }
}

module attributes {stable_mosaic.version = 11 : i64} {
  func.func @_upsample_stem_kernel(%arg0: i32, %arg1: memref<16x128xf32, #tpu.memory_space<vmem>>, %arg2: memref<128x1024xf32, #tpu.memory_space<vmem>>, %arg3: memref<72x16xf32, #tpu.memory_space<vmem>>, %arg4: memref<72x1xf32, #tpu.memory_space<vmem>>, %arg5: memref<72x1024xf32, #tpu.memory_space<vmem>>) attributes {dimension_semantics = [#tpu.dimension_semantics<parallel>], iteration_bounds = array<i64: 1>, scalar_prefetch = 0 : i64, scratch_operands = 0 : i64, tpu.core_type = #tpu.core_type<tc>, window_params = [{pipeline_mode = #tpu.pipeline_mode<synchronous>, transform_indices = @transform_0, window_bounds = array<i64: 16, 128>}, {transform_indices = @transform_1, window_bounds = array<i64: 128, 1024>}, {pipeline_mode = #tpu.pipeline_mode<synchronous>, transform_indices = @transform_2, window_bounds = array<i64: 72, 16>}, {pipeline_mode = #tpu.pipeline_mode<synchronous>, transform_indices = @transform_3, window_bounds = array<i64: 72, 1>}, {transform_indices = @transform_4, window_bounds = array<i64: 72, 1024>}]} {
    %c0 = arith.constant 0 : index
    %c0_0 = arith.constant 0 : index
    %0 = vector.load %arg1[%c0, %c0_0] : memref<16x128xf32, #tpu.memory_space<vmem>>, vector<16x128xf32>
    %c0_1 = arith.constant 0 : index
    %c0_2 = arith.constant 0 : index
    %1 = vector.load %arg2[%c0_1, %c0_2] : memref<128x1024xf32, #tpu.memory_space<vmem>>, vector<128x1024xf32>
    %cst = arith.constant dense<0.000000e+00> : vector<16x1024xf32>
    %2 = tpu.matmul %0, %1, %cst {dimension_numbers = #tpu.dot_dimension_numbers<[1], [0], [0], [1], [0, 0, 1, 1], [], []>} : vector<16x128xf32>, vector<128x1024xf32>, vector<16x1024xf32> -> vector<16x1024xf32>
    %c0_3 = arith.constant 0 : index
    %c0_4 = arith.constant 0 : index
    %3 = vector.load %arg3[%c0_3, %c0_4] : memref<72x16xf32, #tpu.memory_space<vmem>>, vector<72x16xf32>
    %cst_5 = arith.constant dense<0.000000e+00> : vector<72x1024xf32>
    %4 = tpu.matmul %3, %2, %cst_5 {dimension_numbers = #tpu.dot_dimension_numbers<[1], [0], [0], [1], [0, 0, 1, 1], [], []>} : vector<72x16xf32>, vector<16x1024xf32>, vector<72x1024xf32> -> vector<72x1024xf32>
    %c0_6 = arith.constant 0 : index
    %c0_7 = arith.constant 0 : index
    %5 = vector.load %arg4[%c0_6, %c0_7] : memref<72x1xf32, #tpu.memory_space<vmem>>, vector<72x1xf32>
    %6 = vector.broadcast %5 : vector<72x1xf32> to vector<72x1024xf32>
    %7 = arith.addf %4, %6 : vector<72x1024xf32>
    %cst_8 = arith.constant 0.000000e+00 : f32
    %8 = vector.broadcast %cst_8 : f32 to vector<72x1024xf32>
    %9 = arith.maximumf %7, %8 : vector<72x1024xf32>
    %c0_9 = arith.constant 0 : index
    %c0_10 = arith.constant 0 : index
    %10 = vector.load %arg5[%c0_9, %c0_10] : memref<72x1024xf32, #tpu.memory_space<vmem>>, vector<72x1024xf32>
    tpu.vector_store %arg5[%c0_9, %c0_10], %9 {strides = array<i32>} : memref<72x1024xf32, #tpu.memory_space<vmem>>, vector<72x1024xf32>,
    return
  }
  func.func @transform_0(%arg0: i32) -> (i32, i32) {
    %c0_i32 = arith.constant 0 : i32
    %c0_i32_0 = arith.constant 0 : i32
    %c0_i32_1 = arith.constant 0 : i32
    return %c0_i32, %c0_i32_0 : i32, i32
  }
  func.func @transform_1(%arg0: i32) -> (i32, i32) {
    %c0_i32 = arith.constant 0 : i32
    %c0_i32_0 = arith.constant 0 : i32
    return %c0_i32, %arg0 : i32, i32
  }
  func.func @transform_2(%arg0: i32) -> (i32, i32) {
    %c0_i32 = arith.constant 0 : i32
    %c0_i32_0 = arith.constant 0 : i32
    %c0_i32_1 = arith.constant 0 : i32
    return %c0_i32, %c0_i32_0 : i32, i32
  }
  func.func @transform_3(%arg0: i32) -> (i32, i32) {
    %c0_i32 = arith.constant 0 : i32
    %c0_i32_0 = arith.constant 0 : i32
    %c0_i32_1 = arith.constant 0 : i32
    return %c0_i32, %c0_i32_0 : i32, i32
  }
  func.func @transform_4(%arg0: i32) -> (i32, i32) {
    %c0_i32 = arith.constant 0 : i32
    %c0_i32_0 = arith.constant 0 : i32
    return %c0_i32, %arg0 : i32, i32
  }
}

module attributes {stable_mosaic.version = 11 : i64} {
  func.func @_conv_mm_kernel(%arg0: i32, %arg1: memref<864x1024xf32, #tpu.memory_space<vmem>>, %arg2: memref<32x864xf32, #tpu.memory_space<vmem>>, %arg3: memref<32x1xf32, #tpu.memory_space<vmem>>, %arg4: memref<32x1024xf32, #tpu.memory_space<vmem>>) attributes {dimension_semantics = [#tpu.dimension_semantics<parallel>], iteration_bounds = array<i64: 1>, scalar_prefetch = 0 : i64, scratch_operands = 0 : i64, tpu.core_type = #tpu.core_type<tc>, window_params = [{transform_indices = @transform_0, window_bounds = array<i64: 864, 1024>}, {pipeline_mode = #tpu.pipeline_mode<synchronous>, transform_indices = @transform_1, window_bounds = array<i64: 32, 864>}, {pipeline_mode = #tpu.pipeline_mode<synchronous>, transform_indices = @transform_2, window_bounds = array<i64: 32, 1>}, {transform_indices = @transform_3, window_bounds = array<i64: 32, 1024>}]} {
    %c0 = arith.constant 0 : index
    %c0_0 = arith.constant 0 : index
    %0 = vector.load %arg2[%c0, %c0_0] : memref<32x864xf32, #tpu.memory_space<vmem>>, vector<32x864xf32>
    %c0_1 = arith.constant 0 : index
    %c0_2 = arith.constant 0 : index
    %1 = vector.load %arg1[%c0_1, %c0_2] : memref<864x1024xf32, #tpu.memory_space<vmem>>, vector<864x1024xf32>
    %cst = arith.constant dense<0.000000e+00> : vector<32x1024xf32>
    %2 = tpu.matmul %0, %1, %cst {dimension_numbers = #tpu.dot_dimension_numbers<[1], [0], [0], [1], [0, 0, 1, 1], [], []>} : vector<32x864xf32>, vector<864x1024xf32>, vector<32x1024xf32> -> vector<32x1024xf32>
    %c0_3 = arith.constant 0 : index
    %c0_4 = arith.constant 0 : index
    %3 = vector.load %arg3[%c0_3, %c0_4] : memref<32x1xf32, #tpu.memory_space<vmem>>, vector<32x1xf32>
    %4 = vector.broadcast %3 : vector<32x1xf32> to vector<32x1024xf32>
    %5 = arith.addf %2, %4 : vector<32x1024xf32>
    %cst_5 = arith.constant 0.000000e+00 : f32
    %6 = vector.broadcast %cst_5 : f32 to vector<32x1024xf32>
    %7 = arith.maximumf %5, %6 : vector<32x1024xf32>
    %c0_6 = arith.constant 0 : index
    %c0_7 = arith.constant 0 : index
    %8 = vector.load %arg4[%c0_6, %c0_7] : memref<32x1024xf32, #tpu.memory_space<vmem>>, vector<32x1024xf32>
    tpu.vector_store %arg4[%c0_6, %c0_7], %7 {strides = array<i32>} : memref<32x1024xf32, #tpu.memory_space<vmem>>, vector<32x1024xf32>,
    return
  }
  func.func @transform_0(%arg0: i32) -> (i32, i32) {
    %c0_i32 = arith.constant 0 : i32
    %c0_i32_0 = arith.constant 0 : i32
    return %c0_i32, %arg0 : i32, i32
  }
  func.func @transform_1(%arg0: i32) -> (i32, i32) {
    %c0_i32 = arith.constant 0 : i32
    %c0_i32_0 = arith.constant 0 : i32
    %c0_i32_1 = arith.constant 0 : i32
    return %c0_i32, %c0_i32_0 : i32, i32
  }
  func.func @transform_2(%arg0: i32) -> (i32, i32) {
    %c0_i32 = arith.constant 0 : i32
    %c0_i32_0 = arith.constant 0 : i32
    %c0_i32_1 = arith.constant 0 : i32
    return %c0_i32, %c0_i32_0 : i32, i32
  }
  func.func @transform_3(%arg0: i32) -> (i32, i32) {
    %c0_i32 = arith.constant 0 : i32
    %c0_i32_0 = arith.constant 0 : i32
    return %c0_i32, %arg0 : i32, i32
  }
}

module attributes {stable_mosaic.version = 11 : i64} {
  func.func @_conv_mm_kernel(%arg0: i32, %arg1: memref<864x1024xf32, #tpu.memory_space<vmem>>, %arg2: memref<4x864xf32, #tpu.memory_space<vmem>>, %arg3: memref<4x1xf32, #tpu.memory_space<vmem>>, %arg4: memref<4x1024xf32, #tpu.memory_space<vmem>>) attributes {dimension_semantics = [#tpu.dimension_semantics<parallel>], iteration_bounds = array<i64: 1>, scalar_prefetch = 0 : i64, scratch_operands = 0 : i64, tpu.core_type = #tpu.core_type<tc>, window_params = [{transform_indices = @transform_0, window_bounds = array<i64: 864, 1024>}, {pipeline_mode = #tpu.pipeline_mode<synchronous>, transform_indices = @transform_1, window_bounds = array<i64: 4, 864>}, {pipeline_mode = #tpu.pipeline_mode<synchronous>, transform_indices = @transform_2, window_bounds = array<i64: 4, 1>}, {transform_indices = @transform_3, window_bounds = array<i64: 4, 1024>}]} {
    %c0 = arith.constant 0 : index
    %c0_0 = arith.constant 0 : index
    %0 = vector.load %arg2[%c0, %c0_0] : memref<4x864xf32, #tpu.memory_space<vmem>>, vector<4x864xf32>
    %c0_1 = arith.constant 0 : index
    %c0_2 = arith.constant 0 : index
    %1 = vector.load %arg1[%c0_1, %c0_2] : memref<864x1024xf32, #tpu.memory_space<vmem>>, vector<864x1024xf32>
    %cst = arith.constant dense<0.000000e+00> : vector<4x1024xf32>
    %2 = tpu.matmul %0, %1, %cst {dimension_numbers = #tpu.dot_dimension_numbers<[1], [0], [0], [1], [0, 0, 1, 1], [], []>} : vector<4x864xf32>, vector<864x1024xf32>, vector<4x1024xf32> -> vector<4x1024xf32>
    %c0_3 = arith.constant 0 : index
    %c0_4 = arith.constant 0 : index
    %3 = vector.load %arg3[%c0_3, %c0_4] : memref<4x1xf32, #tpu.memory_space<vmem>>, vector<4x1xf32>
    %4 = vector.broadcast %3 : vector<4x1xf32> to vector<4x1024xf32>
    %5 = arith.addf %2, %4 : vector<4x1024xf32>
    %cst_5 = arith.constant 0.000000e+00 : f32
    %6 = vector.broadcast %cst_5 : f32 to vector<4x1024xf32>
    %7 = arith.maximumf %5, %6 : vector<4x1024xf32>
    %c0_6 = arith.constant 0 : index
    %c0_7 = arith.constant 0 : index
    %8 = vector.load %arg4[%c0_6, %c0_7] : memref<4x1024xf32, #tpu.memory_space<vmem>>, vector<4x1024xf32>
    tpu.vector_store %arg4[%c0_6, %c0_7], %7 {strides = array<i32>} : memref<4x1024xf32, #tpu.memory_space<vmem>>, vector<4x1024xf32>,
    return
  }
  func.func @transform_0(%arg0: i32) -> (i32, i32) {
    %c0_i32 = arith.constant 0 : i32
    %c0_i32_0 = arith.constant 0 : i32
    return %c0_i32, %arg0 : i32, i32
  }
  func.func @transform_1(%arg0: i32) -> (i32, i32) {
    %c0_i32 = arith.constant 0 : i32
    %c0_i32_0 = arith.constant 0 : i32
    %c0_i32_1 = arith.constant 0 : i32
    return %c0_i32, %c0_i32_0 : i32, i32
  }
  func.func @transform_2(%arg0: i32) -> (i32, i32) {
    %c0_i32 = arith.constant 0 : i32
    %c0_i32_0 = arith.constant 0 : i32
    %c0_i32_1 = arith.constant 0 : i32
    return %c0_i32, %c0_i32_0 : i32, i32
  }
  func.func @transform_3(%arg0: i32) -> (i32, i32) {
    %c0_i32 = arith.constant 0 : i32
    %c0_i32_0 = arith.constant 0 : i32
    return %c0_i32, %arg0 : i32, i32
  }
}

</mosaic_0001>

<llo_original>
// kernel: _lambda_.8
$region0: #{_lambda_.8}
  #allocation0 [shape = 'u32[]', space=smem, size = 0x4, offset = 0x4, fixed_abs, tag = 'smem constant byte address 0x4 - core index']
  #allocation1 [shape = 'u32[72,128]{1,0:T(1,128)}', space=vmem, size = 0x9000, scoped, tag = 'internal scratch']
  %s0 = inlined_call_operand.vmem [shape: f32[4,128], index: 0, kind: input, shape index: {}]
  %s1 = inlined_call_operand.hbm [shape: f32[72,4], index: 1, kind: input, shape index: {}]
  %s2 = inlined_call_operand.vmem [shape: f32[72,1], index: 2, kind: input, shape index: {}]
  %s3 = inlined_call_operand.vmem [shape: f32[72,128], index: 3, kind: output, shape index: {}]
  %s4 = sld [smem:[#allocation0]]
  $region26: #{_lambda_.8} parent=0
    _
  %s6 = ssub.s32 1, %s4
  %s7 = scalar_select 0, %s6, %s4
  $region1: #{_lambda_.8} parent=0
    #allocation2 [shape = 'u8[36864]{0}', space=vmem, size = 0x9000, scoped, tag = 'input window, operand 1, single buffered']
    #allocation3 [shape = 's32[1]{0}', space=sflag, size = 0x4, scoped, tag = 'scoped memory for _lambda_.8']
    %8 = vsyncpa [#allocation3], 0
    // Predicated region
    $region2: #{_lambda_.8} parent=1 // pred_check
      _
    $region3: #{_lambda_.8} parent=1 // pred_check_branch
      %10 = sbr.rel (0) target = $region5
    $region4: #{_lambda_.8} parent=1 // pred_region
      _
    $region5: #{_lambda_.8} parent=1 // pred_fallthru
      _
    // Predicated region
    $region6: #{_lambda_.8} parent=1 // pred_check
      _
    $region7: #{_lambda_.8} parent=1 // pred_check_branch
      %12 = sbr.rel (0) target = $region9
    $region8: #{_lambda_.8} parent=1 // pred_region
      %14 = vsyncadd [#allocation3], 0
      %s15 = sshll.u32 %s1, 4
      %s16 = int_to_ptr.hbm [resolvable:$true] %s15
      %s17 = sshll.u32 [#allocation2], 4
      %s18 = int_to_ptr.vmem [resolvable:$true] %s17
      %23 = dma.hbm_to_vmem [thread:$0]  %s16, 1152, %s18, [#allocation3], 128, 128, 8
    $region9: #{_lambda_.8} parent=1 // pred_fallthru
      _
    // Predicated region
    $region10: #{_lambda_.8} parent=1 // pred_check
      _
    $region11: #{_lambda_.8} parent=1 // pred_check_branch
      %25 = sbr.rel (0) target = $region13
    $region12: #{_lambda_.8} parent=1 // pred_region
      _
    $region13: #{_lambda_.8} parent=1 // pred_fallthru
      _
    // Predicated region
    $region14: #{_lambda_.8} parent=1 // pred_check
      _
    $region15: #{_lambda_.8} parent=1 // pred_check_branch
      %27 = sbr.rel (0) target = $region17
    $region16: #{_lambda_.8} parent=1 // pred_region
      %29 = dma.done [#allocation3], 1152
    $region17: #{_lambda_.8} parent=1 // pred_fallthru
      _
    %v30 = vld [vmem:[#allocation2] sm:$0xff]
    %v31 = vld [vmem:[#allocation2 + $0x8] sm:$0xff]
    %v32 = vld [vmem:[#allocation2 + $0x10] sm:$0xff]
    %v33 = vld [vmem:[#allocation2 + $0x18] sm:$0xff]
    %v34 = vld [vmem:[#allocation2 + $0x20] sm:$0xff]
    %v35 = vld [vmem:[#allocation2 + $0x28] sm:$0xff]
    %v36 = vld [vmem:[#allocation2 + $0x30] sm:$0xff]
    %v37 = vld [vmem:[#allocation2 + $0x38] sm:$0xff]
    %v38 = vld [vmem:[#allocation2 + $0x40] sm:$0xff]
    %v39 = vld [vmem:[%s0] sm:$0xf]
    %v40 = vld [vmem:[%s2] sm:$0xff]
    %v41 = vld [vmem:[%s2 + $0x8] sm:$0xff]
    %v42 = vld [vmem:[%s2 + $0x10] sm:$0xff]
    %v43 = vld [vmem:[%s2 + $0x18] sm:$0xff]
    %v44 = vld [vmem:[%s2 + $0x20] sm:$0xff]
    %v45 = vld [vmem:[%s2 + $0x28] sm:$0xff]
    %v46 = vld [vmem:[%s2 + $0x30] sm:$0xff]
    %v47 = vld [vmem:[%s2 + $0x38] sm:$0xff]
    %v48 = vld [vmem:[%s2 + $0x40] sm:$0xff]
    %50 = vset.pattern.permute.xlu0 0
    %51 = vperm.xlu0 %50, %v40
    %v52 = vpop.permute.xlu0 %51
    %55 = vset.pattern.permute.xlu0 0
    %56 = vperm.xlu0 %55, %v41
    %v57 = vpop.permute.xlu0 %56
    %60 = vset.pattern.permute.xlu0 0
    %61 = vperm.xlu0 %60, %v42
    %v62 = vpop.permute.xlu0 %61
    %65 = vset.pattern.permute.xlu0 0
    %66 = vperm.xlu0 %65, %v43
    %v67 = vpop.permute.xlu0 %66
    %70 = vset.pattern.permute.xlu0 0
    %71 = vperm.xlu0 %70, %v44
    %v72 = vpop.permute.xlu0 %71
    %75 = vset.pattern.permute.xlu0 0
    %76 = vperm.xlu0 %75, %v45
    %v77 = vpop.permute.xlu0 %76
    %80 = vset.pattern.permute.xlu0 0
    %81 = vperm.xlu0 %80, %v46
    %v82 = vpop.permute.xlu0 %81
    %85 = vset.pattern.permute.xlu0 0
    %86 = vperm.xlu0 %85, %v47
    %v87 = vpop.permute.xlu0 %86
    %90 = vset.pattern.permute.xlu0 0
    %91 = vperm.xlu0 %90, %v48
    %v92 = vpop.permute.xlu0 %91
    %vm94 = vcmask 31744
    %v96 = vsel %vm94, %v30, 0
    %v99 = vsel %vm94, %v31, 0
    %v102 = vsel %vm94, %v32, 0
    %v105 = vsel %vm94, %v33, 0
    %v108 = vsel %vm94, %v34, 0
    %v111 = vsel %vm94, %v35, 0
    %v114 = vsel %vm94, %v36, 0
    %v117 = vsel %vm94, %v37, 0
    %v120 = vsel %vm94, %v38, 0
    %vm122 = vcmask 1043456
    %v124 = vsel %vm122, %v39, 0
    %126 = vmatpush.msra.mxu0 0.0
    %127 = vmatpush.msra.mxu0 0.0
    %128 = vmatpush.msra.mxu0 0.0
    %129 = vmatpush.msra.mxu0 0.0
    %130 = vmatpush.msra.mxu0 0.0
    %131 = vmatpush.msra.mxu0 0.0
    %132 = vmatpush.msra.mxu0 0.0
    %133 = vmatpush.msra.mxu0 0.0
    %134 = vmatpush.msra.mxu0 0.0
    %135 = vmatpush.msra.mxu0 0.0
    %136 = vmatpush.msra.mxu0 0.0
    %137 = vmatpush.msra.mxu0 0.0
    %138 = vmatpush.msra.mxu0 0.0
    %139 = vmatpush.msra.mxu0 0.0
    %140 = vmatpush.msra.mxu0 0.0
    %141 = vmatpush.msra.mxu0 %v124
    %142 = vmatmul.f32.gmra.mxu0 %v96
    %v143 = vpop.f32.mrf.mxu0
    %v144 = vadd.f32 %v52, %v143
    %145 = vmatmul.f32.gmra.mxu0 %v99
    %v146 = vpop.f32.mrf.mxu0
    %v147 = vadd.f32 %v57, %v146
    %148 = vmatmul.f32.gmra.mxu0 %v102
    %v149 = vpop.f32.mrf.mxu0
    %v150 = vadd.f32 %v62, %v149
    %151 = vmatmul.f32.gmra.mxu0 %v105
    %v152 = vpop.f32.mrf.mxu0
    %v153 = vadd.f32 %v67, %v152
    %154 = vmatmul.f32.gmra.mxu0 %v108
    %v155 = vpop.f32.mrf.mxu0
    %v156 = vadd.f32 %v72, %v155
    %157 = vmatmul.f32.gmra.mxu0 %v111
    %v158 = vpop.f32.mrf.mxu0
    %v159 = vadd.f32 %v77, %v158
    %160 = vmatmul.f32.gmra.mxu0 %v114
    %v161 = vpop.f32.mrf.mxu0
    %v162 = vadd.f32 %v82, %v161
    %163 = vmatmul.f32.gmra.mxu0 %v117
    %v164 = vpop.f32.mrf.mxu0
    %v165 = vadd.f32 %v87, %v164
    %166 = vmatmul.f32.gmra.mxu0 %v120
    %v167 = vpop.f32.mrf.mxu0
    %v168 = vadd.f32 %v92, %v167
    %169 = vdwg.mxu0
    %v170 = vmax.f32 %v144, 0.0
    %v171 = vmax.f32 %v147, 0.0
    %v172 = vmax.f32 %v150, 0.0
    %v173 = vmax.f32 %v153, 0.0
    %v174 = vmax.f32 %v156, 0.0
    %v175 = vmax.f32 %v159, 0.0
    %v176 = vmax.f32 %v162, 0.0
    %v177 = vmax.f32 %v165, 0.0
    %v178 = vmax.f32 %v168, 0.0
    %179 = vst [vmem:[%s3] sm:$0xff] %v170
    %180 = vst [vmem:[%s3 + $0x8] sm:$0xff] %v171
    %181 = vst [vmem:[%s3 + $0x10] sm:$0xff] %v172
    %182 = vst [vmem:[%s3 + $0x18] sm:$0xff] %v173
    %183 = vst [vmem:[%s3 + $0x20] sm:$0xff] %v174
    %184 = vst [vmem:[%s3 + $0x28] sm:$0xff] %v175
    %185 = vst [vmem:[%s3 + $0x30] sm:$0xff] %v176
    %186 = vst [vmem:[%s3 + $0x38] sm:$0xff] %v177
    %187 = vst [vmem:[%s3 + $0x40] sm:$0xff] %v178
    // Predicated region
    $region18: #{_lambda_.8} parent=1 // pred_check
      _
    $region19: #{_lambda_.8} parent=1 // pred_check_branch
      %189 = sbr.rel (0) target = $region21
    $region20: #{_lambda_.8} parent=1 // pred_region
      _
    $region21: #{_lambda_.8} parent=1 // pred_fallthru
      _
    // Predicated region
    $region22: #{_lambda_.8} parent=1 // pred_check
      _
    $region23: #{_lambda_.8} parent=1 // pred_check_branch
      %191 = sbr.rel (0) target = $region25
    $region24: #{_lambda_.8} parent=1 // pred_region
      _
    $region25: #{_lambda_.8} parent=1 // pred_fallthru
      _
    %192 = vsyncpa [#allocation3], 1

// kernel: _lambda_.9
$region0: #{_lambda_.9}
  #allocation0 [shape = 'u32[]', space=smem, size = 0x4, offset = 0x4, fixed_abs, tag = 'smem constant byte address 0x4 - core index']
  #allocation1 [shape = 'u32[72,128]{1,0:T(1,128)}', space=vmem, size = 0x9000, scoped, tag = 'internal scratch']
  %s0 = inlined_call_operand.vmem [shape: f32[864,128], index: 0, kind: input, shape index: {}]
  %s1 = inlined_call_operand.vmem [shape: f32[4,864], index: 1, kind: input, shape index: {}]
  %s2 = inlined_call_operand.vmem [shape: f32[4,1], index: 2, kind: input, shape index: {}]
  %s3 = inlined_call_operand.vmem [shape: f32[4,128], index: 3, kind: output, shape index: {}]
  %s4 = sld [smem:[#allocation0]]
  $region22: #{_lambda_.9} parent=0
    _
  %s6 = ssub.s32 1, %s4
  %s7 = scalar_select 0, %s6, %s4
  // Predicated region
  $region2: #{_lambda_.9} parent=0 // pred_check
    _
  $region3: #{_lambda_.9} parent=0 // pred_check_branch
    %9 = sbr.rel (0) target = $region5
  $region4: #{_lambda_.9} parent=0 // pred_region
    _
  $region5: #{_lambda_.9} parent=0 // pred_fallthru
    _
  // Predicated region
  $region6: #{_lambda_.9} parent=0 // pred_check
    _
  $region7: #{_lambda_.9} parent=0 // pred_check_branch
    %11 = sbr.rel (0) target = $region9
  $region8: #{_lambda_.9} parent=0 // pred_region
    _
  $region9: #{_lambda_.9} parent=0 // pred_fallthru
    _
  // Predicated region
  $region10: #{_lambda_.9} parent=0 // pred_check
    _
  $region11: #{_lambda_.9} parent=0 // pred_check_branch
    %13 = sbr.rel (0) target = $region13
  $region12: #{_lambda_.9} parent=0 // pred_region
    _
  $region13: #{_lambda_.9} parent=0 // pred_fallthru
    _
  %v14 = vld [vmem:[%s1] sm:$0xff]
  %v15 = vld [vmem:[%s1 + $0x8] sm:$0xff]
  %v16 = vld [vmem:[%s1 + $0x10] sm:$0xff]
  %v17 = vld [vmem:[%s1 + $0x18] sm:$0xf]
  %v18 = vld [vmem:[%s0] sm:$0xff]
  %v19 = vld [vmem:[%s0 + $0x8] sm:$0xff]
  %v20 = vld [vmem:[%s0 + $0x10] sm:$0xff]
  %v21 = vld [vmem:[%s0 + $0x18] sm:$0xff]
  %v22 = vld [vmem:[%s0 + $0x20] sm:$0xff]
  %v23 = vld [vmem:[%s0 + $0x28] sm:$0xff]
  %v24 = vld [vmem:[%s0 + $0x30] sm:$0xff]
  %v25 = vld [vmem:[%s0 + $0x38] sm:$0xff]
  %v26 = vld [vmem:[%s0 + $0x40] sm:$0xff]
  %v27 = vld [vmem:[%s0 + $0x48] sm:$0xff]
  %v28 = vld [vmem:[%s0 + $0x50] sm:$0xff]
  %v29 = vld [vmem:[%s0 + $0x58] sm:$0xff]
  %v30 = vld [vmem:[%s0 + $0x60] sm:$0xff]
  %v31 = vld [vmem:[%s0 + $0x68] sm:$0xff]
  %v32 = vld [vmem:[%s0 + $0x70] sm:$0xff]
  %v33 = vld [vmem:[%s0 + $0x78] sm:$0xff]
  %v34 = vld [vmem:[%s0 + $0x80] sm:$0xff]
  %v35 = vld [vmem:[%s0 + $0x88] sm:$0xff]
  %v36 = vld [vmem:[%s0 + $0x90] sm:$0xff]
  %v37 = vld [vmem:[%s0 + $0x98] sm:$0xff]
  %v38 = vld [vmem:[%s0 + $0xa0] sm:$0xff]
  %v39 = vld [vmem:[%s0 + $0xa8] sm:$0xff]
  %v40 = vld [vmem:[%s0 + $0xb0] sm:$0xff]
  %v41 = vld [vmem:[%s0 + $0xb8] sm:$0xff]
  %v42 = vld [vmem:[%s0 + $0xc0] sm:$0xff]
  %v43 = vld [vmem:[%s0 + $0xc8] sm:$0xff]
  %v44 = vld [vmem:[%s0 + $0xd0] sm:$0xff]
  %v45 = vld [vmem:[%s0 + $0xd8] sm:$0xff]
  %v46 = vld [vmem:[%s0 + $0xe0] sm:$0xff]
  %v47 = vld [vmem:[%s0 + $0xe8] sm:$0xff]
  %v48 = vld [vmem:[%s0 + $0xf0] sm:$0xff]
  %v49 = vld [vmem:[%s0 + $0xf8] sm:$0xff]
  %v50 = vld [vmem:[%s0 + $0x100] sm:$0xff]
  %v51 = vld [vmem:[%s0 + $0x108] sm:$0xff]
  %v52 = vld [vmem:[%s0 + $0x110] sm:$0xff]
  %v53 = vld [vmem:[%s0 + $0x118] sm:$0xff]
  %v54 = vld [vmem:[%s0 + $0x120] sm:$0xff]
  %v55 = vld [vmem:[%s0 + $0x128] sm:$0xff]
  %v56 = vld [vmem:[%s0 + $0x130] sm:$0xff]
  %v57 = vld [vmem:[%s0 + $0x138] sm:$0xff]
  %v58 = vld [vmem:[%s0 + $0x140] sm:$0xff]
  %v59 = vld [vmem:[%s0 + $0x148] sm:$0xff]
  %v60 = vld [vmem:[%s0 + $0x150] sm:$0xff]
  %v61 = vld [vmem:[%s0 + $0x158] sm:$0xff]
  %v62 = vld [vmem:[%s0 + $0x160] sm:$0xff]
  %v63 = vld [vmem:[%s0 + $0x168] sm:$0xff]
  %v64 = vld [vmem:[%s0 + $0x170] sm:$0xff]
  %v65 = vld [vmem:[%s0 + $0x178] sm:$0xff]
  %v66 = vld [vmem:[%s0 + $0x180] sm:$0xff]
  %v67 = vld [vmem:[%s0 + $0x188] sm:$0xff]
  %v68 = vld [vmem:[%s0 + $0x190] sm:$0xff]
  %v69 = vld [vmem:[%s0 + $0x198] sm:$0xff]
  %v70 = vld [vmem:[%s0 + $0x1a0] sm:$0xff]
  %v71 = vld [vmem:[%s0 + $0x1a8] sm:$0xff]
  %v72 = vld [vmem:[%s0 + $0x1b0] sm:$0xff]
  %v73 = vld [vmem:[%s0 + $0x1b8] sm:$0xff]
  %v74 = vld [vmem:[%s0 + $0x1c0] sm:$0xff]
  %v75 = vld [vmem:[%s0 + $0x1c8] sm:$0xff]
  %v76 = vld [vmem:[%s0 + $0x1d0] sm:$0xff]
  %v77 = vld [vmem:[%s0 + $0x1d8] sm:$0xff]
  %v78 = vld [vmem:[%s0 + $0x1e0] sm:$0xff]
  %v79 = vld [vmem:[%s0 + $0x1e8] sm:$0xff]
  %v80 = vld [vmem:[%s0 + $0x1f0] sm:$0xff]
  %v81 = vld [vmem:[%s0 + $0x1f8] sm:$0xff]
  %v82 = vld [vmem:[%s0 + $0x200] sm:$0xff]
  %v83 = vld [vmem:[%s0 + $0x208] sm:$0xff]
  %v84 = vld [vmem:[%s0 + $0x210] sm:$0xff]
  %v85 = vld [vmem:[%s0 + $0x218] sm:$0xff]
  %v86 = vld [vmem:[%s0 + $0x220] sm:$0xff]
  %v87 = vld [vmem:[%s0 + $0x228] sm:$0xff]
  %v88 = vld [vmem:[%s0 + $0x230] sm:$0xff]
  %v89 = vld [vmem:[%s0 + $0x238] sm:$0xff]
  %v90 = vld [vmem:[%s0 + $0x240] sm:$0xff]
  %v91 = vld [vmem:[%s0 + $0x248] sm:$0xff]
  %v92 = vld [vmem:[%s0 + $0x250] sm:$0xff]
  %v93 = vld [vmem:[%s0 + $0x258] sm:$0xff]
  %v94 = vld [vmem:[%s0 + $0x260] sm:$0xff]
  %v95 = vld [vmem:[%s0 + $0x268] sm:$0xff]
  %v96 = vld [vmem:[%s0 + $0x270] sm:$0xff]
  %v97 = vld [vmem:[%s0 + $0x278] sm:$0xff]
  %v98 = vld [vmem:[%s0 + $0x280] sm:$0xff]
  %v99 = vld [vmem:[%s0 + $0x288] sm:$0xff]
  %v100 = vld [vmem:[%s0 + $0x290] sm:$0xff]
  %v101 = vld [vmem:[%s0 + $0x298] sm:$0xff]
  %v102 = vld [vmem:[%s0 + $0x2a0] sm:$0xff]
  %v103 = vld [vmem:[%s0 + $0x2a8] sm:$0xff]
  %v104 = vld [vmem:[%s0 + $0x2b0] sm:$0xff]
  %v105 = vld [vmem:[%s0 + $0x2b8] sm:$0xff]
  %v106 = vld [vmem:[%s0 + $0x2c0] sm:$0xff]
  %v107 = vld [vmem:[%s0 + $0x2c8] sm:$0xff]
  %v108 = vld [vmem:[%s0 + $0x2d0] sm:$0xff]
  %v109 = vld [vmem:[%s0 + $0x2d8] sm:$0xff]
  %v110 = vld [vmem:[%s0 + $0x2e0] sm:$0xff]
  %v111 = vld [vmem:[%s0 + $0x2e8] sm:$0xff]
  %v112 = vld [vmem:[%s0 + $0x2f0] sm:$0xff]
  %v113 = vld [vmem:[%s0 + $0x2f8] sm:$0xff]
  %v114 = vld [vmem:[%s0 + $0x300] sm:$0xff]
  %v115 = vld [vmem:[%s0 + $0x308] sm:$0xff]
  %v116 = vld [vmem:[%s0 + $0x310] sm:$0xff]
  %v117 = vld [vmem:[%s0 + $0x318] sm:$0xff]
  %v118 = vld [vmem:[%s0 + $0x320] sm:$0xff]
  %v119 = vld [vmem:[%s0 + $0x328] sm:$0xff]
  %v120 = vld [vmem:[%s0 + $0x330] sm:$0xff]
  %v121 = vld [vmem:[%s0 + $0x338] sm:$0xff]
  %v122 = vld [vmem:[%s0 + $0x340] sm:$0xff]
  %v123 = vld [vmem:[%s0 + $0x348] sm:$0xff]
  %v124 = vld [vmem:[%s0 + $0x350] sm:$0xff]
  %v125 = vld [vmem:[%s0 + $0x358] sm:$0xff]
  %v126 = vld [vmem:[%s2] sm:$0xf]
  %128 = vset.pattern.permute.xlu0 0
  %129 = vperm.xlu0 %128, %v126
  %v130 = vpop.permute.xlu0 %129
  %136 = vst [vmem:[#allocation1] ss:$2 sm:$0xff] %v14
  %s137 = scalar_lea.vmem [#allocation1], 16
  %138 = vst [vmem:[%s137] ss:$2 sm:$0xff] %v15
  %s139 = scalar_lea.vmem [#allocation1], 32
  %140 = vst [vmem:[%s139] ss:$2 sm:$0xff] %v16
  %s141 = scalar_lea.vmem [#allocation1], 48
  %142 = vst [vmem:[%s141] ss:$2 sm:$0xff] %v17
  %v143 = vld.sshfl [vmem:[#allocation1] sm:$0xff pattern:$0x75316420]
  %v144 = vld.sshfl [vmem:[#allocation1 + $0x8] sm:$0xff pattern:$0x75316420]
  %v145 = vld.sshfl [vmem:[#allocation1 + $0x10] sm:$0xff pattern:$0x75316420]
  %v146 = vld.sshfl [vmem:[#allocation1 + $0x18] sm:$0xff pattern:$0x75316420]
  %v147 = vld.sshfl [vmem:[#allocation1 + $0x20] sm:$0xff pattern:$0x75316420]
  %v148 = vld.sshfl [vmem:[#allocation1 + $0x28] sm:$0xff pattern:$0x75316420]
  %v149 = vld.sshfl [vmem:[#allocation1 + $0x30] sm:$0xff pattern:$0x75316420]
  %vm156 = vcmask 785408
  %v157 = vsel %vm156, %v149, 0
  %159 = vmatpush.msra.mxu0 %v33
  %160 = vmatpush.msra.mxu0 %v32
  %161 = vmatpush.msra.mxu0 %v31
  %162 = vmatpush.msra.mxu0 %v30
  %163 = vmatpush.msra.mxu0 %v29
  %164 = vmatpush.msra.mxu0 %v28
  %165 = vmatpush.msra.mxu0 %v27
  %166 = vmatpush.msra.mxu0 %v26
  %167 = vmatpush.msra.mxu0 %v25
  %168 = vmatpush.msra.mxu0 %v24
  %169 = vmatpush.msra.mxu0 %v23
  %170 = vmatpush.msra.mxu0 %v22
  %171 = vmatpush.msra.mxu0 %v21
  %172 = vmatpush.msra.mxu0 %v20
  %173 = vmatpush.msra.mxu0 %v19
  %174 = vmatpush.msra.mxu0 %v18
  %175 = vmatmul.f32.gmra.mxu0 %v143
  %v176 = vpop.f32.mrf.mxu0
  %v177 = vadd.f32 %v130, %v176
  %178 = vdwg.mxu0
  %179 = vmatpush.msra.mxu0 %v49
  %180 = vmatpush.msra.mxu0 %v48
  %181 = vmatpush.msra.mxu0 %v47
  %182 = vmatpush.msra.mxu0 %v46
  %183 = vmatpush.msra.mxu0 %v45
  %184 = vmatpush.msra.mxu0 %v44
  %185 = vmatpush.msra.mxu0 %v43
  %186 = vmatpush.msra.mxu0 %v42
  %187 = vmatpush.msra.mxu0 %v41
  %188 = vmatpush.msra.mxu0 %v40
  %189 = vmatpush.msra.mxu0 %v39
  %190 = vmatpush.msra.mxu0 %v38
  %191 = vmatpush.msra.mxu0 %v37
  %192 = vmatpush.msra.mxu0 %v36
  %193 = vmatpush.msra.mxu0 %v35
  %194 = vmatpush.msra.mxu0 %v34
  %195 = vmatmul.f32.gmra.mxu0 %v144
  %v196 = vpop.f32.mrf.mxu0
  %v197 = vadd.f32 %v177, %v196
  %198 = vdwg.mxu0
  %199 = vmatpush.msra.mxu0 %v65
  %200 = vmatpush.msra.mxu0 %v64
  %201 = vmatpush.msra.mxu0 %v63
  %202 = vmatpush.msra.mxu0 %v62
  %203 = vmatpush.msra.mxu0 %v61
  %204 = vmatpush.msra.mxu0 %v60
  %205 = vmatpush.msra.mxu0 %v59
  %206 = vmatpush.msra.mxu0 %v58
  %207 = vmatpush.msra.mxu0 %v57
  %208 = vmatpush.msra.mxu0 %v56
  %209 = vmatpush.msra.mxu0 %v55
  %210 = vmatpush.msra.mxu0 %v54
  %211 = vmatpush.msra.mxu0 %v53
  %212 = vmatpush.msra.mxu0 %v52
  %213 = vmatpush.msra.mxu0 %v51
  %214 = vmatpush.msra.mxu0 %v50
  %215 = vmatmul.f32.gmra.mxu0 %v145
  %v216 = vpop.f32.mrf.mxu0
  %v217 = vadd.f32 %v197, %v216
  %218 = vdwg.mxu0
  %219 = vmatpush.msra.mxu0 %v81
  %220 = vmatpush.msra.mxu0 %v80
  %221 = vmatpush.msra.mxu0 %v79
  %222 = vmatpush.msra.mxu0 %v78
  %223 = vmatpush.msra.mxu0 %v77
  %224 = vmatpush.msra.mxu0 %v76
  %225 = vmatpush.msra.mxu0 %v75
  %226 = vmatpush.msra.mxu0 %v74
  %227 = vmatpush.msra.mxu0 %v73
  %228 = vmatpush.msra.mxu0 %v72
  %229 = vmatpush.msra.mxu0 %v71
  %230 = vmatpush.msra.mxu0 %v70
  %231 = vmatpush.msra.mxu0 %v69
  %232 = vmatpush.msra.mxu0 %v68
  %233 = vmatpush.msra.mxu0 %v67
  %234 = vmatpush.msra.mxu0 %v66
  %235 = vmatmul.f32.gmra.mxu0 %v146
  %v236 = vpop.f32.mrf.mxu0
  %v237 = vadd.f32 %v217, %v236
  %238 = vdwg.mxu0
  %239 = vmatpush.msra.mxu0 %v97
  %240 = vmatpush.msra.mxu0 %v96
  %241 = vmatpush.msra.mxu0 %v95
  %242 = vmatpush.msra.mxu0 %v94
  %243 = vmatpush.msra.mxu0 %v93
  %244 = vmatpush.msra.mxu0 %v92
  %245 = vmatpush.msra.mxu0 %v91
  %246 = vmatpush.msra.mxu0 %v90
  %247 = vmatpush.msra.mxu0 %v89
  %248 = vmatpush.msra.mxu0 %v88
  %249 = vmatpush.msra.mxu0 %v87
  %250 = vmatpush.msra.mxu0 %v86
  %251 = vmatpush.msra.mxu0 %v85
  %252 = vmatpush.msra.mxu0 %v84
  %253 = vmatpush.msra.mxu0 %v83
  %254 = vmatpush.msra.mxu0 %v82
  %255 = vmatmul.f32.gmra.mxu0 %v147
  %v256 = vpop.f32.mrf.mxu0
  %v257 = vadd.f32 %v237, %v256
  %258 = vdwg.mxu0
  %259 = vmatpush.msra.mxu0 %v113
  %260 = vmatpush.msra.mxu0 %v112
  %261 = vmatpush.msra.mxu0 %v111
  %262 = vmatpush.msra.mxu0 %v110
  %263 = vmatpush.msra.mxu0 %v109
  %264 = vmatpush.msra.mxu0 %v108
  %265 = vmatpush.msra.mxu0 %v107
  %266 = vmatpush.msra.mxu0 %v106
  %267 = vmatpush.msra.mxu0 %v105
  %268 = vmatpush.msra.mxu0 %v104
  %269 = vmatpush.msra.mxu0 %v103
  %270 = vmatpush.msra.mxu0 %v102
  %271 = vmatpush.msra.mxu0 %v101
  %272 = vmatpush.msra.mxu0 %v100
  %273 = vmatpush.msra.mxu0 %v99
  %274 = vmatpush.msra.mxu0 %v98
  %275 = vmatmul.f32.gmra.mxu0 %v148
  %v276 = vpop.f32.mrf.mxu0
  %v277 = vadd.f32 %v257, %v276
  %278 = vdwg.mxu0
  %279 = vmatpush.msra.mxu0 0.0
  %280 = vmatpush.msra.mxu0 0.0
  %281 = vmatpush.msra.mxu0 0.0
  %282 = vmatpush.msra.mxu0 0.0
  %283 = vmatpush.msra.mxu0 %v125
  %284 = vmatpush.msra.mxu0 %v124
  %285 = vmatpush.msra.mxu0 %v123
  %286 = vmatpush.msra.mxu0 %v122
  %287 = vmatpush.msra.mxu0 %v121
  %288 = vmatpush.msra.mxu0 %v120
  %289 = vmatpush.msra.mxu0 %v119
  %290 = vmatpush.msra.mxu0 %v118
  %291 = vmatpush.msra.mxu0 %v117
  %292 = vmatpush.msra.mxu0 %v116
  %293 = vmatpush.msra.mxu0 %v115
  %294 = vmatpush.msra.mxu0 %v114
  %295 = vmatmul.f32.gmra.mxu0 %v157
  %v296 = vpop.f32.mrf.mxu0
  %v297 = vadd.f32 %v277, %v296
  %298 = vdwg.mxu0
  %v299 = vmax.f32 %v297, 0.0
  %300 = vst [vmem:[%s3] sm:$0xf] %v299
  // Predicated region
  $region14: #{_lambda_.9} parent=0 // pred_check
    _
  $region15: #{_lambda_.9} parent=0 // pred_check_branch
    %302 = sbr.rel (0) target = $region17
  $region16: #{_lambda_.9} parent=0 // pred_region
    _
  $region17: #{_lambda_.9} parent=0 // pred_fallthru
    _
  // Predicated region
  $region18: #{_lambda_.9} parent=0 // pred_check
    _
  $region19: #{_lambda_.9} parent=0 // pred_check_branch
    %304 = sbr.rel (0) target = $region21
  $region20: #{_lambda_.9} parent=0 // pred_region
    _
  $region21: #{_lambda_.9} parent=0 // pred_fallthru
    _

// kernel: _lambda_.10
$region0: #{_lambda_.10}
  #allocation0 [shape = 'u32[]', space=smem, size = 0x4, offset = 0x4, fixed_abs, tag = 'smem constant byte address 0x4 - core index']
  #allocation1 [shape = 'u32[72,128]{1,0:T(1,128)}', space=vmem, size = 0x9000, scoped, tag = 'internal scratch']
  %s0 = inlined_call_operand.vmem [shape: f32[864,128], index: 0, kind: input, shape index: {}]
  %s1 = inlined_call_operand.vmem [shape: f32[32,864], index: 1, kind: input, shape index: {}]
  %s2 = inlined_call_operand.vmem [shape: f32[32,1], index: 2, kind: input, shape index: {}]
  %s3 = inlined_call_operand.vmem [shape: f32[32,128], index: 3, kind: output, shape index: {}]
  %s4 = sld [smem:[#allocation0]]
  $region22: #{_lambda_.10} parent=0
    _
  %s6 = ssub.s32 1, %s4
  %s7 = scalar_select 0, %s6, %s4
  // Predicated region
  $region2: #{_lambda_.10} parent=0 // pred_check
    _
  $region3: #{_lambda_.10} parent=0 // pred_check_branch
    %9 = sbr.rel (0) target = $region5
  $region4: #{_lambda_.10} parent=0 // pred_region
    _
  $region5: #{_lambda_.10} parent=0 // pred_fallthru
    _
  // Predicated region
  $region6: #{_lambda_.10} parent=0 // pred_check
    _
  $region7: #{_lambda_.10} parent=0 // pred_check_branch
    %11 = sbr.rel (0) target = $region9
  $region8: #{_lambda_.10} parent=0 // pred_region
    _
  $region9: #{_lambda_.10} parent=0 // pred_fallthru
    _
  // Predicated region
  $region10: #{_lambda_.10} parent=0 // pred_check
    _
  $region11: #{_lambda_.10} parent=0 // pred_check_branch
    %13 = sbr.rel (0) target = $region13
  $region12: #{_lambda_.10} parent=0 // pred_region
    _
  $region13: #{_lambda_.10} parent=0 // pred_fallthru
    _
  %v14 = vld [vmem:[%s1] sm:$0xff]
  %v15 = vld [vmem:[%s1 + $0x8] sm:$0xff]
  %v16 = vld [vmem:[%s1 + $0x10] sm:$0xff]
  %v17 = vld [vmem:[%s1 + $0x18] sm:$0xff]
  %v18 = vld [vmem:[%s1 + $0x20] sm:$0xff]
  %v19 = vld [vmem:[%s1 + $0x28] sm:$0xff]
  %v20 = vld [vmem:[%s1 + $0x30] sm:$0xff]
  %v21 = vld [vmem:[%s1 + $0x38] sm:$0xff]
  %v22 = vld [vmem:[%s1 + $0x40] sm:$0xff]
  %v23 = vld [vmem:[%s1 + $0x48] sm:$0xff]
  %v24 = vld [vmem:[%s1 + $0x50] sm:$0xff]
  %v25 = vld [vmem:[%s1 + $0x58] sm:$0xff]
  %v26 = vld [vmem:[%s1 + $0x60] sm:$0xff]
  %v27 = vld [vmem:[%s1 + $0x68] sm:$0xff]
  %v28 = vld [vmem:[%s1 + $0x70] sm:$0xff]
  %v29 = vld [vmem:[%s1 + $0x78] sm:$0xff]
  %v30 = vld [vmem:[%s1 + $0x80] sm:$0xff]
  %v31 = vld [vmem:[%s1 + $0x88] sm:$0xff]
  %v32 = vld [vmem:[%s1 + $0x90] sm:$0xff]
  %v33 = vld [vmem:[%s1 + $0x98] sm:$0xff]
  %v34 = vld [vmem:[%s1 + $0xa0] sm:$0xff]
  %v35 = vld [vmem:[%s1 + $0xa8] sm:$0xff]
  %v36 = vld [vmem:[%s1 + $0xb0] sm:$0xff]
  %v37 = vld [vmem:[%s1 + $0xb8] sm:$0xff]
  %v38 = vld [vmem:[%s1 + $0xc0] sm:$0xff]
  %v39 = vld [vmem:[%s1 + $0xc8] sm:$0xff]
  %v40 = vld [vmem:[%s1 + $0xd0] sm:$0xff]
  %v41 = vld [vmem:[%s1 + $0xd8] sm:$0xff]
  %v42 = vld [vmem:[%s0] sm:$0xff]
  %v43 = vld [vmem:[%s0 + $0x8] sm:$0xff]
  %v44 = vld [vmem:[%s0 + $0x10] sm:$0xff]
  %v45 = vld [vmem:[%s0 + $0x18] sm:$0xff]
  %v46 = vld [vmem:[%s0 + $0x20] sm:$0xff]
  %v47 = vld [vmem:[%s0 + $0x28] sm:$0xff]
  %v48 = vld [vmem:[%s0 + $0x30] sm:$0xff]
  %v49 = vld [vmem:[%s0 + $0x38] sm:$0xff]
  %v50 = vld [vmem:[%s0 + $0x40] sm:$0xff]
  %v51 = vld [vmem:[%s0 + $0x48] sm:$0xff]
  %v52 = vld [vmem:[%s0 + $0x50] sm:$0xff]
  %v53 = vld [vmem:[%s0 + $0x58] sm:$0xff]
  %v54 = vld [vmem:[%s0 + $0x60] sm:$0xff]
  %v55 = vld [vmem:[%s0 + $0x68] sm:$0xff]
  %v56 = vld [vmem:[%s0 + $0x70] sm:$0xff]
  %v57 = vld [vmem:[%s0 + $0x78] sm:$0xff]
  %v58 = vld [vmem:[%s0 + $0x80] sm:$0xff]
  %v59 = vld [vmem:[%s0 + $0x88] sm:$0xff]
  %v60 = vld [vmem:[%s0 + $0x90] sm:$0xff]
  %v61 = vld [vmem:[%s0 + $0x98] sm:$0xff]
  %v62 = vld [vmem:[%s0 + $0xa0] sm:$0xff]
  %v63 = vld [vmem:[%s0 + $0xa8] sm:$0xff]
  %v64 = vld [vmem:[%s0 + $0xb0] sm:$0xff]
  %v65 = vld [vmem:[%s0 + $0xb8] sm:$0xff]
  %v66 = vld [vmem:[%s0 + $0xc0] sm:$0xff]
  %v67 = vld [vmem:[%s0 + $0xc8] sm:$0xff]
  %v68 = vld [vmem:[%s0 + $0xd0] sm:$0xff]
  %v69 = vld [vmem:[%s0 + $0xd8] sm:$0xff]
  %v70 = vld [vmem:[%s0 + $0xe0] sm:$0xff]
  %v71 = vld [vmem:[%s0 + $0xe8] sm:$0xff]
  %v72 = vld [vmem:[%s0 + $0xf0] sm:$0xff]
  %v73 = vld [vmem:[%s0 + $0xf8] sm:$0xff]
  %v74 = vld [vmem:[%s0 + $0x100] sm:$0xff]
  %v75 = vld [vmem:[%s0 + $0x108] sm:$0xff]
  %v76 = vld [vmem:[%s0 + $0x110] sm:$0xff]
  %v77 = vld [vmem:[%s0 + $0x118] sm:$0xff]
  %v78 = vld [vmem:[%s0 + $0x120] sm:$0xff]
  %v79 = vld [vmem:[%s0 + $0x128] sm:$0xff]
  %v80 = vld [vmem:[%s0 + $0x130] sm:$0xff]
  %v81 = vld [vmem:[%s0 + $0x138] sm:$0xff]
  %v82 = vld [vmem:[%s0 + $0x140] sm:$0xff]
  %v83 = vld [vmem:[%s0 + $0x148] sm:$0xff]
  %v84 = vld [vmem:[%s0 + $0x150] sm:$0xff]
  %v85 = vld [vmem:[%s0 + $0x158] sm:$0xff]
  %v86 = vld [vmem:[%s0 + $0x160] sm:$0xff]
  %v87 = vld [vmem:[%s0 + $0x168] sm:$0xff]
  %v88 = vld [vmem:[%s0 + $0x170] sm:$0xff]
  %v89 = vld [vmem:[%s0 + $0x178] sm:$0xff]
  %v90 = vld [vmem:[%s0 + $0x180] sm:$0xff]
  %v91 = vld [vmem:[%s0 + $0x188] sm:$0xff]
  %v92 = vld [vmem:[%s0 + $0x190] sm:$0xff]
  %v93 = vld [vmem:[%s0 + $0x198] sm:$0xff]
  %v94 = vld [vmem:[%s0 + $0x1a0] sm:$0xff]
  %v95 = vld [vmem:[%s0 + $0x1a8] sm:$0xff]
  %v96 = vld [vmem:[%s0 + $0x1b0] sm:$0xff]
  %v97 = vld [vmem:[%s0 + $0x1b8] sm:$0xff]
  %v98 = vld [vmem:[%s0 + $0x1c0] sm:$0xff]
  %v99 = vld [vmem:[%s0 + $0x1c8] sm:$0xff]
  %v100 = vld [vmem:[%s0 + $0x1d0] sm:$0xff]
  %v101 = vld [vmem:[%s0 + $0x1d8] sm:$0xff]
  %v102 = vld [vmem:[%s0 + $0x1e0] sm:$0xff]
  %v103 = vld [vmem:[%s0 + $0x1e8] sm:$0xff]
  %v104 = vld [vmem:[%s0 + $0x1f0] sm:$0xff]
  %v105 = vld [vmem:[%s0 + $0x1f8] sm:$0xff]
  %v106 = vld [vmem:[%s0 + $0x200] sm:$0xff]
  %v107 = vld [vmem:[%s0 + $0x208] sm:$0xff]
  %v108 = vld [vmem:[%s0 + $0x210] sm:$0xff]
  %v109 = vld [vmem:[%s0 + $0x218] sm:$0xff]
  %v110 = vld [vmem:[%s0 + $0x220] sm:$0xff]
  %v111 = vld [vmem:[%s0 + $0x228] sm:$0xff]
  %v112 = vld [vmem:[%s0 + $0x230] sm:$0xff]
  %v113 = vld [vmem:[%s0 + $0x238] sm:$0xff]
  %v114 = vld [vmem:[%s0 + $0x240] sm:$0xff]
  %v115 = vld [vmem:[%s0 + $0x248] sm:$0xff]
  %v116 = vld [vmem:[%s0 + $0x250] sm:$0xff]
  %v117 = vld [vmem:[%s0 + $0x258] sm:$0xff]
  %v118 = vld [vmem:[%s0 + $0x260] sm:$0xff]
  %v119 = vld [vmem:[%s0 + $0x268] sm:$0xff]
  %v120 = vld [vmem:[%s0 + $0x270] sm:$0xff]
  %v121 = vld [vmem:[%s0 + $0x278] sm:$0xff]
  %v122 = vld [vmem:[%s0 + $0x280] sm:$0xff]
  %v123 = vld [vmem:[%s0 + $0x288] sm:$0xff]
  %v124 = vld [vmem:[%s0 + $0x290] sm:$0xff]
  %v125 = vld [vmem:[%s0 + $0x298] sm:$0xff]
  %v126 = vld [vmem:[%s0 + $0x2a0] sm:$0xff]
  %v127 = vld [vmem:[%s0 + $0x2a8] sm:$0xff]
  %v128 = vld [vmem:[%s0 + $0x2b0] sm:$0xff]
  %v129 = vld [vmem:[%s0 + $0x2b8] sm:$0xff]
  %v130 = vld [vmem:[%s0 + $0x2c0] sm:$0xff]
  %v131 = vld [vmem:[%s0 + $0x2c8] sm:$0xff]
  %v132 = vld [vmem:[%s0 + $0x2d0] sm:$0xff]
  %v133 = vld [vmem:[%s0 + $0x2d8] sm:$0xff]
  %v134 = vld [vmem:[%s0 + $0x2e0] sm:$0xff]
  %v135 = vld [vmem:[%s0 + $0x2e8] sm:$0xff]
  %v136 = vld [vmem:[%s0 + $0x2f0] sm:$0xff]
  %v137 = vld [vmem:[%s0 + $0x2f8] sm:$0xff]
  %v138 = vld [vmem:[%s0 + $0x300] sm:$0xff]
  %v139 = vld [vmem:[%s0 + $0x308] sm:$0xff]
  %v140 = vld [vmem:[%s0 + $0x310] sm:$0xff]
  %v141 = vld [vmem:[%s0 + $0x318] sm:$0xff]
  %v142 = vld [vmem:[%s0 + $0x320] sm:$0xff]
  %v143 = vld [vmem:[%s0 + $0x328] sm:$0xff]
  %v144 = vld [vmem:[%s0 + $0x330] sm:$0xff]
  %v145 = vld [vmem:[%s0 + $0x338] sm:$0xff]
  %v146 = vld [vmem:[%s0 + $0x340] sm:$0xff]
  %v147 = vld [vmem:[%s0 + $0x348] sm:$0xff]
  %v148 = vld [vmem:[%s0 + $0x350] sm:$0xff]
  %v149 = vld [vmem:[%s0 + $0x358] sm:$0xff]
  %v150 = vld [vmem:[%s2] sm:$0xff]
  %v151 = vld [vmem:[%s2 + $0x8] sm:$0xff]
  %v152 = vld [vmem:[%s2 + $0x10] sm:$0xff]
  %v153 = vld [vmem:[%s2 + $0x18] sm:$0xff]
  %155 = vset.pattern.permute.xlu0 0
  %156 = vperm.xlu0 %155, %v150
  %v157 = vpop.permute.xlu0 %156
  %160 = vset.pattern.permute.xlu0 0
  %161 = vperm.xlu0 %160, %v151
  %v162 = vpop.permute.xlu0 %161
  %165 = vset.pattern.permute.xlu0 0
  %166 = vperm.xlu0 %165, %v152
  %v167 = vpop.permute.xlu0 %166
  %170 = vset.pattern.permute.xlu0 0
  %171 = vperm.xlu0 %170, %v153
  %v172 = vpop.permute.xlu0 %171
  %vm174 = vcmask 785408
  %v176 = vsel %vm174, %v20, 0
  %v179 = vsel %vm174, %v27, 0
  %v182 = vsel %vm174, %v34, 0
  %v185 = vsel %vm174, %v41, 0
  %187 = vmatpush.msra.mxu0 %v57
  %188 = vmatpush.msra.mxu0 %v56
  %189 = vmatpush.msra.mxu0 %v55
  %190 = vmatpush.msra.mxu0 %v54
  %191 = vmatpush.msra.mxu0 %v53
  %192 = vmatpush.msra.mxu0 %v52
  %193 = vmatpush.msra.mxu0 %v51
  %194 = vmatpush.msra.mxu0 %v50
  %195 = vmatpush.msra.mxu0 %v49
  %196 = vmatpush.msra.mxu0 %v48
  %197 = vmatpush.msra.mxu0 %v47
  %198 = vmatpush.msra.mxu0 %v46
  %199 = vmatpush.msra.mxu0 %v45
  %200 = vmatpush.msra.mxu0 %v44
  %201 = vmatpush.msra.mxu0 %v43
  %202 = vmatpush.msra.mxu0 %v42
  %203 = vmatmul.f32.gmra.mxu0 %v14
  %v204 = vpop.f32.mrf.mxu0
  %v205 = vadd.f32 %v157, %v204
  %206 = vmatmul.f32.gmra.mxu0 %v21
  %v207 = vpop.f32.mrf.mxu0
  %v208 = vadd.f32 %v162, %v207
  %209 = vmatmul.f32.gmra.mxu0 %v28
  %v210 = vpop.f32.mrf.mxu0
  %v211 = vadd.f32 %v167, %v210
  %212 = vmatmul.f32.gmra.mxu0 %v35
  %v213 = vpop.f32.mrf.mxu0
  %v214 = vadd.f32 %v172, %v213
  %215 = vdwg.mxu0
  %216 = vmatpush.msra.mxu0 %v73
  %217 = vmatpush.msra.mxu0 %v72
  %218 = vmatpush.msra.mxu0 %v71
  %219 = vmatpush.msra.mxu0 %v70
  %220 = vmatpush.msra.mxu0 %v69
  %221 = vmatpush.msra.mxu0 %v68
  %222 = vmatpush.msra.mxu0 %v67
  %223 = vmatpush.msra.mxu0 %v66
  %224 = vmatpush.msra.mxu0 %v65
  %225 = vmatpush.msra.mxu0 %v64
  %226 = vmatpush.msra.mxu0 %v63
  %227 = vmatpush.msra.mxu0 %v62
  %228 = vmatpush.msra.mxu0 %v61
  %229 = vmatpush.msra.mxu0 %v60
  %230 = vmatpush.msra.mxu0 %v59
  %231 = vmatpush.msra.mxu0 %v58
  %232 = vmatmul.f32.gmra.mxu0 %v15
  %v233 = vpop.f32.mrf.mxu0
  %v234 = vadd.f32 %v205, %v233
  %235 = vmatmul.f32.gmra.mxu0 %v22
  %v236 = vpop.f32.mrf.mxu0
  %v237 = vadd.f32 %v208, %v236
  %238 = vmatmul.f32.gmra.mxu0 %v29
  %v239 = vpop.f32.mrf.mxu0
  %v240 = vadd.f32 %v211, %v239
  %241 = vmatmul.f32.gmra.mxu0 %v36
  %v242 = vpop.f32.mrf.mxu0
  %v243 = vadd.f32 %v214, %v242
  %244 = vdwg.mxu0
  %245 = vmatpush.msra.mxu0 %v89
  %246 = vmatpush.msra.mxu0 %v88
  %247 = vmatpush.msra.mxu0 %v87
  %248 = vmatpush.msra.mxu0 %v86
  %249 = vmatpush.msra.mxu0 %v85
  %250 = vmatpush.msra.mxu0 %v84
  %251 = vmatpush.msra.mxu0 %v83
  %252 = vmatpush.msra.mxu0 %v82
  %253 = vmatpush.msra.mxu0 %v81
  %254 = vmatpush.msra.mxu0 %v80
  %255 = vmatpush.msra.mxu0 %v79
  %256 = vmatpush.msra.mxu0 %v78
  %257 = vmatpush.msra.mxu0 %v77
  %258 = vmatpush.msra.mxu0 %v76
  %259 = vmatpush.msra.mxu0 %v75
  %260 = vmatpush.msra.mxu0 %v74
  %261 = vmatmul.f32.gmra.mxu0 %v16
  %v262 = vpop.f32.mrf.mxu0
  %v263 = vadd.f32 %v234, %v262
  %264 = vmatmul.f32.gmra.mxu0 %v23
  %v265 = vpop.f32.mrf.mxu0
  %v266 = vadd.f32 %v237, %v265
  %267 = vmatmul.f32.gmra.mxu0 %v30
  %v268 = vpop.f32.mrf.mxu0
  %v269 = vadd.f32 %v240, %v268
  %270 = vmatmul.f32.gmra.mxu0 %v37
  %v271 = vpop.f32.mrf.mxu0
  %v272 = vadd.f32 %v243, %v271
  %273 = vdwg.mxu0
  %274 = vmatpush.msra.mxu0 %v105
  %275 = vmatpush.msra.mxu0 %v104
  %276 = vmatpush.msra.mxu0 %v103
  %277 = vmatpush.msra.mxu0 %v102
  %278 = vmatpush.msra.mxu0 %v101
  %279 = vmatpush.msra.mxu0 %v100
  %280 = vmatpush.msra.mxu0 %v99
  %281 = vmatpush.msra.mxu0 %v98
  %282 = vmatpush.msra.mxu0 %v97
  %283 = vmatpush.msra.mxu0 %v96
  %284 = vmatpush.msra.mxu0 %v95
  %285 = vmatpush.msra.mxu0 %v94
  %286 = vmatpush.msra.mxu0 %v93
  %287 = vmatpush.msra.mxu0 %v92
  %288 = vmatpush.msra.mxu0 %v91
  %289 = vmatpush.msra.mxu0 %v90
  %290 = vmatmul.f32.gmra.mxu0 %v17
  %v291 = vpop.f32.mrf.mxu0
  %v292 = vadd.f32 %v263, %v291
  %293 = vmatmul.f32.gmra.mxu0 %v24
  %v294 = vpop.f32.mrf.mxu0
  %v295 = vadd.f32 %v266, %v294
  %296 = vmatmul.f32.gmra.mxu0 %v31
  %v297 = vpop.f32.mrf.mxu0
  %v298 = vadd.f32 %v269, %v297
  %299 = vmatmul.f32.gmra.mxu0 %v38
  %v300 = vpop.f32.mrf.mxu0
  %v301 = vadd.f32 %v272, %v300
  %302 = vdwg.mxu0
  %303 = vmatpush.msra.mxu0 %v121
  %304 = vmatpush.msra.mxu0 %v120
  %305 = vmatpush.msra.mxu0 %v119
  %306 = vmatpush.msra.mxu0 %v118
  %307 = vmatpush.msra.mxu0 %v117
  %308 = vmatpush.msra.mxu0 %v116
  %309 = vmatpush.msra.mxu0 %v115
  %310 = vmatpush.msra.mxu0 %v114
  %311 = vmatpush.msra.mxu0 %v113
  %312 = vmatpush.msra.mxu0 %v112
  %313 = vmatpush.msra.mxu0 %v111
  %314 = vmatpush.msra.mxu0 %v110
  %315 = vmatpush.msra.mxu0 %v109
  %316 = vmatpush.msra.mxu0 %v108
  %317 = vmatpush.msra.mxu0 %v107
  %318 = vmatpush.msra.mxu0 %v106
  %319 = vmatmul.f32.gmra.mxu0 %v18
  %v320 = vpop.f32.mrf.mxu0
  %v321 = vadd.f32 %v292, %v320
  %322 = vmatmul.f32.gmra.mxu0 %v25
  %v323 = vpop.f32.mrf.mxu0
  %v324 = vadd.f32 %v295, %v323
  %325 = vmatmul.f32.gmra.mxu0 %v32
  %v326 = vpop.f32.mrf.mxu0
  %v327 = vadd.f32 %v298, %v326
  %328 = vmatmul.f32.gmra.mxu0 %v39
  %v329 = vpop.f32.mrf.mxu0
  %v330 = vadd.f32 %v301, %v329
  %331 = vdwg.mxu0
  %332 = vmatpush.msra.mxu0 %v137
  %333 = vmatpush.msra.mxu0 %v136
  %334 = vmatpush.msra.mxu0 %v135
  %335 = vmatpush.msra.mxu0 %v134
  %336 = vmatpush.msra.mxu0 %v133
  %337 = vmatpush.msra.mxu0 %v132
  %338 = vmatpush.msra.mxu0 %v131
  %339 = vmatpush.msra.mxu0 %v130
  %340 = vmatpush.msra.mxu0 %v129
  %341 = vmatpush.msra.mxu0 %v128
  %342 = vmatpush.msra.mxu0 %v127
  %343 = vmatpush.msra.mxu0 %v126
  %344 = vmatpush.msra.mxu0 %v125
  %345 = vmatpush.msra.mxu0 %v124
  %346 = vmatpush.msra.mxu0 %v123
  %347 = vmatpush.msra.mxu0 %v122
  %348 = vmatmul.f32.gmra.mxu0 %v19
  %v349 = vpop.f32.mrf.mxu0
  %v350 = vadd.f32 %v321, %v349
  %351 = vmatmul.f32.gmra.mxu0 %v26
  %v352 = vpop.f32.mrf.mxu0
  %v353 = vadd.f32 %v324, %v352
  %354 = vmatmul.f32.gmra.mxu0 %v33
  %v355 = vpop.f32.mrf.mxu0
  %v356 = vadd.f32 %v327, %v355
  %357 = vmatmul.f32.gmra.mxu0 %v40
  %v358 = vpop.f32.mrf.mxu0
  %v359 = vadd.f32 %v330, %v358
  %360 = vdwg.mxu0
  %361 = vmatpush.msra.mxu0 0.0
  %362 = vmatpush.msra.mxu0 0.0
  %363 = vmatpush.msra.mxu0 0.0
  %364 = vmatpush.msra.mxu0 0.0
  %365 = vmatpush.msra.mxu0 %v149
  %366 = vmatpush.msra.mxu0 %v148
  %367 = vmatpush.msra.mxu0 %v147
  %368 = vmatpush.msra.mxu0 %v146
  %369 = vmatpush.msra.mxu0 %v145
  %370 = vmatpush.msra.mxu0 %v144
  %371 = vmatpush.msra.mxu0 %v143
  %372 = vmatpush.msra.mxu0 %v142
  %373 = vmatpush.msra.mxu0 %v141
  %374 = vmatpush.msra.mxu0 %v140
  %375 = vmatpush.msra.mxu0 %v139
  %376 = vmatpush.msra.mxu0 %v138
  %377 = vmatmul.f32.gmra.mxu0 %v176
  %v378 = vpop.f32.mrf.mxu0
  %v379 = vadd.f32 %v350, %v378
  %380 = vmatmul.f32.gmra.mxu0 %v179
  %v381 = vpop.f32.mrf.mxu0
  %v382 = vadd.f32 %v353, %v381
  %383 = vmatmul.f32.gmra.mxu0 %v182
  %v384 = vpop.f32.mrf.mxu0
  %v385 = vadd.f32 %v356, %v384
  %386 = vmatmul.f32.gmra.mxu0 %v185
  %v387 = vpop.f32.mrf.mxu0
  %v388 = vadd.f32 %v359, %v387
  %389 = vdwg.mxu0
  %v390 = vmax.f32 %v379, 0.0
  %v391 = vmax.f32 %v382, 0.0
  %v392 = vmax.f32 %v385, 0.0
  %v393 = vmax.f32 %v388, 0.0
  %394 = vst [vmem:[%s3] sm:$0xff] %v390
  %395 = vst [vmem:[%s3 + $0x8] sm:$0xff] %v391
  %396 = vst [vmem:[%s3 + $0x10] sm:$0xff] %v392
  %397 = vst [vmem:[%s3 + $0x18] sm:$0xff] %v393
  // Predicated region
  $region14: #{_lambda_.10} parent=0 // pred_check
    _
  $region15: #{_lambda_.10} parent=0 // pred_check_branch
    %399 = sbr.rel (0) target = $region17
  $region16: #{_lambda_.10} parent=0 // pred_region
    _
  $region17: #{_lambda_.10} parent=0 // pred_fallthru
    _
  // Predicated region
  $region18: #{_lambda_.10} parent=0 // pred_check
    _
  $region19: #{_lambda_.10} parent=0 // pred_check_branch
    %401 = sbr.rel (0) target = $region21
  $region20: #{_lambda_.10} parent=0 // pred_region
    _
  $region21: #{_lambda_.10} parent=0 // pred_fallthru
    _

// kernel: _lambda_.12
$region0: #{_lambda_.12}
  #allocation0 [shape = 'u32[]', space=smem, size = 0x4, offset = 0x4, fixed_abs, tag = 'smem constant byte address 0x4 - core index']
  #allocation1 [shape = 'u32[72,128]{1,0:T(1,128)}', space=vmem, size = 0x9000, scoped, tag = 'internal scratch']
  %s0 = inlined_call_operand.vmem [shape: f32[16,128], index: 0, kind: input, shape index: {}]
  %s1 = inlined_call_operand.vmem [shape: f32[128,1024], index: 1, kind: input, shape index: {}]
  %s2 = inlined_call_operand.vmem [shape: f32[72,16], index: 2, kind: input, shape index: {}]
  %s3 = inlined_call_operand.vmem [shape: f32[72,1], index: 3, kind: input, shape index: {}]
  %s4 = inlined_call_operand.vmem [shape: f32[72,1024], index: 4, kind: output, shape index: {}]
  %s5 = sld [smem:[#allocation0]]
  $region26: #{_lambda_.12} parent=0
    _
  %s7 = ssub.s32 1, %s5
  %s8 = scalar_select 0, %s7, %s5
  // Predicated region
  $region2: #{_lambda_.12} parent=0 // pred_check
    _
  $region3: #{_lambda_.12} parent=0 // pred_check_branch
    %10 = sbr.rel (0) target = $region5
  $region4: #{_lambda_.12} parent=0 // pred_region
    _
  $region5: #{_lambda_.12} parent=0 // pred_fallthru
    _
  // Predicated region
  $region6: #{_lambda_.12} parent=0 // pred_check
    _
  $region7: #{_lambda_.12} parent=0 // pred_check_branch
    %12 = sbr.rel (0) target = $region9
  $region8: #{_lambda_.12} parent=0 // pred_region
    _
  $region9: #{_lambda_.12} parent=0 // pred_fallthru
    _
  // Predicated region
  $region10: #{_lambda_.12} parent=0 // pred_check
    _
  $region11: #{_lambda_.12} parent=0 // pred_check_branch
    %14 = sbr.rel (0) target = $region13
  $region12: #{_lambda_.12} parent=0 // pred_region
    _
  $region13: #{_lambda_.12} parent=0 // pred_fallthru
    _
  // Predicated region
  $region14: #{_lambda_.12} parent=0 // pred_check
    _
  $region15: #{_lambda_.12} parent=0 // pred_check_branch
    %16 = sbr.rel (0) target = $region17
  $region16: #{_lambda_.12} parent=0 // pred_region
    _
  $region17: #{_lambda_.12} parent=0 // pred_fallthru
    _
  %v17 = vld [vmem:[%s0] sm:$0xff]
  %v18 = vld [vmem:[%s0 + $0x8] sm:$0xff]
  %v19 = vld [vmem:[%s1] sm:$0xff]
  %v20 = vld [vmem:[%s1 + $0x8] sm:$0xff]
  %v21 = vld [vmem:[%s1 + $0x10] sm:$0xff]
  %v22 = vld [vmem:[%s1 + $0x18] sm:$0xff]
  %v23 = vld [vmem:[%s1 + $0x20] sm:$0xff]
  %v24 = vld [vmem:[%s1 + $0x28] sm:$0xff]
  %v25 = vld [vmem:[%s1 + $0x30] sm:$0xff]
  %v26 = vld [vmem:[%s1 + $0x38] sm:$0xff]
  %v27 = vld [vmem:[%s1 + $0x40] sm:$0xff]
  %v28 = vld [vmem:[%s1 + $0x48] sm:$0xff]
  %v29 = vld [vmem:[%s1 + $0x50] sm:$0xff]
  %v30 = vld [vmem:[%s1 + $0x58] sm:$0xff]
  %v31 = vld [vmem:[%s1 + $0x60] sm:$0xff]
  %v32 = vld [vmem:[%s1 + $0x68] sm:$0xff]
  %v33 = vld [vmem:[%s1 + $0x70] sm:$0xff]
  %v34 = vld [vmem:[%s1 + $0x78] sm:$0xff]
  %v35 = vld [vmem:[%s1 + $0x80] sm:$0xff]
  %v36 = vld [vmem:[%s1 + $0x88] sm:$0xff]
  %v37 = vld [vmem:[%s1 + $0x90] sm:$0xff]
  %v38 = vld [vmem:[%s1 + $0x98] sm:$0xff]
  %v39 = vld [vmem:[%s1 + $0xa0] sm:$0xff]
  %v40 = vld [vmem:[%s1 + $0xa8] sm:$0xff]
  %v41 = vld [vmem:[%s1 + $0xb0] sm:$0xff]
  %v42 = vld [vmem:[%s1 + $0xb8] sm:$0xff]
  %v43 = vld [vmem:[%s1 + $0xc0] sm:$0xff]
  %v44 = vld [vmem:[%s1 + $0xc8] sm:$0xff]
  %v45 = vld [vmem:[%s1 + $0xd0] sm:$0xff]
  %v46 = vld [vmem:[%s1 + $0xd8] sm:$0xff]
  %v47 = vld [vmem:[%s1 + $0xe0] sm:$0xff]
  %v48 = vld [vmem:[%s1 + $0xe8] sm:$0xff]
  %v49 = vld [vmem:[%s1 + $0xf0] sm:$0xff]
  %v50 = vld [vmem:[%s1 + $0xf8] sm:$0xff]
  %v51 = vld [vmem:[%s1 + $0x100] sm:$0xff]
  %v52 = vld [vmem:[%s1 + $0x108] sm:$0xff]
  %v53 = vld [vmem:[%s1 + $0x110] sm:$0xff]
  %v54 = vld [vmem:[%s1 + $0x118] sm:$0xff]
  %v55 = vld [vmem:[%s1 + $0x120] sm:$0xff]
  %v56 = vld [vmem:[%s1 + $0x128] sm:$0xff]
  %v57 = vld [vmem:[%s1 + $0x130] sm:$0xff]
  %v58 = vld [vmem:[%s1 + $0x138] sm:$0xff]
  %v59 = vld [vmem:[%s1 + $0x140] sm:$0xff]
  %v60 = vld [vmem:[%s1 + $0x148] sm:$0xff]
  %v61 = vld [vmem:[%s1 + $0x150] sm:$0xff]
  %v62 = vld [vmem:[%s1 + $0x158] sm:$0xff]
  %v63 = vld [vmem:[%s1 + $0x160] sm:$0xff]
  %v64 = vld [vmem:[%s1 + $0x168] sm:$0xff]
  %v65 = vld [vmem:[%s1 + $0x170] sm:$0xff]
  %v66 = vld [vmem:[%s1 + $0x178] sm:$0xff]
  %v67 = vld [vmem:[%s1 + $0x180] sm:$0xff]
  %v68 = vld [vmem:[%s1 + $0x188] sm:$0xff]
  %v69 = vld [vmem:[%s1 + $0x190] sm:$0xff]
  %v70 = vld [vmem:[%s1 + $0x198] sm:$0xff]
  %v71 = vld [vmem:[%s1 + $0x1a0] sm:$0xff]
  %v72 = vld [vmem:[%s1 + $0x1a8] sm:$0xff]
  %v73 = vld [vmem:[%s1 + $0x1b0] sm:$0xff]
  %v74 = vld [vmem:[%s1 + $0x1b8] sm:$0xff]
  %v75 = vld [vmem:[%s1 + $0x1c0] sm:$0xff]
  %v76 = vld [vmem:[%s1 + $0x1c8] sm:$0xff]
  %v77 = vld [vmem:[%s1 + $0x1d0] sm:$0xff]
  %v78 = vld [vmem:[%s1 + $0x1d8] sm:$0xff]
  %v79 = vld [vmem:[%s1 + $0x1e0] sm:$0xff]
  %v80 = vld [vmem:[%s1 + $0x1e8] sm:$0xff]
  %v81 = vld [vmem:[%s1 + $0x1f0] sm:$0xff]
  %v82 = vld [vmem:[%s1 + $0x1f8] sm:$0xff]
  %v83 = vld [vmem:[%s1 + $0x200] sm:$0xff]
  %v84 = vld [vmem:[%s1 + $0x208] sm:$0xff]
  %v85 = vld [vmem:[%s1 + $0x210] sm:$0xff]
  %v86 = vld [vmem:[%s1 + $0x218] sm:$0xff]
  %v87 = vld [vmem:[%s1 + $0x220] sm:$0xff]
  %v88 = vld [vmem:[%s1 + $0x228] sm:$0xff]
  %v89 = vld [vmem:[%s1 + $0x230] sm:$0xff]
  %v90 = vld [vmem:[%s1 + $0x238] sm:$0xff]
  %v91 = vld [vmem:[%s1 + $0x240] sm:$0xff]
  %v92 = vld [vmem:[%s1 + $0x248] sm:$0xff]
  %v93 = vld [vmem:[%s1 + $0x250] sm:$0xff]
  %v94 = vld [vmem:[%s1 + $0x258] sm:$0xff]
  %v95 = vld [vmem:[%s1 + $0x260] sm:$0xff]
  %v96 = vld [vmem:[%s1 + $0x268] sm:$0xff]
  %v97 = vld [vmem:[%s1 + $0x270] sm:$0xff]
  %v98 = vld [vmem:[%s1 + $0x278] sm:$0xff]
  %v99 = vld [vmem:[%s1 + $0x280] sm:$0xff]
  %v100 = vld [vmem:[%s1 + $0x288] sm:$0xff]
  %v101 = vld [vmem:[%s1 + $0x290] sm:$0xff]
  %v102 = vld [vmem:[%s1 + $0x298] sm:$0xff]
  %v103 = vld [vmem:[%s1 + $0x2a0] sm:$0xff]
  %v104 = vld [vmem:[%s1 + $0x2a8] sm:$0xff]
  %v105 = vld [vmem:[%s1 + $0x2b0] sm:$0xff]
  %v106 = vld [vmem:[%s1 + $0x2b8] sm:$0xff]
  %v107 = vld [vmem:[%s1 + $0x2c0] sm:$0xff]
  %v108 = vld [vmem:[%s1 + $0x2c8] sm:$0xff]
  %v109 = vld [vmem:[%s1 + $0x2d0] sm:$0xff]
  %v110 = vld [vmem:[%s1 + $0x2d8] sm:$0xff]
  %v111 = vld [vmem:[%s1 + $0x2e0] sm:$0xff]
  %v112 = vld [vmem:[%s1 + $0x2e8] sm:$0xff]
  %v113 = vld [vmem:[%s1 + $0x2f0] sm:$0xff]
  %v114 = vld [vmem:[%s1 + $0x2f8] sm:$0xff]
  %v115 = vld [vmem:[%s1 + $0x300] sm:$0xff]
  %v116 = vld [vmem:[%s1 + $0x308] sm:$0xff]
  %v117 = vld [vmem:[%s1 + $0x310] sm:$0xff]
  %v118 = vld [vmem:[%s1 + $0x318] sm:$0xff]
  %v119 = vld [vmem:[%s1 + $0x320] sm:$0xff]
  %v120 = vld [vmem:[%s1 + $0x328] sm:$0xff]
  %v121 = vld [vmem:[%s1 + $0x330] sm:$0xff]
  %v122 = vld [vmem:[%s1 + $0x338] sm:$0xff]
  %v123 = vld [vmem:[%s1 + $0x340] sm:$0xff]
  %v124 = vld [vmem:[%s1 + $0x348] sm:$0xff]
  %v125 = vld [vmem:[%s1 + $0x350] sm:$0xff]
  %v126 = vld [vmem:[%s1 + $0x358] sm:$0xff]
  %v127 = vld [vmem:[%s1 + $0x360] sm:$0xff]
  %v128 = vld [vmem:[%s1 + $0x368] sm:$0xff]
  %v129 = vld [vmem:[%s1 + $0x370] sm:$0xff]
  %v130 = vld [vmem:[%s1 + $0x378] sm:$0xff]
  %v131 = vld [vmem:[%s1 + $0x380] sm:$0xff]
  %v132 = vld [vmem:[%s1 + $0x388] sm:$0xff]
  %v133 = vld [vmem:[%s1 + $0x390] sm:$0xff]
  %v134 = vld [vmem:[%s1 + $0x398] sm:$0xff]
  %v135 = vld [vmem:[%s1 + $0x3a0] sm:$0xff]
  %v136 = vld [vmem:[%s1 + $0x3a8] sm:$0xff]
  %v137 = vld [vmem:[%s1 + $0x3b0] sm:$0xff]
  %v138 = vld [vmem:[%s1 + $0x3b8] sm:$0xff]
  %v139 = vld [vmem:[%s1 + $0x3c0] sm:$0xff]
  %v140 = vld [vmem:[%s1 + $0x3c8] sm:$0xff]
  %v141 = vld [vmem:[%s1 + $0x3d0] sm:$0xff]
  %v142 = vld [vmem:[%s1 + $0x3d8] sm:$0xff]
  %v143 = vld [vmem:[%s1 + $0x3e0] sm:$0xff]
  %v144 = vld [vmem:[%s1 + $0x3e8] sm:$0xff]
  %v145 = vld [vmem:[%s1 + $0x3f0] sm:$0xff]
  %v146 = vld [vmem:[%s1 + $0x3f8] sm:$0xff]
  %147 = vmatpush.msra.mxu0 %v139
  %148 = vmatpush.msra.mxu0 %v131
  %149 = vmatpush.msra.mxu0 %v123
  %150 = vmatpush.msra.mxu0 %v115
  %151 = vmatpush.msra.mxu0 %v107
  %152 = vmatpush.msra.mxu0 %v99
  %153 = vmatpush.msra.mxu0 %v91
  %154 = vmatpush.msra.mxu0 %v83
  %155 = vmatpush.msra.mxu0 %v75
  %156 = vmatpush.msra.mxu0 %v67
  %157 = vmatpush.msra.mxu0 %v59
  %158 = vmatpush.msra.mxu0 %v51
  %159 = vmatpush.msra.mxu0 %v43
  %160 = vmatpush.msra.mxu0 %v35
  %161 = vmatpush.msra.mxu0 %v27
  %162 = vmatpush.msra.mxu0 %v19
  %163 = vmatmul.f32.gmra.mxu0 %v17
  %v164 = vpop.f32.mrf.mxu0
  %v165 = vadd.f32 0.0, %v164
  %166 = vmatmul.f32.gmra.mxu0 %v18
  %v167 = vpop.f32.mrf.mxu0
  %v168 = vadd.f32 0.0, %v167
  %169 = vdwg.mxu0
  %170 = vmatpush.msra.mxu0 %v140
  %171 = vmatpush.msra.mxu0 %v132
  %172 = vmatpush.msra.mxu0 %v124
  %173 = vmatpush.msra.mxu0 %v116
  %174 = vmatpush.msra.mxu0 %v108
  %175 = vmatpush.msra.mxu0 %v100
  %176 = vmatpush.msra.mxu0 %v92
  %177 = vmatpush.msra.mxu0 %v84
  %178 = vmatpush.msra.mxu0 %v76
  %179 = vmatpush.msra.mxu0 %v68
  %180 = vmatpush.msra.mxu0 %v60
  %181 = vmatpush.msra.mxu0 %v52
  %182 = vmatpush.msra.mxu0 %v44
  %183 = vmatpush.msra.mxu0 %v36
  %184 = vmatpush.msra.mxu0 %v28
  %185 = vmatpush.msra.mxu0 %v20
  %186 = vmatmul.f32.gmra.mxu0 %v17
  %v187 = vpop.f32.mrf.mxu0
  %v188 = vadd.f32 0.0, %v187
  %189 = vmatmul.f32.gmra.mxu0 %v18
  %v190 = vpop.f32.mrf.mxu0
  %v191 = vadd.f32 0.0, %v190
  %192 = vdwg.mxu0
  %193 = vmatpush.msra.mxu0 %v141
  %194 = vmatpush.msra.mxu0 %v133
  %195 = vmatpush.msra.mxu0 %v125
  %196 = vmatpush.msra.mxu0 %v117
  %197 = vmatpush.msra.mxu0 %v109
  %198 = vmatpush.msra.mxu0 %v101
  %199 = vmatpush.msra.mxu0 %v93
  %200 = vmatpush.msra.mxu0 %v85
  %201 = vmatpush.msra.mxu0 %v77
  %202 = vmatpush.msra.mxu0 %v69
  %203 = vmatpush.msra.mxu0 %v61
  %204 = vmatpush.msra.mxu0 %v53
  %205 = vmatpush.msra.mxu0 %v45
  %206 = vmatpush.msra.mxu0 %v37
  %207 = vmatpush.msra.mxu0 %v29
  %208 = vmatpush.msra.mxu0 %v21
  %209 = vmatmul.f32.gmra.mxu0 %v17
  %v210 = vpop.f32.mrf.mxu0
  %v211 = vadd.f32 0.0, %v210
  %212 = vmatmul.f32.gmra.mxu0 %v18
  %v213 = vpop.f32.mrf.mxu0
  %v214 = vadd.f32 0.0, %v213
  %215 = vdwg.mxu0
  %216 = vmatpush.msra.mxu0 %v142
  %217 = vmatpush.msra.mxu0 %v134
  %218 = vmatpush.msra.mxu0 %v126
  %219 = vmatpush.msra.mxu0 %v118
  %220 = vmatpush.msra.mxu0 %v110
  %221 = vmatpush.msra.mxu0 %v102
  %222 = vmatpush.msra.mxu0 %v94
  %223 = vmatpush.msra.mxu0 %v86
  %224 = vmatpush.msra.mxu0 %v78
  %225 = vmatpush.msra.mxu0 %v70
  %226 = vmatpush.msra.mxu0 %v62
  %227 = vmatpush.msra.mxu0 %v54
  %228 = vmatpush.msra.mxu0 %v46
  %229 = vmatpush.msra.mxu0 %v38
  %230 = vmatpush.msra.mxu0 %v30
  %231 = vmatpush.msra.mxu0 %v22
  %232 = vmatmul.f32.gmra.mxu0 %v17
  %v233 = vpop.f32.mrf.mxu0
  %v234 = vadd.f32 0.0, %v233
  %235 = vmatmul.f32.gmra.mxu0 %v18
  %v236 = vpop.f32.mrf.mxu0
  %v237 = vadd.f32 0.0, %v236
  %238 = vdwg.mxu0
  %239 = vmatpush.msra.mxu0 %v143
  %240 = vmatpush.msra.mxu0 %v135
  %241 = vmatpush.msra.mxu0 %v127
  %242 = vmatpush.msra.mxu0 %v119
  %243 = vmatpush.msra.mxu0 %v111
  %244 = vmatpush.msra.mxu0 %v103
  %245 = vmatpush.msra.mxu0 %v95
  %246 = vmatpush.msra.mxu0 %v87
  %247 = vmatpush.msra.mxu0 %v79
  %248 = vmatpush.msra.mxu0 %v71
  %249 = vmatpush.msra.mxu0 %v63
  %250 = vmatpush.msra.mxu0 %v55
  %251 = vmatpush.msra.mxu0 %v47
  %252 = vmatpush.msra.mxu0 %v39
  %253 = vmatpush.msra.mxu0 %v31
  %254 = vmatpush.msra.mxu0 %v23
  %255 = vmatmul.f32.gmra.mxu0 %v17
  %v256 = vpop.f32.mrf.mxu0
  %v257 = vadd.f32 0.0, %v256
  %258 = vmatmul.f32.gmra.mxu0 %v18
  %v259 = vpop.f32.mrf.mxu0
  %v260 = vadd.f32 0.0, %v259
  %261 = vdwg.mxu0
  %262 = vmatpush.msra.mxu0 %v144
  %263 = vmatpush.msra.mxu0 %v136
  %264 = vmatpush.msra.mxu0 %v128
  %265 = vmatpush.msra.mxu0 %v120
  %266 = vmatpush.msra.mxu0 %v112
  %267 = vmatpush.msra.mxu0 %v104
  %268 = vmatpush.msra.mxu0 %v96
  %269 = vmatpush.msra.mxu0 %v88
  %270 = vmatpush.msra.mxu0 %v80
  %271 = vmatpush.msra.mxu0 %v72
  %272 = vmatpush.msra.mxu0 %v64
  %273 = vmatpush.msra.mxu0 %v56
  %274 = vmatpush.msra.mxu0 %v48
  %275 = vmatpush.msra.mxu0 %v40
  %276 = vmatpush.msra.mxu0 %v32
  %277 = vmatpush.msra.mxu0 %v24
  %278 = vmatmul.f32.gmra.mxu0 %v17
  %v279 = vpop.f32.mrf.mxu0
  %v280 = vadd.f32 0.0, %v279
  %281 = vmatmul.f32.gmra.mxu0 %v18
  %v282 = vpop.f32.mrf.mxu0
  %v283 = vadd.f32 0.0, %v282
  %284 = vdwg.mxu0
  %285 = vmatpush.msra.mxu0 %v145
  %286 = vmatpush.msra.mxu0 %v137
  %287 = vmatpush.msra.mxu0 %v129
  %288 = vmatpush.msra.mxu0 %v121
  %289 = vmatpush.msra.mxu0 %v113
  %290 = vmatpush.msra.mxu0 %v105
  %291 = vmatpush.msra.mxu0 %v97
  %292 = vmatpush.msra.mxu0 %v89
  %293 = vmatpush.msra.mxu0 %v81
  %294 = vmatpush.msra.mxu0 %v73
  %295 = vmatpush.msra.mxu0 %v65
  %296 = vmatpush.msra.mxu0 %v57
  %297 = vmatpush.msra.mxu0 %v49
  %298 = vmatpush.msra.mxu0 %v41
  %299 = vmatpush.msra.mxu0 %v33
  %300 = vmatpush.msra.mxu0 %v25
  %301 = vmatmul.f32.gmra.mxu0 %v17
  %v302 = vpop.f32.mrf.mxu0
  %v303 = vadd.f32 0.0, %v302
  %304 = vmatmul.f32.gmra.mxu0 %v18
  %v305 = vpop.f32.mrf.mxu0
  %v306 = vadd.f32 0.0, %v305
  %307 = vdwg.mxu0
  %308 = vmatpush.msra.mxu0 %v146
  %309 = vmatpush.msra.mxu0 %v138
  %310 = vmatpush.msra.mxu0 %v130
  %311 = vmatpush.msra.mxu0 %v122
  %312 = vmatpush.msra.mxu0 %v114
  %313 = vmatpush.msra.mxu0 %v106
  %314 = vmatpush.msra.mxu0 %v98
  %315 = vmatpush.msra.mxu0 %v90
  %316 = vmatpush.msra.mxu0 %v82
  %317 = vmatpush.msra.mxu0 %v74
  %318 = vmatpush.msra.mxu0 %v66
  %319 = vmatpush.msra.mxu0 %v58
  %320 = vmatpush.msra.mxu0 %v50
  %321 = vmatpush.msra.mxu0 %v42
  %322 = vmatpush.msra.mxu0 %v34
  %323 = vmatpush.msra.mxu0 %v26
  %324 = vmatmul.f32.gmra.mxu0 %v17
  %v325 = vpop.f32.mrf.mxu0
  %v326 = vadd.f32 0.0, %v325
  %327 = vmatmul.f32.gmra.mxu0 %v18
  %v328 = vpop.f32.mrf.mxu0
  %v329 = vadd.f32 0.0, %v328
  %330 = vdwg.mxu0
  %v331 = vld [vmem:[%s2] sm:$0xff]
  %v332 = vld [vmem:[%s2 + $0x8] sm:$0xff]
  %v333 = vld [vmem:[%s2 + $0x10] sm:$0xff]
  %v334 = vld [vmem:[%s2 + $0x18] sm:$0xff]
  %v335 = vld [vmem:[%s2 + $0x20] sm:$0xff]
  %v336 = vld [vmem:[%s2 + $0x28] sm:$0xff]
  %v337 = vld [vmem:[%s2 + $0x30] sm:$0xff]
  %v338 = vld [vmem:[%s2 + $0x38] sm:$0xff]
  %v339 = vld [vmem:[%s2 + $0x40] sm:$0xff]
  %v340 = vld [vmem:[%s3] sm:$0xff]
  %v341 = vld [vmem:[%s3 + $0x8] sm:$0xff]
  %v342 = vld [vmem:[%s3 + $0x10] sm:$0xff]
  %v343 = vld [vmem:[%s3 + $0x18] sm:$0xff]
  %v344 = vld [vmem:[%s3 + $0x20] sm:$0xff]
  %v345 = vld [vmem:[%s3 + $0x28] sm:$0xff]
  %v346 = vld [vmem:[%s3 + $0x30] sm:$0xff]
  %v347 = vld [vmem:[%s3 + $0x38] sm:$0xff]
  %v348 = vld [vmem:[%s3 + $0x40] sm:$0xff]
  %350 = vset.pattern.permute.xlu0 0
  %351 = vperm.xlu0 %350, %v340
  %v352 = vpop.permute.xlu0 %351
  %355 = vset.pattern.permute.xlu0 0
  %356 = vperm.xlu0 %355, %v341
  %v357 = vpop.permute.xlu0 %356
  %360 = vset.pattern.permute.xlu0 0
  %361 = vperm.xlu0 %360, %v342
  %v362 = vpop.permute.xlu0 %361
  %365 = vset.pattern.permute.xlu0 0
  %366 = vperm.xlu0 %365, %v343
  %v367 = vpop.permute.xlu0 %366
  %370 = vset.pattern.permute.xlu0 0
  %371 = vperm.xlu0 %370, %v344
  %v372 = vpop.permute.xlu0 %371
  %375 = vset.pattern.permute.xlu0 0
  %376 = vperm.xlu0 %375, %v345
  %v377 = vpop.permute.xlu0 %376
  %380 = vset.pattern.permute.xlu0 0
  %381 = vperm.xlu0 %380, %v346
  %v382 = vpop.permute.xlu0 %381
  %385 = vset.pattern.permute.xlu0 0
  %386 = vperm.xlu0 %385, %v347
  %v387 = vpop.permute.xlu0 %386
  %390 = vset.pattern.permute.xlu0 0
  %391 = vperm.xlu0 %390, %v348
  %v392 = vpop.permute.xlu0 %391
  %vm394 = vcmask 130048
  %v396 = vsel %vm394, %v331, 0
  %v399 = vsel %vm394, %v332, 0
  %v402 = vsel %vm394, %v333, 0
  %v405 = vsel %vm394, %v334, 0
  %v408 = vsel %vm394, %v335, 0
  %v411 = vsel %vm394, %v336, 0
  %v414 = vsel %vm394, %v337, 0
  %v417 = vsel %vm394, %v338, 0
  %v420 = vsel %vm394, %v339, 0
  %422 = vmatpush.msra.mxu0 0.0
  %423 = vmatpush.msra.mxu0 0.0
  %424 = vmatpush.msra.mxu0 0.0
  %425 = vmatpush.msra.mxu0 0.0
  %426 = vmatpush.msra.mxu0 0.0
  %427 = vmatpush.msra.mxu0 0.0
  %428 = vmatpush.msra.mxu0 0.0
  %429 = vmatpush.msra.mxu0 0.0
  %430 = vmatpush.msra.mxu0 0.0
  %431 = vmatpush.msra.mxu0 0.0
  %432 = vmatpush.msra.mxu0 0.0
  %433 = vmatpush.msra.mxu0 0.0
  %434 = vmatpush.msra.mxu0 0.0
  %435 = vmatpush.msra.mxu0 0.0
  %436 = vmatpush.msra.mxu0 %v168
  %437 = vmatpush.msra.mxu0 %v165
  %438 = vmatmul.f32.gmra.mxu0 %v396
  %v439 = vpop.f32.mrf.mxu0
  %v440 = vadd.f32 %v352, %v439
  %441 = vmatmul.f32.gmra.mxu0 %v399
  %v442 = vpop.f32.mrf.mxu0
  %v443 = vadd.f32 %v357, %v442
  %444 = vmatmul.f32.gmra.mxu0 %v402
  %v445 = vpop.f32.mrf.mxu0
  %v446 = vadd.f32 %v362, %v445
  %447 = vmatmul.f32.gmra.mxu0 %v405
  %v448 = vpop.f32.mrf.mxu0
  %v449 = vadd.f32 %v367, %v448
  %450 = vmatmul.f32.gmra.mxu0 %v408
  %v451 = vpop.f32.mrf.mxu0
  %v452 = vadd.f32 %v372, %v451
  %453 = vmatmul.f32.gmra.mxu0 %v411
  %v454 = vpop.f32.mrf.mxu0
  %v455 = vadd.f32 %v377, %v454
  %456 = vmatmul.f32.gmra.mxu0 %v414
  %v457 = vpop.f32.mrf.mxu0
  %v458 = vadd.f32 %v382, %v457
  %459 = vmatmul.f32.gmra.mxu0 %v417
  %v460 = vpop.f32.mrf.mxu0
  %v461 = vadd.f32 %v387, %v460
  %462 = vmatmul.f32.gmra.mxu0 %v420
  %v463 = vpop.f32.mrf.mxu0
  %v464 = vadd.f32 %v392, %v463
  %465 = vdwg.mxu0
  %466 = vmatpush.msra.mxu0 0.0
  %467 = vmatpush.msra.mxu0 0.0
  %468 = vmatpush.msra.mxu0 0.0
  %469 = vmatpush.msra.mxu0 0.0
  %470 = vmatpush.msra.mxu0 0.0
  %471 = vmatpush.msra.mxu0 0.0
  %472 = vmatpush.msra.mxu0 0.0
  %473 = vmatpush.msra.mxu0 0.0
  %474 = vmatpush.msra.mxu0 0.0
  %475 = vmatpush.msra.mxu0 0.0
  %476 = vmatpush.msra.mxu0 0.0
  %477 = vmatpush.msra.mxu0 0.0
  %478 = vmatpush.msra.mxu0 0.0
  %479 = vmatpush.msra.mxu0 0.0
  %480 = vmatpush.msra.mxu0 %v191
  %481 = vmatpush.msra.mxu0 %v188
  %482 = vmatmul.f32.gmra.mxu0 %v396
  %v483 = vpop.f32.mrf.mxu0
  %v484 = vadd.f32 %v352, %v483
  %485 = vmatmul.f32.gmra.mxu0 %v399
  %v486 = vpop.f32.mrf.mxu0
  %v487 = vadd.f32 %v357, %v486
  %488 = vmatmul.f32.gmra.mxu0 %v402
  %v489 = vpop.f32.mrf.mxu0
  %v490 = vadd.f32 %v362, %v489
  %491 = vmatmul.f32.gmra.mxu0 %v405
  %v492 = vpop.f32.mrf.mxu0
  %v493 = vadd.f32 %v367, %v492
  %494 = vmatmul.f32.gmra.mxu0 %v408
  %v495 = vpop.f32.mrf.mxu0
  %v496 = vadd.f32 %v372, %v495
  %497 = vmatmul.f32.gmra.mxu0 %v411
  %v498 = vpop.f32.mrf.mxu0
  %v499 = vadd.f32 %v377, %v498
  %500 = vmatmul.f32.gmra.mxu0 %v414
  %v501 = vpop.f32.mrf.mxu0
  %v502 = vadd.f32 %v382, %v501
  %503 = vmatmul.f32.gmra.mxu0 %v417
  %v504 = vpop.f32.mrf.mxu0
  %v505 = vadd.f32 %v387, %v504
  %506 = vmatmul.f32.gmra.mxu0 %v420
  %v507 = vpop.f32.mrf.mxu0
  %v508 = vadd.f32 %v392, %v507
  %509 = vdwg.mxu0
  %510 = vmatpush.msra.mxu0 0.0
  %511 = vmatpush.msra.mxu0 0.0
  %512 = vmatpush.msra.mxu0 0.0
  %513 = vmatpush.msra.mxu0 0.0
  %514 = vmatpush.msra.mxu0 0.0
  %515 = vmatpush.msra.mxu0 0.0
  %516 = vmatpush.msra.mxu0 0.0
  %517 = vmatpush.msra.mxu0 0.0
  %518 = vmatpush.msra.mxu0 0.0
  %519 = vmatpush.msra.mxu0 0.0
  %520 = vmatpush.msra.mxu0 0.0
  %521 = vmatpush.msra.mxu0 0.0
  %522 = vmatpush.msra.mxu0 0.0
  %523 = vmatpush.msra.mxu0 0.0
  %524 = vmatpush.msra.mxu0 %v214
  %525 = vmatpush.msra.mxu0 %v211
  %526 = vmatmul.f32.gmra.mxu0 %v396
  %v527 = vpop.f32.mrf.mxu0
  %v528 = vadd.f32 %v352, %v527
  %529 = vmatmul.f32.gmra.mxu0 %v399
  %v530 = vpop.f32.mrf.mxu0
  %v531 = vadd.f32 %v357, %v530
  %532 = vmatmul.f32.gmra.mxu0 %v402
  %v533 = vpop.f32.mrf.mxu0
  %v534 = vadd.f32 %v362, %v533
  %535 = vmatmul.f32.gmra.mxu0 %v405
  %v536 = vpop.f32.mrf.mxu0
  %v537 = vadd.f32 %v367, %v536
  %538 = vmatmul.f32.gmra.mxu0 %v408
  %v539 = vpop.f32.mrf.mxu0
  %v540 = vadd.f32 %v372, %v539
  %541 = vmatmul.f32.gmra.mxu0 %v411
  %v542 = vpop.f32.mrf.mxu0
  %v543 = vadd.f32 %v377, %v542
  %544 = vmatmul.f32.gmra.mxu0 %v414
  %v545 = vpop.f32.mrf.mxu0
  %v546 = vadd.f32 %v382, %v545
  %547 = vmatmul.f32.gmra.mxu0 %v417
  %v548 = vpop.f32.mrf.mxu0
  %v549 = vadd.f32 %v387, %v548
  %550 = vmatmul.f32.gmra.mxu0 %v420
  %v551 = vpop.f32.mrf.mxu0
  %v552 = vadd.f32 %v392, %v551
  %553 = vdwg.mxu0
  %554 = vmatpush.msra.mxu0 0.0
  %555 = vmatpush.msra.mxu0 0.0
  %556 = vmatpush.msra.mxu0 0.0
  %557 = vmatpush.msra.mxu0 0.0
  %558 = vmatpush.msra.mxu0 0.0
  %559 = vmatpush.msra.mxu0 0.0
  %560 = vmatpush.msra.mxu0 0.0
  %561 = vmatpush.msra.mxu0 0.0
  %562 = vmatpush.msra.mxu0 0.0
  %563 = vmatpush.msra.mxu0 0.0
  %564 = vmatpush.msra.mxu0 0.0
  %565 = vmatpush.msra.mxu0 0.0
  %566 = vmatpush.msra.mxu0 0.0
  %567 = vmatpush.msra.mxu0 0.0
  %568 = vmatpush.msra.mxu0 %v237
  %569 = vmatpush.msra.mxu0 %v234
  %570 = vmatmul.f32.gmra.mxu0 %v396
  %v571 = vpop.f32.mrf.mxu0
  %v572 = vadd.f32 %v352, %v571
  %573 = vmatmul.f32.gmra.mxu0 %v399
  %v574 = vpop.f32.mrf.mxu0
  %v575 = vadd.f32 %v357, %v574
  %576 = vmatmul.f32.gmra.mxu0 %v402
  %v577 = vpop.f32.mrf.mxu0
  %v578 = vadd.f32 %v362, %v577
  %579 = vmatmul.f32.gmra.mxu0 %v405
  %v580 = vpop.f32.mrf.mxu0
  %v581 = vadd.f32 %v367, %v580
  %582 = vmatmul.f32.gmra.mxu0 %v408
  %v583 = vpop.f32.mrf.mxu0
  %v584 = vadd.f32 %v372, %v583
  %585 = vmatmul.f32.gmra.mxu0 %v411
  %v586 = vpop.f32.mrf.mxu0
  %v587 = vadd.f32 %v377, %v586
  %588 = vmatmul.f32.gmra.mxu0 %v414
  %v589 = vpop.f32.mrf.mxu0
  %v590 = vadd.f32 %v382, %v589
  %591 = vmatmul.f32.gmra.mxu0 %v417
  %v592 = vpop.f32.mrf.mxu0
  %v593 = vadd.f32 %v387, %v592
  %594 = vmatmul.f32.gmra.mxu0 %v420
  %v595 = vpop.f32.mrf.mxu0
  %v596 = vadd.f32 %v392, %v595
  %597 = vdwg.mxu0
  %598 = vmatpush.msra.mxu0 0.0
  %599 = vmatpush.msra.mxu0 0.0
  %600 = vmatpush.msra.mxu0 0.0
  %601 = vmatpush.msra.mxu0 0.0
  %602 = vmatpush.msra.mxu0 0.0
  %603 = vmatpush.msra.mxu0 0.0
  %604 = vmatpush.msra.mxu0 0.0
  %605 = vmatpush.msra.mxu0 0.0
  %606 = vmatpush.msra.mxu0 0.0
  %607 = vmatpush.msra.mxu0 0.0
  %608 = vmatpush.msra.mxu0 0.0
  %609 = vmatpush.msra.mxu0 0.0
  %610 = vmatpush.msra.mxu0 0.0
  %611 = vmatpush.msra.mxu0 0.0
  %612 = vmatpush.msra.mxu0 %v260
  %613 = vmatpush.msra.mxu0 %v257
  %614 = vmatmul.f32.gmra.mxu0 %v396
  %v615 = vpop.f32.mrf.mxu0
  %v616 = vadd.f32 %v352, %v615
  %617 = vmatmul.f32.gmra.mxu0 %v399
  %v618 = vpop.f32.mrf.mxu0
  %v619 = vadd.f32 %v357, %v618
  %620 = vmatmul.f32.gmra.mxu0 %v402
  %v621 = vpop.f32.mrf.mxu0
  %v622 = vadd.f32 %v362, %v621
  %623 = vmatmul.f32.gmra.mxu0 %v405
  %v624 = vpop.f32.mrf.mxu0
  %v625 = vadd.f32 %v367, %v624
  %626 = vmatmul.f32.gmra.mxu0 %v408
  %v627 = vpop.f32.mrf.mxu0
  %v628 = vadd.f32 %v372, %v627
  %629 = vmatmul.f32.gmra.mxu0 %v411
  %v630 = vpop.f32.mrf.mxu0
  %v631 = vadd.f32 %v377, %v630
  %632 = vmatmul.f32.gmra.mxu0 %v414
  %v633 = vpop.f32.mrf.mxu0
  %v634 = vadd.f32 %v382, %v633
  %635 = vmatmul.f32.gmra.mxu0 %v417
  %v636 = vpop.f32.mrf.mxu0
  %v637 = vadd.f32 %v387, %v636
  %638 = vmatmul.f32.gmra.mxu0 %v420
  %v639 = vpop.f32.mrf.mxu0
  %v640 = vadd.f32 %v392, %v639
  %641 = vdwg.mxu0
  %642 = vmatpush.msra.mxu0 0.0
  %643 = vmatpush.msra.mxu0 0.0
  %644 = vmatpush.msra.mxu0 0.0
  %645 = vmatpush.msra.mxu0 0.0
  %646 = vmatpush.msra.mxu0 0.0
  %647 = vmatpush.msra.mxu0 0.0
  %648 = vmatpush.msra.mxu0 0.0
  %649 = vmatpush.msra.mxu0 0.0
  %650 = vmatpush.msra.mxu0 0.0
  %651 = vmatpush.msra.mxu0 0.0
  %652 = vmatpush.msra.mxu0 0.0
  %653 = vmatpush.msra.mxu0 0.0
  %654 = vmatpush.msra.mxu0 0.0
  %655 = vmatpush.msra.mxu0 0.0
  %656 = vmatpush.msra.mxu0 %v283
  %657 = vmatpush.msra.mxu0 %v280
  %658 = vmatmul.f32.gmra.mxu0 %v396
  %v659 = vpop.f32.mrf.mxu0
  %v660 = vadd.f32 %v352, %v659
  %661 = vmatmul.f32.gmra.mxu0 %v399
  %v662 = vpop.f32.mrf.mxu0
  %v663 = vadd.f32 %v357, %v662
  %664 = vmatmul.f32.gmra.mxu0 %v402
  %v665 = vpop.f32.mrf.mxu0
  %v666 = vadd.f32 %v362, %v665
  %667 = vmatmul.f32.gmra.mxu0 %v405
  %v668 = vpop.f32.mrf.mxu0
  %v669 = vadd.f32 %v367, %v668
  %670 = vmatmul.f32.gmra.mxu0 %v408
  %v671 = vpop.f32.mrf.mxu0
  %v672 = vadd.f32 %v372, %v671
  %673 = vmatmul.f32.gmra.mxu0 %v411
  %v674 = vpop.f32.mrf.mxu0
  %v675 = vadd.f32 %v377, %v674
  %676 = vmatmul.f32.gmra.mxu0 %v414
  %v677 = vpop.f32.mrf.mxu0
  %v678 = vadd.f32 %v382, %v677
  %679 = vmatmul.f32.gmra.mxu0 %v417
  %v680 = vpop.f32.mrf.mxu0
  %v681 = vadd.f32 %v387, %v680
  %682 = vmatmul.f32.gmra.mxu0 %v420
  %v683 = vpop.f32.mrf.mxu0
  %v684 = vadd.f32 %v392, %v683
  %685 = vdwg.mxu0
  %686 = vmatpush.msra.mxu0 0.0
  %687 = vmatpush.msra.mxu0 0.0
  %688 = vmatpush.msra.mxu0 0.0
  %689 = vmatpush.msra.mxu0 0.0
  %690 = vmatpush.msra.mxu0 0.0
  %691 = vmatpush.msra.mxu0 0.0
  %692 = vmatpush.msra.mxu0 0.0
  %693 = vmatpush.msra.mxu0 0.0
  %694 = vmatpush.msra.mxu0 0.0
  %695 = vmatpush.msra.mxu0 0.0
  %696 = vmatpush.msra.mxu0 0.0
  %697 = vmatpush.msra.mxu0 0.0
  %698 = vmatpush.msra.mxu0 0.0
  %699 = vmatpush.msra.mxu0 0.0
  %700 = vmatpush.msra.mxu0 %v306
  %701 = vmatpush.msra.mxu0 %v303
  %702 = vmatmul.f32.gmra.mxu0 %v396
  %v703 = vpop.f32.mrf.mxu0
  %v704 = vadd.f32 %v352, %v703
  %705 = vmatmul.f32.gmra.mxu0 %v399
  %v706 = vpop.f32.mrf.mxu0
  %v707 = vadd.f32 %v357, %v706
  %708 = vmatmul.f32.gmra.mxu0 %v402
  %v709 = vpop.f32.mrf.mxu0
  %v710 = vadd.f32 %v362, %v709
  %711 = vmatmul.f32.gmra.mxu0 %v405
  %v712 = vpop.f32.mrf.mxu0
  %v713 = vadd.f32 %v367, %v712
  %714 = vmatmul.f32.gmra.mxu0 %v408
  %v715 = vpop.f32.mrf.mxu0
  %v716 = vadd.f32 %v372, %v715
  %717 = vmatmul.f32.gmra.mxu0 %v411
  %v718 = vpop.f32.mrf.mxu0
  %v719 = vadd.f32 %v377, %v718
  %720 = vmatmul.f32.gmra.mxu0 %v414
  %v721 = vpop.f32.mrf.mxu0
  %v722 = vadd.f32 %v382, %v721
  %723 = vmatmul.f32.gmra.mxu0 %v417
  %v724 = vpop.f32.mrf.mxu0
  %v725 = vadd.f32 %v387, %v724
  %726 = vmatmul.f32.gmra.mxu0 %v420
  %v727 = vpop.f32.mrf.mxu0
  %v728 = vadd.f32 %v392, %v727
  %729 = vdwg.mxu0
  %730 = vmatpush.msra.mxu0 0.0
  %731 = vmatpush.msra.mxu0 0.0
  %732 = vmatpush.msra.mxu0 0.0
  %733 = vmatpush.msra.mxu0 0.0
  %734 = vmatpush.msra.mxu0 0.0
  %735 = vmatpush.msra.mxu0 0.0
  %736 = vmatpush.msra.mxu0 0.0
  %737 = vmatpush.msra.mxu0 0.0
  %738 = vmatpush.msra.mxu0 0.0
  %739 = vmatpush.msra.mxu0 0.0
  %740 = vmatpush.msra.mxu0 0.0
  %741 = vmatpush.msra.mxu0 0.0
  %742 = vmatpush.msra.mxu0 0.0
  %743 = vmatpush.msra.mxu0 0.0
  %744 = vmatpush.msra.mxu0 %v329
  %745 = vmatpush.msra.mxu0 %v326
  %746 = vmatmul.f32.gmra.mxu0 %v396
  %v747 = vpop.f32.mrf.mxu0
  %v748 = vadd.f32 %v352, %v747
  %749 = vmatmul.f32.gmra.mxu0 %v399
  %v750 = vpop.f32.mrf.mxu0
  %v751 = vadd.f32 %v357, %v750
  %752 = vmatmul.f32.gmra.mxu0 %v402
  %v753 = vpop.f32.mrf.mxu0
  %v754 = vadd.f32 %v362, %v753
  %755 = vmatmul.f32.gmra.mxu0 %v405
  %v756 = vpop.f32.mrf.mxu0
  %v757 = vadd.f32 %v367, %v756
  %758 = vmatmul.f32.gmra.mxu0 %v408
  %v759 = vpop.f32.mrf.mxu0
  %v760 = vadd.f32 %v372, %v759
  %761 = vmatmul.f32.gmra.mxu0 %v411
  %v762 = vpop.f32.mrf.mxu0
  %v763 = vadd.f32 %v377, %v762
  %764 = vmatmul.f32.gmra.mxu0 %v414
  %v765 = vpop.f32.mrf.mxu0
  %v766 = vadd.f32 %v382, %v765
  %767 = vmatmul.f32.gmra.mxu0 %v417
  %v768 = vpop.f32.mrf.mxu0
  %v769 = vadd.f32 %v387, %v768
  %770 = vmatmul.f32.gmra.mxu0 %v420
  %v771 = vpop.f32.mrf.mxu0
  %v772 = vadd.f32 %v392, %v771
  %773 = vdwg.mxu0
  %v774 = vmax.f32 %v440, 0.0
  %v775 = vmax.f32 %v484, 0.0
  %v776 = vmax.f32 %v528, 0.0
  %v777 = vmax.f32 %v572, 0.0
  %v778 = vmax.f32 %v616, 0.0
  %v779 = vmax.f32 %v660, 0.0
  %v780 = vmax.f32 %v704, 0.0
  %v781 = vmax.f32 %v748, 0.0
  %v782 = vmax.f32 %v443, 0.0
  %v783 = vmax.f32 %v487, 0.0
  %v784 = vmax.f32 %v531, 0.0
  %v785 = vmax.f32 %v575, 0.0
  %v786 = vmax.f32 %v619, 0.0
  %v787 = vmax.f32 %v663, 0.0
  %v788 = vmax.f32 %v707, 0.0
  %v789 = vmax.f32 %v751, 0.0
  %v790 = vmax.f32 %v446, 0.0
  %v791 = vmax.f32 %v490, 0.0
  %v792 = vmax.f32 %v534, 0.0
  %v793 = vmax.f32 %v578, 0.0
  %v794 = vmax.f32 %v622, 0.0
  %v795 = vmax.f32 %v666, 0.0
  %v796 = vmax.f32 %v710, 0.0
  %v797 = vmax.f32 %v754, 0.0
  %v798 = vmax.f32 %v449, 0.0
  %v799 = vmax.f32 %v493, 0.0
  %v800 = vmax.f32 %v537, 0.0
  %v801 = vmax.f32 %v581, 0.0
  %v802 = vmax.f32 %v625, 0.0
  %v803 = vmax.f32 %v669, 0.0
  %v804 = vmax.f32 %v713, 0.0
  %v805 = vmax.f32 %v757, 0.0
  %v806 = vmax.f32 %v452, 0.0
  %v807 = vmax.f32 %v496, 0.0
  %v808 = vmax.f32 %v540, 0.0
  %v809 = vmax.f32 %v584, 0.0
  %v810 = vmax.f32 %v628, 0.0
  %v811 = vmax.f32 %v672, 0.0
  %v812 = vmax.f32 %v716, 0.0
  %v813 = vmax.f32 %v760, 0.0
  %v814 = vmax.f32 %v455, 0.0
  %v815 = vmax.f32 %v499, 0.0
  %v816 = vmax.f32 %v543, 0.0
  %v817 = vmax.f32 %v587, 0.0
  %v818 = vmax.f32 %v631, 0.0
  %v819 = vmax.f32 %v675, 0.0
  %v820 = vmax.f32 %v719, 0.0
  %v821 = vmax.f32 %v763, 0.0
  %v822 = vmax.f32 %v458, 0.0
  %v823 = vmax.f32 %v502, 0.0
  %v824 = vmax.f32 %v546, 0.0
  %v825 = vmax.f32 %v590, 0.0
  %v826 = vmax.f32 %v634, 0.0
  %v827 = vmax.f32 %v678, 0.0
  %v828 = vmax.f32 %v722, 0.0
  %v829 = vmax.f32 %v766, 0.0
  %v830 = vmax.f32 %v461, 0.0
  %v831 = vmax.f32 %v505, 0.0
  %v832 = vmax.f32 %v549, 0.0
  %v833 = vmax.f32 %v593, 0.0
  %v834 = vmax.f32 %v637, 0.0
  %v835 = vmax.f32 %v681, 0.0
  %v836 = vmax.f32 %v725, 0.0
  %v837 = vmax.f32 %v769, 0.0
  %v838 = vmax.f32 %v464, 0.0
  %v839 = vmax.f32 %v508, 0.0
  %v840 = vmax.f32 %v552, 0.0
  %v841 = vmax.f32 %v596, 0.0
  %v842 = vmax.f32 %v640, 0.0
  %v843 = vmax.f32 %v684, 0.0
  %v844 = vmax.f32 %v728, 0.0
  %v845 = vmax.f32 %v772, 0.0
  %846 = vst [vmem:[%s4] sm:$0xff] %v774
  %847 = vst [vmem:[%s4 + $0x8] sm:$0xff] %v775
  %848 = vst [vmem:[%s4 + $0x10] sm:$0xff] %v776
  %849 = vst [vmem:[%s4 + $0x18] sm:$0xff] %v777
  %850 = vst [vmem:[%s4 + $0x20] sm:$0xff] %v778
  %851 = vst [vmem:[%s4 + $0x28] sm:$0xff] %v779
  %852 = vst [vmem:[%s4 + $0x30] sm:$0xff] %v780
  %853 = vst [vmem:[%s4 + $0x38] sm:$0xff] %v781
  %854 = vst [vmem:[%s4 + $0x40] sm:$0xff] %v782
  %855 = vst [vmem:[%s4 + $0x48] sm:$0xff] %v783
  %856 = vst [vmem:[%s4 + $0x50] sm:$0xff] %v784
  %857 = vst [vmem:[%s4 + $0x58] sm:$0xff] %v785
  %858 = vst [vmem:[%s4 + $0x60] sm:$0xff] %v786
  %859 = vst [vmem:[%s4 + $0x68] sm:$0xff] %v787
  %860 = vst [vmem:[%s4 + $0x70] sm:$0xff] %v788
  %861 = vst [vmem:[%s4 + $0x78] sm:$0xff] %v789
  %862 = vst [vmem:[%s4 + $0x80] sm:$0xff] %v790
  %863 = vst [vmem:[%s4 + $0x88] sm:$0xff] %v791
  %864 = vst [vmem:[%s4 + $0x90] sm:$0xff] %v792
  %865 = vst [vmem:[%s4 + $0x98] sm:$0xff] %v793
  %866 = vst [vmem:[%s4 + $0xa0] sm:$0xff] %v794
  %867 = vst [vmem:[%s4 + $0xa8] sm:$0xff] %v795
  %868 = vst [vmem:[%s4 + $0xb0] sm:$0xff] %v796
  %869 = vst [vmem:[%s4 + $0xb8] sm:$0xff] %v797
  %870 = vst [vmem:[%s4 + $0xc0] sm:$0xff] %v798
  %871 = vst [vmem:[%s4 + $0xc8] sm:$0xff] %v799
  %872 = vst [vmem:[%s4 + $0xd0] sm:$0xff] %v800
  %873 = vst [vmem:[%s4 + $0xd8] sm:$0xff] %v801
  %874 = vst [vmem:[%s4 + $0xe0] sm:$0xff] %v802
  %875 = vst [vmem:[%s4 + $0xe8] sm:$0xff] %v803
  %876 = vst [vmem:[%s4 + $0xf0] sm:$0xff] %v804
  %877 = vst [vmem:[%s4 + $0xf8] sm:$0xff] %v805
  %878 = vst [vmem:[%s4 + $0x100] sm:$0xff] %v806
  %879 = vst [vmem:[%s4 + $0x108] sm:$0xff] %v807
  %880 = vst [vmem:[%s4 + $0x110] sm:$0xff] %v808
  %881 = vst [vmem:[%s4 + $0x118] sm:$0xff] %v809
  %882 = vst [vmem:[%s4 + $0x120] sm:$0xff] %v810
  %883 = vst [vmem:[%s4 + $0x128] sm:$0xff] %v811
  %884 = vst [vmem:[%s4 + $0x130] sm:$0xff] %v812
  %885 = vst [vmem:[%s4 + $0x138] sm:$0xff] %v813
  %886 = vst [vmem:[%s4 + $0x140] sm:$0xff] %v814
  %887 = vst [vmem:[%s4 + $0x148] sm:$0xff] %v815
  %888 = vst [vmem:[%s4 + $0x150] sm:$0xff] %v816
  %889 = vst [vmem:[%s4 + $0x158] sm:$0xff] %v817
  %890 = vst [vmem:[%s4 + $0x160] sm:$0xff] %v818
  %891 = vst [vmem:[%s4 + $0x168] sm:$0xff] %v819
  %892 = vst [vmem:[%s4 + $0x170] sm:$0xff] %v820
  %893 = vst [vmem:[%s4 + $0x178] sm:$0xff] %v821
  %894 = vst [vmem:[%s4 + $0x180] sm:$0xff] %v822
  %895 = vst [vmem:[%s4 + $0x188] sm:$0xff] %v823
  %896 = vst [vmem:[%s4 + $0x190] sm:$0xff] %v824
  %897 = vst [vmem:[%s4 + $0x198] sm:$0xff] %v825
  %898 = vst [vmem:[%s4 + $0x1a0] sm:$0xff] %v826
  %899 = vst [vmem:[%s4 + $0x1a8] sm:$0xff] %v827
  %900 = vst [vmem:[%s4 + $0x1b0] sm:$0xff] %v828
  %901 = vst [vmem:[%s4 + $0x1b8] sm:$0xff] %v829
  %902 = vst [vmem:[%s4 + $0x1c0] sm:$0xff] %v830
  %903 = vst [vmem:[%s4 + $0x1c8] sm:$0xff] %v831
  %904 = vst [vmem:[%s4 + $0x1d0] sm:$0xff] %v832
  %905 = vst [vmem:[%s4 + $0x1d8] sm:$0xff] %v833
  %906 = vst [vmem:[%s4 + $0x1e0] sm:$0xff] %v834
  %907 = vst [vmem:[%s4 + $0x1e8] sm:$0xff] %v835
  %908 = vst [vmem:[%s4 + $0x1f0] sm:$0xff] %v836
  %909 = vst [vmem:[%s4 + $0x1f8] sm:$0xff] %v837
  %910 = vst [vmem:[%s4 + $0x200] sm:$0xff] %v838
  %911 = vst [vmem:[%s4 + $0x208] sm:$0xff] %v839
  %912 = vst [vmem:[%s4 + $0x210] sm:$0xff] %v840
  %913 = vst [vmem:[%s4 + $0x218] sm:$0xff] %v841
  %914 = vst [vmem:[%s4 + $0x220] sm:$0xff] %v842
  %915 = vst [vmem:[%s4 + $0x228] sm:$0xff] %v843
  %916 = vst [vmem:[%s4 + $0x230] sm:$0xff] %v844
  %917 = vst [vmem:[%s4 + $0x238] sm:$0xff] %v845
  // Predicated region
  $region18: #{_lambda_.12} parent=0 // pred_check
    _
  $region19: #{_lambda_.12} parent=0 // pred_check_branch
    %919 = sbr.rel (0) target = $region21
  $region20: #{_lambda_.12} parent=0 // pred_region
    _
  $region21: #{_lambda_.12} parent=0 // pred_fallthru
    _
  // Predicated region
  $region22: #{_lambda_.12} parent=0 // pred_check
    _
  $region23: #{_lambda_.12} parent=0 // pred_check_branch
    %921 = sbr.rel (0) target = $region25
  $region24: #{_lambda_.12} parent=0 // pred_region
    _
  $region25: #{_lambda_.12} parent=0 // pred_fallthru
    _

// kernel: _lambda_.14
$region0: #{_lambda_.14}
  #allocation0 [shape = 'u32[]', space=smem, size = 0x4, offset = 0x4, fixed_abs, tag = 'smem constant byte address 0x4 - core index']
  #allocation1 [shape = 'u32[72,128]{1,0:T(1,128)}', space=vmem, size = 0x9000, scoped, tag = 'internal scratch']
  %s0 = inlined_call_operand.vmem [shape: f32[864,1024], index: 0, kind: input, shape index: {}]
  %s1 = inlined_call_operand.vmem [shape: f32[32,864], index: 1, kind: input, shape index: {}]
  %s2 = inlined_call_operand.vmem [shape: f32[32,1], index: 2, kind: input, shape index: {}]
  %s3 = inlined_call_operand.vmem [shape: f32[32,1024], index: 3, kind: output, shape index: {}]
  %s4 = sld [smem:[#allocation0]]
  $region22: #{_lambda_.14} parent=0
    _
  %s6 = ssub.s32 1, %s4
  %s7 = scalar_select 0, %s6, %s4
  // Predicated region
  $region2: #{_lambda_.14} parent=0 // pred_check
    _
  $region3: #{_lambda_.14} parent=0 // pred_check_branch
    %9 = sbr.rel (0) target = $region5
  $region4: #{_lambda_.14} parent=0 // pred_region
    _
  $region5: #{_lambda_.14} parent=0 // pred_fallthru
    _
  // Predicated region
  $region6: #{_lambda_.14} parent=0 // pred_check
    _
  $region7: #{_lambda_.14} parent=0 // pred_check_branch
    %11 = sbr.rel (0) target = $region9
  $region8: #{_lambda_.14} parent=0 // pred_region
    _
  $region9: #{_lambda_.14} parent=0 // pred_fallthru
    _
  // Predicated region
  $region10: #{_lambda_.14} parent=0 // pred_check
    _
  $region11: #{_lambda_.14} parent=0 // pred_check_branch
    %13 = sbr.rel (0) target = $region13
  $region12: #{_lambda_.14} parent=0 // pred_region
    _
  $region13: #{_lambda_.14} parent=0 // pred_fallthru
    _
  %v14 = vld [vmem:[%s1] sm:$0xff]
  %v15 = vld [vmem:[%s1 + $0x8] sm:$0xff]
  %v16 = vld [vmem:[%s1 + $0x10] sm:$0xff]
  %v17 = vld [vmem:[%s1 + $0x18] sm:$0xff]
  %v18 = vld [vmem:[%s1 + $0x20] sm:$0xff]
  %v19 = vld [vmem:[%s1 + $0x28] sm:$0xff]
  %v20 = vld [vmem:[%s1 + $0x30] sm:$0xff]
  %v21 = vld [vmem:[%s1 + $0x38] sm:$0xff]
  %v22 = vld [vmem:[%s1 + $0x40] sm:$0xff]
  %v23 = vld [vmem:[%s1 + $0x48] sm:$0xff]
  %v24 = vld [vmem:[%s1 + $0x50] sm:$0xff]
  %v25 = vld [vmem:[%s1 + $0x58] sm:$0xff]
  %v26 = vld [vmem:[%s1 + $0x60] sm:$0xff]
  %v27 = vld [vmem:[%s1 + $0x68] sm:$0xff]
  %v28 = vld [vmem:[%s1 + $0x70] sm:$0xff]
  %v29 = vld [vmem:[%s1 + $0x78] sm:$0xff]
  %v30 = vld [vmem:[%s1 + $0x80] sm:$0xff]
  %v31 = vld [vmem:[%s1 + $0x88] sm:$0xff]
  %v32 = vld [vmem:[%s1 + $0x90] sm:$0xff]
  %v33 = vld [vmem:[%s1 + $0x98] sm:$0xff]
  %v34 = vld [vmem:[%s1 + $0xa0] sm:$0xff]
  %v35 = vld [vmem:[%s1 + $0xa8] sm:$0xff]
  %v36 = vld [vmem:[%s1 + $0xb0] sm:$0xff]
  %v37 = vld [vmem:[%s1 + $0xb8] sm:$0xff]
  %v38 = vld [vmem:[%s1 + $0xc0] sm:$0xff]
  %v39 = vld [vmem:[%s1 + $0xc8] sm:$0xff]
  %v40 = vld [vmem:[%s1 + $0xd0] sm:$0xff]
  %v41 = vld [vmem:[%s1 + $0xd8] sm:$0xff]
  %v42 = vld [vmem:[%s0] sm:$0xff]
  %v43 = vld [vmem:[%s0 + $0x8] sm:$0xff]
  %v44 = vld [vmem:[%s0 + $0x10] sm:$0xff]
  %v45 = vld [vmem:[%s0 + $0x18] sm:$0xff]
  %v46 = vld [vmem:[%s0 + $0x20] sm:$0xff]
  %v47 = vld [vmem:[%s0 + $0x28] sm:$0xff]
  %v48 = vld [vmem:[%s0 + $0x30] sm:$0xff]
  %v49 = vld [vmem:[%s0 + $0x38] sm:$0xff]
  %v50 = vld [vmem:[%s0 + $0x40] sm:$0xff]
  %v51 = vld [vmem:[%s0 + $0x48] sm:$0xff]
  %v52 = vld [vmem:[%s0 + $0x50] sm:$0xff]
  %v53 = vld [vmem:[%s0 + $0x58] sm:$0xff]
  %v54 = vld [vmem:[%s0 + $0x60] sm:$0xff]
  %v55 = vld [vmem:[%s0 + $0x68] sm:$0xff]
  %v56 = vld [vmem:[%s0 + $0x70] sm:$0xff]
  %v57 = vld [vmem:[%s0 + $0x78] sm:$0xff]
  %v58 = vld [vmem:[%s0 + $0x80] sm:$0xff]
  %v59 = vld [vmem:[%s0 + $0x88] sm:$0xff]
  %v60 = vld [vmem:[%s0 + $0x90] sm:$0xff]
  %v61 = vld [vmem:[%s0 + $0x98] sm:$0xff]
  %v62 = vld [vmem:[%s0 + $0xa0] sm:$0xff]
  %v63 = vld [vmem:[%s0 + $0xa8] sm:$0xff]
  %v64 = vld [vmem:[%s0 + $0xb0] sm:$0xff]
  %v65 = vld [vmem:[%s0 + $0xb8] sm:$0xff]
  %v66 = vld [vmem:[%s0 + $0xc0] sm:$0xff]
  %v67 = vld [vmem:[%s0 + $0xc8] sm:$0xff]
  %v68 = vld [vmem:[%s0 + $0xd0] sm:$0xff]
  %v69 = vld [vmem:[%s0 + $0xd8] sm:$0xff]
  %v70 = vld [vmem:[%s0 + $0xe0] sm:$0xff]
  %v71 = vld [vmem:[%s0 + $0xe8] sm:$0xff]
  %v72 = vld [vmem:[%s0 + $0xf0] sm:$0xff]
  %v73 = vld [vmem:[%s0 + $0xf8] sm:$0xff]
  %v74 = vld [vmem:[%s0 + $0x100] sm:$0xff]
  %v75 = vld [vmem:[%s0 + $0x108] sm:$0xff]
  %v76 = vld [vmem:[%s0 + $0x110] sm:$0xff]
  %v77 = vld [vmem:[%s0 + $0x118] sm:$0xff]
  %v78 = vld [vmem:[%s0 + $0x120] sm:$0xff]
  %v79 = vld [vmem:[%s0 + $0x128] sm:$0xff]
  %v80 = vld [vmem:[%s0 + $0x130] sm:$0xff]
  %v81 = vld [vmem:[%s0 + $0x138] sm:$0xff]
  %v82 = vld [vmem:[%s0 + $0x140] sm:$0xff]
  %v83 = vld [vmem:[%s0 + $0x148] sm:$0xff]
  %v84 = vld [vmem:[%s0 + $0x150] sm:$0xff]
  %v85 = vld [vmem:[%s0 + $0x158] sm:$0xff]
  %v86 = vld [vmem:[%s0 + $0x160] sm:$0xff]
  %v87 = vld [vmem:[%s0 + $0x168] sm:$0xff]
  %v88 = vld [vmem:[%s0 + $0x170] sm:$0xff]
  %v89 = vld [vmem:[%s0 + $0x178] sm:$0xff]
  %v90 = vld [vmem:[%s0 + $0x180] sm:$0xff]
  %v91 = vld [vmem:[%s0 + $0x188] sm:$0xff]
  %v92 = vld [vmem:[%s0 + $0x190] sm:$0xff]
  %v93 = vld [vmem:[%s0 + $0x198] sm:$0xff]
  %v94 = vld [vmem:[%s0 + $0x1a0] sm:$0xff]
  %v95 = vld [vmem:[%s0 + $0x1a8] sm:$0xff]
  %v96 = vld [vmem:[%s0 + $0x1b0] sm:$0xff]
  %v97 = vld [vmem:[%s0 + $0x1b8] sm:$0xff]
  %v98 = vld [vmem:[%s0 + $0x1c0] sm:$0xff]
  %v99 = vld [vmem:[%s0 + $0x1c8] sm:$0xff]
  %v100 = vld [vmem:[%s0 + $0x1d0] sm:$0xff]
  %v101 = vld [vmem:[%s0 + $0x1d8] sm:$0xff]
  %v102 = vld [vmem:[%s0 + $0x1e0] sm:$0xff]
  %v103 = vld [vmem:[%s0 + $0x1e8] sm:$0xff]
  %v104 = vld [vmem:[%s0 + $0x1f0] sm:$0xff]
  %v105 = vld [vmem:[%s0 + $0x1f8] sm:$0xff]
  %v106 = vld [vmem:[%s0 + $0x200] sm:$0xff]
  %v107 = vld [vmem:[%s0 + $0x208] sm:$0xff]
  %v108 = vld [vmem:[%s0 + $0x210] sm:$0xff]
  %v109 = vld [vmem:[%s0 + $0x218] sm:$0xff]
  %v110 = vld [vmem:[%s0 + $0x220] sm:$0xff]
  %v111 = vld [vmem:[%s0 + $0x228] sm:$0xff]
  %v112 = vld [vmem:[%s0 + $0x230] sm:$0xff]
  %v113 = vld [vmem:[%s0 + $0x238] sm:$0xff]
  %v114 = vld [vmem:[%s0 + $0x240] sm:$0xff]
  %v115 = vld [vmem:[%s0 + $0x248] sm:$0xff]
  %v116 = vld [vmem:[%s0 + $0x250] sm:$0xff]
  %v117 = vld [vmem:[%s0 + $0x258] sm:$0xff]
  %v118 = vld [vmem:[%s0 + $0x260] sm:$0xff]
  %v119 = vld [vmem:[%s0 + $0x268] sm:$0xff]
  %v120 = vld [vmem:[%s0 + $0x270] sm:$0xff]
  %v121 = vld [vmem:[%s0 + $0x278] sm:$0xff]
  %v122 = vld [vmem:[%s0 + $0x280] sm:$0xff]
  %v123 = vld [vmem:[%s0 + $0x288] sm:$0xff]
  %v124 = vld [vmem:[%s0 + $0x290] sm:$0xff]
  %v125 = vld [vmem:[%s0 + $0x298] sm:$0xff]
  %v126 = vld [vmem:[%s0 + $0x2a0] sm:$0xff]
  %v127 = vld [vmem:[%s0 + $0x2a8] sm:$0xff]
  %v128 = vld [vmem:[%s0 + $0x2b0] sm:$0xff]
  %v129 = vld [vmem:[%s0 + $0x2b8] sm:$0xff]
  %v130 = vld [vmem:[%s0 + $0x2c0] sm:$0xff]
  %v131 = vld [vmem:[%s0 + $0x2c8] sm:$0xff]
  %v132 = vld [vmem:[%s0 + $0x2d0] sm:$0xff]
  %v133 = vld [vmem:[%s0 + $0x2d8] sm:$0xff]
  %v134 = vld [vmem:[%s0 + $0x2e0] sm:$0xff]
  %v135 = vld [vmem:[%s0 + $0x2e8] sm:$0xff]
  %v136 = vld [vmem:[%s0 + $0x2f0] sm:$0xff]
  %v137 = vld [vmem:[%s0 + $0x2f8] sm:$0xff]
  %v138 = vld [vmem:[%s0 + $0x300] sm:$0xff]
  %v139 = vld [vmem:[%s0 + $0x308] sm:$0xff]
  %v140 = vld [vmem:[%s0 + $0x310] sm:$0xff]
  %v141 = vld [vmem:[%s0 + $0x318] sm:$0xff]
  %v142 = vld [vmem:[%s0 + $0x320] sm:$0xff]
  %v143 = vld [vmem:[%s0 + $0x328] sm:$0xff]
  %v144 = vld [vmem:[%s0 + $0x330] sm:$0xff]
  %v145 = vld [vmem:[%s0 + $0x338] sm:$0xff]
  %v146 = vld [vmem:[%s0 + $0x340] sm:$0xff]
  %v147 = vld [vmem:[%s0 + $0x348] sm:$0xff]
  %v148 = vld [vmem:[%s0 + $0x350] sm:$0xff]
  %v149 = vld [vmem:[%s0 + $0x358] sm:$0xff]
  %v150 = vld [vmem:[%s0 + $0x360] sm:$0xff]
  %v151 = vld [vmem:[%s0 + $0x368] sm:$0xff]
  %v152 = vld [vmem:[%s0 + $0x370] sm:$0xff]
  %v153 = vld [vmem:[%s0 + $0x378] sm:$0xff]
  %v154 = vld [vmem:[%s0 + $0x380] sm:$0xff]
  %v155 = vld [vmem:[%s0 + $0x388] sm:$0xff]
  %v156 = vld [vmem:[%s0 + $0x390] sm:$0xff]
  %v157 = vld [vmem:[%s0 + $0x398] sm:$0xff]
  %v158 = vld [vmem:[%s0 + $0x3a0] sm:$0xff]
  %v159 = vld [vmem:[%s0 + $0x3a8] sm:$0xff]
  %v160 = vld [vmem:[%s0 + $0x3b0] sm:$0xff]
  %v161 = vld [vmem:[%s0 + $0x3b8] sm:$0xff]
  %v162 = vld [vmem:[%s0 + $0x3c0] sm:$0xff]
  %v163 = vld [vmem:[%s0 + $0x3c8] sm:$0xff]
  %v164 = vld [vmem:[%s0 + $0x3d0] sm:$0xff]
  %v165 = vld [vmem:[%s0 + $0x3d8] sm:$0xff]
  %v166 = vld [vmem:[%s0 + $0x3e0] sm:$0xff]
  %v167 = vld [vmem:[%s0 + $0x3e8] sm:$0xff]
  %v168 = vld [vmem:[%s0 + $0x3f0] sm:$0xff]
  %v169 = vld [vmem:[%s0 + $0x3f8] sm:$0xff]
  %v170 = vld [vmem:[%s0 + $0x400] sm:$0xff]
  %v171 = vld [vmem:[%s0 + $0x408] sm:$0xff]
  %v172 = vld [vmem:[%s0 + $0x410] sm:$0xff]
  %v173 = vld [vmem:[%s0 + $0x418] sm:$0xff]
  %v174 = vld [vmem:[%s0 + $0x420] sm:$0xff]
  %v175 = vld [vmem:[%s0 + $0x428] sm:$0xff]
  %v176 = vld [vmem:[%s0 + $0x430] sm:$0xff]
  %v177 = vld [vmem:[%s0 + $0x438] sm:$0xff]
  %v178 = vld [vmem:[%s0 + $0x440] sm:$0xff]
  %v179 = vld [vmem:[%s0 + $0x448] sm:$0xff]
  %v180 = vld [vmem:[%s0 + $0x450] sm:$0xff]
  %v181 = vld [vmem:[%s0 + $0x458] sm:$0xff]
  %v182 = vld [vmem:[%s0 + $0x460] sm:$0xff]
  %v183 = vld [vmem:[%s0 + $0x468] sm:$0xff]
  %v184 = vld [vmem:[%s0 + $0x470] sm:$0xff]
  %v185 = vld [vmem:[%s0 + $0x478] sm:$0xff]
  %v186 = vld [vmem:[%s0 + $0x480] sm:$0xff]
  %v187 = vld [vmem:[%s0 + $0x488] sm:$0xff]
  %v188 = vld [vmem:[%s0 + $0x490] sm:$0xff]
  %v189 = vld [vmem:[%s0 + $0x498] sm:$0xff]
  %v190 = vld [vmem:[%s0 + $0x4a0] sm:$0xff]
  %v191 = vld [vmem:[%s0 + $0x4a8] sm:$0xff]
  %v192 = vld [vmem:[%s0 + $0x4b0] sm:$0xff]
  %v193 = vld [vmem:[%s0 + $0x4b8] sm:$0xff]
  %v194 = vld [vmem:[%s0 + $0x4c0] sm:$0xff]
  %v195 = vld [vmem:[%s0 + $0x4c8] sm:$0xff]
  %v196 = vld [vmem:[%s0 + $0x4d0] sm:$0xff]
  %v197 = vld [vmem:[%s0 + $0x4d8] sm:$0xff]
  %v198 = vld [vmem:[%s0 + $0x4e0] sm:$0xff]
  %v199 = vld [vmem:[%s0 + $0x4e8] sm:$0xff]
  %v200 = vld [vmem:[%s0 + $0x4f0] sm:$0xff]
  %v201 = vld [vmem:[%s0 + $0x4f8] sm:$0xff]
  %v202 = vld [vmem:[%s0 + $0x500] sm:$0xff]
  %v203 = vld [vmem:[%s0 + $0x508] sm:$0xff]
  %v204 = vld [vmem:[%s0 + $0x510] sm:$0xff]
  %v205 = vld [vmem:[%s0 + $0x518] sm:$0xff]
  %v206 = vld [vmem:[%s0 + $0x520] sm:$0xff]
  %v207 = vld [vmem:[%s0 + $0x528] sm:$0xff]
  %v208 = vld [vmem:[%s0 + $0x530] sm:$0xff]
  %v209 = vld [vmem:[%s0 + $0x538] sm:$0xff]
  %v210 = vld [vmem:[%s0 + $0x540] sm:$0xff]
  %v211 = vld [vmem:[%s0 + $0x548] sm:$0xff]
  %v212 = vld [vmem:[%s0 + $0x550] sm:$0xff]
  %v213 = vld [vmem:[%s0 + $0x558] sm:$0xff]
  %v214 = vld [vmem:[%s0 + $0x560] sm:$0xff]
  %v215 = vld [vmem:[%s0 + $0x568] sm:$0xff]
  %v216 = vld [vmem:[%s0 + $0x570] sm:$0xff]
  %v217 = vld [vmem:[%s0 + $0x578] sm:$0xff]
  %v218 = vld [vmem:[%s0 + $0x580] sm:$0xff]
  %v219 = vld [vmem:[%s0 + $0x588] sm:$0xff]
  %v220 = vld [vmem:[%s0 + $0x590] sm:$0xff]
  %v221 = vld [vmem:[%s0 + $0x598] sm:$0xff]
  %v222 = vld [vmem:[%s0 + $0x5a0] sm:$0xff]
  %v223 = vld [vmem:[%s0 + $0x5a8] sm:$0xff]
  %v224 = vld [vmem:[%s0 + $0x5b0] sm:$0xff]
  %v225 = vld [vmem:[%s0 + $0x5b8] sm:$0xff]
  %v226 = vld [vmem:[%s0 + $0x5c0] sm:$0xff]
  %v227 = vld [vmem:[%s0 + $0x5c8] sm:$0xff]
  %v228 = vld [vmem:[%s0 + $0x5d0] sm:$0xff]
  %v229 = vld [vmem:[%s0 + $0x5d8] sm:$0xff]
  %v230 = vld [vmem:[%s0 + $0x5e0] sm:$0xff]
  %v231 = vld [vmem:[%s0 + $0x5e8] sm:$0xff]
  %v232 = vld [vmem:[%s0 + $0x5f0] sm:$0xff]
  %v233 = vld [vmem:[%s0 + $0x5f8] sm:$0xff]
  %v234 = vld [vmem:[%s0 + $0x600] sm:$0xff]
  %v235 = vld [vmem:[%s0 + $0x608] sm:$0xff]
  %v236 = vld [vmem:[%s0 + $0x610] sm:$0xff]
  %v237 = vld [vmem:[%s0 + $0x618] sm:$0xff]
  %v238 = vld [vmem:[%s0 + $0x620] sm:$0xff]
  %v239 = vld [vmem:[%s0 + $0x628] sm:$0xff]
  %v240 = vld [vmem:[%s0 + $0x630] sm:$0xff]
  %v241 = vld [vmem:[%s0 + $0x638] sm:$0xff]
  %v242 = vld [vmem:[%s0 + $0x640] sm:$0xff]
  %v243 = vld [vmem:[%s0 + $0x648] sm:$0xff]
  %v244 = vld [vmem:[%s0 + $0x650] sm:$0xff]
  %v245 = vld [vmem:[%s0 + $0x658] sm:$0xff]
  %v246 = vld [vmem:[%s0 + $0x660] sm:$0xff]
  %v247 = vld [vmem:[%s0 + $0x668] sm:$0xff]
  %v248 = vld [vmem:[%s0 + $0x670] sm:$0xff]
  %v249 = vld [vmem:[%s0 + $0x678] sm:$0xff]
  %v250 = vld [vmem:[%s0 + $0x680] sm:$0xff]
  %v251 = vld [vmem:[%s0 + $0x688] sm:$0xff]
  %v252 = vld [vmem:[%s0 + $0x690] sm:$0xff]
  %v253 = vld [vmem:[%s0 + $0x698] sm:$0xff]
  %v254 = vld [vmem:[%s0 + $0x6a0] sm:$0xff]
  %v255 = vld [vmem:[%s0 + $0x6a8] sm:$0xff]
  %v256 = vld [vmem:[%s0 + $0x6b0] sm:$0xff]
  %v257 = vld [vmem:[%s0 + $0x6b8] sm:$0xff]
  %v258 = vld [vmem:[%s0 + $0x6c0] sm:$0xff]
  %v259 = vld [vmem:[%s0 + $0x6c8] sm:$0xff]
  %v260 = vld [vmem:[%s0 + $0x6d0] sm:$0xff]
  %v261 = vld [vmem:[%s0 + $0x6d8] sm:$0xff]
  %v262 = vld [vmem:[%s0 + $0x6e0] sm:$0xff]
  %v263 = vld [vmem:[%s0 + $0x6e8] sm:$0xff]
  %v264 = vld [vmem:[%s0 + $0x6f0] sm:$0xff]
  %v265 = vld [vmem:[%s0 + $0x6f8] sm:$0xff]
  %v266 = vld [vmem:[%s0 + $0x700] sm:$0xff]
  %v267 = vld [vmem:[%s0 + $0x708] sm:$0xff]
  %v268 = vld [vmem:[%s0 + $0x710] sm:$0xff]
  %v269 = vld [vmem:[%s0 + $0x718] sm:$0xff]
  %v270 = vld [vmem:[%s0 + $0x720] sm:$0xff]
  %v271 = vld [vmem:[%s0 + $0x728] sm:$0xff]
  %v272 = vld [vmem:[%s0 + $0x730] sm:$0xff]
  %v273 = vld [vmem:[%s0 + $0x738] sm:$0xff]
  %v274 = vld [vmem:[%s0 + $0x740] sm:$0xff]
  %v275 = vld [vmem:[%s0 + $0x748] sm:$0xff]
  %v276 = vld [vmem:[%s0 + $0x750] sm:$0xff]
  %v277 = vld [vmem:[%s0 + $0x758] sm:$0xff]
  %v278 = vld [vmem:[%s0 + $0x760] sm:$0xff]
  %v279 = vld [vmem:[%s0 + $0x768] sm:$0xff]
  %v280 = vld [vmem:[%s0 + $0x770] sm:$0xff]
  %v281 = vld [vmem:[%s0 + $0x778] sm:$0xff]
  %v282 = vld [vmem:[%s0 + $0x780] sm:$0xff]
  %v283 = vld [vmem:[%s0 + $0x788] sm:$0xff]
  %v284 = vld [vmem:[%s0 + $0x790] sm:$0xff]
  %v285 = vld [vmem:[%s0 + $0x798] sm:$0xff]
  %v286 = vld [vmem:[%s0 + $0x7a0] sm:$0xff]
  %v287 = vld [vmem:[%s0 + $0x7a8] sm:$0xff]
  %v288 = vld [vmem:[%s0 + $0x7b0] sm:$0xff]
  %v289 = vld [vmem:[%s0 + $0x7b8] sm:$0xff]
  %v290 = vld [vmem:[%s0 + $0x7c0] sm:$0xff]
  %v291 = vld [vmem:[%s0 + $0x7c8] sm:$0xff]
  %v292 = vld [vmem:[%s0 + $0x7d0] sm:$0xff]
  %v293 = vld [vmem:[%s0 + $0x7d8] sm:$0xff]
  %v294 = vld [vmem:[%s0 + $0x7e0] sm:$0xff]
  %v295 = vld [vmem:[%s0 + $0x7e8] sm:$0xff]
  %v296 = vld [vmem:[%s0 + $0x7f0] sm:$0xff]
  %v297 = vld [vmem:[%s0 + $0x7f8] sm:$0xff]
  %v298 = vld [vmem:[%s0 + $0x800] sm:$0xff]
  %v299 = vld [vmem:[%s0 + $0x808] sm:$0xff]
  %v300 = vld [vmem:[%s0 + $0x810] sm:$0xff]
  %v301 = vld [vmem:[%s0 + $0x818] sm:$0xff]
  %v302 = vld [vmem:[%s0 + $0x820] sm:$0xff]
  %v303 = vld [vmem:[%s0 + $0x828] sm:$0xff]
  %v304 = vld [vmem:[%s0 + $0x830] sm:$0xff]
  %v305 = vld [vmem:[%s0 + $0x838] sm:$0xff]
  %v306 = vld [vmem:[%s0 + $0x840] sm:$0xff]
  %v307 = vld [vmem:[%s0 + $0x848] sm:$0xff]
  %v308 = vld [vmem:[%s0 + $0x850] sm:$0xff]
  %v309 = vld [vmem:[%s0 + $0x858] sm:$0xff]
  %v310 = vld [vmem:[%s0 + $0x860] sm:$0xff]
  %v311 = vld [vmem:[%s0 + $0x868] sm:$0xff]
  %v312 = vld [vmem:[%s0 + $0x870] sm:$0xff]
  %v313 = vld [vmem:[%s0 + $0x878] sm:$0xff]
  %v314 = vld [vmem:[%s0 + $0x880] sm:$0xff]
  %v315 = vld [vmem:[%s0 + $0x888] sm:$0xff]
  %v316 = vld [vmem:[%s0 + $0x890] sm:$0xff]
  %v317 = vld [vmem:[%s0 + $0x898] sm:$0xff]
  %v318 = vld [vmem:[%s0 + $0x8a0] sm:$0xff]
  %v319 = vld [vmem:[%s0 + $0x8a8] sm:$0xff]
  %v320 = vld [vmem:[%s0 + $0x8b0] sm:$0xff]
  %v321 = vld [vmem:[%s0 + $0x8b8] sm:$0xff]
  %v322 = vld [vmem:[%s0 + $0x8c0] sm:$0xff]
  %v323 = vld [vmem:[%s0 + $0x8c8] sm:$0xff]
  %v324 = vld [vmem:[%s0 + $0x8d0] sm:$0xff]
  %v325 = vld [vmem:[%s0 + $0x8d8] sm:$0xff]
  %v326 = vld [vmem:[%s0 + $0x8e0] sm:$0xff]
  %v327 = vld [vmem:[%s0 + $0x8e8] sm:$0xff]
  %v328 = vld [vmem:[%s0 + $0x8f0] sm:$0xff]
  %v329 = vld [vmem:[%s0 + $0x8f8] sm:$0xff]
  %v330 = vld [vmem:[%s0 + $0x900] sm:$0xff]
  %v331 = vld [vmem:[%s0 + $0x908] sm:$0xff]
  %v332 = vld [vmem:[%s0 + $0x910] sm:$0xff]
  %v333 = vld [vmem:[%s0 + $0x918] sm:$0xff]
  %v334 = vld [vmem:[%s0 + $0x920] sm:$0xff]
  %v335 = vld [vmem:[%s0 + $0x928] sm:$0xff]
  %v336 = vld [vmem:[%s0 + $0x930] sm:$0xff]
  %v337 = vld [vmem:[%s0 + $0x938] sm:$0xff]
  %v338 = vld [vmem:[%s0 + $0x940] sm:$0xff]
  %v339 = vld [vmem:[%s0 + $0x948] sm:$0xff]
  %v340 = vld [vmem:[%s0 + $0x950] sm:$0xff]
  %v341 = vld [vmem:[%s0 + $0x958] sm:$0xff]
  %v342 = vld [vmem:[%s0 + $0x960] sm:$0xff]
  %v343 = vld [vmem:[%s0 + $0x968] sm:$0xff]
  %v344 = vld [vmem:[%s0 + $0x970] sm:$0xff]
  %v345 = vld [vmem:[%s0 + $0x978] sm:$0xff]
  %v346 = vld [vmem:[%s0 + $0x980] sm:$0xff]
  %v347 = vld [vmem:[%s0 + $0x988] sm:$0xff]
  %v348 = vld [vmem:[%s0 + $0x990] sm:$0xff]
  %v349 = vld [vmem:[%s0 + $0x998] sm:$0xff]
  %v350 = vld [vmem:[%s0 + $0x9a0] sm:$0xff]
  %v351 = vld [vmem:[%s0 + $0x9a8] sm:$0xff]
  %v352 = vld [vmem:[%s0 + $0x9b0] sm:$0xff]
  %v353 = vld [vmem:[%s0 + $0x9b8] sm:$0xff]
  %v354 = vld [vmem:[%s0 + $0x9c0] sm:$0xff]
  %v355 = vld [vmem:[%s0 + $0x9c8] sm:$0xff]
  %v356 = vld [vmem:[%s0 + $0x9d0] sm:$0xff]
  %v357 = vld [vmem:[%s0 + $0x9d8] sm:$0xff]
  %v358 = vld [vmem:[%s0 + $0x9e0] sm:$0xff]
  %v359 = vld [vmem:[%s0 + $0x9e8] sm:$0xff]
  %v360 = vld [vmem:[%s0 + $0x9f0] sm:$0xff]
  %v361 = vld [vmem:[%s0 + $0x9f8] sm:$0xff]
  %v362 = vld [vmem:[%s0 + $0xa00] sm:$0xff]
  %v363 = vld [vmem:[%s0 + $0xa08] sm:$0xff]
  %v364 = vld [vmem:[%s0 + $0xa10] sm:$0xff]
  %v365 = vld [vmem:[%s0 + $0xa18] sm:$0xff]
  %v366 = vld [vmem:[%s0 + $0xa20] sm:$0xff]
  %v367 = vld [vmem:[%s0 + $0xa28] sm:$0xff]
  %v368 = vld [vmem:[%s0 + $0xa30] sm:$0xff]
  %v369 = vld [vmem:[%s0 + $0xa38] sm:$0xff]
  %v370 = vld [vmem:[%s0 + $0xa40] sm:$0xff]
  %v371 = vld [vmem:[%s0 + $0xa48] sm:$0xff]
  %v372 = vld [vmem:[%s0 + $0xa50] sm:$0xff]
  %v373 = vld [vmem:[%s0 + $0xa58] sm:$0xff]
  %v374 = vld [vmem:[%s0 + $0xa60] sm:$0xff]
  %v375 = vld [vmem:[%s0 + $0xa68] sm:$0xff]
  %v376 = vld [vmem:[%s0 + $0xa70] sm:$0xff]
  %v377 = vld [vmem:[%s0 + $0xa78] sm:$0xff]
  %v378 = vld [vmem:[%s0 + $0xa80] sm:$0xff]
  %v379 = vld [vmem:[%s0 + $0xa88] sm:$0xff]
  %v380 = vld [vmem:[%s0 + $0xa90] sm:$0xff]
  %v381 = vld [vmem:[%s0 + $0xa98] sm:$0xff]
  %v382 = vld [vmem:[%s0 + $0xaa0] sm:$0xff]
  %v383 = vld [vmem:[%s0 + $0xaa8] sm:$0xff]
  %v384 = vld [vmem:[%s0 + $0xab0] sm:$0xff]
  %v385 = vld [vmem:[%s0 + $0xab8] sm:$0xff]
  %v386 = vld [vmem:[%s0 + $0xac0] sm:$0xff]
  %v387 = vld [vmem:[%s0 + $0xac8] sm:$0xff]
  %v388 = vld [vmem:[%s0 + $0xad0] sm:$0xff]
  %v389 = vld [vmem:[%s0 + $0xad8] sm:$0xff]
  %v390 = vld [vmem:[%s0 + $0xae0] sm:$0xff]
  %v391 = vld [vmem:[%s0 + $0xae8] sm:$0xff]
  %v392 = vld [vmem:[%s0 + $0xaf0] sm:$0xff]
  %v393 = vld [vmem:[%s0 + $0xaf8] sm:$0xff]
  %v394 = vld [vmem:[%s0 + $0xb00] sm:$0xff]
  %v395 = vld [vmem:[%s0 + $0xb08] sm:$0xff]
  %v396 = vld [vmem:[%s0 + $0xb10] sm:$0xff]
  %v397 = vld [vmem:[%s0 + $0xb18] sm:$0xff]
  %v398 = vld [vmem:[%s0 + $0xb20] sm:$0xff]
  %v399 = vld [vmem:[%s0 + $0xb28] sm:$0xff]
  %v400 = vld [vmem:[%s0 + $0xb30] sm:$0xff]
  %v401 = vld [vmem:[%s0 + $0xb38] sm:$0xff]
  %v402 = vld [vmem:[%s0 + $0xb40] sm:$0xff]
  %v403 = vld [vmem:[%s0 + $0xb48] sm:$0xff]
  %v404 = vld [vmem:[%s0 + $0xb50] sm:$0xff]
  %v405 = vld [vmem:[%s0 + $0xb58] sm:$0xff]
  %v406 = vld [vmem:[%s0 + $0xb60] sm:$0xff]
  %v407 = vld [vmem:[%s0 + $0xb68] sm:$0xff]
  %v408 = vld [vmem:[%s0 + $0xb70] sm:$0xff]
  %v409 = vld [vmem:[%s0 + $0xb78] sm:$0xff]
  %v410 = vld [vmem:[%s0 + $0xb80] sm:$0xff]
  %v411 = vld [vmem:[%s0 + $0xb88] sm:$0xff]
  %v412 = vld [vmem:[%s0 + $0xb90] sm:$0xff]
  %v413 = vld [vmem:[%s0 + $0xb98] sm:$0xff]
  %v414 = vld [vmem:[%s0 + $0xba0] sm:$0xff]
  %v415 = vld [vmem:[%s0 + $0xba8] sm:$0xff]
  %v416 = vld [vmem:[%s0 + $0xbb0] sm:$0xff]
  %v417 = vld [vmem:[%s0 + $0xbb8] sm:$0xff]
  %v418 = vld [vmem:[%s0 + $0xbc0] sm:$0xff]
  %v419 = vld [vmem:[%s0 + $0xbc8] sm:$0xff]
  %v420 = vld [vmem:[%s0 + $0xbd0] sm:$0xff]
  %v421 = vld [vmem:[%s0 + $0xbd8] sm:$0xff]
  %v422 = vld [vmem:[%s0 + $0xbe0] sm:$0xff]
  %v423 = vld [vmem:[%s0 + $0xbe8] sm:$0xff]
  %v424 = vld [vmem:[%s0 + $0xbf0] sm:$0xff]
  %v425 = vld [vmem:[%s0 + $0xbf8] sm:$0xff]
  %v426 = vld [vmem:[%s0 + $0xc00] sm:$0xff]
  %v427 = vld [vmem:[%s0 + $0xc08] sm:$0xff]
  %v428 = vld [vmem:[%s0 + $0xc10] sm:$0xff]
  %v429 = vld [vmem:[%s0 + $0xc18] sm:$0xff]
  %v430 = vld [vmem:[%s0 + $0xc20] sm:$0xff]
  %v431 = vld [vmem:[%s0 + $0xc28] sm:$0xff]
  %v432 = vld [vmem:[%s0 + $0xc30] sm:$0xff]
  %v433 = vld [vmem:[%s0 + $0xc38] sm:$0xff]
  %v434 = vld [vmem:[%s0 + $0xc40] sm:$0xff]
  %v435 = vld [vmem:[%s0 + $0xc48] sm:$0xff]
  %v436 = vld [vmem:[%s0 + $0xc50] sm:$0xff]
  %v437 = vld [vmem:[%s0 + $0xc58] sm:$0xff]
  %v438 = vld [vmem:[%s0 + $0xc60] sm:$0xff]
  %v439 = vld [vmem:[%s0 + $0xc68] sm:$0xff]
  %v440 = vld [vmem:[%s0 + $0xc70] sm:$0xff]
  %v441 = vld [vmem:[%s0 + $0xc78] sm:$0xff]
  %v442 = vld [vmem:[%s0 + $0xc80] sm:$0xff]
  %v443 = vld [vmem:[%s0 + $0xc88] sm:$0xff]
  %v444 = vld [vmem:[%s0 + $0xc90] sm:$0xff]
  %v445 = vld [vmem:[%s0 + $0xc98] sm:$0xff]
  %v446 = vld [vmem:[%s0 + $0xca0] sm:$0xff]
  %v447 = vld [vmem:[%s0 + $0xca8] sm:$0xff]
  %v448 = vld [vmem:[%s0 + $0xcb0] sm:$0xff]
  %v449 = vld [vmem:[%s0 + $0xcb8] sm:$0xff]
  %v450 = vld [vmem:[%s0 + $0xcc0] sm:$0xff]
  %v451 = vld [vmem:[%s0 + $0xcc8] sm:$0xff]
  %v452 = vld [vmem:[%s0 + $0xcd0] sm:$0xff]
  %v453 = vld [vmem:[%s0 + $0xcd8] sm:$0xff]
  %v454 = vld [vmem:[%s0 + $0xce0] sm:$0xff]
  %v455 = vld [vmem:[%s0 + $0xce8] sm:$0xff]
  %v456 = vld [vmem:[%s0 + $0xcf0] sm:$0xff]
  %v457 = vld [vmem:[%s0 + $0xcf8] sm:$0xff]
  %v458 = vld [vmem:[%s0 + $0xd00] sm:$0xff]
  %v459 = vld [vmem:[%s0 + $0xd08] sm:$0xff]
  %v460 = vld [vmem:[%s0 + $0xd10] sm:$0xff]
  %v461 = vld [vmem:[%s0 + $0xd18] sm:$0xff]
  %v462 = vld [vmem:[%s0 + $0xd20] sm:$0xff]
  %v463 = vld [vmem:[%s0 + $0xd28] sm:$0xff]
  %v464 = vld [vmem:[%s0 + $0xd30] sm:$0xff]
  %v465 = vld [vmem:[%s0 + $0xd38] sm:$0xff]
  %v466 = vld [vmem:[%s0 + $0xd40] sm:$0xff]
  %v467 = vld [vmem:[%s0 + $0xd48] sm:$0xff]
  %v468 = vld [vmem:[%s0 + $0xd50] sm:$0xff]
  %v469 = vld [vmem:[%s0 + $0xd58] sm:$0xff]
  %v470 = vld [vmem:[%s0 + $0xd60] sm:$0xff]
  %v471 = vld [vmem:[%s0 + $0xd68] sm:$0xff]
  %v472 = vld [vmem:[%s0 + $0xd70] sm:$0xff]
  %v473 = vld [vmem:[%s0 + $0xd78] sm:$0xff]
  %v474 = vld [vmem:[%s0 + $0xd80] sm:$0xff]
  %v475 = vld [vmem:[%s0 + $0xd88] sm:$0xff]
  %v476 = vld [vmem:[%s0 + $0xd90] sm:$0xff]
  %v477 = vld [vmem:[%s0 + $0xd98] sm:$0xff]
  %v478 = vld [vmem:[%s0 + $0xda0] sm:$0xff]
  %v479 = vld [vmem:[%s0 + $0xda8] sm:$0xff]
  %v480 = vld [vmem:[%s0 + $0xdb0] sm:$0xff]
  %v481 = vld [vmem:[%s0 + $0xdb8] sm:$0xff]
  %v482 = vld [vmem:[%s0 + $0xdc0] sm:$0xff]
  %v483 = vld [vmem:[%s0 + $0xdc8] sm:$0xff]
  %v484 = vld [vmem:[%s0 + $0xdd0] sm:$0xff]
  %v485 = vld [vmem:[%s0 + $0xdd8] sm:$0xff]
  %v486 = vld [vmem:[%s0 + $0xde0] sm:$0xff]
  %v487 = vld [vmem:[%s0 + $0xde8] sm:$0xff]
  %v488 = vld [vmem:[%s0 + $0xdf0] sm:$0xff]
  %v489 = vld [vmem:[%s0 + $0xdf8] sm:$0xff]
  %v490 = vld [vmem:[%s0 + $0xe00] sm:$0xff]
  %v491 = vld [vmem:[%s0 + $0xe08] sm:$0xff]
  %v492 = vld [vmem:[%s0 + $0xe10] sm:$0xff]
  %v493 = vld [vmem:[%s0 + $0xe18] sm:$0xff]
  %v494 = vld [vmem:[%s0 + $0xe20] sm:$0xff]
  %v495 = vld [vmem:[%s0 + $0xe28] sm:$0xff]
  %v496 = vld [vmem:[%s0 + $0xe30] sm:$0xff]
  %v497 = vld [vmem:[%s0 + $0xe38] sm:$0xff]
  %v498 = vld [vmem:[%s0 + $0xe40] sm:$0xff]
  %v499 = vld [vmem:[%s0 + $0xe48] sm:$0xff]
  %v500 = vld [vmem:[%s0 + $0xe50] sm:$0xff]
  %v501 = vld [vmem:[%s0 + $0xe58] sm:$0xff]
  %v502 = vld [vmem:[%s0 + $0xe60] sm:$0xff]
  %v503 = vld [vmem:[%s0 + $0xe68] sm:$0xff]
  %v504 = vld [vmem:[%s0 + $0xe70] sm:$0xff]
  %v505 = vld [vmem:[%s0 + $0xe78] sm:$0xff]
  %v506 = vld [vmem:[%s0 + $0xe80] sm:$0xff]
  %v507 = vld [vmem:[%s0 + $0xe88] sm:$0xff]
  %v508 = vld [vmem:[%s0 + $0xe90] sm:$0xff]
  %v509 = vld [vmem:[%s0 + $0xe98] sm:$0xff]
  %v510 = vld [vmem:[%s0 + $0xea0] sm:$0xff]
  %v511 = vld [vmem:[%s0 + $0xea8] sm:$0xff]
  %v512 = vld [vmem:[%s0 + $0xeb0] sm:$0xff]
  %v513 = vld [vmem:[%s0 + $0xeb8] sm:$0xff]
  %v514 = vld [vmem:[%s0 + $0xec0] sm:$0xff]
  %v515 = vld [vmem:[%s0 + $0xec8] sm:$0xff]
  %v516 = vld [vmem:[%s0 + $0xed0] sm:$0xff]
  %v517 = vld [vmem:[%s0 + $0xed8] sm:$0xff]
  %v518 = vld [vmem:[%s0 + $0xee0] sm:$0xff]
  %v519 = vld [vmem:[%s0 + $0xee8] sm:$0xff]
  %v520 = vld [vmem:[%s0 + $0xef0] sm:$0xff]
  %v521 = vld [vmem:[%s0 + $0xef8] sm:$0xff]
  %v522 = vld [vmem:[%s0 + $0xf00] sm:$0xff]
  %v523 = vld [vmem:[%s0 + $0xf08] sm:$0xff]
  %v524 = vld [vmem:[%s0 + $0xf10] sm:$0xff]
  %v525 = vld [vmem:[%s0 + $0xf18] sm:$0xff]
  %v526 = vld [vmem:[%s0 + $0xf20] sm:$0xff]
  %v527 = vld [vmem:[%s0 + $0xf28] sm:$0xff]
  %v528 = vld [vmem:[%s0 + $0xf30] sm:$0xff]
  %v529 = vld [vmem:[%s0 + $0xf38] sm:$0xff]
  %v530 = vld [vmem:[%s0 + $0xf40] sm:$0xff]
  %v531 = vld [vmem:[%s0 + $0xf48] sm:$0xff]
  %v532 = vld [vmem:[%s0 + $0xf50] sm:$0xff]
  %v533 = vld [vmem:[%s0 + $0xf58] sm:$0xff]
  %v534 = vld [vmem:[%s0 + $0xf60] sm:$0xff]
  %v535 = vld [vmem:[%s0 + $0xf68] sm:$0xff]
  %v536 = vld [vmem:[%s0 + $0xf70] sm:$0xff]
  %v537 = vld [vmem:[%s0 + $0xf78] sm:$0xff]
  %v538 = vld [vmem:[%s0 + $0xf80] sm:$0xff]
  %v539 = vld [vmem:[%s0 + $0xf88] sm:$0xff]
  %v540 = vld [vmem:[%s0 + $0xf90] sm:$0xff]
  %v541 = vld [vmem:[%s0 + $0xf98] sm:$0xff]
  %v542 = vld [vmem:[%s0 + $0xfa0] sm:$0xff]
  %v543 = vld [vmem:[%s0 + $0xfa8] sm:$0xff]
  %v544 = vld [vmem:[%s0 + $0xfb0] sm:$0xff]
  %v545 = vld [vmem:[%s0 + $0xfb8] sm:$0xff]
  %v546 = vld [vmem:[%s0 + $0xfc0] sm:$0xff]
  %v547 = vld [vmem:[%s0 + $0xfc8] sm:$0xff]
  %v548 = vld [vmem:[%s0 + $0xfd0] sm:$0xff]
  %v549 = vld [vmem:[%s0 + $0xfd8] sm:$0xff]
  %v550 = vld [vmem:[%s0 + $0xfe0] sm:$0xff]
  %v551 = vld [vmem:[%s0 + $0xfe8] sm:$0xff]
  %v552 = vld [vmem:[%s0 + $0xff0] sm:$0xff]
  %v553 = vld [vmem:[%s0 + $0xff8] sm:$0xff]
  %v554 = vld [vmem:[%s0 + $0x1000] sm:$0xff]
  %v555 = vld [vmem:[%s0 + $0x1008] sm:$0xff]
  %v556 = vld [vmem:[%s0 + $0x1010] sm:$0xff]
  %v557 = vld [vmem:[%s0 + $0x1018] sm:$0xff]
  %v558 = vld [vmem:[%s0 + $0x1020] sm:$0xff]
  %v559 = vld [vmem:[%s0 + $0x1028] sm:$0xff]
  %v560 = vld [vmem:[%s0 + $0x1030] sm:$0xff]
  %v561 = vld [vmem:[%s0 + $0x1038] sm:$0xff]
  %v562 = vld [vmem:[%s0 + $0x1040] sm:$0xff]
  %v563 = vld [vmem:[%s0 + $0x1048] sm:$0xff]
  %v564 = vld [vmem:[%s0 + $0x1050] sm:$0xff]
  %v565 = vld [vmem:[%s0 + $0x1058] sm:$0xff]
  %v566 = vld [vmem:[%s0 + $0x1060] sm:$0xff]
  %v567 = vld [vmem:[%s0 + $0x1068] sm:$0xff]
  %v568 = vld [vmem:[%s0 + $0x1070] sm:$0xff]
  %v569 = vld [vmem:[%s0 + $0x1078] sm:$0xff]
  %v570 = vld [vmem:[%s0 + $0x1080] sm:$0xff]
  %v571 = vld [vmem:[%s0 + $0x1088] sm:$0xff]
  %v572 = vld [vmem:[%s0 + $0x1090] sm:$0xff]
  %v573 = vld [vmem:[%s0 + $0x1098] sm:$0xff]
  %v574 = vld [vmem:[%s0 + $0x10a0] sm:$0xff]
  %v575 = vld [vmem:[%s0 + $0x10a8] sm:$0xff]
  %v576 = vld [vmem:[%s0 + $0x10b0] sm:$0xff]
  %v577 = vld [vmem:[%s0 + $0x10b8] sm:$0xff]
  %v578 = vld [vmem:[%s0 + $0x10c0] sm:$0xff]
  %v579 = vld [vmem:[%s0 + $0x10c8] sm:$0xff]
  %v580 = vld [vmem:[%s0 + $0x10d0] sm:$0xff]
  %v581 = vld [vmem:[%s0 + $0x10d8] sm:$0xff]
  %v582 = vld [vmem:[%s0 + $0x10e0] sm:$0xff]
  %v583 = vld [vmem:[%s0 + $0x10e8] sm:$0xff]
  %v584 = vld [vmem:[%s0 + $0x10f0] sm:$0xff]
  %v585 = vld [vmem:[%s0 + $0x10f8] sm:$0xff]
  %v586 = vld [vmem:[%s0 + $0x1100] sm:$0xff]
  %v587 = vld [vmem:[%s0 + $0x1108] sm:$0xff]
  %v588 = vld [vmem:[%s0 + $0x1110] sm:$0xff]
  %v589 = vld [vmem:[%s0 + $0x1118] sm:$0xff]
  %v590 = vld [vmem:[%s0 + $0x1120] sm:$0xff]
  %v591 = vld [vmem:[%s0 + $0x1128] sm:$0xff]
  %v592 = vld [vmem:[%s0 + $0x1130] sm:$0xff]
  %v593 = vld [vmem:[%s0 + $0x1138] sm:$0xff]
  %v594 = vld [vmem:[%s0 + $0x1140] sm:$0xff]
  %v595 = vld [vmem:[%s0 + $0x1148] sm:$0xff]
  %v596 = vld [vmem:[%s0 + $0x1150] sm:$0xff]
  %v597 = vld [vmem:[%s0 + $0x1158] sm:$0xff]
  %v598 = vld [vmem:[%s0 + $0x1160] sm:$0xff]
  %v599 = vld [vmem:[%s0 + $0x1168] sm:$0xff]
  %v600 = vld [vmem:[%s0 + $0x1170] sm:$0xff]
  %v601 = vld [vmem:[%s0 + $0x1178] sm:$0xff]
  %v602 = vld [vmem:[%s0 + $0x1180] sm:$0xff]
  %v603 = vld [vmem:[%s0 + $0x1188] sm:$0xff]
  %v604 = vld [vmem:[%s0 + $0x1190] sm:$0xff]
  %v605 = vld [vmem:[%s0 + $0x1198] sm:$0xff]
  %v606 = vld [vmem:[%s0 + $0x11a0] sm:$0xff]
  %v607 = vld [vmem:[%s0 + $0x11a8] sm:$0xff]
  %v608 = vld [vmem:[%s0 + $0x11b0] sm:$0xff]
  %v609 = vld [vmem:[%s0 + $0x11b8] sm:$0xff]
  %v610 = vld [vmem:[%s0 + $0x11c0] sm:$0xff]
  %v611 = vld [vmem:[%s0 + $0x11c8] sm:$0xff]
  %v612 = vld [vmem:[%s0 + $0x11d0] sm:$0xff]
  %v613 = vld [vmem:[%s0 + $0x11d8] sm:$0xff]
  %v614 = vld [vmem:[%s0 + $0x11e0] sm:$0xff]
  %v615 = vld [vmem:[%s0 + $0x11e8] sm:$0xff]
  %v616 = vld [vmem:[%s0 + $0x11f0] sm:$0xff]
  %v617 = vld [vmem:[%s0 + $0x11f8] sm:$0xff]
  %v618 = vld [vmem:[%s0 + $0x1200] sm:$0xff]
  %v619 = vld [vmem:[%s0 + $0x1208] sm:$0xff]
  %v620 = vld [vmem:[%s0 + $0x1210] sm:$0xff]
  %v621 = vld [vmem:[%s0 + $0x1218] sm:$0xff]
  %v622 = vld [vmem:[%s0 + $0x1220] sm:$0xff]
  %v623 = vld [vmem:[%s0 + $0x1228] sm:$0xff]
  %v624 = vld [vmem:[%s0 + $0x1230] sm:$0xff]
  %v625 = vld [vmem:[%s0 + $0x1238] sm:$0xff]
  %v626 = vld [vmem:[%s0 + $0x1240] sm:$0xff]
  %v627 = vld [vmem:[%s0 + $0x1248] sm:$0xff]
  %v628 = vld [vmem:[%s0 + $0x1250] sm:$0xff]
  %v629 = vld [vmem:[%s0 + $0x1258] sm:$0xff]
  %v630 = vld [vmem:[%s0 + $0x1260] sm:$0xff]
  %v631 = vld [vmem:[%s0 + $0x1268] sm:$0xff]
  %v632 = vld [vmem:[%s0 + $0x1270] sm:$0xff]
  %v633 = vld [vmem:[%s0 + $0x1278] sm:$0xff]
  %v634 = vld [vmem:[%s0 + $0x1280] sm:$0xff]
  %v635 = vld [vmem:[%s0 + $0x1288] sm:$0xff]
  %v636 = vld [vmem:[%s0 + $0x1290] sm:$0xff]
  %v637 = vld [vmem:[%s0 + $0x1298] sm:$0xff]
  %v638 = vld [vmem:[%s0 + $0x12a0] sm:$0xff]
  %v639 = vld [vmem:[%s0 + $0x12a8] sm:$0xff]
  %v640 = vld [vmem:[%s0 + $0x12b0] sm:$0xff]
  %v641 = vld [vmem:[%s0 + $0x12b8] sm:$0xff]
  %v642 = vld [vmem:[%s0 + $0x12c0] sm:$0xff]
  %v643 = vld [vmem:[%s0 + $0x12c8] sm:$0xff]
  %v644 = vld [vmem:[%s0 + $0x12d0] sm:$0xff]
  %v645 = vld [vmem:[%s0 + $0x12d8] sm:$0xff]
  %v646 = vld [vmem:[%s0 + $0x12e0] sm:$0xff]
  %v647 = vld [vmem:[%s0 + $0x12e8] sm:$0xff]
  %v648 = vld [vmem:[%s0 + $0x12f0] sm:$0xff]
  %v649 = vld [vmem:[%s0 + $0x12f8] sm:$0xff]
  %v650 = vld [vmem:[%s0 + $0x1300] sm:$0xff]
  %v651 = vld [vmem:[%s0 + $0x1308] sm:$0xff]
  %v652 = vld [vmem:[%s0 + $0x1310] sm:$0xff]
  %v653 = vld [vmem:[%s0 + $0x1318] sm:$0xff]
  %v654 = vld [vmem:[%s0 + $0x1320] sm:$0xff]
  %v655 = vld [vmem:[%s0 + $0x1328] sm:$0xff]
  %v656 = vld [vmem:[%s0 + $0x1330] sm:$0xff]
  %v657 = vld [vmem:[%s0 + $0x1338] sm:$0xff]
  %v658 = vld [vmem:[%s0 + $0x1340] sm:$0xff]
  %v659 = vld [vmem:[%s0 + $0x1348] sm:$0xff]
  %v660 = vld [vmem:[%s0 + $0x1350] sm:$0xff]
  %v661 = vld [vmem:[%s0 + $0x1358] sm:$0xff]
  %v662 = vld [vmem:[%s0 + $0x1360] sm:$0xff]
  %v663 = vld [vmem:[%s0 + $0x1368] sm:$0xff]
  %v664 = vld [vmem:[%s0 + $0x1370] sm:$0xff]
  %v665 = vld [vmem:[%s0 + $0x1378] sm:$0xff]
  %v666 = vld [vmem:[%s0 + $0x1380] sm:$0xff]
  %v667 = vld [vmem:[%s0 + $0x1388] sm:$0xff]
  %v668 = vld [vmem:[%s0 + $0x1390] sm:$0xff]
  %v669 = vld [vmem:[%s0 + $0x1398] sm:$0xff]
  %v670 = vld [vmem:[%s0 + $0x13a0] sm:$0xff]
  %v671 = vld [vmem:[%s0 + $0x13a8] sm:$0xff]
  %v672 = vld [vmem:[%s0 + $0x13b0] sm:$0xff]
  %v673 = vld [vmem:[%s0 + $0x13b8] sm:$0xff]
  %v674 = vld [vmem:[%s0 + $0x13c0] sm:$0xff]
  %v675 = vld [vmem:[%s0 + $0x13c8] sm:$0xff]
  %v676 = vld [vmem:[%s0 + $0x13d0] sm:$0xff]
  %v677 = vld [vmem:[%s0 + $0x13d8] sm:$0xff]
  %v678 = vld [vmem:[%s0 + $0x13e0] sm:$0xff]
  %v679 = vld [vmem:[%s0 + $0x13e8] sm:$0xff]
  %v680 = vld [vmem:[%s0 + $0x13f0] sm:$0xff]
  %v681 = vld [vmem:[%s0 + $0x13f8] sm:$0xff]
  %v682 = vld [vmem:[%s0 + $0x1400] sm:$0xff]
  %v683 = vld [vmem:[%s0 + $0x1408] sm:$0xff]
  %v684 = vld [vmem:[%s0 + $0x1410] sm:$0xff]
  %v685 = vld [vmem:[%s0 + $0x1418] sm:$0xff]
  %v686 = vld [vmem:[%s0 + $0x1420] sm:$0xff]
  %v687 = vld [vmem:[%s0 + $0x1428] sm:$0xff]
  %v688 = vld [vmem:[%s0 + $0x1430] sm:$0xff]
  %v689 = vld [vmem:[%s0 + $0x1438] sm:$0xff]
  %v690 = vld [vmem:[%s0 + $0x1440] sm:$0xff]
  %v691 = vld [vmem:[%s0 + $0x1448] sm:$0xff]
  %v692 = vld [vmem:[%s0 + $0x1450] sm:$0xff]
  %v693 = vld [vmem:[%s0 + $0x1458] sm:$0xff]
  %v694 = vld [vmem:[%s0 + $0x1460] sm:$0xff]
  %v695 = vld [vmem:[%s0 + $0x1468] sm:$0xff]
  %v696 = vld [vmem:[%s0 + $0x1470] sm:$0xff]
  %v697 = vld [vmem:[%s0 + $0x1478] sm:$0xff]
  %v698 = vld [vmem:[%s0 + $0x1480] sm:$0xff]
  %v699 = vld [vmem:[%s0 + $0x1488] sm:$0xff]
  %v700 = vld [vmem:[%s0 + $0x1490] sm:$0xff]
  %v701 = vld [vmem:[%s0 + $0x1498] sm:$0xff]
  %v702 = vld [vmem:[%s0 + $0x14a0] sm:$0xff]
  %v703 = vld [vmem:[%s0 + $0x14a8] sm:$0xff]
  %v704 = vld [vmem:[%s0 + $0x14b0] sm:$0xff]
  %v705 = vld [vmem:[%s0 + $0x14b8] sm:$0xff]
  %v706 = vld [vmem:[%s0 + $0x14c0] sm:$0xff]
  %v707 = vld [vmem:[%s0 + $0x14c8] sm:$0xff]
  %v708 = vld [vmem:[%s0 + $0x14d0] sm:$0xff]
  %v709 = vld [vmem:[%s0 + $0x14d8] sm:$0xff]
  %v710 = vld [vmem:[%s0 + $0x14e0] sm:$0xff]
  %v711 = vld [vmem:[%s0 + $0x14e8] sm:$0xff]
  %v712 = vld [vmem:[%s0 + $0x14f0] sm:$0xff]
  %v713 = vld [vmem:[%s0 + $0x14f8] sm:$0xff]
  %v714 = vld [vmem:[%s0 + $0x1500] sm:$0xff]
  %v715 = vld [vmem:[%s0 + $0x1508] sm:$0xff]
  %v716 = vld [vmem:[%s0 + $0x1510] sm:$0xff]
  %v717 = vld [vmem:[%s0 + $0x1518] sm:$0xff]
  %v718 = vld [vmem:[%s0 + $0x1520] sm:$0xff]
  %v719 = vld [vmem:[%s0 + $0x1528] sm:$0xff]
  %v720 = vld [vmem:[%s0 + $0x1530] sm:$0xff]
  %v721 = vld [vmem:[%s0 + $0x1538] sm:$0xff]
  %v722 = vld [vmem:[%s0 + $0x1540] sm:$0xff]
  %v723 = vld [vmem:[%s0 + $0x1548] sm:$0xff]
  %v724 = vld [vmem:[%s0 + $0x1550] sm:$0xff]
  %v725 = vld [vmem:[%s0 + $0x1558] sm:$0xff]
  %v726 = vld [vmem:[%s0 + $0x1560] sm:$0xff]
  %v727 = vld [vmem:[%s0 + $0x1568] sm:$0xff]
  %v728 = vld [vmem:[%s0 + $0x1570] sm:$0xff]
  %v729 = vld [vmem:[%s0 + $0x1578] sm:$0xff]
  %v730 = vld [vmem:[%s0 + $0x1580] sm:$0xff]
  %v731 = vld [vmem:[%s0 + $0x1588] sm:$0xff]
  %v732 = vld [vmem:[%s0 + $0x1590] sm:$0xff]
  %v733 = vld [vmem:[%s0 + $0x1598] sm:$0xff]
  %v734 = vld [vmem:[%s0 + $0x15a0] sm:$0xff]
  %v735 = vld [vmem:[%s0 + $0x15a8] sm:$0xff]
  %v736 = vld [vmem:[%s0 + $0x15b0] sm:$0xff]
  %v737 = vld [vmem:[%s0 + $0x15b8] sm:$0xff]
  %v738 = vld [vmem:[%s0 + $0x15c0] sm:$0xff]
  %v739 = vld [vmem:[%s0 + $0x15c8] sm:$0xff]
  %v740 = vld [vmem:[%s0 + $0x15d0] sm:$0xff]
  %v741 = vld [vmem:[%s0 + $0x15d8] sm:$0xff]
  %v742 = vld [vmem:[%s0 + $0x15e0] sm:$0xff]
  %v743 = vld [vmem:[%s0 + $0x15e8] sm:$0xff]
  %v744 = vld [vmem:[%s0 + $0x15f0] sm:$0xff]
  %v745 = vld [vmem:[%s0 + $0x15f8] sm:$0xff]
  %v746 = vld [vmem:[%s0 + $0x1600] sm:$0xff]
  %v747 = vld [vmem:[%s0 + $0x1608] sm:$0xff]
  %v748 = vld [vmem:[%s0 + $0x1610] sm:$0xff]
  %v749 = vld [vmem:[%s0 + $0x1618] sm:$0xff]
  %v750 = vld [vmem:[%s0 + $0x1620] sm:$0xff]
  %v751 = vld [vmem:[%s0 + $0x1628] sm:$0xff]
  %v752 = vld [vmem:[%s0 + $0x1630] sm:$0xff]
  %v753 = vld [vmem:[%s0 + $0x1638] sm:$0xff]
  %v754 = vld [vmem:[%s0 + $0x1640] sm:$0xff]
  %v755 = vld [vmem:[%s0 + $0x1648] sm:$0xff]
  %v756 = vld [vmem:[%s0 + $0x1650] sm:$0xff]
  %v757 = vld [vmem:[%s0 + $0x1658] sm:$0xff]
  %v758 = vld [vmem:[%s0 + $0x1660] sm:$0xff]
  %v759 = vld [vmem:[%s0 + $0x1668] sm:$0xff]
  %v760 = vld [vmem:[%s0 + $0x1670] sm:$0xff]
  %v761 = vld [vmem:[%s0 + $0x1678] sm:$0xff]
  %v762 = vld [vmem:[%s0 + $0x1680] sm:$0xff]
  %v763 = vld [vmem:[%s0 + $0x1688] sm:$0xff]
  %v764 = vld [vmem:[%s0 + $0x1690] sm:$0xff]
  %v765 = vld [vmem:[%s0 + $0x1698] sm:$0xff]
  %v766 = vld [vmem:[%s0 + $0x16a0] sm:$0xff]
  %v767 = vld [vmem:[%s0 + $0x16a8] sm:$0xff]
  %v768 = vld [vmem:[%s0 + $0x16b0] sm:$0xff]
  %v769 = vld [vmem:[%s0 + $0x16b8] sm:$0xff]
  %v770 = vld [vmem:[%s0 + $0x16c0] sm:$0xff]
  %v771 = vld [vmem:[%s0 + $0x16c8] sm:$0xff]
  %v772 = vld [vmem:[%s0 + $0x16d0] sm:$0xff]
  %v773 = vld [vmem:[%s0 + $0x16d8] sm:$0xff]
  %v774 = vld [vmem:[%s0 + $0x16e0] sm:$0xff]
  %v775 = vld [vmem:[%s0 + $0x16e8] sm:$0xff]
  %v776 = vld [vmem:[%s0 + $0x16f0] sm:$0xff]
  %v777 = vld [vmem:[%s0 + $0x16f8] sm:$0xff]
  %v778 = vld [vmem:[%s0 + $0x1700] sm:$0xff]
  %v779 = vld [vmem:[%s0 + $0x1708] sm:$0xff]
  %v780 = vld [vmem:[%s0 + $0x1710] sm:$0xff]
  %v781 = vld [vmem:[%s0 + $0x1718] sm:$0xff]
  %v782 = vld [vmem:[%s0 + $0x1720] sm:$0xff]
  %v783 = vld [vmem:[%s0 + $0x1728] sm:$0xff]
  %v784 = vld [vmem:[%s0 + $0x1730] sm:$0xff]
  %v785 = vld [vmem:[%s0 + $0x1738] sm:$0xff]
  %v786 = vld [vmem:[%s0 + $0x1740] sm:$0xff]
  %v787 = vld [vmem:[%s0 + $0x1748] sm:$0xff]
  %v788 = vld [vmem:[%s0 + $0x1750] sm:$0xff]
  %v789 = vld [vmem:[%s0 + $0x1758] sm:$0xff]
  %v790 = vld [vmem:[%s0 + $0x1760] sm:$0xff]
  %v791 = vld [vmem:[%s0 + $0x1768] sm:$0xff]
  %v792 = vld [vmem:[%s0 + $0x1770] sm:$0xff]
  %v793 = vld [vmem:[%s0 + $0x1778] sm:$0xff]
  %v794 = vld [vmem:[%s0 + $0x1780] sm:$0xff]
  %v795 = vld [vmem:[%s0 + $0x1788] sm:$0xff]
  %v796 = vld [vmem:[%s0 + $0x1790] sm:$0xff]
  %v797 = vld [vmem:[%s0 + $0x1798] sm:$0xff]
  %v798 = vld [vmem:[%s0 + $0x17a0] sm:$0xff]
  %v799 = vld [vmem:[%s0 + $0x17a8] sm:$0xff]
  %v800 = vld [vmem:[%s0 + $0x17b0] sm:$0xff]
  %v801 = vld [vmem:[%s0 + $0x17b8] sm:$0xff]
  %v802 = vld [vmem:[%s0 + $0x17c0] sm:$0xff]
  %v803 = vld [vmem:[%s0 + $0x17c8] sm:$0xff]
  %v804 = vld [vmem:[%s0 + $0x17d0] sm:$0xff]
  %v805 = vld [vmem:[%s0 + $0x17d8] sm:$0xff]
  %v806 = vld [vmem:[%s0 + $0x17e0] sm:$0xff]
  %v807 = vld [vmem:[%s0 + $0x17e8] sm:$0xff]
  %v808 = vld [vmem:[%s0 + $0x17f0] sm:$0xff]
  %v809 = vld [vmem:[%s0 + $0x17f8] sm:$0xff]
  %v810 = vld [vmem:[%s0 + $0x1800] sm:$0xff]
  %v811 = vld [vmem:[%s0 + $0x1808] sm:$0xff]
  %v812 = vld [vmem:[%s0 + $0x1810] sm:$0xff]
  %v813 = vld [vmem:[%s0 + $0x1818] sm:$0xff]
  %v814 = vld [vmem:[%s0 + $0x1820] sm:$0xff]
  %v815 = vld [vmem:[%s0 + $0x1828] sm:$0xff]
  %v816 = vld [vmem:[%s0 + $0x1830] sm:$0xff]
  %v817 = vld [vmem:[%s0 + $0x1838] sm:$0xff]
  %v818 = vld [vmem:[%s0 + $0x1840] sm:$0xff]
  %v819 = vld [vmem:[%s0 + $0x1848] sm:$0xff]
  %v820 = vld [vmem:[%s0 + $0x1850] sm:$0xff]
  %v821 = vld [vmem:[%s0 + $0x1858] sm:$0xff]
  %v822 = vld [vmem:[%s0 + $0x1860] sm:$0xff]
  %v823 = vld [vmem:[%s0 + $0x1868] sm:$0xff]
  %v824 = vld [vmem:[%s0 + $0x1870] sm:$0xff]
  %v825 = vld [vmem:[%s0 + $0x1878] sm:$0xff]
  %v826 = vld [vmem:[%s0 + $0x1880] sm:$0xff]
  %v827 = vld [vmem:[%s0 + $0x1888] sm:$0xff]
  %v828 = vld [vmem:[%s0 + $0x1890] sm:$0xff]
  %v829 = vld [vmem:[%s0 + $0x1898] sm:$0xff]
  %v830 = vld [vmem:[%s0 + $0x18a0] sm:$0xff]
  %v831 = vld [vmem:[%s0 + $0x18a8] sm:$0xff]
  %v832 = vld [vmem:[%s0 + $0x18b0] sm:$0xff]
  %v833 = vld [vmem:[%s0 + $0x18b8] sm:$0xff]
  %v834 = vld [vmem:[%s0 + $0x18c0] sm:$0xff]
  %v835 = vld [vmem:[%s0 + $0x18c8] sm:$0xff]
  %v836 = vld [vmem:[%s0 + $0x18d0] sm:$0xff]
  %v837 = vld [vmem:[%s0 + $0x18d8] sm:$0xff]
  %v838 = vld [vmem:[%s0 + $0x18e0] sm:$0xff]
  %v839 = vld [vmem:[%s0 + $0x18e8] sm:$0xff]
  %v840 = vld [vmem:[%s0 + $0x18f0] sm:$0xff]
  %v841 = vld [vmem:[%s0 + $0x18f8] sm:$0xff]
  %v842 = vld [vmem:[%s0 + $0x1900] sm:$0xff]
  %v843 = vld [vmem:[%s0 + $0x1908] sm:$0xff]
  %v844 = vld [vmem:[%s0 + $0x1910] sm:$0xff]
  %v845 = vld [vmem:[%s0 + $0x1918] sm:$0xff]
  %v846 = vld [vmem:[%s0 + $0x1920] sm:$0xff]
  %v847 = vld [vmem:[%s0 + $0x1928] sm:$0xff]
  %v848 = vld [vmem:[%s0 + $0x1930] sm:$0xff]
  %v849 = vld [vmem:[%s0 + $0x1938] sm:$0xff]
  %v850 = vld [vmem:[%s0 + $0x1940] sm:$0xff]
  %v851 = vld [vmem:[%s0 + $0x1948] sm:$0xff]
  %v852 = vld [vmem:[%s0 + $0x1950] sm:$0xff]
  %v853 = vld [vmem:[%s0 + $0x1958] sm:$0xff]
  %v854 = vld [vmem:[%s0 + $0x1960] sm:$0xff]
  %v855 = vld [vmem:[%s0 + $0x1968] sm:$0xff]
  %v856 = vld [vmem:[%s0 + $0x1970] sm:$0xff]
  %v857 = vld [vmem:[%s0 + $0x1978] sm:$0xff]
  %v858 = vld [vmem:[%s0 + $0x1980] sm:$0xff]
  %v859 = vld [vmem:[%s0 + $0x1988] sm:$0xff]
  %v860 = vld [vmem:[%s0 + $0x1990] sm:$0xff]
  %v861 = vld [vmem:[%s0 + $0x1998] sm:$0xff]
  %v862 = vld [vmem:[%s0 + $0x19a0] sm:$0xff]
  %v863 = vld [vmem:[%s0 + $0x19a8] sm:$0xff]
  %v864 = vld [vmem:[%s0 + $0x19b0] sm:$0xff]
  %v865 = vld [vmem:[%s0 + $0x19b8] sm:$0xff]
  %v866 = vld [vmem:[%s0 + $0x19c0] sm:$0xff]
  %v867 = vld [vmem:[%s0 + $0x19c8] sm:$0xff]
  %v868 = vld [vmem:[%s0 + $0x19d0] sm:$0xff]
  %v869 = vld [vmem:[%s0 + $0x19d8] sm:$0xff]
  %v870 = vld [vmem:[%s0 + $0x19e0] sm:$0xff]
  %v871 = vld [vmem:[%s0 + $0x19e8] sm:$0xff]
  %v872 = vld [vmem:[%s0 + $0x19f0] sm:$0xff]
  %v873 = vld [vmem:[%s0 + $0x19f8] sm:$0xff]
  %v874 = vld [vmem:[%s0 + $0x1a00] sm:$0xff]
  %v875 = vld [vmem:[%s0 + $0x1a08] sm:$0xff]
  %v876 = vld [vmem:[%s0 + $0x1a10] sm:$0xff]
  %v877 = vld [vmem:[%s0 + $0x1a18] sm:$0xff]
  %v878 = vld [vmem:[%s0 + $0x1a20] sm:$0xff]
  %v879 = vld [vmem:[%s0 + $0x1a28] sm:$0xff]
  %v880 = vld [vmem:[%s0 + $0x1a30] sm:$0xff]
  %v881 = vld [vmem:[%s0 + $0x1a38] sm:$0xff]
  %v882 = vld [vmem:[%s0 + $0x1a40] sm:$0xff]
  %v883 = vld [vmem:[%s0 + $0x1a48] sm:$0xff]
  %v884 = vld [vmem:[%s0 + $0x1a50] sm:$0xff]
  %v885 = vld [vmem:[%s0 + $0x1a58] sm:$0xff]
  %v886 = vld [vmem:[%s0 + $0x1a60] sm:$0xff]
  %v887 = vld [vmem:[%s0 + $0x1a68] sm:$0xff]
  %v888 = vld [vmem:[%s0 + $0x1a70] sm:$0xff]
  %v889 = vld [vmem:[%s0 + $0x1a78] sm:$0xff]
  %v890 = vld [vmem:[%s0 + $0x1a80] sm:$0xff]
  %v891 = vld [vmem:[%s0 + $0x1a88] sm:$0xff]
  %v892 = vld [vmem:[%s0 + $0x1a90] sm:$0xff]
  %v893 = vld [vmem:[%s0 + $0x1a98] sm:$0xff]
  %v894 = vld [vmem:[%s0 + $0x1aa0] sm:$0xff]
  %v895 = vld [vmem:[%s0 + $0x1aa8] sm:$0xff]
  %v896 = vld [vmem:[%s0 + $0x1ab0] sm:$0xff]
  %v897 = vld [vmem:[%s0 + $0x1ab8] sm:$0xff]
  %v898 = vld [vmem:[%s0 + $0x1ac0] sm:$0xff]
  %v899 = vld [vmem:[%s0 + $0x1ac8] sm:$0xff]
  %v900 = vld [vmem:[%s0 + $0x1ad0] sm:$0xff]
  %v901 = vld [vmem:[%s0 + $0x1ad8] sm:$0xff]
  %v902 = vld [vmem:[%s0 + $0x1ae0] sm:$0xff]
  %v903 = vld [vmem:[%s0 + $0x1ae8] sm:$0xff]
  %v904 = vld [vmem:[%s0 + $0x1af0] sm:$0xff]
  %v905 = vld [vmem:[%s0 + $0x1af8] sm:$0xff]
  %v906 = vld [vmem:[%s2] sm:$0xff]
  %v907 = vld [vmem:[%s2 + $0x8] sm:$0xff]
  %v908 = vld [vmem:[%s2 + $0x10] sm:$0xff]
  %v909 = vld [vmem:[%s2 + $0x18] sm:$0xff]
  %911 = vset.pattern.permute.xlu0 0
  %912 = vperm.xlu0 %911, %v906
  %v913 = vpop.permute.xlu0 %912
  %916 = vset.pattern.permute.xlu0 0
  %917 = vperm.xlu0 %916, %v907
  %v918 = vpop.permute.xlu0 %917
  %921 = vset.pattern.permute.xlu0 0
  %922 = vperm.xlu0 %921, %v908
  %v923 = vpop.permute.xlu0 %922
  %926 = vset.pattern.permute.xlu0 0
  %927 = vperm.xlu0 %926, %v909
  %v928 = vpop.permute.xlu0 %927
  %vm930 = vcmask 785408
  %v932 = vsel %vm930, %v20, 0
  %v935 = vsel %vm930, %v27, 0
  %v938 = vsel %vm930, %v34, 0
  %v941 = vsel %vm930, %v41, 0
  %943 = vmatpush.msra.mxu0 %v162
  %944 = vmatpush.msra.mxu0 %v154
  %945 = vmatpush.msra.mxu0 %v146
  %946 = vmatpush.msra.mxu0 %v138
  %947 = vmatpush.msra.mxu0 %v130
  %948 = vmatpush.msra.mxu0 %v122
  %949 = vmatpush.msra.mxu0 %v114
  %950 = vmatpush.msra.mxu0 %v106
  %951 = vmatpush.msra.mxu0 %v98
  %952 = vmatpush.msra.mxu0 %v90
  %953 = vmatpush.msra.mxu0 %v82
  %954 = vmatpush.msra.mxu0 %v74
  %955 = vmatpush.msra.mxu0 %v66
  %956 = vmatpush.msra.mxu0 %v58
  %957 = vmatpush.msra.mxu0 %v50
  %958 = vmatpush.msra.mxu0 %v42
  %959 = vmatmul.f32.gmra.mxu0 %v14
  %v960 = vpop.f32.mrf.mxu0
  %v961 = vadd.f32 %v913, %v960
  %962 = vmatmul.f32.gmra.mxu0 %v21
  %v963 = vpop.f32.mrf.mxu0
  %v964 = vadd.f32 %v918, %v963
  %965 = vmatmul.f32.gmra.mxu0 %v28
  %v966 = vpop.f32.mrf.mxu0
  %v967 = vadd.f32 %v923, %v966
  %968 = vmatmul.f32.gmra.mxu0 %v35
  %v969 = vpop.f32.mrf.mxu0
  %v970 = vadd.f32 %v928, %v969
  %971 = vdwg.mxu0
  %972 = vmatpush.msra.mxu0 %v290
  %973 = vmatpush.msra.mxu0 %v282
  %974 = vmatpush.msra.mxu0 %v274
  %975 = vmatpush.msra.mxu0 %v266
  %976 = vmatpush.msra.mxu0 %v258
  %977 = vmatpush.msra.mxu0 %v250
  %978 = vmatpush.msra.mxu0 %v242
  %979 = vmatpush.msra.mxu0 %v234
  %980 = vmatpush.msra.mxu0 %v226
  %981 = vmatpush.msra.mxu0 %v218
  %982 = vmatpush.msra.mxu0 %v210
  %983 = vmatpush.msra.mxu0 %v202
  %984 = vmatpush.msra.mxu0 %v194
  %985 = vmatpush.msra.mxu0 %v186
  %986 = vmatpush.msra.mxu0 %v178
  %987 = vmatpush.msra.mxu0 %v170
  %988 = vmatmul.f32.gmra.mxu0 %v15
  %v989 = vpop.f32.mrf.mxu0
  %v990 = vadd.f32 %v961, %v989
  %991 = vmatmul.f32.gmra.mxu0 %v22
  %v992 = vpop.f32.mrf.mxu0
  %v993 = vadd.f32 %v964, %v992
  %994 = vmatmul.f32.gmra.mxu0 %v29
  %v995 = vpop.f32.mrf.mxu0
  %v996 = vadd.f32 %v967, %v995
  %997 = vmatmul.f32.gmra.mxu0 %v36
  %v998 = vpop.f32.mrf.mxu0
  %v999 = vadd.f32 %v970, %v998
  %1000 = vdwg.mxu0
  %1001 = vmatpush.msra.mxu0 %v418
  %1002 = vmatpush.msra.mxu0 %v410
  %1003 = vmatpush.msra.mxu0 %v402
  %1004 = vmatpush.msra.mxu0 %v394
  %1005 = vmatpush.msra.mxu0 %v386
  %1006 = vmatpush.msra.mxu0 %v378
  %1007 = vmatpush.msra.mxu0 %v370
  %1008 = vmatpush.msra.mxu0 %v362
  %1009 = vmatpush.msra.mxu0 %v354
  %1010 = vmatpush.msra.mxu0 %v346
  %1011 = vmatpush.msra.mxu0 %v338
  %1012 = vmatpush.msra.mxu0 %v330
  %1013 = vmatpush.msra.mxu0 %v322
  %1014 = vmatpush.msra.mxu0 %v314
  %1015 = vmatpush.msra.mxu0 %v306
  %1016 = vmatpush.msra.mxu0 %v298
  %1017 = vmatmul.f32.gmra.mxu0 %v16
  %v1018 = vpop.f32.mrf.mxu0
  %v1019 = vadd.f32 %v990, %v1018
  %1020 = vmatmul.f32.gmra.mxu0 %v23
  %v1021 = vpop.f32.mrf.mxu0
  %v1022 = vadd.f32 %v993, %v1021
  %1023 = vmatmul.f32.gmra.mxu0 %v30
  %v1024 = vpop.f32.mrf.mxu0
  %v1025 = vadd.f32 %v996, %v1024
  %1026 = vmatmul.f32.gmra.mxu0 %v37
  %v1027 = vpop.f32.mrf.mxu0
  %v1028 = vadd.f32 %v999, %v1027
  %1029 = vdwg.mxu0
  %1030 = vmatpush.msra.mxu0 %v546
  %1031 = vmatpush.msra.mxu0 %v538
  %1032 = vmatpush.msra.mxu0 %v530
  %1033 = vmatpush.msra.mxu0 %v522
  %1034 = vmatpush.msra.mxu0 %v514
  %1035 = vmatpush.msra.mxu0 %v506
  %1036 = vmatpush.msra.mxu0 %v498
  %1037 = vmatpush.msra.mxu0 %v490
  %1038 = vmatpush.msra.mxu0 %v482
  %1039 = vmatpush.msra.mxu0 %v474
  %1040 = vmatpush.msra.mxu0 %v466
  %1041 = vmatpush.msra.mxu0 %v458
  %1042 = vmatpush.msra.mxu0 %v450
  %1043 = vmatpush.msra.mxu0 %v442
  %1044 = vmatpush.msra.mxu0 %v434
  %1045 = vmatpush.msra.mxu0 %v426
  %1046 = vmatmul.f32.gmra.mxu0 %v17
  %v1047 = vpop.f32.mrf.mxu0
  %v1048 = vadd.f32 %v1019, %v1047
  %1049 = vmatmul.f32.gmra.mxu0 %v24
  %v1050 = vpop.f32.mrf.mxu0
  %v1051 = vadd.f32 %v1022, %v1050
  %1052 = vmatmul.f32.gmra.mxu0 %v31
  %v1053 = vpop.f32.mrf.mxu0
  %v1054 = vadd.f32 %v1025, %v1053
  %1055 = vmatmul.f32.gmra.mxu0 %v38
  %v1056 = vpop.f32.mrf.mxu0
  %v1057 = vadd.f32 %v1028, %v1056
  %1058 = vdwg.mxu0
  %1059 = vmatpush.msra.mxu0 %v674
  %1060 = vmatpush.msra.mxu0 %v666
  %1061 = vmatpush.msra.mxu0 %v658
  %1062 = vmatpush.msra.mxu0 %v650
  %1063 = vmatpush.msra.mxu0 %v642
  %1064 = vmatpush.msra.mxu0 %v634
  %1065 = vmatpush.msra.mxu0 %v626
  %1066 = vmatpush.msra.mxu0 %v618
  %1067 = vmatpush.msra.mxu0 %v610
  %1068 = vmatpush.msra.mxu0 %v602
  %1069 = vmatpush.msra.mxu0 %v594
  %1070 = vmatpush.msra.mxu0 %v586
  %1071 = vmatpush.msra.mxu0 %v578
  %1072 = vmatpush.msra.mxu0 %v570
  %1073 = vmatpush.msra.mxu0 %v562
  %1074 = vmatpush.msra.mxu0 %v554
  %1075 = vmatmul.f32.gmra.mxu0 %v18
  %v1076 = vpop.f32.mrf.mxu0
  %v1077 = vadd.f32 %v1048, %v1076
  %1078 = vmatmul.f32.gmra.mxu0 %v25
  %v1079 = vpop.f32.mrf.mxu0
  %v1080 = vadd.f32 %v1051, %v1079
  %1081 = vmatmul.f32.gmra.mxu0 %v32
  %v1082 = vpop.f32.mrf.mxu0
  %v1083 = vadd.f32 %v1054, %v1082
  %1084 = vmatmul.f32.gmra.mxu0 %v39
  %v1085 = vpop.f32.mrf.mxu0
  %v1086 = vadd.f32 %v1057, %v1085
  %1087 = vdwg.mxu0
  %1088 = vmatpush.msra.mxu0 %v802
  %1089 = vmatpush.msra.mxu0 %v794
  %1090 = vmatpush.msra.mxu0 %v786
  %1091 = vmatpush.msra.mxu0 %v778
  %1092 = vmatpush.msra.mxu0 %v770
  %1093 = vmatpush.msra.mxu0 %v762
  %1094 = vmatpush.msra.mxu0 %v754
  %1095 = vmatpush.msra.mxu0 %v746
  %1096 = vmatpush.msra.mxu0 %v738
  %1097 = vmatpush.msra.mxu0 %v730
  %1098 = vmatpush.msra.mxu0 %v722
  %1099 = vmatpush.msra.mxu0 %v714
  %1100 = vmatpush.msra.mxu0 %v706
  %1101 = vmatpush.msra.mxu0 %v698
  %1102 = vmatpush.msra.mxu0 %v690
  %1103 = vmatpush.msra.mxu0 %v682
  %1104 = vmatmul.f32.gmra.mxu0 %v19
  %v1105 = vpop.f32.mrf.mxu0
  %v1106 = vadd.f32 %v1077, %v1105
  %1107 = vmatmul.f32.gmra.mxu0 %v26
  %v1108 = vpop.f32.mrf.mxu0
  %v1109 = vadd.f32 %v1080, %v1108
  %1110 = vmatmul.f32.gmra.mxu0 %v33
  %v1111 = vpop.f32.mrf.mxu0
  %v1112 = vadd.f32 %v1083, %v1111
  %1113 = vmatmul.f32.gmra.mxu0 %v40
  %v1114 = vpop.f32.mrf.mxu0
  %v1115 = vadd.f32 %v1086, %v1114
  %1116 = vdwg.mxu0
  %1117 = vmatpush.msra.mxu0 0.0
  %1118 = vmatpush.msra.mxu0 0.0
  %1119 = vmatpush.msra.mxu0 0.0
  %1120 = vmatpush.msra.mxu0 0.0
  %1121 = vmatpush.msra.mxu0 %v898
  %1122 = vmatpush.msra.mxu0 %v890
  %1123 = vmatpush.msra.mxu0 %v882
  %1124 = vmatpush.msra.mxu0 %v874
  %1125 = vmatpush.msra.mxu0 %v866
  %1126 = vmatpush.msra.mxu0 %v858
  %1127 = vmatpush.msra.mxu0 %v850
  %1128 = vmatpush.msra.mxu0 %v842
  %1129 = vmatpush.msra.mxu0 %v834
  %1130 = vmatpush.msra.mxu0 %v826
  %1131 = vmatpush.msra.mxu0 %v818
  %1132 = vmatpush.msra.mxu0 %v810
  %1133 = vmatmul.f32.gmra.mxu0 %v932
  %v1134 = vpop.f32.mrf.mxu0
  %v1135 = vadd.f32 %v1106, %v1134
  %1136 = vmatmul.f32.gmra.mxu0 %v935
  %v1137 = vpop.f32.mrf.mxu0
  %v1138 = vadd.f32 %v1109, %v1137
  %1139 = vmatmul.f32.gmra.mxu0 %v938
  %v1140 = vpop.f32.mrf.mxu0
  %v1141 = vadd.f32 %v1112, %v1140
  %1142 = vmatmul.f32.gmra.mxu0 %v941
  %v1143 = vpop.f32.mrf.mxu0
  %v1144 = vadd.f32 %v1115, %v1143
  %1145 = vdwg.mxu0
  %1146 = vmatpush.msra.mxu0 %v163
  %1147 = vmatpush.msra.mxu0 %v155
  %1148 = vmatpush.msra.mxu0 %v147
  %1149 = vmatpush.msra.mxu0 %v139
  %1150 = vmatpush.msra.mxu0 %v131
  %1151 = vmatpush.msra.mxu0 %v123
  %1152 = vmatpush.msra.mxu0 %v115
  %1153 = vmatpush.msra.mxu0 %v107
  %1154 = vmatpush.msra.mxu0 %v99
  %1155 = vmatpush.msra.mxu0 %v91
  %1156 = vmatpush.msra.mxu0 %v83
  %1157 = vmatpush.msra.mxu0 %v75
  %1158 = vmatpush.msra.mxu0 %v67
  %1159 = vmatpush.msra.mxu0 %v59
  %1160 = vmatpush.msra.mxu0 %v51
  %1161 = vmatpush.msra.mxu0 %v43
  %1162 = vmatmul.f32.gmra.mxu0 %v14
  %v1163 = vpop.f32.mrf.mxu0
  %v1164 = vadd.f32 %v913, %v1163
  %1165 = vmatmul.f32.gmra.mxu0 %v21
  %v1166 = vpop.f32.mrf.mxu0
  %v1167 = vadd.f32 %v918, %v1166
  %1168 = vmatmul.f32.gmra.mxu0 %v28
  %v1169 = vpop.f32.mrf.mxu0
  %v1170 = vadd.f32 %v923, %v1169
  %1171 = vmatmul.f32.gmra.mxu0 %v35
  %v1172 = vpop.f32.mrf.mxu0
  %v1173 = vadd.f32 %v928, %v1172
  %1174 = vdwg.mxu0
  %1175 = vmatpush.msra.mxu0 %v291
  %1176 = vmatpush.msra.mxu0 %v283
  %1177 = vmatpush.msra.mxu0 %v275
  %1178 = vmatpush.msra.mxu0 %v267
  %1179 = vmatpush.msra.mxu0 %v259
  %1180 = vmatpush.msra.mxu0 %v251
  %1181 = vmatpush.msra.mxu0 %v243
  %1182 = vmatpush.msra.mxu0 %v235
  %1183 = vmatpush.msra.mxu0 %v227
  %1184 = vmatpush.msra.mxu0 %v219
  %1185 = vmatpush.msra.mxu0 %v211
  %1186 = vmatpush.msra.mxu0 %v203
  %1187 = vmatpush.msra.mxu0 %v195
  %1188 = vmatpush.msra.mxu0 %v187
  %1189 = vmatpush.msra.mxu0 %v179
  %1190 = vmatpush.msra.mxu0 %v171
  %1191 = vmatmul.f32.gmra.mxu0 %v15
  %v1192 = vpop.f32.mrf.mxu0
  %v1193 = vadd.f32 %v1164, %v1192
  %1194 = vmatmul.f32.gmra.mxu0 %v22
  %v1195 = vpop.f32.mrf.mxu0
  %v1196 = vadd.f32 %v1167, %v1195
  %1197 = vmatmul.f32.gmra.mxu0 %v29
  %v1198 = vpop.f32.mrf.mxu0
  %v1199 = vadd.f32 %v1170, %v1198
  %1200 = vmatmul.f32.gmra.mxu0 %v36
  %v1201 = vpop.f32.mrf.mxu0
  %v1202 = vadd.f32 %v1173, %v1201
  %1203 = vdwg.mxu0
  %1204 = vmatpush.msra.mxu0 %v419
  %1205 = vmatpush.msra.mxu0 %v411
  %1206 = vmatpush.msra.mxu0 %v403
  %1207 = vmatpush.msra.mxu0 %v395
  %1208 = vmatpush.msra.mxu0 %v387
  %1209 = vmatpush.msra.mxu0 %v379
  %1210 = vmatpush.msra.mxu0 %v371
  %1211 = vmatpush.msra.mxu0 %v363
  %1212 = vmatpush.msra.mxu0 %v355
  %1213 = vmatpush.msra.mxu0 %v347
  %1214 = vmatpush.msra.mxu0 %v339
  %1215 = vmatpush.msra.mxu0 %v331
  %1216 = vmatpush.msra.mxu0 %v323
  %1217 = vmatpush.msra.mxu0 %v315
  %1218 = vmatpush.msra.mxu0 %v307
  %1219 = vmatpush.msra.mxu0 %v299
  %1220 = vmatmul.f32.gmra.mxu0 %v16
  %v1221 = vpop.f32.mrf.mxu0
  %v1222 = vadd.f32 %v1193, %v1221
  %1223 = vmatmul.f32.gmra.mxu0 %v23
  %v1224 = vpop.f32.mrf.mxu0
  %v1225 = vadd.f32 %v1196, %v1224
  %1226 = vmatmul.f32.gmra.mxu0 %v30
  %v1227 = vpop.f32.mrf.mxu0
  %v1228 = vadd.f32 %v1199, %v1227
  %1229 = vmatmul.f32.gmra.mxu0 %v37
  %v1230 = vpop.f32.mrf.mxu0
  %v1231 = vadd.f32 %v1202, %v1230
  %1232 = vdwg.mxu0
  %1233 = vmatpush.msra.mxu0 %v547
  %1234 = vmatpush.msra.mxu0 %v539
  %1235 = vmatpush.msra.mxu0 %v531
  %1236 = vmatpush.msra.mxu0 %v523
  %1237 = vmatpush.msra.mxu0 %v515
  %1238 = vmatpush.msra.mxu0 %v507
  %1239 = vmatpush.msra.mxu0 %v499
  %1240 = vmatpush.msra.mxu0 %v491
  %1241 = vmatpush.msra.mxu0 %v483
  %1242 = vmatpush.msra.mxu0 %v475
  %1243 = vmatpush.msra.mxu0 %v467
  %1244 = vmatpush.msra.mxu0 %v459
  %1245 = vmatpush.msra.mxu0 %v451
  %1246 = vmatpush.msra.mxu0 %v443
  %1247 = vmatpush.msra.mxu0 %v435
  %1248 = vmatpush.msra.mxu0 %v427
  %1249 = vmatmul.f32.gmra.mxu0 %v17
  %v1250 = vpop.f32.mrf.mxu0
  %v1251 = vadd.f32 %v1222, %v1250
  %1252 = vmatmul.f32.gmra.mxu0 %v24
  %v1253 = vpop.f32.mrf.mxu0
  %v1254 = vadd.f32 %v1225, %v1253
  %1255 = vmatmul.f32.gmra.mxu0 %v31
  %v1256 = vpop.f32.mrf.mxu0
  %v1257 = vadd.f32 %v1228, %v1256
  %1258 = vmatmul.f32.gmra.mxu0 %v38
  %v1259 = vpop.f32.mrf.mxu0
  %v1260 = vadd.f32 %v1231, %v1259
  %1261 = vdwg.mxu0
  %1262 = vmatpush.msra.mxu0 %v675
  %1263 = vmatpush.msra.mxu0 %v667
  %1264 = vmatpush.msra.mxu0 %v659
  %1265 = vmatpush.msra.mxu0 %v651
  %1266 = vmatpush.msra.mxu0 %v643
  %1267 = vmatpush.msra.mxu0 %v635
  %1268 = vmatpush.msra.mxu0 %v627
  %1269 = vmatpush.msra.mxu0 %v619
  %1270 = vmatpush.msra.mxu0 %v611
  %1271 = vmatpush.msra.mxu0 %v603
  %1272 = vmatpush.msra.mxu0 %v595
  %1273 = vmatpush.msra.mxu0 %v587
  %1274 = vmatpush.msra.mxu0 %v579
  %1275 = vmatpush.msra.mxu0 %v571
  %1276 = vmatpush.msra.mxu0 %v563
  %1277 = vmatpush.msra.mxu0 %v555
  %1278 = vmatmul.f32.gmra.mxu0 %v18
  %v1279 = vpop.f32.mrf.mxu0
  %v1280 = vadd.f32 %v1251, %v1279
  %1281 = vmatmul.f32.gmra.mxu0 %v25
  %v1282 = vpop.f32.mrf.mxu0
  %v1283 = vadd.f32 %v1254, %v1282
  %1284 = vmatmul.f32.gmra.mxu0 %v32
  %v1285 = vpop.f32.mrf.mxu0
  %v1286 = vadd.f32 %v1257, %v1285
  %1287 = vmatmul.f32.gmra.mxu0 %v39
  %v1288 = vpop.f32.mrf.mxu0
  %v1289 = vadd.f32 %v1260, %v1288
  %1290 = vdwg.mxu0
  %1291 = vmatpush.msra.mxu0 %v803
  %1292 = vmatpush.msra.mxu0 %v795
  %1293 = vmatpush.msra.mxu0 %v787
  %1294 = vmatpush.msra.mxu0 %v779
  %1295 = vmatpush.msra.mxu0 %v771
  %1296 = vmatpush.msra.mxu0 %v763
  %1297 = vmatpush.msra.mxu0 %v755
  %1298 = vmatpush.msra.mxu0 %v747
  %1299 = vmatpush.msra.mxu0 %v739
  %1300 = vmatpush.msra.mxu0 %v731
  %1301 = vmatpush.msra.mxu0 %v723
  %1302 = vmatpush.msra.mxu0 %v715
  %1303 = vmatpush.msra.mxu0 %v707
  %1304 = vmatpush.msra.mxu0 %v699
  %1305 = vmatpush.msra.mxu0 %v691
  %1306 = vmatpush.msra.mxu0 %v683
  %1307 = vmatmul.f32.gmra.mxu0 %v19
  %v1308 = vpop.f32.mrf.mxu0
  %v1309 = vadd.f32 %v1280, %v1308
  %1310 = vmatmul.f32.gmra.mxu0 %v26
  %v1311 = vpop.f32.mrf.mxu0
  %v1312 = vadd.f32 %v1283, %v1311
  %1313 = vmatmul.f32.gmra.mxu0 %v33
  %v1314 = vpop.f32.mrf.mxu0
  %v1315 = vadd.f32 %v1286, %v1314
  %1316 = vmatmul.f32.gmra.mxu0 %v40
  %v1317 = vpop.f32.mrf.mxu0
  %v1318 = vadd.f32 %v1289, %v1317
  %1319 = vdwg.mxu0
  %1320 = vmatpush.msra.mxu0 0.0
  %1321 = vmatpush.msra.mxu0 0.0
  %1322 = vmatpush.msra.mxu0 0.0
  %1323 = vmatpush.msra.mxu0 0.0
  %1324 = vmatpush.msra.mxu0 %v899
  %1325 = vmatpush.msra.mxu0 %v891
  %1326 = vmatpush.msra.mxu0 %v883
  %1327 = vmatpush.msra.mxu0 %v875
  %1328 = vmatpush.msra.mxu0 %v867
  %1329 = vmatpush.msra.mxu0 %v859
  %1330 = vmatpush.msra.mxu0 %v851
  %1331 = vmatpush.msra.mxu0 %v843
  %1332 = vmatpush.msra.mxu0 %v835
  %1333 = vmatpush.msra.mxu0 %v827
  %1334 = vmatpush.msra.mxu0 %v819
  %1335 = vmatpush.msra.mxu0 %v811
  %1336 = vmatmul.f32.gmra.mxu0 %v932
  %v1337 = vpop.f32.mrf.mxu0
  %v1338 = vadd.f32 %v1309, %v1337
  %1339 = vmatmul.f32.gmra.mxu0 %v935
  %v1340 = vpop.f32.mrf.mxu0
  %v1341 = vadd.f32 %v1312, %v1340
  %1342 = vmatmul.f32.gmra.mxu0 %v938
  %v1343 = vpop.f32.mrf.mxu0
  %v1344 = vadd.f32 %v1315, %v1343
  %1345 = vmatmul.f32.gmra.mxu0 %v941
  %v1346 = vpop.f32.mrf.mxu0
  %v1347 = vadd.f32 %v1318, %v1346
  %1348 = vdwg.mxu0
  %1349 = vmatpush.msra.mxu0 %v164
  %1350 = vmatpush.msra.mxu0 %v156
  %1351 = vmatpush.msra.mxu0 %v148
  %1352 = vmatpush.msra.mxu0 %v140
  %1353 = vmatpush.msra.mxu0 %v132
  %1354 = vmatpush.msra.mxu0 %v124
  %1355 = vmatpush.msra.mxu0 %v116
  %1356 = vmatpush.msra.mxu0 %v108
  %1357 = vmatpush.msra.mxu0 %v100
  %1358 = vmatpush.msra.mxu0 %v92
  %1359 = vmatpush.msra.mxu0 %v84
  %1360 = vmatpush.msra.mxu0 %v76
  %1361 = vmatpush.msra.mxu0 %v68
  %1362 = vmatpush.msra.mxu0 %v60
  %1363 = vmatpush.msra.mxu0 %v52
  %1364 = vmatpush.msra.mxu0 %v44
  %1365 = vmatmul.f32.gmra.mxu0 %v14
  %v1366 = vpop.f32.mrf.mxu0
  %v1367 = vadd.f32 %v913, %v1366
  %1368 = vmatmul.f32.gmra.mxu0 %v21
  %v1369 = vpop.f32.mrf.mxu0
  %v1370 = vadd.f32 %v918, %v1369
  %1371 = vmatmul.f32.gmra.mxu0 %v28
  %v1372 = vpop.f32.mrf.mxu0
  %v1373 = vadd.f32 %v923, %v1372
  %1374 = vmatmul.f32.gmra.mxu0 %v35
  %v1375 = vpop.f32.mrf.mxu0
  %v1376 = vadd.f32 %v928, %v1375
  %1377 = vdwg.mxu0
  %1378 = vmatpush.msra.mxu0 %v292
  %1379 = vmatpush.msra.mxu0 %v284
  %1380 = vmatpush.msra.mxu0 %v276
  %1381 = vmatpush.msra.mxu0 %v268
  %1382 = vmatpush.msra.mxu0 %v260
  %1383 = vmatpush.msra.mxu0 %v252
  %1384 = vmatpush.msra.mxu0 %v244
  %1385 = vmatpush.msra.mxu0 %v236
  %1386 = vmatpush.msra.mxu0 %v228
  %1387 = vmatpush.msra.mxu0 %v220
  %1388 = vmatpush.msra.mxu0 %v212
  %1389 = vmatpush.msra.mxu0 %v204
  %1390 = vmatpush.msra.mxu0 %v196
  %1391 = vmatpush.msra.mxu0 %v188
  %1392 = vmatpush.msra.mxu0 %v180
  %1393 = vmatpush.msra.mxu0 %v172
  %1394 = vmatmul.f32.gmra.mxu0 %v15
  %v1395 = vpop.f32.mrf.mxu0
  %v1396 = vadd.f32 %v1367, %v1395
  %1397 = vmatmul.f32.gmra.mxu0 %v22
  %v1398 = vpop.f32.mrf.mxu0
  %v1399 = vadd.f32 %v1370, %v1398
  %1400 = vmatmul.f32.gmra.mxu0 %v29
  %v1401 = vpop.f32.mrf.mxu0
  %v1402 = vadd.f32 %v1373, %v1401
  %1403 = vmatmul.f32.gmra.mxu0 %v36
  %v1404 = vpop.f32.mrf.mxu0
  %v1405 = vadd.f32 %v1376, %v1404
  %1406 = vdwg.mxu0
  %1407 = vmatpush.msra.mxu0 %v420
  %1408 = vmatpush.msra.mxu0 %v412
  %1409 = vmatpush.msra.mxu0 %v404
  %1410 = vmatpush.msra.mxu0 %v396
  %1411 = vmatpush.msra.mxu0 %v388
  %1412 = vmatpush.msra.mxu0 %v380
  %1413 = vmatpush.msra.mxu0 %v372
  %1414 = vmatpush.msra.mxu0 %v364
  %1415 = vmatpush.msra.mxu0 %v356
  %1416 = vmatpush.msra.mxu0 %v348
  %1417 = vmatpush.msra.mxu0 %v340
  %1418 = vmatpush.msra.mxu0 %v332
  %1419 = vmatpush.msra.mxu0 %v324
  %1420 = vmatpush.msra.mxu0 %v316
  %1421 = vmatpush.msra.mxu0 %v308
  %1422 = vmatpush.msra.mxu0 %v300
  %1423 = vmatmul.f32.gmra.mxu0 %v16
  %v1424 = vpop.f32.mrf.mxu0
  %v1425 = vadd.f32 %v1396, %v1424
  %1426 = vmatmul.f32.gmra.mxu0 %v23
  %v1427 = vpop.f32.mrf.mxu0
  %v1428 = vadd.f32 %v1399, %v1427
  %1429 = vmatmul.f32.gmra.mxu0 %v30
  %v1430 = vpop.f32.mrf.mxu0
  %v1431 = vadd.f32 %v1402, %v1430
  %1432 = vmatmul.f32.gmra.mxu0 %v37
  %v1433 = vpop.f32.mrf.mxu0
  %v1434 = vadd.f32 %v1405, %v1433
  %1435 = vdwg.mxu0
  %1436 = vmatpush.msra.mxu0 %v548
  %1437 = vmatpush.msra.mxu0 %v540
  %1438 = vmatpush.msra.mxu0 %v532
  %1439 = vmatpush.msra.mxu0 %v524
  %1440 = vmatpush.msra.mxu0 %v516
  %1441 = vmatpush.msra.mxu0 %v508
  %1442 = vmatpush.msra.mxu0 %v500
  %1443 = vmatpush.msra.mxu0 %v492
  %1444 = vmatpush.msra.mxu0 %v484
  %1445 = vmatpush.msra.mxu0 %v476
  %1446 = vmatpush.msra.mxu0 %v468
  %1447 = vmatpush.msra.mxu0 %v460
  %1448 = vmatpush.msra.mxu0 %v452
  %1449 = vmatpush.msra.mxu0 %v444
  %1450 = vmatpush.msra.mxu0 %v436
  %1451 = vmatpush.msra.mxu0 %v428
  %1452 = vmatmul.f32.gmra.mxu0 %v17
  %v1453 = vpop.f32.mrf.mxu0
  %v1454 = vadd.f32 %v1425, %v1453
  %1455 = vmatmul.f32.gmra.mxu0 %v24
  %v1456 = vpop.f32.mrf.mxu0
  %v1457 = vadd.f32 %v1428, %v1456
  %1458 = vmatmul.f32.gmra.mxu0 %v31
  %v1459 = vpop.f32.mrf.mxu0
  %v1460 = vadd.f32 %v1431, %v1459
  %1461 = vmatmul.f32.gmra.mxu0 %v38
  %v1462 = vpop.f32.mrf.mxu0
  %v1463 = vadd.f32 %v1434, %v1462
  %1464 = vdwg.mxu0
  %1465 = vmatpush.msra.mxu0 %v676
  %1466 = vmatpush.msra.mxu0 %v668
  %1467 = vmatpush.msra.mxu0 %v660
  %1468 = vmatpush.msra.mxu0 %v652
  %1469 = vmatpush.msra.mxu0 %v644
  %1470 = vmatpush.msra.mxu0 %v636
  %1471 = vmatpush.msra.mxu0 %v628
  %1472 = vmatpush.msra.mxu0 %v620
  %1473 = vmatpush.msra.mxu0 %v612
  %1474 = vmatpush.msra.mxu0 %v604
  %1475 = vmatpush.msra.mxu0 %v596
  %1476 = vmatpush.msra.mxu0 %v588
  %1477 = vmatpush.msra.mxu0 %v580
  %1478 = vmatpush.msra.mxu0 %v572
  %1479 = vmatpush.msra.mxu0 %v564
  %1480 = vmatpush.msra.mxu0 %v556
  %1481 = vmatmul.f32.gmra.mxu0 %v18
  %v1482 = vpop.f32.mrf.mxu0
  %v1483 = vadd.f32 %v1454, %v1482
  %1484 = vmatmul.f32.gmra.mxu0 %v25
  %v1485 = vpop.f32.mrf.mxu0
  %v1486 = vadd.f32 %v1457, %v1485
  %1487 = vmatmul.f32.gmra.mxu0 %v32
  %v1488 = vpop.f32.mrf.mxu0
  %v1489 = vadd.f32 %v1460, %v1488
  %1490 = vmatmul.f32.gmra.mxu0 %v39
  %v1491 = vpop.f32.mrf.mxu0
  %v1492 = vadd.f32 %v1463, %v1491
  %1493 = vdwg.mxu0
  %1494 = vmatpush.msra.mxu0 %v804
  %1495 = vmatpush.msra.mxu0 %v796
  %1496 = vmatpush.msra.mxu0 %v788
  %1497 = vmatpush.msra.mxu0 %v780
  %1498 = vmatpush.msra.mxu0 %v772
  %1499 = vmatpush.msra.mxu0 %v764
  %1500 = vmatpush.msra.mxu0 %v756
  %1501 = vmatpush.msra.mxu0 %v748
  %1502 = vmatpush.msra.mxu0 %v740
  %1503 = vmatpush.msra.mxu0 %v732
  %1504 = vmatpush.msra.mxu0 %v724
  %1505 = vmatpush.msra.mxu0 %v716
  %1506 = vmatpush.msra.mxu0 %v708
  %1507 = vmatpush.msra.mxu0 %v700
  %1508 = vmatpush.msra.mxu0 %v692
  %1509 = vmatpush.msra.mxu0 %v684
  %1510 = vmatmul.f32.gmra.mxu0 %v19
  %v1511 = vpop.f32.mrf.mxu0
  %v1512 = vadd.f32 %v1483, %v1511
  %1513 = vmatmul.f32.gmra.mxu0 %v26
  %v1514 = vpop.f32.mrf.mxu0
  %v1515 = vadd.f32 %v1486, %v1514
  %1516 = vmatmul.f32.gmra.mxu0 %v33
  %v1517 = vpop.f32.mrf.mxu0
  %v1518 = vadd.f32 %v1489, %v1517
  %1519 = vmatmul.f32.gmra.mxu0 %v40
  %v1520 = vpop.f32.mrf.mxu0
  %v1521 = vadd.f32 %v1492, %v1520
  %1522 = vdwg.mxu0
  %1523 = vmatpush.msra.mxu0 0.0
  %1524 = vmatpush.msra.mxu0 0.0
  %1525 = vmatpush.msra.mxu0 0.0
  %1526 = vmatpush.msra.mxu0 0.0
  %1527 = vmatpush.msra.mxu0 %v900
  %1528 = vmatpush.msra.mxu0 %v892
  %1529 = vmatpush.msra.mxu0 %v884
  %1530 = vmatpush.msra.mxu0 %v876
  %1531 = vmatpush.msra.mxu0 %v868
  %1532 = vmatpush.msra.mxu0 %v860
  %1533 = vmatpush.msra.mxu0 %v852
  %1534 = vmatpush.msra.mxu0 %v844
  %1535 = vmatpush.msra.mxu0 %v836
  %1536 = vmatpush.msra.mxu0 %v828
  %1537 = vmatpush.msra.mxu0 %v820
  %1538 = vmatpush.msra.mxu0 %v812
  %1539 = vmatmul.f32.gmra.mxu0 %v932
  %v1540 = vpop.f32.mrf.mxu0
  %v1541 = vadd.f32 %v1512, %v1540
  %1542 = vmatmul.f32.gmra.mxu0 %v935
  %v1543 = vpop.f32.mrf.mxu0
  %v1544 = vadd.f32 %v1515, %v1543
  %1545 = vmatmul.f32.gmra.mxu0 %v938
  %v1546 = vpop.f32.mrf.mxu0
  %v1547 = vadd.f32 %v1518, %v1546
  %1548 = vmatmul.f32.gmra.mxu0 %v941
  %v1549 = vpop.f32.mrf.mxu0
  %v1550 = vadd.f32 %v1521, %v1549
  %1551 = vdwg.mxu0
  %1552 = vmatpush.msra.mxu0 %v165
  %1553 = vmatpush.msra.mxu0 %v157
  %1554 = vmatpush.msra.mxu0 %v149
  %1555 = vmatpush.msra.mxu0 %v141
  %1556 = vmatpush.msra.mxu0 %v133
  %1557 = vmatpush.msra.mxu0 %v125
  %1558 = vmatpush.msra.mxu0 %v117
  %1559 = vmatpush.msra.mxu0 %v109
  %1560 = vmatpush.msra.mxu0 %v101
  %1561 = vmatpush.msra.mxu0 %v93
  %1562 = vmatpush.msra.mxu0 %v85
  %1563 = vmatpush.msra.mxu0 %v77
  %1564 = vmatpush.msra.mxu0 %v69
  %1565 = vmatpush.msra.mxu0 %v61
  %1566 = vmatpush.msra.mxu0 %v53
  %1567 = vmatpush.msra.mxu0 %v45
  %1568 = vmatmul.f32.gmra.mxu0 %v14
  %v1569 = vpop.f32.mrf.mxu0
  %v1570 = vadd.f32 %v913, %v1569
  %1571 = vmatmul.f32.gmra.mxu0 %v21
  %v1572 = vpop.f32.mrf.mxu0
  %v1573 = vadd.f32 %v918, %v1572
  %1574 = vmatmul.f32.gmra.mxu0 %v28
  %v1575 = vpop.f32.mrf.mxu0
  %v1576 = vadd.f32 %v923, %v1575
  %1577 = vmatmul.f32.gmra.mxu0 %v35
  %v1578 = vpop.f32.mrf.mxu0
  %v1579 = vadd.f32 %v928, %v1578
  %1580 = vdwg.mxu0
  %1581 = vmatpush.msra.mxu0 %v293
  %1582 = vmatpush.msra.mxu0 %v285
  %1583 = vmatpush.msra.mxu0 %v277
  %1584 = vmatpush.msra.mxu0 %v269
  %1585 = vmatpush.msra.mxu0 %v261
  %1586 = vmatpush.msra.mxu0 %v253
  %1587 = vmatpush.msra.mxu0 %v245
  %1588 = vmatpush.msra.mxu0 %v237
  %1589 = vmatpush.msra.mxu0 %v229
  %1590 = vmatpush.msra.mxu0 %v221
  %1591 = vmatpush.msra.mxu0 %v213
  %1592 = vmatpush.msra.mxu0 %v205
  %1593 = vmatpush.msra.mxu0 %v197
  %1594 = vmatpush.msra.mxu0 %v189
  %1595 = vmatpush.msra.mxu0 %v181
  %1596 = vmatpush.msra.mxu0 %v173
  %1597 = vmatmul.f32.gmra.mxu0 %v15
  %v1598 = vpop.f32.mrf.mxu0
  %v1599 = vadd.f32 %v1570, %v1598
  %1600 = vmatmul.f32.gmra.mxu0 %v22
  %v1601 = vpop.f32.mrf.mxu0
  %v1602 = vadd.f32 %v1573, %v1601
  %1603 = vmatmul.f32.gmra.mxu0 %v29
  %v1604 = vpop.f32.mrf.mxu0
  %v1605 = vadd.f32 %v1576, %v1604
  %1606 = vmatmul.f32.gmra.mxu0 %v36
  %v1607 = vpop.f32.mrf.mxu0
  %v1608 = vadd.f32 %v1579, %v1607
  %1609 = vdwg.mxu0
  %1610 = vmatpush.msra.mxu0 %v421
  %1611 = vmatpush.msra.mxu0 %v413
  %1612 = vmatpush.msra.mxu0 %v405
  %1613 = vmatpush.msra.mxu0 %v397
  %1614 = vmatpush.msra.mxu0 %v389
  %1615 = vmatpush.msra.mxu0 %v381
  %1616 = vmatpush.msra.mxu0 %v373
  %1617 = vmatpush.msra.mxu0 %v365
  %1618 = vmatpush.msra.mxu0 %v357
  %1619 = vmatpush.msra.mxu0 %v349
  %1620 = vmatpush.msra.mxu0 %v341
  %1621 = vmatpush.msra.mxu0 %v333
  %1622 = vmatpush.msra.mxu0 %v325
  %1623 = vmatpush.msra.mxu0 %v317
  %1624 = vmatpush.msra.mxu0 %v309
  %1625 = vmatpush.msra.mxu0 %v301
  %1626 = vmatmul.f32.gmra.mxu0 %v16
  %v1627 = vpop.f32.mrf.mxu0
  %v1628 = vadd.f32 %v1599, %v1627
  %1629 = vmatmul.f32.gmra.mxu0 %v23
  %v1630 = vpop.f32.mrf.mxu0
  %v1631 = vadd.f32 %v1602, %v1630
  %1632 = vmatmul.f32.gmra.mxu0 %v30
  %v1633 = vpop.f32.mrf.mxu0
  %v1634 = vadd.f32 %v1605, %v1633
  %1635 = vmatmul.f32.gmra.mxu0 %v37
  %v1636 = vpop.f32.mrf.mxu0
  %v1637 = vadd.f32 %v1608, %v1636
  %1638 = vdwg.mxu0
  %1639 = vmatpush.msra.mxu0 %v549
  %1640 = vmatpush.msra.mxu0 %v541
  %1641 = vmatpush.msra.mxu0 %v533
  %1642 = vmatpush.msra.mxu0 %v525
  %1643 = vmatpush.msra.mxu0 %v517
  %1644 = vmatpush.msra.mxu0 %v509
  %1645 = vmatpush.msra.mxu0 %v501
  %1646 = vmatpush.msra.mxu0 %v493
  %1647 = vmatpush.msra.mxu0 %v485
  %1648 = vmatpush.msra.mxu0 %v477
  %1649 = vmatpush.msra.mxu0 %v469
  %1650 = vmatpush.msra.mxu0 %v461
  %1651 = vmatpush.msra.mxu0 %v453
  %1652 = vmatpush.msra.mxu0 %v445
  %1653 = vmatpush.msra.mxu0 %v437
  %1654 = vmatpush.msra.mxu0 %v429
  %1655 = vmatmul.f32.gmra.mxu0 %v17
  %v1656 = vpop.f32.mrf.mxu0
  %v1657 = vadd.f32 %v1628, %v1656
  %1658 = vmatmul.f32.gmra.mxu0 %v24
  %v1659 = vpop.f32.mrf.mxu0
  %v1660 = vadd.f32 %v1631, %v1659
  %1661 = vmatmul.f32.gmra.mxu0 %v31
  %v1662 = vpop.f32.mrf.mxu0
  %v1663 = vadd.f32 %v1634, %v1662
  %1664 = vmatmul.f32.gmra.mxu0 %v38
  %v1665 = vpop.f32.mrf.mxu0
  %v1666 = vadd.f32 %v1637, %v1665
  %1667 = vdwg.mxu0
  %1668 = vmatpush.msra.mxu0 %v677
  %1669 = vmatpush.msra.mxu0 %v669
  %1670 = vmatpush.msra.mxu0 %v661
  %1671 = vmatpush.msra.mxu0 %v653
  %1672 = vmatpush.msra.mxu0 %v645
  %1673 = vmatpush.msra.mxu0 %v637
  %1674 = vmatpush.msra.mxu0 %v629
  %1675 = vmatpush.msra.mxu0 %v621
  %1676 = vmatpush.msra.mxu0 %v613
  %1677 = vmatpush.msra.mxu0 %v605
  %1678 = vmatpush.msra.mxu0 %v597
  %1679 = vmatpush.msra.mxu0 %v589
  %1680 = vmatpush.msra.mxu0 %v581
  %1681 = vmatpush.msra.mxu0 %v573
  %1682 = vmatpush.msra.mxu0 %v565
  %1683 = vmatpush.msra.mxu0 %v557
  %1684 = vmatmul.f32.gmra.mxu0 %v18
  %v1685 = vpop.f32.mrf.mxu0
  %v1686 = vadd.f32 %v1657, %v1685
  %1687 = vmatmul.f32.gmra.mxu0 %v25
  %v1688 = vpop.f32.mrf.mxu0
  %v1689 = vadd.f32 %v1660, %v1688
  %1690 = vmatmul.f32.gmra.mxu0 %v32
  %v1691 = vpop.f32.mrf.mxu0
  %v1692 = vadd.f32 %v1663, %v1691
  %1693 = vmatmul.f32.gmra.mxu0 %v39
  %v1694 = vpop.f32.mrf.mxu0
  %v1695 = vadd.f32 %v1666, %v1694
  %1696 = vdwg.mxu0
  %1697 = vmatpush.msra.mxu0 %v805
  %1698 = vmatpush.msra.mxu0 %v797
  %1699 = vmatpush.msra.mxu0 %v789
  %1700 = vmatpush.msra.mxu0 %v781
  %1701 = vmatpush.msra.mxu0 %v773
  %1702 = vmatpush.msra.mxu0 %v765
  %1703 = vmatpush.msra.mxu0 %v757
  %1704 = vmatpush.msra.mxu0 %v749
  %1705 = vmatpush.msra.mxu0 %v741
  %1706 = vmatpush.msra.mxu0 %v733
  %1707 = vmatpush.msra.mxu0 %v725
  %1708 = vmatpush.msra.mxu0 %v717
  %1709 = vmatpush.msra.mxu0 %v709
  %1710 = vmatpush.msra.mxu0 %v701
  %1711 = vmatpush.msra.mxu0 %v693
  %1712 = vmatpush.msra.mxu0 %v685
  %1713 = vmatmul.f32.gmra.mxu0 %v19
  %v1714 = vpop.f32.mrf.mxu0
  %v1715 = vadd.f32 %v1686, %v1714
  %1716 = vmatmul.f32.gmra.mxu0 %v26
  %v1717 = vpop.f32.mrf.mxu0
  %v1718 = vadd.f32 %v1689, %v1717
  %1719 = vmatmul.f32.gmra.mxu0 %v33
  %v1720 = vpop.f32.mrf.mxu0
  %v1721 = vadd.f32 %v1692, %v1720
  %1722 = vmatmul.f32.gmra.mxu0 %v40
  %v1723 = vpop.f32.mrf.mxu0
  %v1724 = vadd.f32 %v1695, %v1723
  %1725 = vdwg.mxu0
  %1726 = vmatpush.msra.mxu0 0.0
  %1727 = vmatpush.msra.mxu0 0.0
  %1728 = vmatpush.msra.mxu0 0.0
  %1729 = vmatpush.msra.mxu0 0.0
  %1730 = vmatpush.msra.mxu0 %v901
  %1731 = vmatpush.msra.mxu0 %v893
  %1732 = vmatpush.msra.mxu0 %v885
  %1733 = vmatpush.msra.mxu0 %v877
  %1734 = vmatpush.msra.mxu0 %v869
  %1735 = vmatpush.msra.mxu0 %v861
  %1736 = vmatpush.msra.mxu0 %v853
  %1737 = vmatpush.msra.mxu0 %v845
  %1738 = vmatpush.msra.mxu0 %v837
  %1739 = vmatpush.msra.mxu0 %v829
  %1740 = vmatpush.msra.mxu0 %v821
  %1741 = vmatpush.msra.mxu0 %v813
  %1742 = vmatmul.f32.gmra.mxu0 %v932
  %v1743 = vpop.f32.mrf.mxu0
  %v1744 = vadd.f32 %v1715, %v1743
  %1745 = vmatmul.f32.gmra.mxu0 %v935
  %v1746 = vpop.f32.mrf.mxu0
  %v1747 = vadd.f32 %v1718, %v1746
  %1748 = vmatmul.f32.gmra.mxu0 %v938
  %v1749 = vpop.f32.mrf.mxu0
  %v1750 = vadd.f32 %v1721, %v1749
  %1751 = vmatmul.f32.gmra.mxu0 %v941
  %v1752 = vpop.f32.mrf.mxu0
  %v1753 = vadd.f32 %v1724, %v1752
  %1754 = vdwg.mxu0
  %1755 = vmatpush.msra.mxu0 %v166
  %1756 = vmatpush.msra.mxu0 %v158
  %1757 = vmatpush.msra.mxu0 %v150
  %1758 = vmatpush.msra.mxu0 %v142
  %1759 = vmatpush.msra.mxu0 %v134
  %1760 = vmatpush.msra.mxu0 %v126
  %1761 = vmatpush.msra.mxu0 %v118
  %1762 = vmatpush.msra.mxu0 %v110
  %1763 = vmatpush.msra.mxu0 %v102
  %1764 = vmatpush.msra.mxu0 %v94
  %1765 = vmatpush.msra.mxu0 %v86
  %1766 = vmatpush.msra.mxu0 %v78
  %1767 = vmatpush.msra.mxu0 %v70
  %1768 = vmatpush.msra.mxu0 %v62
  %1769 = vmatpush.msra.mxu0 %v54
  %1770 = vmatpush.msra.mxu0 %v46
  %1771 = vmatmul.f32.gmra.mxu0 %v14
  %v1772 = vpop.f32.mrf.mxu0
  %v1773 = vadd.f32 %v913, %v1772
  %1774 = vmatmul.f32.gmra.mxu0 %v21
  %v1775 = vpop.f32.mrf.mxu0
  %v1776 = vadd.f32 %v918, %v1775
  %1777 = vmatmul.f32.gmra.mxu0 %v28
  %v1778 = vpop.f32.mrf.mxu0
  %v1779 = vadd.f32 %v923, %v1778
  %1780 = vmatmul.f32.gmra.mxu0 %v35
  %v1781 = vpop.f32.mrf.mxu0
  %v1782 = vadd.f32 %v928, %v1781
  %1783 = vdwg.mxu0
  %1784 = vmatpush.msra.mxu0 %v294
  %1785 = vmatpush.msra.mxu0 %v286
  %1786 = vmatpush.msra.mxu0 %v278
  %1787 = vmatpush.msra.mxu0 %v270
  %1788 = vmatpush.msra.mxu0 %v262
  %1789 = vmatpush.msra.mxu0 %v254
  %1790 = vmatpush.msra.mxu0 %v246
  %1791 = vmatpush.msra.mxu0 %v238
  %1792 = vmatpush.msra.mxu0 %v230
  %1793 = vmatpush.msra.mxu0 %v222
  %1794 = vmatpush.msra.mxu0 %v214
  %1795 = vmatpush.msra.mxu0 %v206
  %1796 = vmatpush.msra.mxu0 %v198
  %1797 = vmatpush.msra.mxu0 %v190
  %1798 = vmatpush.msra.mxu0 %v182
  %1799 = vmatpush.msra.mxu0 %v174
  %1800 = vmatmul.f32.gmra.mxu0 %v15
  %v1801 = vpop.f32.mrf.mxu0
  %v1802 = vadd.f32 %v1773, %v1801
  %1803 = vmatmul.f32.gmra.mxu0 %v22
  %v1804 = vpop.f32.mrf.mxu0
  %v1805 = vadd.f32 %v1776, %v1804
  %1806 = vmatmul.f32.gmra.mxu0 %v29
  %v1807 = vpop.f32.mrf.mxu0
  %v1808 = vadd.f32 %v1779, %v1807
  %1809 = vmatmul.f32.gmra.mxu0 %v36
  %v1810 = vpop.f32.mrf.mxu0
  %v1811 = vadd.f32 %v1782, %v1810
  %1812 = vdwg.mxu0
  %1813 = vmatpush.msra.mxu0 %v422
  %1814 = vmatpush.msra.mxu0 %v414
  %1815 = vmatpush.msra.mxu0 %v406
  %1816 = vmatpush.msra.mxu0 %v398
  %1817 = vmatpush.msra.mxu0 %v390
  %1818 = vmatpush.msra.mxu0 %v382
  %1819 = vmatpush.msra.mxu0 %v374
  %1820 = vmatpush.msra.mxu0 %v366
  %1821 = vmatpush.msra.mxu0 %v358
  %1822 = vmatpush.msra.mxu0 %v350
  %1823 = vmatpush.msra.mxu0 %v342
  %1824 = vmatpush.msra.mxu0 %v334
  %1825 = vmatpush.msra.mxu0 %v326
  %1826 = vmatpush.msra.mxu0 %v318
  %1827 = vmatpush.msra.mxu0 %v310
  %1828 = vmatpush.msra.mxu0 %v302
  %1829 = vmatmul.f32.gmra.mxu0 %v16
  %v1830 = vpop.f32.mrf.mxu0
  %v1831 = vadd.f32 %v1802, %v1830
  %1832 = vmatmul.f32.gmra.mxu0 %v23
  %v1833 = vpop.f32.mrf.mxu0
  %v1834 = vadd.f32 %v1805, %v1833
  %1835 = vmatmul.f32.gmra.mxu0 %v30
  %v1836 = vpop.f32.mrf.mxu0
  %v1837 = vadd.f32 %v1808, %v1836
  %1838 = vmatmul.f32.gmra.mxu0 %v37
  %v1839 = vpop.f32.mrf.mxu0
  %v1840 = vadd.f32 %v1811, %v1839
  %1841 = vdwg.mxu0
  %1842 = vmatpush.msra.mxu0 %v550
  %1843 = vmatpush.msra.mxu0 %v542
  %1844 = vmatpush.msra.mxu0 %v534
  %1845 = vmatpush.msra.mxu0 %v526
  %1846 = vmatpush.msra.mxu0 %v518
  %1847 = vmatpush.msra.mxu0 %v510
  %1848 = vmatpush.msra.mxu0 %v502
  %1849 = vmatpush.msra.mxu0 %v494
  %1850 = vmatpush.msra.mxu0 %v486
  %1851 = vmatpush.msra.mxu0 %v478
  %1852 = vmatpush.msra.mxu0 %v470
  %1853 = vmatpush.msra.mxu0 %v462
  %1854 = vmatpush.msra.mxu0 %v454
  %1855 = vmatpush.msra.mxu0 %v446
  %1856 = vmatpush.msra.mxu0 %v438
  %1857 = vmatpush.msra.mxu0 %v430
  %1858 = vmatmul.f32.gmra.mxu0 %v17
  %v1859 = vpop.f32.mrf.mxu0
  %v1860 = vadd.f32 %v1831, %v1859
  %1861 = vmatmul.f32.gmra.mxu0 %v24
  %v1862 = vpop.f32.mrf.mxu0
  %v1863 = vadd.f32 %v1834, %v1862
  %1864 = vmatmul.f32.gmra.mxu0 %v31
  %v1865 = vpop.f32.mrf.mxu0
  %v1866 = vadd.f32 %v1837, %v1865
  %1867 = vmatmul.f32.gmra.mxu0 %v38
  %v1868 = vpop.f32.mrf.mxu0
  %v1869 = vadd.f32 %v1840, %v1868
  %1870 = vdwg.mxu0
  %1871 = vmatpush.msra.mxu0 %v678
  %1872 = vmatpush.msra.mxu0 %v670
  %1873 = vmatpush.msra.mxu0 %v662
  %1874 = vmatpush.msra.mxu0 %v654
  %1875 = vmatpush.msra.mxu0 %v646
  %1876 = vmatpush.msra.mxu0 %v638
  %1877 = vmatpush.msra.mxu0 %v630
  %1878 = vmatpush.msra.mxu0 %v622
  %1879 = vmatpush.msra.mxu0 %v614
  %1880 = vmatpush.msra.mxu0 %v606
  %1881 = vmatpush.msra.mxu0 %v598
  %1882 = vmatpush.msra.mxu0 %v590
  %1883 = vmatpush.msra.mxu0 %v582
  %1884 = vmatpush.msra.mxu0 %v574
  %1885 = vmatpush.msra.mxu0 %v566
  %1886 = vmatpush.msra.mxu0 %v558
  %1887 = vmatmul.f32.gmra.mxu0 %v18
  %v1888 = vpop.f32.mrf.mxu0
  %v1889 = vadd.f32 %v1860, %v1888
  %1890 = vmatmul.f32.gmra.mxu0 %v25
  %v1891 = vpop.f32.mrf.mxu0
  %v1892 = vadd.f32 %v1863, %v1891
  %1893 = vmatmul.f32.gmra.mxu0 %v32
  %v1894 = vpop.f32.mrf.mxu0
  %v1895 = vadd.f32 %v1866, %v1894
  %1896 = vmatmul.f32.gmra.mxu0 %v39
  %v1897 = vpop.f32.mrf.mxu0
  %v1898 = vadd.f32 %v1869, %v1897
  %1899 = vdwg.mxu0
  %1900 = vmatpush.msra.mxu0 %v806
  %1901 = vmatpush.msra.mxu0 %v798
  %1902 = vmatpush.msra.mxu0 %v790
  %1903 = vmatpush.msra.mxu0 %v782
  %1904 = vmatpush.msra.mxu0 %v774
  %1905 = vmatpush.msra.mxu0 %v766
  %1906 = vmatpush.msra.mxu0 %v758
  %1907 = vmatpush.msra.mxu0 %v750
  %1908 = vmatpush.msra.mxu0 %v742
  %1909 = vmatpush.msra.mxu0 %v734
  %1910 = vmatpush.msra.mxu0 %v726
  %1911 = vmatpush.msra.mxu0 %v718
  %1912 = vmatpush.msra.mxu0 %v710
  %1913 = vmatpush.msra.mxu0 %v702
  %1914 = vmatpush.msra.mxu0 %v694
  %1915 = vmatpush.msra.mxu0 %v686
  %1916 = vmatmul.f32.gmra.mxu0 %v19
  %v1917 = vpop.f32.mrf.mxu0
  %v1918 = vadd.f32 %v1889, %v1917
  %1919 = vmatmul.f32.gmra.mxu0 %v26
  %v1920 = vpop.f32.mrf.mxu0
  %v1921 = vadd.f32 %v1892, %v1920
  %1922 = vmatmul.f32.gmra.mxu0 %v33
  %v1923 = vpop.f32.mrf.mxu0
  %v1924 = vadd.f32 %v1895, %v1923
  %1925 = vmatmul.f32.gmra.mxu0 %v40
  %v1926 = vpop.f32.mrf.mxu0
  %v1927 = vadd.f32 %v1898, %v1926
  %1928 = vdwg.mxu0
  %1929 = vmatpush.msra.mxu0 0.0
  %1930 = vmatpush.msra.mxu0 0.0
  %1931 = vmatpush.msra.mxu0 0.0
  %1932 = vmatpush.msra.mxu0 0.0
  %1933 = vmatpush.msra.mxu0 %v902
  %1934 = vmatpush.msra.mxu0 %v894
  %1935 = vmatpush.msra.mxu0 %v886
  %1936 = vmatpush.msra.mxu0 %v878
  %1937 = vmatpush.msra.mxu0 %v870
  %1938 = vmatpush.msra.mxu0 %v862
  %1939 = vmatpush.msra.mxu0 %v854
  %1940 = vmatpush.msra.mxu0 %v846
  %1941 = vmatpush.msra.mxu0 %v838
  %1942 = vmatpush.msra.mxu0 %v830
  %1943 = vmatpush.msra.mxu0 %v822
  %1944 = vmatpush.msra.mxu0 %v814
  %1945 = vmatmul.f32.gmra.mxu0 %v932
  %v1946 = vpop.f32.mrf.mxu0
  %v1947 = vadd.f32 %v1918, %v1946
  %1948 = vmatmul.f32.gmra.mxu0 %v935
  %v1949 = vpop.f32.mrf.mxu0
  %v1950 = vadd.f32 %v1921, %v1949
  %1951 = vmatmul.f32.gmra.mxu0 %v938
  %v1952 = vpop.f32.mrf.mxu0
  %v1953 = vadd.f32 %v1924, %v1952
  %1954 = vmatmul.f32.gmra.mxu0 %v941
  %v1955 = vpop.f32.mrf.mxu0
  %v1956 = vadd.f32 %v1927, %v1955
  %1957 = vdwg.mxu0
  %1958 = vmatpush.msra.mxu0 %v167
  %1959 = vmatpush.msra.mxu0 %v159
  %1960 = vmatpush.msra.mxu0 %v151
  %1961 = vmatpush.msra.mxu0 %v143
  %1962 = vmatpush.msra.mxu0 %v135
  %1963 = vmatpush.msra.mxu0 %v127
  %1964 = vmatpush.msra.mxu0 %v119
  %1965 = vmatpush.msra.mxu0 %v111
  %1966 = vmatpush.msra.mxu0 %v103
  %1967 = vmatpush.msra.mxu0 %v95
  %1968 = vmatpush.msra.mxu0 %v87
  %1969 = vmatpush.msra.mxu0 %v79
  %1970 = vmatpush.msra.mxu0 %v71
  %1971 = vmatpush.msra.mxu0 %v63
  %1972 = vmatpush.msra.mxu0 %v55
  %1973 = vmatpush.msra.mxu0 %v47
  %1974 = vmatmul.f32.gmra.mxu0 %v14
  %v1975 = vpop.f32.mrf.mxu0
  %v1976 = vadd.f32 %v913, %v1975
  %1977 = vmatmul.f32.gmra.mxu0 %v21
  %v1978 = vpop.f32.mrf.mxu0
  %v1979 = vadd.f32 %v918, %v1978
  %1980 = vmatmul.f32.gmra.mxu0 %v28
  %v1981 = vpop.f32.mrf.mxu0
  %v1982 = vadd.f32 %v923, %v1981
  %1983 = vmatmul.f32.gmra.mxu0 %v35
  %v1984 = vpop.f32.mrf.mxu0
  %v1985 = vadd.f32 %v928, %v1984
  %1986 = vdwg.mxu0
  %1987 = vmatpush.msra.mxu0 %v295
  %1988 = vmatpush.msra.mxu0 %v287
  %1989 = vmatpush.msra.mxu0 %v279
  %1990 = vmatpush.msra.mxu0 %v271
  %1991 = vmatpush.msra.mxu0 %v263
  %1992 = vmatpush.msra.mxu0 %v255
  %1993 = vmatpush.msra.mxu0 %v247
  %1994 = vmatpush.msra.mxu0 %v239
  %1995 = vmatpush.msra.mxu0 %v231
  %1996 = vmatpush.msra.mxu0 %v223
  %1997 = vmatpush.msra.mxu0 %v215
  %1998 = vmatpush.msra.mxu0 %v207
  %1999 = vmatpush.msra.mxu0 %v199
  %2000 = vmatpush.msra.mxu0 %v191
  %2001 = vmatpush.msra.mxu0 %v183
  %2002 = vmatpush.msra.mxu0 %v175
  %2003 = vmatmul.f32.gmra.mxu0 %v15
  %v2004 = vpop.f32.mrf.mxu0
  %v2005 = vadd.f32 %v1976, %v2004
  %2006 = vmatmul.f32.gmra.mxu0 %v22
  %v2007 = vpop.f32.mrf.mxu0
  %v2008 = vadd.f32 %v1979, %v2007
  %2009 = vmatmul.f32.gmra.mxu0 %v29
  %v2010 = vpop.f32.mrf.mxu0
  %v2011 = vadd.f32 %v1982, %v2010
  %2012 = vmatmul.f32.gmra.mxu0 %v36
  %v2013 = vpop.f32.mrf.mxu0
  %v2014 = vadd.f32 %v1985, %v2013
  %2015 = vdwg.mxu0
  %2016 = vmatpush.msra.mxu0 %v423
  %2017 = vmatpush.msra.mxu0 %v415
  %2018 = vmatpush.msra.mxu0 %v407
  %2019 = vmatpush.msra.mxu0 %v399
  %2020 = vmatpush.msra.mxu0 %v391
  %2021 = vmatpush.msra.mxu0 %v383
  %2022 = vmatpush.msra.mxu0 %v375
  %2023 = vmatpush.msra.mxu0 %v367
  %2024 = vmatpush.msra.mxu0 %v359
  %2025 = vmatpush.msra.mxu0 %v351
  %2026 = vmatpush.msra.mxu0 %v343
  %2027 = vmatpush.msra.mxu0 %v335
  %2028 = vmatpush.msra.mxu0 %v327
  %2029 = vmatpush.msra.mxu0 %v319
  %2030 = vmatpush.msra.mxu0 %v311
  %2031 = vmatpush.msra.mxu0 %v303
  %2032 = vmatmul.f32.gmra.mxu0 %v16
  %v2033 = vpop.f32.mrf.mxu0
  %v2034 = vadd.f32 %v2005, %v2033
  %2035 = vmatmul.f32.gmra.mxu0 %v23
  %v2036 = vpop.f32.mrf.mxu0
  %v2037 = vadd.f32 %v2008, %v2036
  %2038 = vmatmul.f32.gmra.mxu0 %v30
  %v2039 = vpop.f32.mrf.mxu0
  %v2040 = vadd.f32 %v2011, %v2039
  %2041 = vmatmul.f32.gmra.mxu0 %v37
  %v2042 = vpop.f32.mrf.mxu0
  %v2043 = vadd.f32 %v2014, %v2042
  %2044 = vdwg.mxu0
  %2045 = vmatpush.msra.mxu0 %v551
  %2046 = vmatpush.msra.mxu0 %v543
  %2047 = vmatpush.msra.mxu0 %v535
  %2048 = vmatpush.msra.mxu0 %v527
  %2049 = vmatpush.msra.mxu0 %v519
  %2050 = vmatpush.msra.mxu0 %v511
  %2051 = vmatpush.msra.mxu0 %v503
  %2052 = vmatpush.msra.mxu0 %v495
  %2053 = vmatpush.msra.mxu0 %v487
  %2054 = vmatpush.msra.mxu0 %v479
  %2055 = vmatpush.msra.mxu0 %v471
  %2056 = vmatpush.msra.mxu0 %v463
  %2057 = vmatpush.msra.mxu0 %v455
  %2058 = vmatpush.msra.mxu0 %v447
  %2059 = vmatpush.msra.mxu0 %v439
  %2060 = vmatpush.msra.mxu0 %v431
  %2061 = vmatmul.f32.gmra.mxu0 %v17
  %v2062 = vpop.f32.mrf.mxu0
  %v2063 = vadd.f32 %v2034, %v2062
  %2064 = vmatmul.f32.gmra.mxu0 %v24
  %v2065 = vpop.f32.mrf.mxu0
  %v2066 = vadd.f32 %v2037, %v2065
  %2067 = vmatmul.f32.gmra.mxu0 %v31
  %v2068 = vpop.f32.mrf.mxu0
  %v2069 = vadd.f32 %v2040, %v2068
  %2070 = vmatmul.f32.gmra.mxu0 %v38
  %v2071 = vpop.f32.mrf.mxu0
  %v2072 = vadd.f32 %v2043, %v2071
  %2073 = vdwg.mxu0
  %2074 = vmatpush.msra.mxu0 %v679
  %2075 = vmatpush.msra.mxu0 %v671
  %2076 = vmatpush.msra.mxu0 %v663
  %2077 = vmatpush.msra.mxu0 %v655
  %2078 = vmatpush.msra.mxu0 %v647
  %2079 = vmatpush.msra.mxu0 %v639
  %2080 = vmatpush.msra.mxu0 %v631
  %2081 = vmatpush.msra.mxu0 %v623
  %2082 = vmatpush.msra.mxu0 %v615
  %2083 = vmatpush.msra.mxu0 %v607
  %2084 = vmatpush.msra.mxu0 %v599
  %2085 = vmatpush.msra.mxu0 %v591
  %2086 = vmatpush.msra.mxu0 %v583
  %2087 = vmatpush.msra.mxu0 %v575
  %2088 = vmatpush.msra.mxu0 %v567
  %2089 = vmatpush.msra.mxu0 %v559
  %2090 = vmatmul.f32.gmra.mxu0 %v18
  %v2091 = vpop.f32.mrf.mxu0
  %v2092 = vadd.f32 %v2063, %v2091
  %2093 = vmatmul.f32.gmra.mxu0 %v25
  %v2094 = vpop.f32.mrf.mxu0
  %v2095 = vadd.f32 %v2066, %v2094
  %2096 = vmatmul.f32.gmra.mxu0 %v32
  %v2097 = vpop.f32.mrf.mxu0
  %v2098 = vadd.f32 %v2069, %v2097
  %2099 = vmatmul.f32.gmra.mxu0 %v39
  %v2100 = vpop.f32.mrf.mxu0
  %v2101 = vadd.f32 %v2072, %v2100
  %2102 = vdwg.mxu0
  %2103 = vmatpush.msra.mxu0 %v807
  %2104 = vmatpush.msra.mxu0 %v799
  %2105 = vmatpush.msra.mxu0 %v791
  %2106 = vmatpush.msra.mxu0 %v783
  %2107 = vmatpush.msra.mxu0 %v775
  %2108 = vmatpush.msra.mxu0 %v767
  %2109 = vmatpush.msra.mxu0 %v759
  %2110 = vmatpush.msra.mxu0 %v751
  %2111 = vmatpush.msra.mxu0 %v743
  %2112 = vmatpush.msra.mxu0 %v735
  %2113 = vmatpush.msra.mxu0 %v727
  %2114 = vmatpush.msra.mxu0 %v719
  %2115 = vmatpush.msra.mxu0 %v711
  %2116 = vmatpush.msra.mxu0 %v703
  %2117 = vmatpush.msra.mxu0 %v695
  %2118 = vmatpush.msra.mxu0 %v687
  %2119 = vmatmul.f32.gmra.mxu0 %v19
  %v2120 = vpop.f32.mrf.mxu0
  %v2121 = vadd.f32 %v2092, %v2120
  %2122 = vmatmul.f32.gmra.mxu0 %v26
  %v2123 = vpop.f32.mrf.mxu0
  %v2124 = vadd.f32 %v2095, %v2123
  %2125 = vmatmul.f32.gmra.mxu0 %v33
  %v2126 = vpop.f32.mrf.mxu0
  %v2127 = vadd.f32 %v2098, %v2126
  %2128 = vmatmul.f32.gmra.mxu0 %v40
  %v2129 = vpop.f32.mrf.mxu0
  %v2130 = vadd.f32 %v2101, %v2129
  %2131 = vdwg.mxu0
  %2132 = vmatpush.msra.mxu0 0.0
  %2133 = vmatpush.msra.mxu0 0.0
  %2134 = vmatpush.msra.mxu0 0.0
  %2135 = vmatpush.msra.mxu0 0.0
  %2136 = vmatpush.msra.mxu0 %v903
  %2137 = vmatpush.msra.mxu0 %v895
  %2138 = vmatpush.msra.mxu0 %v887
  %2139 = vmatpush.msra.mxu0 %v879
  %2140 = vmatpush.msra.mxu0 %v871
  %2141 = vmatpush.msra.mxu0 %v863
  %2142 = vmatpush.msra.mxu0 %v855
  %2143 = vmatpush.msra.mxu0 %v847
  %2144 = vmatpush.msra.mxu0 %v839
  %2145 = vmatpush.msra.mxu0 %v831
  %2146 = vmatpush.msra.mxu0 %v823
  %2147 = vmatpush.msra.mxu0 %v815
  %2148 = vmatmul.f32.gmra.mxu0 %v932
  %v2149 = vpop.f32.mrf.mxu0
  %v2150 = vadd.f32 %v2121, %v2149
  %2151 = vmatmul.f32.gmra.mxu0 %v935
  %v2152 = vpop.f32.mrf.mxu0
  %v2153 = vadd.f32 %v2124, %v2152
  %2154 = vmatmul.f32.gmra.mxu0 %v938
  %v2155 = vpop.f32.mrf.mxu0
  %v2156 = vadd.f32 %v2127, %v2155
  %2157 = vmatmul.f32.gmra.mxu0 %v941
  %v2158 = vpop.f32.mrf.mxu0
  %v2159 = vadd.f32 %v2130, %v2158
  %2160 = vdwg.mxu0
  %2161 = vmatpush.msra.mxu0 %v168
  %2162 = vmatpush.msra.mxu0 %v160
  %2163 = vmatpush.msra.mxu0 %v152
  %2164 = vmatpush.msra.mxu0 %v144
  %2165 = vmatpush.msra.mxu0 %v136
  %2166 = vmatpush.msra.mxu0 %v128
  %2167 = vmatpush.msra.mxu0 %v120
  %2168 = vmatpush.msra.mxu0 %v112
  %2169 = vmatpush.msra.mxu0 %v104
  %2170 = vmatpush.msra.mxu0 %v96
  %2171 = vmatpush.msra.mxu0 %v88
  %2172 = vmatpush.msra.mxu0 %v80
  %2173 = vmatpush.msra.mxu0 %v72
  %2174 = vmatpush.msra.mxu0 %v64
  %2175 = vmatpush.msra.mxu0 %v56
  %2176 = vmatpush.msra.mxu0 %v48
  %2177 = vmatmul.f32.gmra.mxu0 %v14
  %v2178 = vpop.f32.mrf.mxu0
  %v2179 = vadd.f32 %v913, %v2178
  %2180 = vmatmul.f32.gmra.mxu0 %v21
  %v2181 = vpop.f32.mrf.mxu0
  %v2182 = vadd.f32 %v918, %v2181
  %2183 = vmatmul.f32.gmra.mxu0 %v28
  %v2184 = vpop.f32.mrf.mxu0
  %v2185 = vadd.f32 %v923, %v2184
  %2186 = vmatmul.f32.gmra.mxu0 %v35
  %v2187 = vpop.f32.mrf.mxu0
  %v2188 = vadd.f32 %v928, %v2187
  %2189 = vdwg.mxu0
  %2190 = vmatpush.msra.mxu0 %v296
  %2191 = vmatpush.msra.mxu0 %v288
  %2192 = vmatpush.msra.mxu0 %v280
  %2193 = vmatpush.msra.mxu0 %v272
  %2194 = vmatpush.msra.mxu0 %v264
  %2195 = vmatpush.msra.mxu0 %v256
  %2196 = vmatpush.msra.mxu0 %v248
  %2197 = vmatpush.msra.mxu0 %v240
  %2198 = vmatpush.msra.mxu0 %v232
  %2199 = vmatpush.msra.mxu0 %v224
  %2200 = vmatpush.msra.mxu0 %v216
  %2201 = vmatpush.msra.mxu0 %v208
  %2202 = vmatpush.msra.mxu0 %v200
  %2203 = vmatpush.msra.mxu0 %v192
  %2204 = vmatpush.msra.mxu0 %v184
  %2205 = vmatpush.msra.mxu0 %v176
  %2206 = vmatmul.f32.gmra.mxu0 %v15
  %v2207 = vpop.f32.mrf.mxu0
  %v2208 = vadd.f32 %v2179, %v2207
  %2209 = vmatmul.f32.gmra.mxu0 %v22
  %v2210 = vpop.f32.mrf.mxu0
  %v2211 = vadd.f32 %v2182, %v2210
  %2212 = vmatmul.f32.gmra.mxu0 %v29
  %v2213 = vpop.f32.mrf.mxu0
  %v2214 = vadd.f32 %v2185, %v2213
  %2215 = vmatmul.f32.gmra.mxu0 %v36
  %v2216 = vpop.f32.mrf.mxu0
  %v2217 = vadd.f32 %v2188, %v2216
  %2218 = vdwg.mxu0
  %2219 = vmatpush.msra.mxu0 %v424
  %2220 = vmatpush.msra.mxu0 %v416
  %2221 = vmatpush.msra.mxu0 %v408
  %2222 = vmatpush.msra.mxu0 %v400
  %2223 = vmatpush.msra.mxu0 %v392
  %2224 = vmatpush.msra.mxu0 %v384
  %2225 = vmatpush.msra.mxu0 %v376
  %2226 = vmatpush.msra.mxu0 %v368
  %2227 = vmatpush.msra.mxu0 %v360
  %2228 = vmatpush.msra.mxu0 %v352
  %2229 = vmatpush.msra.mxu0 %v344
  %2230 = vmatpush.msra.mxu0 %v336
  %2231 = vmatpush.msra.mxu0 %v328
  %2232 = vmatpush.msra.mxu0 %v320
  %2233 = vmatpush.msra.mxu0 %v312
  %2234 = vmatpush.msra.mxu0 %v304
  %2235 = vmatmul.f32.gmra.mxu0 %v16
  %v2236 = vpop.f32.mrf.mxu0
  %v2237 = vadd.f32 %v2208, %v2236
  %2238 = vmatmul.f32.gmra.mxu0 %v23
  %v2239 = vpop.f32.mrf.mxu0
  %v2240 = vadd.f32 %v2211, %v2239
  %2241 = vmatmul.f32.gmra.mxu0 %v30
  %v2242 = vpop.f32.mrf.mxu0
  %v2243 = vadd.f32 %v2214, %v2242
  %2244 = vmatmul.f32.gmra.mxu0 %v37
  %v2245 = vpop.f32.mrf.mxu0
  %v2246 = vadd.f32 %v2217, %v2245
  %2247 = vdwg.mxu0
  %2248 = vmatpush.msra.mxu0 %v552
  %2249 = vmatpush.msra.mxu0 %v544
  %2250 = vmatpush.msra.mxu0 %v536
  %2251 = vmatpush.msra.mxu0 %v528
  %2252 = vmatpush.msra.mxu0 %v520
  %2253 = vmatpush.msra.mxu0 %v512
  %2254 = vmatpush.msra.mxu0 %v504
  %2255 = vmatpush.msra.mxu0 %v496
  %2256 = vmatpush.msra.mxu0 %v488
  %2257 = vmatpush.msra.mxu0 %v480
  %2258 = vmatpush.msra.mxu0 %v472
  %2259 = vmatpush.msra.mxu0 %v464
  %2260 = vmatpush.msra.mxu0 %v456
  %2261 = vmatpush.msra.mxu0 %v448
  %2262 = vmatpush.msra.mxu0 %v440
  %2263 = vmatpush.msra.mxu0 %v432
  %2264 = vmatmul.f32.gmra.mxu0 %v17
  %v2265 = vpop.f32.mrf.mxu0
  %v2266 = vadd.f32 %v2237, %v2265
  %2267 = vmatmul.f32.gmra.mxu0 %v24
  %v2268 = vpop.f32.mrf.mxu0
  %v2269 = vadd.f32 %v2240, %v2268
  %2270 = vmatmul.f32.gmra.mxu0 %v31
  %v2271 = vpop.f32.mrf.mxu0
  %v2272 = vadd.f32 %v2243, %v2271
  %2273 = vmatmul.f32.gmra.mxu0 %v38
  %v2274 = vpop.f32.mrf.mxu0
  %v2275 = vadd.f32 %v2246, %v2274
  %2276 = vdwg.mxu0
  %2277 = vmatpush.msra.mxu0 %v680
  %2278 = vmatpush.msra.mxu0 %v672
  %2279 = vmatpush.msra.mxu0 %v664
  %2280 = vmatpush.msra.mxu0 %v656
  %2281 = vmatpush.msra.mxu0 %v648
  %2282 = vmatpush.msra.mxu0 %v640
  %2283 = vmatpush.msra.mxu0 %v632
  %2284 = vmatpush.msra.mxu0 %v624
  %2285 = vmatpush.msra.mxu0 %v616
  %2286 = vmatpush.msra.mxu0 %v608
  %2287 = vmatpush.msra.mxu0 %v600
  %2288 = vmatpush.msra.mxu0 %v592
  %2289 = vmatpush.msra.mxu0 %v584
  %2290 = vmatpush.msra.mxu0 %v576
  %2291 = vmatpush.msra.mxu0 %v568
  %2292 = vmatpush.msra.mxu0 %v560
  %2293 = vmatmul.f32.gmra.mxu0 %v18
  %v2294 = vpop.f32.mrf.mxu0
  %v2295 = vadd.f32 %v2266, %v2294
  %2296 = vmatmul.f32.gmra.mxu0 %v25
  %v2297 = vpop.f32.mrf.mxu0
  %v2298 = vadd.f32 %v2269, %v2297
  %2299 = vmatmul.f32.gmra.mxu0 %v32
  %v2300 = vpop.f32.mrf.mxu0
  %v2301 = vadd.f32 %v2272, %v2300
  %2302 = vmatmul.f32.gmra.mxu0 %v39
  %v2303 = vpop.f32.mrf.mxu0
  %v2304 = vadd.f32 %v2275, %v2303
  %2305 = vdwg.mxu0
  %2306 = vmatpush.msra.mxu0 %v808
  %2307 = vmatpush.msra.mxu0 %v800
  %2308 = vmatpush.msra.mxu0 %v792
  %2309 = vmatpush.msra.mxu0 %v784
  %2310 = vmatpush.msra.mxu0 %v776
  %2311 = vmatpush.msra.mxu0 %v768
  %2312 = vmatpush.msra.mxu0 %v760
  %2313 = vmatpush.msra.mxu0 %v752
  %2314 = vmatpush.msra.mxu0 %v744
  %2315 = vmatpush.msra.mxu0 %v736
  %2316 = vmatpush.msra.mxu0 %v728
  %2317 = vmatpush.msra.mxu0 %v720
  %2318 = vmatpush.msra.mxu0 %v712
  %2319 = vmatpush.msra.mxu0 %v704
  %2320 = vmatpush.msra.mxu0 %v696
  %2321 = vmatpush.msra.mxu0 %v688
  %2322 = vmatmul.f32.gmra.mxu0 %v19
  %v2323 = vpop.f32.mrf.mxu0
  %v2324 = vadd.f32 %v2295, %v2323
  %2325 = vmatmul.f32.gmra.mxu0 %v26
  %v2326 = vpop.f32.mrf.mxu0
  %v2327 = vadd.f32 %v2298, %v2326
  %2328 = vmatmul.f32.gmra.mxu0 %v33
  %v2329 = vpop.f32.mrf.mxu0
  %v2330 = vadd.f32 %v2301, %v2329
  %2331 = vmatmul.f32.gmra.mxu0 %v40
  %v2332 = vpop.f32.mrf.mxu0
  %v2333 = vadd.f32 %v2304, %v2332
  %2334 = vdwg.mxu0
  %2335 = vmatpush.msra.mxu0 0.0
  %2336 = vmatpush.msra.mxu0 0.0
  %2337 = vmatpush.msra.mxu0 0.0
  %2338 = vmatpush.msra.mxu0 0.0
  %2339 = vmatpush.msra.mxu0 %v904
  %2340 = vmatpush.msra.mxu0 %v896
  %2341 = vmatpush.msra.mxu0 %v888
  %2342 = vmatpush.msra.mxu0 %v880
  %2343 = vmatpush.msra.mxu0 %v872
  %2344 = vmatpush.msra.mxu0 %v864
  %2345 = vmatpush.msra.mxu0 %v856
  %2346 = vmatpush.msra.mxu0 %v848
  %2347 = vmatpush.msra.mxu0 %v840
  %2348 = vmatpush.msra.mxu0 %v832
  %2349 = vmatpush.msra.mxu0 %v824
  %2350 = vmatpush.msra.mxu0 %v816
  %2351 = vmatmul.f32.gmra.mxu0 %v932
  %v2352 = vpop.f32.mrf.mxu0
  %v2353 = vadd.f32 %v2324, %v2352
  %2354 = vmatmul.f32.gmra.mxu0 %v935
  %v2355 = vpop.f32.mrf.mxu0
  %v2356 = vadd.f32 %v2327, %v2355
  %2357 = vmatmul.f32.gmra.mxu0 %v938
  %v2358 = vpop.f32.mrf.mxu0
  %v2359 = vadd.f32 %v2330, %v2358
  %2360 = vmatmul.f32.gmra.mxu0 %v941
  %v2361 = vpop.f32.mrf.mxu0
  %v2362 = vadd.f32 %v2333, %v2361
  %2363 = vdwg.mxu0
  %2364 = vmatpush.msra.mxu0 %v169
  %2365 = vmatpush.msra.mxu0 %v161
  %2366 = vmatpush.msra.mxu0 %v153
  %2367 = vmatpush.msra.mxu0 %v145
  %2368 = vmatpush.msra.mxu0 %v137
  %2369 = vmatpush.msra.mxu0 %v129
  %2370 = vmatpush.msra.mxu0 %v121
  %2371 = vmatpush.msra.mxu0 %v113
  %2372 = vmatpush.msra.mxu0 %v105
  %2373 = vmatpush.msra.mxu0 %v97
  %2374 = vmatpush.msra.mxu0 %v89
  %2375 = vmatpush.msra.mxu0 %v81
  %2376 = vmatpush.msra.mxu0 %v73
  %2377 = vmatpush.msra.mxu0 %v65
  %2378 = vmatpush.msra.mxu0 %v57
  %2379 = vmatpush.msra.mxu0 %v49
  %2380 = vmatmul.f32.gmra.mxu0 %v14
  %v2381 = vpop.f32.mrf.mxu0
  %v2382 = vadd.f32 %v913, %v2381
  %2383 = vmatmul.f32.gmra.mxu0 %v21
  %v2384 = vpop.f32.mrf.mxu0
  %v2385 = vadd.f32 %v918, %v2384
  %2386 = vmatmul.f32.gmra.mxu0 %v28
  %v2387 = vpop.f32.mrf.mxu0
  %v2388 = vadd.f32 %v923, %v2387
  %2389 = vmatmul.f32.gmra.mxu0 %v35
  %v2390 = vpop.f32.mrf.mxu0
  %v2391 = vadd.f32 %v928, %v2390
  %2392 = vdwg.mxu0
  %2393 = vmatpush.msra.mxu0 %v297
  %2394 = vmatpush.msra.mxu0 %v289
  %2395 = vmatpush.msra.mxu0 %v281
  %2396 = vmatpush.msra.mxu0 %v273
  %2397 = vmatpush.msra.mxu0 %v265
  %2398 = vmatpush.msra.mxu0 %v257
  %2399 = vmatpush.msra.mxu0 %v249
  %2400 = vmatpush.msra.mxu0 %v241
  %2401 = vmatpush.msra.mxu0 %v233
  %2402 = vmatpush.msra.mxu0 %v225
  %2403 = vmatpush.msra.mxu0 %v217
  %2404 = vmatpush.msra.mxu0 %v209
  %2405 = vmatpush.msra.mxu0 %v201
  %2406 = vmatpush.msra.mxu0 %v193
  %2407 = vmatpush.msra.mxu0 %v185
  %2408 = vmatpush.msra.mxu0 %v177
  %2409 = vmatmul.f32.gmra.mxu0 %v15
  %v2410 = vpop.f32.mrf.mxu0
  %v2411 = vadd.f32 %v2382, %v2410
  %2412 = vmatmul.f32.gmra.mxu0 %v22
  %v2413 = vpop.f32.mrf.mxu0
  %v2414 = vadd.f32 %v2385, %v2413
  %2415 = vmatmul.f32.gmra.mxu0 %v29
  %v2416 = vpop.f32.mrf.mxu0
  %v2417 = vadd.f32 %v2388, %v2416
  %2418 = vmatmul.f32.gmra.mxu0 %v36
  %v2419 = vpop.f32.mrf.mxu0
  %v2420 = vadd.f32 %v2391, %v2419
  %2421 = vdwg.mxu0
  %2422 = vmatpush.msra.mxu0 %v425
  %2423 = vmatpush.msra.mxu0 %v417
  %2424 = vmatpush.msra.mxu0 %v409
  %2425 = vmatpush.msra.mxu0 %v401
  %2426 = vmatpush.msra.mxu0 %v393
  %2427 = vmatpush.msra.mxu0 %v385
  %2428 = vmatpush.msra.mxu0 %v377
  %2429 = vmatpush.msra.mxu0 %v369
  %2430 = vmatpush.msra.mxu0 %v361
  %2431 = vmatpush.msra.mxu0 %v353
  %2432 = vmatpush.msra.mxu0 %v345
  %2433 = vmatpush.msra.mxu0 %v337
  %2434 = vmatpush.msra.mxu0 %v329
  %2435 = vmatpush.msra.mxu0 %v321
  %2436 = vmatpush.msra.mxu0 %v313
  %2437 = vmatpush.msra.mxu0 %v305
  %2438 = vmatmul.f32.gmra.mxu0 %v16
  %v2439 = vpop.f32.mrf.mxu0
  %v2440 = vadd.f32 %v2411, %v2439
  %2441 = vmatmul.f32.gmra.mxu0 %v23
  %v2442 = vpop.f32.mrf.mxu0
  %v2443 = vadd.f32 %v2414, %v2442
  %2444 = vmatmul.f32.gmra.mxu0 %v30
  %v2445 = vpop.f32.mrf.mxu0
  %v2446 = vadd.f32 %v2417, %v2445
  %2447 = vmatmul.f32.gmra.mxu0 %v37
  %v2448 = vpop.f32.mrf.mxu0
  %v2449 = vadd.f32 %v2420, %v2448
  %2450 = vdwg.mxu0
  %2451 = vmatpush.msra.mxu0 %v553
  %2452 = vmatpush.msra.mxu0 %v545
  %2453 = vmatpush.msra.mxu0 %v537
  %2454 = vmatpush.msra.mxu0 %v529
  %2455 = vmatpush.msra.mxu0 %v521
  %2456 = vmatpush.msra.mxu0 %v513
  %2457 = vmatpush.msra.mxu0 %v505
  %2458 = vmatpush.msra.mxu0 %v497
  %2459 = vmatpush.msra.mxu0 %v489
  %2460 = vmatpush.msra.mxu0 %v481
  %2461 = vmatpush.msra.mxu0 %v473
  %2462 = vmatpush.msra.mxu0 %v465
  %2463 = vmatpush.msra.mxu0 %v457
  %2464 = vmatpush.msra.mxu0 %v449
  %2465 = vmatpush.msra.mxu0 %v441
  %2466 = vmatpush.msra.mxu0 %v433
  %2467 = vmatmul.f32.gmra.mxu0 %v17
  %v2468 = vpop.f32.mrf.mxu0
  %v2469 = vadd.f32 %v2440, %v2468
  %2470 = vmatmul.f32.gmra.mxu0 %v24
  %v2471 = vpop.f32.mrf.mxu0
  %v2472 = vadd.f32 %v2443, %v2471
  %2473 = vmatmul.f32.gmra.mxu0 %v31
  %v2474 = vpop.f32.mrf.mxu0
  %v2475 = vadd.f32 %v2446, %v2474
  %2476 = vmatmul.f32.gmra.mxu0 %v38
  %v2477 = vpop.f32.mrf.mxu0
  %v2478 = vadd.f32 %v2449, %v2477
  %2479 = vdwg.mxu0
  %2480 = vmatpush.msra.mxu0 %v681
  %2481 = vmatpush.msra.mxu0 %v673
  %2482 = vmatpush.msra.mxu0 %v665
  %2483 = vmatpush.msra.mxu0 %v657
  %2484 = vmatpush.msra.mxu0 %v649
  %2485 = vmatpush.msra.mxu0 %v641
  %2486 = vmatpush.msra.mxu0 %v633
  %2487 = vmatpush.msra.mxu0 %v625
  %2488 = vmatpush.msra.mxu0 %v617
  %2489 = vmatpush.msra.mxu0 %v609
  %2490 = vmatpush.msra.mxu0 %v601
  %2491 = vmatpush.msra.mxu0 %v593
  %2492 = vmatpush.msra.mxu0 %v585
  %2493 = vmatpush.msra.mxu0 %v577
  %2494 = vmatpush.msra.mxu0 %v569
  %2495 = vmatpush.msra.mxu0 %v561
  %2496 = vmatmul.f32.gmra.mxu0 %v18
  %v2497 = vpop.f32.mrf.mxu0
  %v2498 = vadd.f32 %v2469, %v2497
  %2499 = vmatmul.f32.gmra.mxu0 %v25
  %v2500 = vpop.f32.mrf.mxu0
  %v2501 = vadd.f32 %v2472, %v2500
  %2502 = vmatmul.f32.gmra.mxu0 %v32
  %v2503 = vpop.f32.mrf.mxu0
  %v2504 = vadd.f32 %v2475, %v2503
  %2505 = vmatmul.f32.gmra.mxu0 %v39
  %v2506 = vpop.f32.mrf.mxu0
  %v2507 = vadd.f32 %v2478, %v2506
  %2508 = vdwg.mxu0
  %2509 = vmatpush.msra.mxu0 %v809
  %2510 = vmatpush.msra.mxu0 %v801
  %2511 = vmatpush.msra.mxu0 %v793
  %2512 = vmatpush.msra.mxu0 %v785
  %2513 = vmatpush.msra.mxu0 %v777
  %2514 = vmatpush.msra.mxu0 %v769
  %2515 = vmatpush.msra.mxu0 %v761
  %2516 = vmatpush.msra.mxu0 %v753
  %2517 = vmatpush.msra.mxu0 %v745
  %2518 = vmatpush.msra.mxu0 %v737
  %2519 = vmatpush.msra.mxu0 %v729
  %2520 = vmatpush.msra.mxu0 %v721
  %2521 = vmatpush.msra.mxu0 %v713
  %2522 = vmatpush.msra.mxu0 %v705
  %2523 = vmatpush.msra.mxu0 %v697
  %2524 = vmatpush.msra.mxu0 %v689
  %2525 = vmatmul.f32.gmra.mxu0 %v19
  %v2526 = vpop.f32.mrf.mxu0
  %v2527 = vadd.f32 %v2498, %v2526
  %2528 = vmatmul.f32.gmra.mxu0 %v26
  %v2529 = vpop.f32.mrf.mxu0
  %v2530 = vadd.f32 %v2501, %v2529
  %2531 = vmatmul.f32.gmra.mxu0 %v33
  %v2532 = vpop.f32.mrf.mxu0
  %v2533 = vadd.f32 %v2504, %v2532
  %2534 = vmatmul.f32.gmra.mxu0 %v40
  %v2535 = vpop.f32.mrf.mxu0
  %v2536 = vadd.f32 %v2507, %v2535
  %2537 = vdwg.mxu0
  %2538 = vmatpush.msra.mxu0 0.0
  %2539 = vmatpush.msra.mxu0 0.0
  %2540 = vmatpush.msra.mxu0 0.0
  %2541 = vmatpush.msra.mxu0 0.0
  %2542 = vmatpush.msra.mxu0 %v905
  %2543 = vmatpush.msra.mxu0 %v897
  %2544 = vmatpush.msra.mxu0 %v889
  %2545 = vmatpush.msra.mxu0 %v881
  %2546 = vmatpush.msra.mxu0 %v873
  %2547 = vmatpush.msra.mxu0 %v865
  %2548 = vmatpush.msra.mxu0 %v857
  %2549 = vmatpush.msra.mxu0 %v849
  %2550 = vmatpush.msra.mxu0 %v841
  %2551 = vmatpush.msra.mxu0 %v833
  %2552 = vmatpush.msra.mxu0 %v825
  %2553 = vmatpush.msra.mxu0 %v817
  %2554 = vmatmul.f32.gmra.mxu0 %v932
  %v2555 = vpop.f32.mrf.mxu0
  %v2556 = vadd.f32 %v2527, %v2555
  %2557 = vmatmul.f32.gmra.mxu0 %v935
  %v2558 = vpop.f32.mrf.mxu0
  %v2559 = vadd.f32 %v2530, %v2558
  %2560 = vmatmul.f32.gmra.mxu0 %v938
  %v2561 = vpop.f32.mrf.mxu0
  %v2562 = vadd.f32 %v2533, %v2561
  %2563 = vmatmul.f32.gmra.mxu0 %v941
  %v2564 = vpop.f32.mrf.mxu0
  %v2565 = vadd.f32 %v2536, %v2564
  %2566 = vdwg.mxu0
  %v2567 = vmax.f32 %v1135, 0.0
  %v2568 = vmax.f32 %v1338, 0.0
  %v2569 = vmax.f32 %v1541, 0.0
  %v2570 = vmax.f32 %v1744, 0.0
  %v2571 = vmax.f32 %v1947, 0.0
  %v2572 = vmax.f32 %v2150, 0.0
  %v2573 = vmax.f32 %v2353, 0.0
  %v2574 = vmax.f32 %v2556, 0.0
  %v2575 = vmax.f32 %v1138, 0.0
  %v2576 = vmax.f32 %v1341, 0.0
  %v2577 = vmax.f32 %v1544, 0.0
  %v2578 = vmax.f32 %v1747, 0.0
  %v2579 = vmax.f32 %v1950, 0.0
  %v2580 = vmax.f32 %v2153, 0.0
  %v2581 = vmax.f32 %v2356, 0.0
  %v2582 = vmax.f32 %v2559, 0.0
  %v2583 = vmax.f32 %v1141, 0.0
  %v2584 = vmax.f32 %v1344, 0.0
  %v2585 = vmax.f32 %v1547, 0.0
  %v2586 = vmax.f32 %v1750, 0.0
  %v2587 = vmax.f32 %v1953, 0.0
  %v2588 = vmax.f32 %v2156, 0.0
  %v2589 = vmax.f32 %v2359, 0.0
  %v2590 = vmax.f32 %v2562, 0.0
  %v2591 = vmax.f32 %v1144, 0.0
  %v2592 = vmax.f32 %v1347, 0.0
  %v2593 = vmax.f32 %v1550, 0.0
  %v2594 = vmax.f32 %v1753, 0.0
  %v2595 = vmax.f32 %v1956, 0.0
  %v2596 = vmax.f32 %v2159, 0.0
  %v2597 = vmax.f32 %v2362, 0.0
  %v2598 = vmax.f32 %v2565, 0.0
  %2599 = vst [vmem:[%s3] sm:$0xff] %v2567
  %2600 = vst [vmem:[%s3 + $0x8] sm:$0xff] %v2568
  %2601 = vst [vmem:[%s3 + $0x10] sm:$0xff] %v2569
  %2602 = vst [vmem:[%s3 + $0x18] sm:$0xff] %v2570
  %2603 = vst [vmem:[%s3 + $0x20] sm:$0xff] %v2571
  %2604 = vst [vmem:[%s3 + $0x28] sm:$0xff] %v2572
  %2605 = vst [vmem:[%s3 + $0x30] sm:$0xff] %v2573
  %2606 = vst [vmem:[%s3 + $0x38] sm:$0xff] %v2574
  %2607 = vst [vmem:[%s3 + $0x40] sm:$0xff] %v2575
  %2608 = vst [vmem:[%s3 + $0x48] sm:$0xff] %v2576
  %2609 = vst [vmem:[%s3 + $0x50] sm:$0xff] %v2577
  %2610 = vst [vmem:[%s3 + $0x58] sm:$0xff] %v2578
  %2611 = vst [vmem:[%s3 + $0x60] sm:$0xff] %v2579
  %2612 = vst [vmem:[%s3 + $0x68] sm:$0xff] %v2580
  %2613 = vst [vmem:[%s3 + $0x70] sm:$0xff] %v2581
  %2614 = vst [vmem:[%s3 + $0x78] sm:$0xff] %v2582
  %2615 = vst [vmem:[%s3 + $0x80] sm:$0xff] %v2583
  %2616 = vst [vmem:[%s3 + $0x88] sm:$0xff] %v2584
  %2617 = vst [vmem:[%s3 + $0x90] sm:$0xff] %v2585
  %2618 = vst [vmem:[%s3 + $0x98] sm:$0xff] %v2586
  %2619 = vst [vmem:[%s3 + $0xa0] sm:$0xff] %v2587
  %2620 = vst [vmem:[%s3 + $0xa8] sm:$0xff] %v2588
  %2621 = vst [vmem:[%s3 + $0xb0] sm:$0xff] %v2589
  %2622 = vst [vmem:[%s3 + $0xb8] sm:$0xff] %v2590
  %2623 = vst [vmem:[%s3 + $0xc0] sm:$0xff] %v2591
  %2624 = vst [vmem:[%s3 + $0xc8] sm:$0xff] %v2592
  %2625 = vst [vmem:[%s3 + $0xd0] sm:$0xff] %v2593
  %2626 = vst [vmem:[%s3 + $0xd8] sm:$0xff] %v2594
  %2627 = vst [vmem:[%s3 + $0xe0] sm:$0xff] %v2595
  %2628 = vst [vmem:[%s3 + $0xe8] sm:$0xff] %v2596
  %2629 = vst [vmem:[%s3 + $0xf0] sm:$0xff] %v2597
  %2630 = vst [vmem:[%s3 + $0xf8] sm:$0xff] %v2598
  // Predicated region
  $region14: #{_lambda_.14} parent=0 // pred_check
    _
  $region15: #{_lambda_.14} parent=0 // pred_check_branch
    %2632 = sbr.rel (0) target = $region17
  $region16: #{_lambda_.14} parent=0 // pred_region
    _
  $region17: #{_lambda_.14} parent=0 // pred_fallthru
    _
  // Predicated region
  $region18: #{_lambda_.14} parent=0 // pred_check
    _
  $region19: #{_lambda_.14} parent=0 // pred_check_branch
    %2634 = sbr.rel (0) target = $region21
  $region20: #{_lambda_.14} parent=0 // pred_region
    _
  $region21: #{_lambda_.14} parent=0 // pred_fallthru
    _

// kernel: _lambda_.13
$region0: #{_lambda_.13}
  #allocation0 [shape = 'u32[]', space=smem, size = 0x4, offset = 0x4, fixed_abs, tag = 'smem constant byte address 0x4 - core index']
  #allocation1 [shape = 'u32[72,128]{1,0:T(1,128)}', space=vmem, size = 0x9000, scoped, tag = 'internal scratch']
  %s0 = inlined_call_operand.vmem [shape: f32[864,1024], index: 0, kind: input, shape index: {}]
  %s1 = inlined_call_operand.vmem [shape: f32[4,864], index: 1, kind: input, shape index: {}]
  %s2 = inlined_call_operand.vmem [shape: f32[4,1], index: 2, kind: input, shape index: {}]
  %s3 = inlined_call_operand.vmem [shape: f32[4,1024], index: 3, kind: output, shape index: {}]
  %s4 = sld [smem:[#allocation0]]
  $region22: #{_lambda_.13} parent=0
    _
  %s6 = ssub.s32 1, %s4
  %s7 = scalar_select 0, %s6, %s4
  // Predicated region
  $region2: #{_lambda_.13} parent=0 // pred_check
    _
  $region3: #{_lambda_.13} parent=0 // pred_check_branch
    %9 = sbr.rel (0) target = $region5
  $region4: #{_lambda_.13} parent=0 // pred_region
    _
  $region5: #{_lambda_.13} parent=0 // pred_fallthru
    _
  // Predicated region
  $region6: #{_lambda_.13} parent=0 // pred_check
    _
  $region7: #{_lambda_.13} parent=0 // pred_check_branch
    %11 = sbr.rel (0) target = $region9
  $region8: #{_lambda_.13} parent=0 // pred_region
    _
  $region9: #{_lambda_.13} parent=0 // pred_fallthru
    _
  // Predicated region
  $region10: #{_lambda_.13} parent=0 // pred_check
    _
  $region11: #{_lambda_.13} parent=0 // pred_check_branch
    %13 = sbr.rel (0) target = $region13
  $region12: #{_lambda_.13} parent=0 // pred_region
    _
  $region13: #{_lambda_.13} parent=0 // pred_fallthru
    _
  %v14 = vld [vmem:[%s1] sm:$0xff]
  %v15 = vld [vmem:[%s1 + $0x8] sm:$0xff]
  %v16 = vld [vmem:[%s1 + $0x10] sm:$0xff]
  %v17 = vld [vmem:[%s1 + $0x18] sm:$0xf]
  %v18 = vld [vmem:[%s0] sm:$0xff]
  %v19 = vld [vmem:[%s0 + $0x8] sm:$0xff]
  %v20 = vld [vmem:[%s0 + $0x10] sm:$0xff]
  %v21 = vld [vmem:[%s0 + $0x18] sm:$0xff]
  %v22 = vld [vmem:[%s0 + $0x20] sm:$0xff]
  %v23 = vld [vmem:[%s0 + $0x28] sm:$0xff]
  %v24 = vld [vmem:[%s0 + $0x30] sm:$0xff]
  %v25 = vld [vmem:[%s0 + $0x38] sm:$0xff]
  %v26 = vld [vmem:[%s0 + $0x40] sm:$0xff]
  %v27 = vld [vmem:[%s0 + $0x48] sm:$0xff]
  %v28 = vld [vmem:[%s0 + $0x50] sm:$0xff]
  %v29 = vld [vmem:[%s0 + $0x58] sm:$0xff]
  %v30 = vld [vmem:[%s0 + $0x60] sm:$0xff]
  %v31 = vld [vmem:[%s0 + $0x68] sm:$0xff]
  %v32 = vld [vmem:[%s0 + $0x70] sm:$0xff]
  %v33 = vld [vmem:[%s0 + $0x78] sm:$0xff]
  %v34 = vld [vmem:[%s0 + $0x80] sm:$0xff]
  %v35 = vld [vmem:[%s0 + $0x88] sm:$0xff]
  %v36 = vld [vmem:[%s0 + $0x90] sm:$0xff]
  %v37 = vld [vmem:[%s0 + $0x98] sm:$0xff]
  %v38 = vld [vmem:[%s0 + $0xa0] sm:$0xff]
  %v39 = vld [vmem:[%s0 + $0xa8] sm:$0xff]
  %v40 = vld [vmem:[%s0 + $0xb0] sm:$0xff]
  %v41 = vld [vmem:[%s0 + $0xb8] sm:$0xff]
  %v42 = vld [vmem:[%s0 + $0xc0] sm:$0xff]
  %v43 = vld [vmem:[%s0 + $0xc8] sm:$0xff]
  %v44 = vld [vmem:[%s0 + $0xd0] sm:$0xff]
  %v45 = vld [vmem:[%s0 + $0xd8] sm:$0xff]
  %v46 = vld [vmem:[%s0 + $0xe0] sm:$0xff]
  %v47 = vld [vmem:[%s0 + $0xe8] sm:$0xff]
  %v48 = vld [vmem:[%s0 + $0xf0] sm:$0xff]
  %v49 = vld [vmem:[%s0 + $0xf8] sm:$0xff]
  %v50 = vld [vmem:[%s0 + $0x100] sm:$0xff]
  %v51 = vld [vmem:[%s0 + $0x108] sm:$0xff]
  %v52 = vld [vmem:[%s0 + $0x110] sm:$0xff]
  %v53 = vld [vmem:[%s0 + $0x118] sm:$0xff]
  %v54 = vld [vmem:[%s0 + $0x120] sm:$0xff]
  %v55 = vld [vmem:[%s0 + $0x128] sm:$0xff]
  %v56 = vld [vmem:[%s0 + $0x130] sm:$0xff]
  %v57 = vld [vmem:[%s0 + $0x138] sm:$0xff]
  %v58 = vld [vmem:[%s0 + $0x140] sm:$0xff]
  %v59 = vld [vmem:[%s0 + $0x148] sm:$0xff]
  %v60 = vld [vmem:[%s0 + $0x150] sm:$0xff]
  %v61 = vld [vmem:[%s0 + $0x158] sm:$0xff]
  %v62 = vld [vmem:[%s0 + $0x160] sm:$0xff]
  %v63 = vld [vmem:[%s0 + $0x168] sm:$0xff]
  %v64 = vld [vmem:[%s0 + $0x170] sm:$0xff]
  %v65 = vld [vmem:[%s0 + $0x178] sm:$0xff]
  %v66 = vld [vmem:[%s0 + $0x180] sm:$0xff]
  %v67 = vld [vmem:[%s0 + $0x188] sm:$0xff]
  %v68 = vld [vmem:[%s0 + $0x190] sm:$0xff]
  %v69 = vld [vmem:[%s0 + $0x198] sm:$0xff]
  %v70 = vld [vmem:[%s0 + $0x1a0] sm:$0xff]
  %v71 = vld [vmem:[%s0 + $0x1a8] sm:$0xff]
  %v72 = vld [vmem:[%s0 + $0x1b0] sm:$0xff]
  %v73 = vld [vmem:[%s0 + $0x1b8] sm:$0xff]
  %v74 = vld [vmem:[%s0 + $0x1c0] sm:$0xff]
  %v75 = vld [vmem:[%s0 + $0x1c8] sm:$0xff]
  %v76 = vld [vmem:[%s0 + $0x1d0] sm:$0xff]
  %v77 = vld [vmem:[%s0 + $0x1d8] sm:$0xff]
  %v78 = vld [vmem:[%s0 + $0x1e0] sm:$0xff]
  %v79 = vld [vmem:[%s0 + $0x1e8] sm:$0xff]
  %v80 = vld [vmem:[%s0 + $0x1f0] sm:$0xff]
  %v81 = vld [vmem:[%s0 + $0x1f8] sm:$0xff]
  %v82 = vld [vmem:[%s0 + $0x200] sm:$0xff]
  %v83 = vld [vmem:[%s0 + $0x208] sm:$0xff]
  %v84 = vld [vmem:[%s0 + $0x210] sm:$0xff]
  %v85 = vld [vmem:[%s0 + $0x218] sm:$0xff]
  %v86 = vld [vmem:[%s0 + $0x220] sm:$0xff]
  %v87 = vld [vmem:[%s0 + $0x228] sm:$0xff]
  %v88 = vld [vmem:[%s0 + $0x230] sm:$0xff]
  %v89 = vld [vmem:[%s0 + $0x238] sm:$0xff]
  %v90 = vld [vmem:[%s0 + $0x240] sm:$0xff]
  %v91 = vld [vmem:[%s0 + $0x248] sm:$0xff]
  %v92 = vld [vmem:[%s0 + $0x250] sm:$0xff]
  %v93 = vld [vmem:[%s0 + $0x258] sm:$0xff]
  %v94 = vld [vmem:[%s0 + $0x260] sm:$0xff]
  %v95 = vld [vmem:[%s0 + $0x268] sm:$0xff]
  %v96 = vld [vmem:[%s0 + $0x270] sm:$0xff]
  %v97 = vld [vmem:[%s0 + $0x278] sm:$0xff]
  %v98 = vld [vmem:[%s0 + $0x280] sm:$0xff]
  %v99 = vld [vmem:[%s0 + $0x288] sm:$0xff]
  %v100 = vld [vmem:[%s0 + $0x290] sm:$0xff]
  %v101 = vld [vmem:[%s0 + $0x298] sm:$0xff]
  %v102 = vld [vmem:[%s0 + $0x2a0] sm:$0xff]
  %v103 = vld [vmem:[%s0 + $0x2a8] sm:$0xff]
  %v104 = vld [vmem:[%s0 + $0x2b0] sm:$0xff]
  %v105 = vld [vmem:[%s0 + $0x2b8] sm:$0xff]
  %v106 = vld [vmem:[%s0 + $0x2c0] sm:$0xff]
  %v107 = vld [vmem:[%s0 + $0x2c8] sm:$0xff]
  %v108 = vld [vmem:[%s0 + $0x2d0] sm:$0xff]
  %v109 = vld [vmem:[%s0 + $0x2d8] sm:$0xff]
  %v110 = vld [vmem:[%s0 + $0x2e0] sm:$0xff]
  %v111 = vld [vmem:[%s0 + $0x2e8] sm:$0xff]
  %v112 = vld [vmem:[%s0 + $0x2f0] sm:$0xff]
  %v113 = vld [vmem:[%s0 + $0x2f8] sm:$0xff]
  %v114 = vld [vmem:[%s0 + $0x300] sm:$0xff]
  %v115 = vld [vmem:[%s0 + $0x308] sm:$0xff]
  %v116 = vld [vmem:[%s0 + $0x310] sm:$0xff]
  %v117 = vld [vmem:[%s0 + $0x318] sm:$0xff]
  %v118 = vld [vmem:[%s0 + $0x320] sm:$0xff]
  %v119 = vld [vmem:[%s0 + $0x328] sm:$0xff]
  %v120 = vld [vmem:[%s0 + $0x330] sm:$0xff]
  %v121 = vld [vmem:[%s0 + $0x338] sm:$0xff]
  %v122 = vld [vmem:[%s0 + $0x340] sm:$0xff]
  %v123 = vld [vmem:[%s0 + $0x348] sm:$0xff]
  %v124 = vld [vmem:[%s0 + $0x350] sm:$0xff]
  %v125 = vld [vmem:[%s0 + $0x358] sm:$0xff]
  %v126 = vld [vmem:[%s0 + $0x360] sm:$0xff]
  %v127 = vld [vmem:[%s0 + $0x368] sm:$0xff]
  %v128 = vld [vmem:[%s0 + $0x370] sm:$0xff]
  %v129 = vld [vmem:[%s0 + $0x378] sm:$0xff]
  %v130 = vld [vmem:[%s0 + $0x380] sm:$0xff]
  %v131 = vld [vmem:[%s0 + $0x388] sm:$0xff]
  %v132 = vld [vmem:[%s0 + $0x390] sm:$0xff]
  %v133 = vld [vmem:[%s0 + $0x398] sm:$0xff]
  %v134 = vld [vmem:[%s0 + $0x3a0] sm:$0xff]
  %v135 = vld [vmem:[%s0 + $0x3a8] sm:$0xff]
  %v136 = vld [vmem:[%s0 + $0x3b0] sm:$0xff]
  %v137 = vld [vmem:[%s0 + $0x3b8] sm:$0xff]
  %v138 = vld [vmem:[%s0 + $0x3c0] sm:$0xff]
  %v139 = vld [vmem:[%s0 + $0x3c8] sm:$0xff]
  %v140 = vld [vmem:[%s0 + $0x3d0] sm:$0xff]
  %v141 = vld [vmem:[%s0 + $0x3d8] sm:$0xff]
  %v142 = vld [vmem:[%s0 + $0x3e0] sm:$0xff]
  %v143 = vld [vmem:[%s0 + $0x3e8] sm:$0xff]
  %v144 = vld [vmem:[%s0 + $0x3f0] sm:$0xff]
  %v145 = vld [vmem:[%s0 + $0x3f8] sm:$0xff]
  %v146 = vld [vmem:[%s0 + $0x400] sm:$0xff]
  %v147 = vld [vmem:[%s0 + $0x408] sm:$0xff]
  %v148 = vld [vmem:[%s0 + $0x410] sm:$0xff]
  %v149 = vld [vmem:[%s0 + $0x418] sm:$0xff]
  %v150 = vld [vmem:[%s0 + $0x420] sm:$0xff]
  %v151 = vld [vmem:[%s0 + $0x428] sm:$0xff]
  %v152 = vld [vmem:[%s0 + $0x430] sm:$0xff]
  %v153 = vld [vmem:[%s0 + $0x438] sm:$0xff]
  %v154 = vld [vmem:[%s0 + $0x440] sm:$0xff]
  %v155 = vld [vmem:[%s0 + $0x448] sm:$0xff]
  %v156 = vld [vmem:[%s0 + $0x450] sm:$0xff]
  %v157 = vld [vmem:[%s0 + $0x458] sm:$0xff]
  %v158 = vld [vmem:[%s0 + $0x460] sm:$0xff]
  %v159 = vld [vmem:[%s0 + $0x468] sm:$0xff]
  %v160 = vld [vmem:[%s0 + $0x470] sm:$0xff]
  %v161 = vld [vmem:[%s0 + $0x478] sm:$0xff]
  %v162 = vld [vmem:[%s0 + $0x480] sm:$0xff]
  %v163 = vld [vmem:[%s0 + $0x488] sm:$0xff]
  %v164 = vld [vmem:[%s0 + $0x490] sm:$0xff]
  %v165 = vld [vmem:[%s0 + $0x498] sm:$0xff]
  %v166 = vld [vmem:[%s0 + $0x4a0] sm:$0xff]
  %v167 = vld [vmem:[%s0 + $0x4a8] sm:$0xff]
  %v168 = vld [vmem:[%s0 + $0x4b0] sm:$0xff]
  %v169 = vld [vmem:[%s0 + $0x4b8] sm:$0xff]
  %v170 = vld [vmem:[%s0 + $0x4c0] sm:$0xff]
  %v171 = vld [vmem:[%s0 + $0x4c8] sm:$0xff]
  %v172 = vld [vmem:[%s0 + $0x4d0] sm:$0xff]
  %v173 = vld [vmem:[%s0 + $0x4d8] sm:$0xff]
  %v174 = vld [vmem:[%s0 + $0x4e0] sm:$0xff]
  %v175 = vld [vmem:[%s0 + $0x4e8] sm:$0xff]
  %v176 = vld [vmem:[%s0 + $0x4f0] sm:$0xff]
  %v177 = vld [vmem:[%s0 + $0x4f8] sm:$0xff]
  %v178 = vld [vmem:[%s0 + $0x500] sm:$0xff]
  %v179 = vld [vmem:[%s0 + $0x508] sm:$0xff]
  %v180 = vld [vmem:[%s0 + $0x510] sm:$0xff]
  %v181 = vld [vmem:[%s0 + $0x518] sm:$0xff]
  %v182 = vld [vmem:[%s0 + $0x520] sm:$0xff]
  %v183 = vld [vmem:[%s0 + $0x528] sm:$0xff]
  %v184 = vld [vmem:[%s0 + $0x530] sm:$0xff]
  %v185 = vld [vmem:[%s0 + $0x538] sm:$0xff]
  %v186 = vld [vmem:[%s0 + $0x540] sm:$0xff]
  %v187 = vld [vmem:[%s0 + $0x548] sm:$0xff]
  %v188 = vld [vmem:[%s0 + $0x550] sm:$0xff]
  %v189 = vld [vmem:[%s0 + $0x558] sm:$0xff]
  %v190 = vld [vmem:[%s0 + $0x560] sm:$0xff]
  %v191 = vld [vmem:[%s0 + $0x568] sm:$0xff]
  %v192 = vld [vmem:[%s0 + $0x570] sm:$0xff]
  %v193 = vld [vmem:[%s0 + $0x578] sm:$0xff]
  %v194 = vld [vmem:[%s0 + $0x580] sm:$0xff]
  %v195 = vld [vmem:[%s0 + $0x588] sm:$0xff]
  %v196 = vld [vmem:[%s0 + $0x590] sm:$0xff]
  %v197 = vld [vmem:[%s0 + $0x598] sm:$0xff]
  %v198 = vld [vmem:[%s0 + $0x5a0] sm:$0xff]
  %v199 = vld [vmem:[%s0 + $0x5a8] sm:$0xff]
  %v200 = vld [vmem:[%s0 + $0x5b0] sm:$0xff]
  %v201 = vld [vmem:[%s0 + $0x5b8] sm:$0xff]
  %v202 = vld [vmem:[%s0 + $0x5c0] sm:$0xff]
  %v203 = vld [vmem:[%s0 + $0x5c8] sm:$0xff]
  %v204 = vld [vmem:[%s0 + $0x5d0] sm:$0xff]
  %v205 = vld [vmem:[%s0 + $0x5d8] sm:$0xff]
  %v206 = vld [vmem:[%s0 + $0x5e0] sm:$0xff]
  %v207 = vld [vmem:[%s0 + $0x5e8] sm:$0xff]
  %v208 = vld [vmem:[%s0 + $0x5f0] sm:$0xff]
  %v209 = vld [vmem:[%s0 + $0x5f8] sm:$0xff]
  %v210 = vld [vmem:[%s0 + $0x600] sm:$0xff]
  %v211 = vld [vmem:[%s0 + $0x608] sm:$0xff]
  %v212 = vld [vmem:[%s0 + $0x610] sm:$0xff]
  %v213 = vld [vmem:[%s0 + $0x618] sm:$0xff]
  %v214 = vld [vmem:[%s0 + $0x620] sm:$0xff]
  %v215 = vld [vmem:[%s0 + $0x628] sm:$0xff]
  %v216 = vld [vmem:[%s0 + $0x630] sm:$0xff]
  %v217 = vld [vmem:[%s0 + $0x638] sm:$0xff]
  %v218 = vld [vmem:[%s0 + $0x640] sm:$0xff]
  %v219 = vld [vmem:[%s0 + $0x648] sm:$0xff]
  %v220 = vld [vmem:[%s0 + $0x650] sm:$0xff]
  %v221 = vld [vmem:[%s0 + $0x658] sm:$0xff]
  %v222 = vld [vmem:[%s0 + $0x660] sm:$0xff]
  %v223 = vld [vmem:[%s0 + $0x668] sm:$0xff]
  %v224 = vld [vmem:[%s0 + $0x670] sm:$0xff]
  %v225 = vld [vmem:[%s0 + $0x678] sm:$0xff]
  %v226 = vld [vmem:[%s0 + $0x680] sm:$0xff]
  %v227 = vld [vmem:[%s0 + $0x688] sm:$0xff]
  %v228 = vld [vmem:[%s0 + $0x690] sm:$0xff]
  %v229 = vld [vmem:[%s0 + $0x698] sm:$0xff]
  %v230 = vld [vmem:[%s0 + $0x6a0] sm:$0xff]
  %v231 = vld [vmem:[%s0 + $0x6a8] sm:$0xff]
  %v232 = vld [vmem:[%s0 + $0x6b0] sm:$0xff]
  %v233 = vld [vmem:[%s0 + $0x6b8] sm:$0xff]
  %v234 = vld [vmem:[%s0 + $0x6c0] sm:$0xff]
  %v235 = vld [vmem:[%s0 + $0x6c8] sm:$0xff]
  %v236 = vld [vmem:[%s0 + $0x6d0] sm:$0xff]
  %v237 = vld [vmem:[%s0 + $0x6d8] sm:$0xff]
  %v238 = vld [vmem:[%s0 + $0x6e0] sm:$0xff]
  %v239 = vld [vmem:[%s0 + $0x6e8] sm:$0xff]
  %v240 = vld [vmem:[%s0 + $0x6f0] sm:$0xff]
  %v241 = vld [vmem:[%s0 + $0x6f8] sm:$0xff]
  %v242 = vld [vmem:[%s0 + $0x700] sm:$0xff]
  %v243 = vld [vmem:[%s0 + $0x708] sm:$0xff]
  %v244 = vld [vmem:[%s0 + $0x710] sm:$0xff]
  %v245 = vld [vmem:[%s0 + $0x718] sm:$0xff]
  %v246 = vld [vmem:[%s0 + $0x720] sm:$0xff]
  %v247 = vld [vmem:[%s0 + $0x728] sm:$0xff]
  %v248 = vld [vmem:[%s0 + $0x730] sm:$0xff]
  %v249 = vld [vmem:[%s0 + $0x738] sm:$0xff]
  %v250 = vld [vmem:[%s0 + $0x740] sm:$0xff]
  %v251 = vld [vmem:[%s0 + $0x748] sm:$0xff]
  %v252 = vld [vmem:[%s0 + $0x750] sm:$0xff]
  %v253 = vld [vmem:[%s0 + $0x758] sm:$0xff]
  %v254 = vld [vmem:[%s0 + $0x760] sm:$0xff]
  %v255 = vld [vmem:[%s0 + $0x768] sm:$0xff]
  %v256 = vld [vmem:[%s0 + $0x770] sm:$0xff]
  %v257 = vld [vmem:[%s0 + $0x778] sm:$0xff]
  %v258 = vld [vmem:[%s0 + $0x780] sm:$0xff]
  %v259 = vld [vmem:[%s0 + $0x788] sm:$0xff]
  %v260 = vld [vmem:[%s0 + $0x790] sm:$0xff]
  %v261 = vld [vmem:[%s0 + $0x798] sm:$0xff]
  %v262 = vld [vmem:[%s0 + $0x7a0] sm:$0xff]
  %v263 = vld [vmem:[%s0 + $0x7a8] sm:$0xff]
  %v264 = vld [vmem:[%s0 + $0x7b0] sm:$0xff]
  %v265 = vld [vmem:[%s0 + $0x7b8] sm:$0xff]
  %v266 = vld [vmem:[%s0 + $0x7c0] sm:$0xff]
  %v267 = vld [vmem:[%s0 + $0x7c8] sm:$0xff]
  %v268 = vld [vmem:[%s0 + $0x7d0] sm:$0xff]
  %v269 = vld [vmem:[%s0 + $0x7d8] sm:$0xff]
  %v270 = vld [vmem:[%s0 + $0x7e0] sm:$0xff]
  %v271 = vld [vmem:[%s0 + $0x7e8] sm:$0xff]
  %v272 = vld [vmem:[%s0 + $0x7f0] sm:$0xff]
  %v273 = vld [vmem:[%s0 + $0x7f8] sm:$0xff]
  %v274 = vld [vmem:[%s0 + $0x800] sm:$0xff]
  %v275 = vld [vmem:[%s0 + $0x808] sm:$0xff]
  %v276 = vld [vmem:[%s0 + $0x810] sm:$0xff]
  %v277 = vld [vmem:[%s0 + $0x818] sm:$0xff]
  %v278 = vld [vmem:[%s0 + $0x820] sm:$0xff]
  %v279 = vld [vmem:[%s0 + $0x828] sm:$0xff]
  %v280 = vld [vmem:[%s0 + $0x830] sm:$0xff]
  %v281 = vld [vmem:[%s0 + $0x838] sm:$0xff]
  %v282 = vld [vmem:[%s0 + $0x840] sm:$0xff]
  %v283 = vld [vmem:[%s0 + $0x848] sm:$0xff]
  %v284 = vld [vmem:[%s0 + $0x850] sm:$0xff]
  %v285 = vld [vmem:[%s0 + $0x858] sm:$0xff]
  %v286 = vld [vmem:[%s0 + $0x860] sm:$0xff]
  %v287 = vld [vmem:[%s0 + $0x868] sm:$0xff]
  %v288 = vld [vmem:[%s0 + $0x870] sm:$0xff]
  %v289 = vld [vmem:[%s0 + $0x878] sm:$0xff]
  %v290 = vld [vmem:[%s0 + $0x880] sm:$0xff]
  %v291 = vld [vmem:[%s0 + $0x888] sm:$0xff]
  %v292 = vld [vmem:[%s0 + $0x890] sm:$0xff]
  %v293 = vld [vmem:[%s0 + $0x898] sm:$0xff]
  %v294 = vld [vmem:[%s0 + $0x8a0] sm:$0xff]
  %v295 = vld [vmem:[%s0 + $0x8a8] sm:$0xff]
  %v296 = vld [vmem:[%s0 + $0x8b0] sm:$0xff]
  %v297 = vld [vmem:[%s0 + $0x8b8] sm:$0xff]
  %v298 = vld [vmem:[%s0 + $0x8c0] sm:$0xff]
  %v299 = vld [vmem:[%s0 + $0x8c8] sm:$0xff]
  %v300 = vld [vmem:[%s0 + $0x8d0] sm:$0xff]
  %v301 = vld [vmem:[%s0 + $0x8d8] sm:$0xff]
  %v302 = vld [vmem:[%s0 + $0x8e0] sm:$0xff]
  %v303 = vld [vmem:[%s0 + $0x8e8] sm:$0xff]
  %v304 = vld [vmem:[%s0 + $0x8f0] sm:$0xff]
  %v305 = vld [vmem:[%s0 + $0x8f8] sm:$0xff]
  %v306 = vld [vmem:[%s0 + $0x900] sm:$0xff]
  %v307 = vld [vmem:[%s0 + $0x908] sm:$0xff]
  %v308 = vld [vmem:[%s0 + $0x910] sm:$0xff]
  %v309 = vld [vmem:[%s0 + $0x918] sm:$0xff]
  %v310 = vld [vmem:[%s0 + $0x920] sm:$0xff]
  %v311 = vld [vmem:[%s0 + $0x928] sm:$0xff]
  %v312 = vld [vmem:[%s0 + $0x930] sm:$0xff]
  %v313 = vld [vmem:[%s0 + $0x938] sm:$0xff]
  %v314 = vld [vmem:[%s0 + $0x940] sm:$0xff]
  %v315 = vld [vmem:[%s0 + $0x948] sm:$0xff]
  %v316 = vld [vmem:[%s0 + $0x950] sm:$0xff]
  %v317 = vld [vmem:[%s0 + $0x958] sm:$0xff]
  %v318 = vld [vmem:[%s0 + $0x960] sm:$0xff]
  %v319 = vld [vmem:[%s0 + $0x968] sm:$0xff]
  %v320 = vld [vmem:[%s0 + $0x970] sm:$0xff]
  %v321 = vld [vmem:[%s0 + $0x978] sm:$0xff]
  %v322 = vld [vmem:[%s0 + $0x980] sm:$0xff]
  %v323 = vld [vmem:[%s0 + $0x988] sm:$0xff]
  %v324 = vld [vmem:[%s0 + $0x990] sm:$0xff]
  %v325 = vld [vmem:[%s0 + $0x998] sm:$0xff]
  %v326 = vld [vmem:[%s0 + $0x9a0] sm:$0xff]
  %v327 = vld [vmem:[%s0 + $0x9a8] sm:$0xff]
  %v328 = vld [vmem:[%s0 + $0x9b0] sm:$0xff]
  %v329 = vld [vmem:[%s0 + $0x9b8] sm:$0xff]
  %v330 = vld [vmem:[%s0 + $0x9c0] sm:$0xff]
  %v331 = vld [vmem:[%s0 + $0x9c8] sm:$0xff]
  %v332 = vld [vmem:[%s0 + $0x9d0] sm:$0xff]
  %v333 = vld [vmem:[%s0 + $0x9d8] sm:$0xff]
  %v334 = vld [vmem:[%s0 + $0x9e0] sm:$0xff]
  %v335 = vld [vmem:[%s0 + $0x9e8] sm:$0xff]
  %v336 = vld [vmem:[%s0 + $0x9f0] sm:$0xff]
  %v337 = vld [vmem:[%s0 + $0x9f8] sm:$0xff]
  %v338 = vld [vmem:[%s0 + $0xa00] sm:$0xff]
  %v339 = vld [vmem:[%s0 + $0xa08] sm:$0xff]
  %v340 = vld [vmem:[%s0 + $0xa10] sm:$0xff]
  %v341 = vld [vmem:[%s0 + $0xa18] sm:$0xff]
  %v342 = vld [vmem:[%s0 + $0xa20] sm:$0xff]
  %v343 = vld [vmem:[%s0 + $0xa28] sm:$0xff]
  %v344 = vld [vmem:[%s0 + $0xa30] sm:$0xff]
  %v345 = vld [vmem:[%s0 + $0xa38] sm:$0xff]
  %v346 = vld [vmem:[%s0 + $0xa40] sm:$0xff]
  %v347 = vld [vmem:[%s0 + $0xa48] sm:$0xff]
  %v348 = vld [vmem:[%s0 + $0xa50] sm:$0xff]
  %v349 = vld [vmem:[%s0 + $0xa58] sm:$0xff]
  %v350 = vld [vmem:[%s0 + $0xa60] sm:$0xff]
  %v351 = vld [vmem:[%s0 + $0xa68] sm:$0xff]
  %v352 = vld [vmem:[%s0 + $0xa70] sm:$0xff]
  %v353 = vld [vmem:[%s0 + $0xa78] sm:$0xff]
  %v354 = vld [vmem:[%s0 + $0xa80] sm:$0xff]
  %v355 = vld [vmem:[%s0 + $0xa88] sm:$0xff]
  %v356 = vld [vmem:[%s0 + $0xa90] sm:$0xff]
  %v357 = vld [vmem:[%s0 + $0xa98] sm:$0xff]
  %v358 = vld [vmem:[%s0 + $0xaa0] sm:$0xff]
  %v359 = vld [vmem:[%s0 + $0xaa8] sm:$0xff]
  %v360 = vld [vmem:[%s0 + $0xab0] sm:$0xff]
  %v361 = vld [vmem:[%s0 + $0xab8] sm:$0xff]
  %v362 = vld [vmem:[%s0 + $0xac0] sm:$0xff]
  %v363 = vld [vmem:[%s0 + $0xac8] sm:$0xff]
  %v364 = vld [vmem:[%s0 + $0xad0] sm:$0xff]
  %v365 = vld [vmem:[%s0 + $0xad8] sm:$0xff]
  %v366 = vld [vmem:[%s0 + $0xae0] sm:$0xff]
  %v367 = vld [vmem:[%s0 + $0xae8] sm:$0xff]
  %v368 = vld [vmem:[%s0 + $0xaf0] sm:$0xff]
  %v369 = vld [vmem:[%s0 + $0xaf8] sm:$0xff]
  %v370 = vld [vmem:[%s0 + $0xb00] sm:$0xff]
  %v371 = vld [vmem:[%s0 + $0xb08] sm:$0xff]
  %v372 = vld [vmem:[%s0 + $0xb10] sm:$0xff]
  %v373 = vld [vmem:[%s0 + $0xb18] sm:$0xff]
  %v374 = vld [vmem:[%s0 + $0xb20] sm:$0xff]
  %v375 = vld [vmem:[%s0 + $0xb28] sm:$0xff]
  %v376 = vld [vmem:[%s0 + $0xb30] sm:$0xff]
  %v377 = vld [vmem:[%s0 + $0xb38] sm:$0xff]
  %v378 = vld [vmem:[%s0 + $0xb40] sm:$0xff]
  %v379 = vld [vmem:[%s0 + $0xb48] sm:$0xff]
  %v380 = vld [vmem:[%s0 + $0xb50] sm:$0xff]
  %v381 = vld [vmem:[%s0 + $0xb58] sm:$0xff]
  %v382 = vld [vmem:[%s0 + $0xb60] sm:$0xff]
  %v383 = vld [vmem:[%s0 + $0xb68] sm:$0xff]
  %v384 = vld [vmem:[%s0 + $0xb70] sm:$0xff]
  %v385 = vld [vmem:[%s0 + $0xb78] sm:$0xff]
  %v386 = vld [vmem:[%s0 + $0xb80] sm:$0xff]
  %v387 = vld [vmem:[%s0 + $0xb88] sm:$0xff]
  %v388 = vld [vmem:[%s0 + $0xb90] sm:$0xff]
  %v389 = vld [vmem:[%s0 + $0xb98] sm:$0xff]
  %v390 = vld [vmem:[%s0 + $0xba0] sm:$0xff]
  %v391 = vld [vmem:[%s0 + $0xba8] sm:$0xff]
  %v392 = vld [vmem:[%s0 + $0xbb0] sm:$0xff]
  %v393 = vld [vmem:[%s0 + $0xbb8] sm:$0xff]
  %v394 = vld [vmem:[%s0 + $0xbc0] sm:$0xff]
  %v395 = vld [vmem:[%s0 + $0xbc8] sm:$0xff]
  %v396 = vld [vmem:[%s0 + $0xbd0] sm:$0xff]
  %v397 = vld [vmem:[%s0 + $0xbd8] sm:$0xff]
  %v398 = vld [vmem:[%s0 + $0xbe0] sm:$0xff]
  %v399 = vld [vmem:[%s0 + $0xbe8] sm:$0xff]
  %v400 = vld [vmem:[%s0 + $0xbf0] sm:$0xff]
  %v401 = vld [vmem:[%s0 + $0xbf8] sm:$0xff]
  %v402 = vld [vmem:[%s0 + $0xc00] sm:$0xff]
  %v403 = vld [vmem:[%s0 + $0xc08] sm:$0xff]
  %v404 = vld [vmem:[%s0 + $0xc10] sm:$0xff]
  %v405 = vld [vmem:[%s0 + $0xc18] sm:$0xff]
  %v406 = vld [vmem:[%s0 + $0xc20] sm:$0xff]
  %v407 = vld [vmem:[%s0 + $0xc28] sm:$0xff]
  %v408 = vld [vmem:[%s0 + $0xc30] sm:$0xff]
  %v409 = vld [vmem:[%s0 + $0xc38] sm:$0xff]
  %v410 = vld [vmem:[%s0 + $0xc40] sm:$0xff]
  %v411 = vld [vmem:[%s0 + $0xc48] sm:$0xff]
  %v412 = vld [vmem:[%s0 + $0xc50] sm:$0xff]
  %v413 = vld [vmem:[%s0 + $0xc58] sm:$0xff]
  %v414 = vld [vmem:[%s0 + $0xc60] sm:$0xff]
  %v415 = vld [vmem:[%s0 + $0xc68] sm:$0xff]
  %v416 = vld [vmem:[%s0 + $0xc70] sm:$0xff]
  %v417 = vld [vmem:[%s0 + $0xc78] sm:$0xff]
  %v418 = vld [vmem:[%s0 + $0xc80] sm:$0xff]
  %v419 = vld [vmem:[%s0 + $0xc88] sm:$0xff]
  %v420 = vld [vmem:[%s0 + $0xc90] sm:$0xff]
  %v421 = vld [vmem:[%s0 + $0xc98] sm:$0xff]
  %v422 = vld [vmem:[%s0 + $0xca0] sm:$0xff]
  %v423 = vld [vmem:[%s0 + $0xca8] sm:$0xff]
  %v424 = vld [vmem:[%s0 + $0xcb0] sm:$0xff]
  %v425 = vld [vmem:[%s0 + $0xcb8] sm:$0xff]
  %v426 = vld [vmem:[%s0 + $0xcc0] sm:$0xff]
  %v427 = vld [vmem:[%s0 + $0xcc8] sm:$0xff]
  %v428 = vld [vmem:[%s0 + $0xcd0] sm:$0xff]
  %v429 = vld [vmem:[%s0 + $0xcd8] sm:$0xff]
  %v430 = vld [vmem:[%s0 + $0xce0] sm:$0xff]
  %v431 = vld [vmem:[%s0 + $0xce8] sm:$0xff]
  %v432 = vld [vmem:[%s0 + $0xcf0] sm:$0xff]
  %v433 = vld [vmem:[%s0 + $0xcf8] sm:$0xff]
  %v434 = vld [vmem:[%s0 + $0xd00] sm:$0xff]
  %v435 = vld [vmem:[%s0 + $0xd08] sm:$0xff]
  %v436 = vld [vmem:[%s0 + $0xd10] sm:$0xff]
  %v437 = vld [vmem:[%s0 + $0xd18] sm:$0xff]
  %v438 = vld [vmem:[%s0 + $0xd20] sm:$0xff]
  %v439 = vld [vmem:[%s0 + $0xd28] sm:$0xff]
  %v440 = vld [vmem:[%s0 + $0xd30] sm:$0xff]
  %v441 = vld [vmem:[%s0 + $0xd38] sm:$0xff]
  %v442 = vld [vmem:[%s0 + $0xd40] sm:$0xff]
  %v443 = vld [vmem:[%s0 + $0xd48] sm:$0xff]
  %v444 = vld [vmem:[%s0 + $0xd50] sm:$0xff]
  %v445 = vld [vmem:[%s0 + $0xd58] sm:$0xff]
  %v446 = vld [vmem:[%s0 + $0xd60] sm:$0xff]
  %v447 = vld [vmem:[%s0 + $0xd68] sm:$0xff]
  %v448 = vld [vmem:[%s0 + $0xd70] sm:$0xff]
  %v449 = vld [vmem:[%s0 + $0xd78] sm:$0xff]
  %v450 = vld [vmem:[%s0 + $0xd80] sm:$0xff]
  %v451 = vld [vmem:[%s0 + $0xd88] sm:$0xff]
  %v452 = vld [vmem:[%s0 + $0xd90] sm:$0xff]
  %v453 = vld [vmem:[%s0 + $0xd98] sm:$0xff]
  %v454 = vld [vmem:[%s0 + $0xda0] sm:$0xff]
  %v455 = vld [vmem:[%s0 + $0xda8] sm:$0xff]
  %v456 = vld [vmem:[%s0 + $0xdb0] sm:$0xff]
  %v457 = vld [vmem:[%s0 + $0xdb8] sm:$0xff]
  %v458 = vld [vmem:[%s0 + $0xdc0] sm:$0xff]
  %v459 = vld [vmem:[%s0 + $0xdc8] sm:$0xff]
  %v460 = vld [vmem:[%s0 + $0xdd0] sm:$0xff]
  %v461 = vld [vmem:[%s0 + $0xdd8] sm:$0xff]
  %v462 = vld [vmem:[%s0 + $0xde0] sm:$0xff]
  %v463 = vld [vmem:[%s0 + $0xde8] sm:$0xff]
  %v464 = vld [vmem:[%s0 + $0xdf0] sm:$0xff]
  %v465 = vld [vmem:[%s0 + $0xdf8] sm:$0xff]
  %v466 = vld [vmem:[%s0 + $0xe00] sm:$0xff]
  %v467 = vld [vmem:[%s0 + $0xe08] sm:$0xff]
  %v468 = vld [vmem:[%s0 + $0xe10] sm:$0xff]
  %v469 = vld [vmem:[%s0 + $0xe18] sm:$0xff]
  %v470 = vld [vmem:[%s0 + $0xe20] sm:$0xff]
  %v471 = vld [vmem:[%s0 + $0xe28] sm:$0xff]
  %v472 = vld [vmem:[%s0 + $0xe30] sm:$0xff]
  %v473 = vld [vmem:[%s0 + $0xe38] sm:$0xff]
  %v474 = vld [vmem:[%s0 + $0xe40] sm:$0xff]
  %v475 = vld [vmem:[%s0 + $0xe48] sm:$0xff]
  %v476 = vld [vmem:[%s0 + $0xe50] sm:$0xff]
  %v477 = vld [vmem:[%s0 + $0xe58] sm:$0xff]
  %v478 = vld [vmem:[%s0 + $0xe60] sm:$0xff]
  %v479 = vld [vmem:[%s0 + $0xe68] sm:$0xff]
  %v480 = vld [vmem:[%s0 + $0xe70] sm:$0xff]
  %v481 = vld [vmem:[%s0 + $0xe78] sm:$0xff]
  %v482 = vld [vmem:[%s0 + $0xe80] sm:$0xff]
  %v483 = vld [vmem:[%s0 + $0xe88] sm:$0xff]
  %v484 = vld [vmem:[%s0 + $0xe90] sm:$0xff]
  %v485 = vld [vmem:[%s0 + $0xe98] sm:$0xff]
  %v486 = vld [vmem:[%s0 + $0xea0] sm:$0xff]
  %v487 = vld [vmem:[%s0 + $0xea8] sm:$0xff]
  %v488 = vld [vmem:[%s0 + $0xeb0] sm:$0xff]
  %v489 = vld [vmem:[%s0 + $0xeb8] sm:$0xff]
  %v490 = vld [vmem:[%s0 + $0xec0] sm:$0xff]
  %v491 = vld [vmem:[%s0 + $0xec8] sm:$0xff]
  %v492 = vld [vmem:[%s0 + $0xed0] sm:$0xff]
  %v493 = vld [vmem:[%s0 + $0xed8] sm:$0xff]
  %v494 = vld [vmem:[%s0 + $0xee0] sm:$0xff]
  %v495 = vld [vmem:[%s0 + $0xee8] sm:$0xff]
  %v496 = vld [vmem:[%s0 + $0xef0] sm:$0xff]
  %v497 = vld [vmem:[%s0 + $0xef8] sm:$0xff]
  %v498 = vld [vmem:[%s0 + $0xf00] sm:$0xff]
  %v499 = vld [vmem:[%s0 + $0xf08] sm:$0xff]
  %v500 = vld [vmem:[%s0 + $0xf10] sm:$0xff]
  %v501 = vld [vmem:[%s0 + $0xf18] sm:$0xff]
  %v502 = vld [vmem:[%s0 + $0xf20] sm:$0xff]
  %v503 = vld [vmem:[%s0 + $0xf28] sm:$0xff]
  %v504 = vld [vmem:[%s0 + $0xf30] sm:$0xff]
  %v505 = vld [vmem:[%s0 + $0xf38] sm:$0xff]
  %v506 = vld [vmem:[%s0 + $0xf40] sm:$0xff]
  %v507 = vld [vmem:[%s0 + $0xf48] sm:$0xff]
  %v508 = vld [vmem:[%s0 + $0xf50] sm:$0xff]
  %v509 = vld [vmem:[%s0 + $0xf58] sm:$0xff]
  %v510 = vld [vmem:[%s0 + $0xf60] sm:$0xff]
  %v511 = vld [vmem:[%s0 + $0xf68] sm:$0xff]
  %v512 = vld [vmem:[%s0 + $0xf70] sm:$0xff]
  %v513 = vld [vmem:[%s0 + $0xf78] sm:$0xff]
  %v514 = vld [vmem:[%s0 + $0xf80] sm:$0xff]
  %v515 = vld [vmem:[%s0 + $0xf88] sm:$0xff]
  %v516 = vld [vmem:[%s0 + $0xf90] sm:$0xff]
  %v517 = vld [vmem:[%s0 + $0xf98] sm:$0xff]
  %v518 = vld [vmem:[%s0 + $0xfa0] sm:$0xff]
  %v519 = vld [vmem:[%s0 + $0xfa8] sm:$0xff]
  %v520 = vld [vmem:[%s0 + $0xfb0] sm:$0xff]
  %v521 = vld [vmem:[%s0 + $0xfb8] sm:$0xff]
  %v522 = vld [vmem:[%s0 + $0xfc0] sm:$0xff]
  %v523 = vld [vmem:[%s0 + $0xfc8] sm:$0xff]
  %v524 = vld [vmem:[%s0 + $0xfd0] sm:$0xff]
  %v525 = vld [vmem:[%s0 + $0xfd8] sm:$0xff]
  %v526 = vld [vmem:[%s0 + $0xfe0] sm:$0xff]
  %v527 = vld [vmem:[%s0 + $0xfe8] sm:$0xff]
  %v528 = vld [vmem:[%s0 + $0xff0] sm:$0xff]
  %v529 = vld [vmem:[%s0 + $0xff8] sm:$0xff]
  %v530 = vld [vmem:[%s0 + $0x1000] sm:$0xff]
  %v531 = vld [vmem:[%s0 + $0x1008] sm:$0xff]
  %v532 = vld [vmem:[%s0 + $0x1010] sm:$0xff]
  %v533 = vld [vmem:[%s0 + $0x1018] sm:$0xff]
  %v534 = vld [vmem:[%s0 + $0x1020] sm:$0xff]
  %v535 = vld [vmem:[%s0 + $0x1028] sm:$0xff]
  %v536 = vld [vmem:[%s0 + $0x1030] sm:$0xff]
  %v537 = vld [vmem:[%s0 + $0x1038] sm:$0xff]
  %v538 = vld [vmem:[%s0 + $0x1040] sm:$0xff]
  %v539 = vld [vmem:[%s0 + $0x1048] sm:$0xff]
  %v540 = vld [vmem:[%s0 + $0x1050] sm:$0xff]
  %v541 = vld [vmem:[%s0 + $0x1058] sm:$0xff]
  %v542 = vld [vmem:[%s0 + $0x1060] sm:$0xff]
  %v543 = vld [vmem:[%s0 + $0x1068] sm:$0xff]
  %v544 = vld [vmem:[%s0 + $0x1070] sm:$0xff]
  %v545 = vld [vmem:[%s0 + $0x1078] sm:$0xff]
  %v546 = vld [vmem:[%s0 + $0x1080] sm:$0xff]
  %v547 = vld [vmem:[%s0 + $0x1088] sm:$0xff]
  %v548 = vld [vmem:[%s0 + $0x1090] sm:$0xff]
  %v549 = vld [vmem:[%s0 + $0x1098] sm:$0xff]
  %v550 = vld [vmem:[%s0 + $0x10a0] sm:$0xff]
  %v551 = vld [vmem:[%s0 + $0x10a8] sm:$0xff]
  %v552 = vld [vmem:[%s0 + $0x10b0] sm:$0xff]
  %v553 = vld [vmem:[%s0 + $0x10b8] sm:$0xff]
  %v554 = vld [vmem:[%s0 + $0x10c0] sm:$0xff]
  %v555 = vld [vmem:[%s0 + $0x10c8] sm:$0xff]
  %v556 = vld [vmem:[%s0 + $0x10d0] sm:$0xff]
  %v557 = vld [vmem:[%s0 + $0x10d8] sm:$0xff]
  %v558 = vld [vmem:[%s0 + $0x10e0] sm:$0xff]
  %v559 = vld [vmem:[%s0 + $0x10e8] sm:$0xff]
  %v560 = vld [vmem:[%s0 + $0x10f0] sm:$0xff]
  %v561 = vld [vmem:[%s0 + $0x10f8] sm:$0xff]
  %v562 = vld [vmem:[%s0 + $0x1100] sm:$0xff]
  %v563 = vld [vmem:[%s0 + $0x1108] sm:$0xff]
  %v564 = vld [vmem:[%s0 + $0x1110] sm:$0xff]
  %v565 = vld [vmem:[%s0 + $0x1118] sm:$0xff]
  %v566 = vld [vmem:[%s0 + $0x1120] sm:$0xff]
  %v567 = vld [vmem:[%s0 + $0x1128] sm:$0xff]
  %v568 = vld [vmem:[%s0 + $0x1130] sm:$0xff]
  %v569 = vld [vmem:[%s0 + $0x1138] sm:$0xff]
  %v570 = vld [vmem:[%s0 + $0x1140] sm:$0xff]
  %v571 = vld [vmem:[%s0 + $0x1148] sm:$0xff]
  %v572 = vld [vmem:[%s0 + $0x1150] sm:$0xff]
  %v573 = vld [vmem:[%s0 + $0x1158] sm:$0xff]
  %v574 = vld [vmem:[%s0 + $0x1160] sm:$0xff]
  %v575 = vld [vmem:[%s0 + $0x1168] sm:$0xff]
  %v576 = vld [vmem:[%s0 + $0x1170] sm:$0xff]
  %v577 = vld [vmem:[%s0 + $0x1178] sm:$0xff]
  %v578 = vld [vmem:[%s0 + $0x1180] sm:$0xff]
  %v579 = vld [vmem:[%s0 + $0x1188] sm:$0xff]
  %v580 = vld [vmem:[%s0 + $0x1190] sm:$0xff]
  %v581 = vld [vmem:[%s0 + $0x1198] sm:$0xff]
  %v582 = vld [vmem:[%s0 + $0x11a0] sm:$0xff]
  %v583 = vld [vmem:[%s0 + $0x11a8] sm:$0xff]
  %v584 = vld [vmem:[%s0 + $0x11b0] sm:$0xff]
  %v585 = vld [vmem:[%s0 + $0x11b8] sm:$0xff]
  %v586 = vld [vmem:[%s0 + $0x11c0] sm:$0xff]
  %v587 = vld [vmem:[%s0 + $0x11c8] sm:$0xff]
  %v588 = vld [vmem:[%s0 + $0x11d0] sm:$0xff]
  %v589 = vld [vmem:[%s0 + $0x11d8] sm:$0xff]
  %v590 = vld [vmem:[%s0 + $0x11e0] sm:$0xff]
  %v591 = vld [vmem:[%s0 + $0x11e8] sm:$0xff]
  %v592 = vld [vmem:[%s0 + $0x11f0] sm:$0xff]
  %v593 = vld [vmem:[%s0 + $0x11f8] sm:$0xff]
  %v594 = vld [vmem:[%s0 + $0x1200] sm:$0xff]
  %v595 = vld [vmem:[%s0 + $0x1208] sm:$0xff]
  %v596 = vld [vmem:[%s0 + $0x1210] sm:$0xff]
  %v597 = vld [vmem:[%s0 + $0x1218] sm:$0xff]
  %v598 = vld [vmem:[%s0 + $0x1220] sm:$0xff]
  %v599 = vld [vmem:[%s0 + $0x1228] sm:$0xff]
  %v600 = vld [vmem:[%s0 + $0x1230] sm:$0xff]
  %v601 = vld [vmem:[%s0 + $0x1238] sm:$0xff]
  %v602 = vld [vmem:[%s0 + $0x1240] sm:$0xff]
  %v603 = vld [vmem:[%s0 + $0x1248] sm:$0xff]
  %v604 = vld [vmem:[%s0 + $0x1250] sm:$0xff]
  %v605 = vld [vmem:[%s0 + $0x1258] sm:$0xff]
  %v606 = vld [vmem:[%s0 + $0x1260] sm:$0xff]
  %v607 = vld [vmem:[%s0 + $0x1268] sm:$0xff]
  %v608 = vld [vmem:[%s0 + $0x1270] sm:$0xff]
  %v609 = vld [vmem:[%s0 + $0x1278] sm:$0xff]
  %v610 = vld [vmem:[%s0 + $0x1280] sm:$0xff]
  %v611 = vld [vmem:[%s0 + $0x1288] sm:$0xff]
  %v612 = vld [vmem:[%s0 + $0x1290] sm:$0xff]
  %v613 = vld [vmem:[%s0 + $0x1298] sm:$0xff]
  %v614 = vld [vmem:[%s0 + $0x12a0] sm:$0xff]
  %v615 = vld [vmem:[%s0 + $0x12a8] sm:$0xff]
  %v616 = vld [vmem:[%s0 + $0x12b0] sm:$0xff]
  %v617 = vld [vmem:[%s0 + $0x12b8] sm:$0xff]
  %v618 = vld [vmem:[%s0 + $0x12c0] sm:$0xff]
  %v619 = vld [vmem:[%s0 + $0x12c8] sm:$0xff]
  %v620 = vld [vmem:[%s0 + $0x12d0] sm:$0xff]
  %v621 = vld [vmem:[%s0 + $0x12d8] sm:$0xff]
  %v622 = vld [vmem:[%s0 + $0x12e0] sm:$0xff]
  %v623 = vld [vmem:[%s0 + $0x12e8] sm:$0xff]
  %v624 = vld [vmem:[%s0 + $0x12f0] sm:$0xff]
  %v625 = vld [vmem:[%s0 + $0x12f8] sm:$0xff]
  %v626 = vld [vmem:[%s0 + $0x1300] sm:$0xff]
  %v627 = vld [vmem:[%s0 + $0x1308] sm:$0xff]
  %v628 = vld [vmem:[%s0 + $0x1310] sm:$0xff]
  %v629 = vld [vmem:[%s0 + $0x1318] sm:$0xff]
  %v630 = vld [vmem:[%s0 + $0x1320] sm:$0xff]
  %v631 = vld [vmem:[%s0 + $0x1328] sm:$0xff]
  %v632 = vld [vmem:[%s0 + $0x1330] sm:$0xff]
  %v633 = vld [vmem:[%s0 + $0x1338] sm:$0xff]
  %v634 = vld [vmem:[%s0 + $0x1340] sm:$0xff]
  %v635 = vld [vmem:[%s0 + $0x1348] sm:$0xff]
  %v636 = vld [vmem:[%s0 + $0x1350] sm:$0xff]
  %v637 = vld [vmem:[%s0 + $0x1358] sm:$0xff]
  %v638 = vld [vmem:[%s0 + $0x1360] sm:$0xff]
  %v639 = vld [vmem:[%s0 + $0x1368] sm:$0xff]
  %v640 = vld [vmem:[%s0 + $0x1370] sm:$0xff]
  %v641 = vld [vmem:[%s0 + $0x1378] sm:$0xff]
  %v642 = vld [vmem:[%s0 + $0x1380] sm:$0xff]
  %v643 = vld [vmem:[%s0 + $0x1388] sm:$0xff]
  %v644 = vld [vmem:[%s0 + $0x1390] sm:$0xff]
  %v645 = vld [vmem:[%s0 + $0x1398] sm:$0xff]
  %v646 = vld [vmem:[%s0 + $0x13a0] sm:$0xff]
  %v647 = vld [vmem:[%s0 + $0x13a8] sm:$0xff]
  %v648 = vld [vmem:[%s0 + $0x13b0] sm:$0xff]
  %v649 = vld [vmem:[%s0 + $0x13b8] sm:$0xff]
  %v650 = vld [vmem:[%s0 + $0x13c0] sm:$0xff]
  %v651 = vld [vmem:[%s0 + $0x13c8] sm:$0xff]
  %v652 = vld [vmem:[%s0 + $0x13d0] sm:$0xff]
  %v653 = vld [vmem:[%s0 + $0x13d8] sm:$0xff]
  %v654 = vld [vmem:[%s0 + $0x13e0] sm:$0xff]
  %v655 = vld [vmem:[%s0 + $0x13e8] sm:$0xff]
  %v656 = vld [vmem:[%s0 + $0x13f0] sm:$0xff]
  %v657 = vld [vmem:[%s0 + $0x13f8] sm:$0xff]
  %v658 = vld [vmem:[%s0 + $0x1400] sm:$0xff]
  %v659 = vld [vmem:[%s0 + $0x1408] sm:$0xff]
  %v660 = vld [vmem:[%s0 + $0x1410] sm:$0xff]
  %v661 = vld [vmem:[%s0 + $0x1418] sm:$0xff]
  %v662 = vld [vmem:[%s0 + $0x1420] sm:$0xff]
  %v663 = vld [vmem:[%s0 + $0x1428] sm:$0xff]
  %v664 = vld [vmem:[%s0 + $0x1430] sm:$0xff]
  %v665 = vld [vmem:[%s0 + $0x1438] sm:$0xff]
  %v666 = vld [vmem:[%s0 + $0x1440] sm:$0xff]
  %v667 = vld [vmem:[%s0 + $0x1448] sm:$0xff]
  %v668 = vld [vmem:[%s0 + $0x1450] sm:$0xff]
  %v669 = vld [vmem:[%s0 + $0x1458] sm:$0xff]
  %v670 = vld [vmem:[%s0 + $0x1460] sm:$0xff]
  %v671 = vld [vmem:[%s0 + $0x1468] sm:$0xff]
  %v672 = vld [vmem:[%s0 + $0x1470] sm:$0xff]
  %v673 = vld [vmem:[%s0 + $0x1478] sm:$0xff]
  %v674 = vld [vmem:[%s0 + $0x1480] sm:$0xff]
  %v675 = vld [vmem:[%s0 + $0x1488] sm:$0xff]
  %v676 = vld [vmem:[%s0 + $0x1490] sm:$0xff]
  %v677 = vld [vmem:[%s0 + $0x1498] sm:$0xff]
  %v678 = vld [vmem:[%s0 + $0x14a0] sm:$0xff]
  %v679 = vld [vmem:[%s0 + $0x14a8] sm:$0xff]
  %v680 = vld [vmem:[%s0 + $0x14b0] sm:$0xff]
  %v681 = vld [vmem:[%s0 + $0x14b8] sm:$0xff]
  %v682 = vld [vmem:[%s0 + $0x14c0] sm:$0xff]
  %v683 = vld [vmem:[%s0 + $0x14c8] sm:$0xff]
  %v684 = vld [vmem:[%s0 + $0x14d0] sm:$0xff]
  %v685 = vld [vmem:[%s0 + $0x14d8] sm:$0xff]
  %v686 = vld [vmem:[%s0 + $0x14e0] sm:$0xff]
  %v687 = vld [vmem:[%s0 + $0x14e8] sm:$0xff]
  %v688 = vld [vmem:[%s0 + $0x14f0] sm:$0xff]
  %v689 = vld [vmem:[%s0 + $0x14f8] sm:$0xff]
  %v690 = vld [vmem:[%s0 + $0x1500] sm:$0xff]
  %v691 = vld [vmem:[%s0 + $0x1508] sm:$0xff]
  %v692 = vld [vmem:[%s0 + $0x1510] sm:$0xff]
  %v693 = vld [vmem:[%s0 + $0x1518] sm:$0xff]
  %v694 = vld [vmem:[%s0 + $0x1520] sm:$0xff]
  %v695 = vld [vmem:[%s0 + $0x1528] sm:$0xff]
  %v696 = vld [vmem:[%s0 + $0x1530] sm:$0xff]
  %v697 = vld [vmem:[%s0 + $0x1538] sm:$0xff]
  %v698 = vld [vmem:[%s0 + $0x1540] sm:$0xff]
  %v699 = vld [vmem:[%s0 + $0x1548] sm:$0xff]
  %v700 = vld [vmem:[%s0 + $0x1550] sm:$0xff]
  %v701 = vld [vmem:[%s0 + $0x1558] sm:$0xff]
  %v702 = vld [vmem:[%s0 + $0x1560] sm:$0xff]
  %v703 = vld [vmem:[%s0 + $0x1568] sm:$0xff]
  %v704 = vld [vmem:[%s0 + $0x1570] sm:$0xff]
  %v705 = vld [vmem:[%s0 + $0x1578] sm:$0xff]
  %v706 = vld [vmem:[%s0 + $0x1580] sm:$0xff]
  %v707 = vld [vmem:[%s0 + $0x1588] sm:$0xff]
  %v708 = vld [vmem:[%s0 + $0x1590] sm:$0xff]
  %v709 = vld [vmem:[%s0 + $0x1598] sm:$0xff]
  %v710 = vld [vmem:[%s0 + $0x15a0] sm:$0xff]
  %v711 = vld [vmem:[%s0 + $0x15a8] sm:$0xff]
  %v712 = vld [vmem:[%s0 + $0x15b0] sm:$0xff]
  %v713 = vld [vmem:[%s0 + $0x15b8] sm:$0xff]
  %v714 = vld [vmem:[%s0 + $0x15c0] sm:$0xff]
  %v715 = vld [vmem:[%s0 + $0x15c8] sm:$0xff]
  %v716 = vld [vmem:[%s0 + $0x15d0] sm:$0xff]
  %v717 = vld [vmem:[%s0 + $0x15d8] sm:$0xff]
  %v718 = vld [vmem:[%s0 + $0x15e0] sm:$0xff]
  %v719 = vld [vmem:[%s0 + $0x15e8] sm:$0xff]
  %v720 = vld [vmem:[%s0 + $0x15f0] sm:$0xff]
  %v721 = vld [vmem:[%s0 + $0x15f8] sm:$0xff]
  %v722 = vld [vmem:[%s0 + $0x1600] sm:$0xff]
  %v723 = vld [vmem:[%s0 + $0x1608] sm:$0xff]
  %v724 = vld [vmem:[%s0 + $0x1610] sm:$0xff]
  %v725 = vld [vmem:[%s0 + $0x1618] sm:$0xff]
  %v726 = vld [vmem:[%s0 + $0x1620] sm:$0xff]
  %v727 = vld [vmem:[%s0 + $0x1628] sm:$0xff]
  %v728 = vld [vmem:[%s0 + $0x1630] sm:$0xff]
  %v729 = vld [vmem:[%s0 + $0x1638] sm:$0xff]
  %v730 = vld [vmem:[%s0 + $0x1640] sm:$0xff]
  %v731 = vld [vmem:[%s0 + $0x1648] sm:$0xff]
  %v732 = vld [vmem:[%s0 + $0x1650] sm:$0xff]
  %v733 = vld [vmem:[%s0 + $0x1658] sm:$0xff]
  %v734 = vld [vmem:[%s0 + $0x1660] sm:$0xff]
  %v735 = vld [vmem:[%s0 + $0x1668] sm:$0xff]
  %v736 = vld [vmem:[%s0 + $0x1670] sm:$0xff]
  %v737 = vld [vmem:[%s0 + $0x1678] sm:$0xff]
  %v738 = vld [vmem:[%s0 + $0x1680] sm:$0xff]
  %v739 = vld [vmem:[%s0 + $0x1688] sm:$0xff]
  %v740 = vld [vmem:[%s0 + $0x1690] sm:$0xff]
  %v741 = vld [vmem:[%s0 + $0x1698] sm:$0xff]
  %v742 = vld [vmem:[%s0 + $0x16a0] sm:$0xff]
  %v743 = vld [vmem:[%s0 + $0x16a8] sm:$0xff]
  %v744 = vld [vmem:[%s0 + $0x16b0] sm:$0xff]
  %v745 = vld [vmem:[%s0 + $0x16b8] sm:$0xff]
  %v746 = vld [vmem:[%s0 + $0x16c0] sm:$0xff]
  %v747 = vld [vmem:[%s0 + $0x16c8] sm:$0xff]
  %v748 = vld [vmem:[%s0 + $0x16d0] sm:$0xff]
  %v749 = vld [vmem:[%s0 + $0x16d8] sm:$0xff]
  %v750 = vld [vmem:[%s0 + $0x16e0] sm:$0xff]
  %v751 = vld [vmem:[%s0 + $0x16e8] sm:$0xff]
  %v752 = vld [vmem:[%s0 + $0x16f0] sm:$0xff]
  %v753 = vld [vmem:[%s0 + $0x16f8] sm:$0xff]
  %v754 = vld [vmem:[%s0 + $0x1700] sm:$0xff]
  %v755 = vld [vmem:[%s0 + $0x1708] sm:$0xff]
  %v756 = vld [vmem:[%s0 + $0x1710] sm:$0xff]
  %v757 = vld [vmem:[%s0 + $0x1718] sm:$0xff]
  %v758 = vld [vmem:[%s0 + $0x1720] sm:$0xff]
  %v759 = vld [vmem:[%s0 + $0x1728] sm:$0xff]
  %v760 = vld [vmem:[%s0 + $0x1730] sm:$0xff]
  %v761 = vld [vmem:[%s0 + $0x1738] sm:$0xff]
  %v762 = vld [vmem:[%s0 + $0x1740] sm:$0xff]
  %v763 = vld [vmem:[%s0 + $0x1748] sm:$0xff]
  %v764 = vld [vmem:[%s0 + $0x1750] sm:$0xff]
  %v765 = vld [vmem:[%s0 + $0x1758] sm:$0xff]
  %v766 = vld [vmem:[%s0 + $0x1760] sm:$0xff]
  %v767 = vld [vmem:[%s0 + $0x1768] sm:$0xff]
  %v768 = vld [vmem:[%s0 + $0x1770] sm:$0xff]
  %v769 = vld [vmem:[%s0 + $0x1778] sm:$0xff]
  %v770 = vld [vmem:[%s0 + $0x1780] sm:$0xff]
  %v771 = vld [vmem:[%s0 + $0x1788] sm:$0xff]
  %v772 = vld [vmem:[%s0 + $0x1790] sm:$0xff]
  %v773 = vld [vmem:[%s0 + $0x1798] sm:$0xff]
  %v774 = vld [vmem:[%s0 + $0x17a0] sm:$0xff]
  %v775 = vld [vmem:[%s0 + $0x17a8] sm:$0xff]
  %v776 = vld [vmem:[%s0 + $0x17b0] sm:$0xff]
  %v777 = vld [vmem:[%s0 + $0x17b8] sm:$0xff]
  %v778 = vld [vmem:[%s0 + $0x17c0] sm:$0xff]
  %v779 = vld [vmem:[%s0 + $0x17c8] sm:$0xff]
  %v780 = vld [vmem:[%s0 + $0x17d0] sm:$0xff]
  %v781 = vld [vmem:[%s0 + $0x17d8] sm:$0xff]
  %v782 = vld [vmem:[%s0 + $0x17e0] sm:$0xff]
  %v783 = vld [vmem:[%s0 + $0x17e8] sm:$0xff]
  %v784 = vld [vmem:[%s0 + $0x17f0] sm:$0xff]
  %v785 = vld [vmem:[%s0 + $0x17f8] sm:$0xff]
  %v786 = vld [vmem:[%s0 + $0x1800] sm:$0xff]
  %v787 = vld [vmem:[%s0 + $0x1808] sm:$0xff]
  %v788 = vld [vmem:[%s0 + $0x1810] sm:$0xff]
  %v789 = vld [vmem:[%s0 + $0x1818] sm:$0xff]
  %v790 = vld [vmem:[%s0 + $0x1820] sm:$0xff]
  %v791 = vld [vmem:[%s0 + $0x1828] sm:$0xff]
  %v792 = vld [vmem:[%s0 + $0x1830] sm:$0xff]
  %v793 = vld [vmem:[%s0 + $0x1838] sm:$0xff]
  %v794 = vld [vmem:[%s0 + $0x1840] sm:$0xff]
  %v795 = vld [vmem:[%s0 + $0x1848] sm:$0xff]
  %v796 = vld [vmem:[%s0 + $0x1850] sm:$0xff]
  %v797 = vld [vmem:[%s0 + $0x1858] sm:$0xff]
  %v798 = vld [vmem:[%s0 + $0x1860] sm:$0xff]
  %v799 = vld [vmem:[%s0 + $0x1868] sm:$0xff]
  %v800 = vld [vmem:[%s0 + $0x1870] sm:$0xff]
  %v801 = vld [vmem:[%s0 + $0x1878] sm:$0xff]
  %v802 = vld [vmem:[%s0 + $0x1880] sm:$0xff]
  %v803 = vld [vmem:[%s0 + $0x1888] sm:$0xff]
  %v804 = vld [vmem:[%s0 + $0x1890] sm:$0xff]
  %v805 = vld [vmem:[%s0 + $0x1898] sm:$0xff]
  %v806 = vld [vmem:[%s0 + $0x18a0] sm:$0xff]
  %v807 = vld [vmem:[%s0 + $0x18a8] sm:$0xff]
  %v808 = vld [vmem:[%s0 + $0x18b0] sm:$0xff]
  %v809 = vld [vmem:[%s0 + $0x18b8] sm:$0xff]
  %v810 = vld [vmem:[%s0 + $0x18c0] sm:$0xff]
  %v811 = vld [vmem:[%s0 + $0x18c8] sm:$0xff]
  %v812 = vld [vmem:[%s0 + $0x18d0] sm:$0xff]
  %v813 = vld [vmem:[%s0 + $0x18d8] sm:$0xff]
  %v814 = vld [vmem:[%s0 + $0x18e0] sm:$0xff]
  %v815 = vld [vmem:[%s0 + $0x18e8] sm:$0xff]
  %v816 = vld [vmem:[%s0 + $0x18f0] sm:$0xff]
  %v817 = vld [vmem:[%s0 + $0x18f8] sm:$0xff]
  %v818 = vld [vmem:[%s0 + $0x1900] sm:$0xff]
  %v819 = vld [vmem:[%s0 + $0x1908] sm:$0xff]
  %v820 = vld [vmem:[%s0 + $0x1910] sm:$0xff]
  %v821 = vld [vmem:[%s0 + $0x1918] sm:$0xff]
  %v822 = vld [vmem:[%s0 + $0x1920] sm:$0xff]
  %v823 = vld [vmem:[%s0 + $0x1928] sm:$0xff]
  %v824 = vld [vmem:[%s0 + $0x1930] sm:$0xff]
  %v825 = vld [vmem:[%s0 + $0x1938] sm:$0xff]
  %v826 = vld [vmem:[%s0 + $0x1940] sm:$0xff]
  %v827 = vld [vmem:[%s0 + $0x1948] sm:$0xff]
  %v828 = vld [vmem:[%s0 + $0x1950] sm:$0xff]
  %v829 = vld [vmem:[%s0 + $0x1958] sm:$0xff]
  %v830 = vld [vmem:[%s0 + $0x1960] sm:$0xff]
  %v831 = vld [vmem:[%s0 + $0x1968] sm:$0xff]
  %v832 = vld [vmem:[%s0 + $0x1970] sm:$0xff]
  %v833 = vld [vmem:[%s0 + $0x1978] sm:$0xff]
  %v834 = vld [vmem:[%s0 + $0x1980] sm:$0xff]
  %v835 = vld [vmem:[%s0 + $0x1988] sm:$0xff]
  %v836 = vld [vmem:[%s0 + $0x1990] sm:$0xff]
  %v837 = vld [vmem:[%s0 + $0x1998] sm:$0xff]
  %v838 = vld [vmem:[%s0 + $0x19a0] sm:$0xff]
  %v839 = vld [vmem:[%s0 + $0x19a8] sm:$0xff]
  %v840 = vld [vmem:[%s0 + $0x19b0] sm:$0xff]
  %v841 = vld [vmem:[%s0 + $0x19b8] sm:$0xff]
  %v842 = vld [vmem:[%s0 + $0x19c0] sm:$0xff]
  %v843 = vld [vmem:[%s0 + $0x19c8] sm:$0xff]
  %v844 = vld [vmem:[%s0 + $0x19d0] sm:$0xff]
  %v845 = vld [vmem:[%s0 + $0x19d8] sm:$0xff]
  %v846 = vld [vmem:[%s0 + $0x19e0] sm:$0xff]
  %v847 = vld [vmem:[%s0 + $0x19e8] sm:$0xff]
  %v848 = vld [vmem:[%s0 + $0x19f0] sm:$0xff]
  %v849 = vld [vmem:[%s0 + $0x19f8] sm:$0xff]
  %v850 = vld [vmem:[%s0 + $0x1a00] sm:$0xff]
  %v851 = vld [vmem:[%s0 + $0x1a08] sm:$0xff]
  %v852 = vld [vmem:[%s0 + $0x1a10] sm:$0xff]
  %v853 = vld [vmem:[%s0 + $0x1a18] sm:$0xff]
  %v854 = vld [vmem:[%s0 + $0x1a20] sm:$0xff]
  %v855 = vld [vmem:[%s0 + $0x1a28] sm:$0xff]
  %v856 = vld [vmem:[%s0 + $0x1a30] sm:$0xff]
  %v857 = vld [vmem:[%s0 + $0x1a38] sm:$0xff]
  %v858 = vld [vmem:[%s0 + $0x1a40] sm:$0xff]
  %v859 = vld [vmem:[%s0 + $0x1a48] sm:$0xff]
  %v860 = vld [vmem:[%s0 + $0x1a50] sm:$0xff]
  %v861 = vld [vmem:[%s0 + $0x1a58] sm:$0xff]
  %v862 = vld [vmem:[%s0 + $0x1a60] sm:$0xff]
  %v863 = vld [vmem:[%s0 + $0x1a68] sm:$0xff]
  %v864 = vld [vmem:[%s0 + $0x1a70] sm:$0xff]
  %v865 = vld [vmem:[%s0 + $0x1a78] sm:$0xff]
  %v866 = vld [vmem:[%s0 + $0x1a80] sm:$0xff]
  %v867 = vld [vmem:[%s0 + $0x1a88] sm:$0xff]
  %v868 = vld [vmem:[%s0 + $0x1a90] sm:$0xff]
  %v869 = vld [vmem:[%s0 + $0x1a98] sm:$0xff]
  %v870 = vld [vmem:[%s0 + $0x1aa0] sm:$0xff]
  %v871 = vld [vmem:[%s0 + $0x1aa8] sm:$0xff]
  %v872 = vld [vmem:[%s0 + $0x1ab0] sm:$0xff]
  %v873 = vld [vmem:[%s0 + $0x1ab8] sm:$0xff]
  %v874 = vld [vmem:[%s0 + $0x1ac0] sm:$0xff]
  %v875 = vld [vmem:[%s0 + $0x1ac8] sm:$0xff]
  %v876 = vld [vmem:[%s0 + $0x1ad0] sm:$0xff]
  %v877 = vld [vmem:[%s0 + $0x1ad8] sm:$0xff]
  %v878 = vld [vmem:[%s0 + $0x1ae0] sm:$0xff]
  %v879 = vld [vmem:[%s0 + $0x1ae8] sm:$0xff]
  %v880 = vld [vmem:[%s0 + $0x1af0] sm:$0xff]
  %v881 = vld [vmem:[%s0 + $0x1af8] sm:$0xff]
  %v882 = vld [vmem:[%s2] sm:$0xf]
  %884 = vset.pattern.permute.xlu0 0
  %885 = vperm.xlu0 %884, %v882
  %v886 = vpop.permute.xlu0 %885
  %892 = vst [vmem:[#allocation1] ss:$2 sm:$0xff] %v14
  %s893 = scalar_lea.vmem [#allocation1], 16
  %894 = vst [vmem:[%s893] ss:$2 sm:$0xff] %v15
  %s895 = scalar_lea.vmem [#allocation1], 32
  %896 = vst [vmem:[%s895] ss:$2 sm:$0xff] %v16
  %s897 = scalar_lea.vmem [#allocation1], 48
  %898 = vst [vmem:[%s897] ss:$2 sm:$0xff] %v17
  %v899 = vld.sshfl [vmem:[#allocation1] sm:$0xff pattern:$0x75316420]
  %v900 = vld.sshfl [vmem:[#allocation1 + $0x8] sm:$0xff pattern:$0x75316420]
  %v901 = vld.sshfl [vmem:[#allocation1 + $0x10] sm:$0xff pattern:$0x75316420]
  %v902 = vld.sshfl [vmem:[#allocation1 + $0x18] sm:$0xff pattern:$0x75316420]
  %v903 = vld.sshfl [vmem:[#allocation1 + $0x20] sm:$0xff pattern:$0x75316420]
  %v904 = vld.sshfl [vmem:[#allocation1 + $0x28] sm:$0xff pattern:$0x75316420]
  %v905 = vld.sshfl [vmem:[#allocation1 + $0x30] sm:$0xff pattern:$0x75316420]
  %vm912 = vcmask 785408
  %v913 = vsel %vm912, %v905, 0
  %915 = vmatpush.msra.mxu0 %v138
  %916 = vmatpush.msra.mxu0 %v130
  %917 = vmatpush.msra.mxu0 %v122
  %918 = vmatpush.msra.mxu0 %v114
  %919 = vmatpush.msra.mxu0 %v106
  %920 = vmatpush.msra.mxu0 %v98
  %921 = vmatpush.msra.mxu0 %v90
  %922 = vmatpush.msra.mxu0 %v82
  %923 = vmatpush.msra.mxu0 %v74
  %924 = vmatpush.msra.mxu0 %v66
  %925 = vmatpush.msra.mxu0 %v58
  %926 = vmatpush.msra.mxu0 %v50
  %927 = vmatpush.msra.mxu0 %v42
  %928 = vmatpush.msra.mxu0 %v34
  %929 = vmatpush.msra.mxu0 %v26
  %930 = vmatpush.msra.mxu0 %v18
  %931 = vmatmul.f32.gmra.mxu0 %v899
  %v932 = vpop.f32.mrf.mxu0
  %v933 = vadd.f32 %v886, %v932
  %934 = vdwg.mxu0
  %935 = vmatpush.msra.mxu0 %v266
  %936 = vmatpush.msra.mxu0 %v258
  %937 = vmatpush.msra.mxu0 %v250
  %938 = vmatpush.msra.mxu0 %v242
  %939 = vmatpush.msra.mxu0 %v234
  %940 = vmatpush.msra.mxu0 %v226
  %941 = vmatpush.msra.mxu0 %v218
  %942 = vmatpush.msra.mxu0 %v210
  %943 = vmatpush.msra.mxu0 %v202
  %944 = vmatpush.msra.mxu0 %v194
  %945 = vmatpush.msra.mxu0 %v186
  %946 = vmatpush.msra.mxu0 %v178
  %947 = vmatpush.msra.mxu0 %v170
  %948 = vmatpush.msra.mxu0 %v162
  %949 = vmatpush.msra.mxu0 %v154
  %950 = vmatpush.msra.mxu0 %v146
  %951 = vmatmul.f32.gmra.mxu0 %v900
  %v952 = vpop.f32.mrf.mxu0
  %v953 = vadd.f32 %v933, %v952
  %954 = vdwg.mxu0
  %955 = vmatpush.msra.mxu0 %v394
  %956 = vmatpush.msra.mxu0 %v386
  %957 = vmatpush.msra.mxu0 %v378
  %958 = vmatpush.msra.mxu0 %v370
  %959 = vmatpush.msra.mxu0 %v362
  %960 = vmatpush.msra.mxu0 %v354
  %961 = vmatpush.msra.mxu0 %v346
  %962 = vmatpush.msra.mxu0 %v338
  %963 = vmatpush.msra.mxu0 %v330
  %964 = vmatpush.msra.mxu0 %v322
  %965 = vmatpush.msra.mxu0 %v314
  %966 = vmatpush.msra.mxu0 %v306
  %967 = vmatpush.msra.mxu0 %v298
  %968 = vmatpush.msra.mxu0 %v290
  %969 = vmatpush.msra.mxu0 %v282
  %970 = vmatpush.msra.mxu0 %v274
  %971 = vmatmul.f32.gmra.mxu0 %v901
  %v972 = vpop.f32.mrf.mxu0
  %v973 = vadd.f32 %v953, %v972
  %974 = vdwg.mxu0
  %975 = vmatpush.msra.mxu0 %v522
  %976 = vmatpush.msra.mxu0 %v514
  %977 = vmatpush.msra.mxu0 %v506
  %978 = vmatpush.msra.mxu0 %v498
  %979 = vmatpush.msra.mxu0 %v490
  %980 = vmatpush.msra.mxu0 %v482
  %981 = vmatpush.msra.mxu0 %v474
  %982 = vmatpush.msra.mxu0 %v466
  %983 = vmatpush.msra.mxu0 %v458
  %984 = vmatpush.msra.mxu0 %v450
  %985 = vmatpush.msra.mxu0 %v442
  %986 = vmatpush.msra.mxu0 %v434
  %987 = vmatpush.msra.mxu0 %v426
  %988 = vmatpush.msra.mxu0 %v418
  %989 = vmatpush.msra.mxu0 %v410
  %990 = vmatpush.msra.mxu0 %v402
  %991 = vmatmul.f32.gmra.mxu0 %v902
  %v992 = vpop.f32.mrf.mxu0
  %v993 = vadd.f32 %v973, %v992
  %994 = vdwg.mxu0
  %995 = vmatpush.msra.mxu0 %v650
  %996 = vmatpush.msra.mxu0 %v642
  %997 = vmatpush.msra.mxu0 %v634
  %998 = vmatpush.msra.mxu0 %v626
  %999 = vmatpush.msra.mxu0 %v618
  %1000 = vmatpush.msra.mxu0 %v610
  %1001 = vmatpush.msra.mxu0 %v602
  %1002 = vmatpush.msra.mxu0 %v594
  %1003 = vmatpush.msra.mxu0 %v586
  %1004 = vmatpush.msra.mxu0 %v578
  %1005 = vmatpush.msra.mxu0 %v570
  %1006 = vmatpush.msra.mxu0 %v562
  %1007 = vmatpush.msra.mxu0 %v554
  %1008 = vmatpush.msra.mxu0 %v546
  %1009 = vmatpush.msra.mxu0 %v538
  %1010 = vmatpush.msra.mxu0 %v530
  %1011 = vmatmul.f32.gmra.mxu0 %v903
  %v1012 = vpop.f32.mrf.mxu0
  %v1013 = vadd.f32 %v993, %v1012
  %1014 = vdwg.mxu0
  %1015 = vmatpush.msra.mxu0 %v778
  %1016 = vmatpush.msra.mxu0 %v770
  %1017 = vmatpush.msra.mxu0 %v762
  %1018 = vmatpush.msra.mxu0 %v754
  %1019 = vmatpush.msra.mxu0 %v746
  %1020 = vmatpush.msra.mxu0 %v738
  %1021 = vmatpush.msra.mxu0 %v730
  %1022 = vmatpush.msra.mxu0 %v722
  %1023 = vmatpush.msra.mxu0 %v714
  %1024 = vmatpush.msra.mxu0 %v706
  %1025 = vmatpush.msra.mxu0 %v698
  %1026 = vmatpush.msra.mxu0 %v690
  %1027 = vmatpush.msra.mxu0 %v682
  %1028 = vmatpush.msra.mxu0 %v674
  %1029 = vmatpush.msra.mxu0 %v666
  %1030 = vmatpush.msra.mxu0 %v658
  %1031 = vmatmul.f32.gmra.mxu0 %v904
  %v1032 = vpop.f32.mrf.mxu0
  %v1033 = vadd.f32 %v1013, %v1032
  %1034 = vdwg.mxu0
  %1035 = vmatpush.msra.mxu0 0.0
  %1036 = vmatpush.msra.mxu0 0.0
  %1037 = vmatpush.msra.mxu0 0.0
  %1038 = vmatpush.msra.mxu0 0.0
  %1039 = vmatpush.msra.mxu0 %v874
  %1040 = vmatpush.msra.mxu0 %v866
  %1041 = vmatpush.msra.mxu0 %v858
  %1042 = vmatpush.msra.mxu0 %v850
  %1043 = vmatpush.msra.mxu0 %v842
  %1044 = vmatpush.msra.mxu0 %v834
  %1045 = vmatpush.msra.mxu0 %v826
  %1046 = vmatpush.msra.mxu0 %v818
  %1047 = vmatpush.msra.mxu0 %v810
  %1048 = vmatpush.msra.mxu0 %v802
  %1049 = vmatpush.msra.mxu0 %v794
  %1050 = vmatpush.msra.mxu0 %v786
  %1051 = vmatmul.f32.gmra.mxu0 %v913
  %v1052 = vpop.f32.mrf.mxu0
  %v1053 = vadd.f32 %v1033, %v1052
  %1054 = vdwg.mxu0
  %1055 = vmatpush.msra.mxu0 %v139
  %1056 = vmatpush.msra.mxu0 %v131
  %1057 = vmatpush.msra.mxu0 %v123
  %1058 = vmatpush.msra.mxu0 %v115
  %1059 = vmatpush.msra.mxu0 %v107
  %1060 = vmatpush.msra.mxu0 %v99
  %1061 = vmatpush.msra.mxu0 %v91
  %1062 = vmatpush.msra.mxu0 %v83
  %1063 = vmatpush.msra.mxu0 %v75
  %1064 = vmatpush.msra.mxu0 %v67
  %1065 = vmatpush.msra.mxu0 %v59
  %1066 = vmatpush.msra.mxu0 %v51
  %1067 = vmatpush.msra.mxu0 %v43
  %1068 = vmatpush.msra.mxu0 %v35
  %1069 = vmatpush.msra.mxu0 %v27
  %1070 = vmatpush.msra.mxu0 %v19
  %1071 = vmatmul.f32.gmra.mxu0 %v899
  %v1072 = vpop.f32.mrf.mxu0
  %v1073 = vadd.f32 %v886, %v1072
  %1074 = vdwg.mxu0
  %1075 = vmatpush.msra.mxu0 %v267
  %1076 = vmatpush.msra.mxu0 %v259
  %1077 = vmatpush.msra.mxu0 %v251
  %1078 = vmatpush.msra.mxu0 %v243
  %1079 = vmatpush.msra.mxu0 %v235
  %1080 = vmatpush.msra.mxu0 %v227
  %1081 = vmatpush.msra.mxu0 %v219
  %1082 = vmatpush.msra.mxu0 %v211
  %1083 = vmatpush.msra.mxu0 %v203
  %1084 = vmatpush.msra.mxu0 %v195
  %1085 = vmatpush.msra.mxu0 %v187
  %1086 = vmatpush.msra.mxu0 %v179
  %1087 = vmatpush.msra.mxu0 %v171
  %1088 = vmatpush.msra.mxu0 %v163
  %1089 = vmatpush.msra.mxu0 %v155
  %1090 = vmatpush.msra.mxu0 %v147
  %1091 = vmatmul.f32.gmra.mxu0 %v900
  %v1092 = vpop.f32.mrf.mxu0
  %v1093 = vadd.f32 %v1073, %v1092
  %1094 = vdwg.mxu0
  %1095 = vmatpush.msra.mxu0 %v395
  %1096 = vmatpush.msra.mxu0 %v387
  %1097 = vmatpush.msra.mxu0 %v379
  %1098 = vmatpush.msra.mxu0 %v371
  %1099 = vmatpush.msra.mxu0 %v363
  %1100 = vmatpush.msra.mxu0 %v355
  %1101 = vmatpush.msra.mxu0 %v347
  %1102 = vmatpush.msra.mxu0 %v339
  %1103 = vmatpush.msra.mxu0 %v331
  %1104 = vmatpush.msra.mxu0 %v323
  %1105 = vmatpush.msra.mxu0 %v315
  %1106 = vmatpush.msra.mxu0 %v307
  %1107 = vmatpush.msra.mxu0 %v299
  %1108 = vmatpush.msra.mxu0 %v291
  %1109 = vmatpush.msra.mxu0 %v283
  %1110 = vmatpush.msra.mxu0 %v275
  %1111 = vmatmul.f32.gmra.mxu0 %v901
  %v1112 = vpop.f32.mrf.mxu0
  %v1113 = vadd.f32 %v1093, %v1112
  %1114 = vdwg.mxu0
  %1115 = vmatpush.msra.mxu0 %v523
  %1116 = vmatpush.msra.mxu0 %v515
  %1117 = vmatpush.msra.mxu0 %v507
  %1118 = vmatpush.msra.mxu0 %v499
  %1119 = vmatpush.msra.mxu0 %v491
  %1120 = vmatpush.msra.mxu0 %v483
  %1121 = vmatpush.msra.mxu0 %v475
  %1122 = vmatpush.msra.mxu0 %v467
  %1123 = vmatpush.msra.mxu0 %v459
  %1124 = vmatpush.msra.mxu0 %v451
  %1125 = vmatpush.msra.mxu0 %v443
  %1126 = vmatpush.msra.mxu0 %v435
  %1127 = vmatpush.msra.mxu0 %v427
  %1128 = vmatpush.msra.mxu0 %v419
  %1129 = vmatpush.msra.mxu0 %v411
  %1130 = vmatpush.msra.mxu0 %v403
  %1131 = vmatmul.f32.gmra.mxu0 %v902
  %v1132 = vpop.f32.mrf.mxu0
  %v1133 = vadd.f32 %v1113, %v1132
  %1134 = vdwg.mxu0
  %1135 = vmatpush.msra.mxu0 %v651
  %1136 = vmatpush.msra.mxu0 %v643
  %1137 = vmatpush.msra.mxu0 %v635
  %1138 = vmatpush.msra.mxu0 %v627
  %1139 = vmatpush.msra.mxu0 %v619
  %1140 = vmatpush.msra.mxu0 %v611
  %1141 = vmatpush.msra.mxu0 %v603
  %1142 = vmatpush.msra.mxu0 %v595
  %1143 = vmatpush.msra.mxu0 %v587
  %1144 = vmatpush.msra.mxu0 %v579
  %1145 = vmatpush.msra.mxu0 %v571
  %1146 = vmatpush.msra.mxu0 %v563
  %1147 = vmatpush.msra.mxu0 %v555
  %1148 = vmatpush.msra.mxu0 %v547
  %1149 = vmatpush.msra.mxu0 %v539
  %1150 = vmatpush.msra.mxu0 %v531
  %1151 = vmatmul.f32.gmra.mxu0 %v903
  %v1152 = vpop.f32.mrf.mxu0
  %v1153 = vadd.f32 %v1133, %v1152
  %1154 = vdwg.mxu0
  %1155 = vmatpush.msra.mxu0 %v779
  %1156 = vmatpush.msra.mxu0 %v771
  %1157 = vmatpush.msra.mxu0 %v763
  %1158 = vmatpush.msra.mxu0 %v755
  %1159 = vmatpush.msra.mxu0 %v747
  %1160 = vmatpush.msra.mxu0 %v739
  %1161 = vmatpush.msra.mxu0 %v731
  %1162 = vmatpush.msra.mxu0 %v723
  %1163 = vmatpush.msra.mxu0 %v715
  %1164 = vmatpush.msra.mxu0 %v707
  %1165 = vmatpush.msra.mxu0 %v699
  %1166 = vmatpush.msra.mxu0 %v691
  %1167 = vmatpush.msra.mxu0 %v683
  %1168 = vmatpush.msra.mxu0 %v675
  %1169 = vmatpush.msra.mxu0 %v667
  %1170 = vmatpush.msra.mxu0 %v659
  %1171 = vmatmul.f32.gmra.mxu0 %v904
  %v1172 = vpop.f32.mrf.mxu0
  %v1173 = vadd.f32 %v1153, %v1172
  %1174 = vdwg.mxu0
  %1175 = vmatpush.msra.mxu0 0.0
  %1176 = vmatpush.msra.mxu0 0.0
  %1177 = vmatpush.msra.mxu0 0.0
  %1178 = vmatpush.msra.mxu0 0.0
  %1179 = vmatpush.msra.mxu0 %v875
  %1180 = vmatpush.msra.mxu0 %v867
  %1181 = vmatpush.msra.mxu0 %v859
  %1182 = vmatpush.msra.mxu0 %v851
  %1183 = vmatpush.msra.mxu0 %v843
  %1184 = vmatpush.msra.mxu0 %v835
  %1185 = vmatpush.msra.mxu0 %v827
  %1186 = vmatpush.msra.mxu0 %v819
  %1187 = vmatpush.msra.mxu0 %v811
  %1188 = vmatpush.msra.mxu0 %v803
  %1189 = vmatpush.msra.mxu0 %v795
  %1190 = vmatpush.msra.mxu0 %v787
  %1191 = vmatmul.f32.gmra.mxu0 %v913
  %v1192 = vpop.f32.mrf.mxu0
  %v1193 = vadd.f32 %v1173, %v1192
  %1194 = vdwg.mxu0
  %1195 = vmatpush.msra.mxu0 %v140
  %1196 = vmatpush.msra.mxu0 %v132
  %1197 = vmatpush.msra.mxu0 %v124
  %1198 = vmatpush.msra.mxu0 %v116
  %1199 = vmatpush.msra.mxu0 %v108
  %1200 = vmatpush.msra.mxu0 %v100
  %1201 = vmatpush.msra.mxu0 %v92
  %1202 = vmatpush.msra.mxu0 %v84
  %1203 = vmatpush.msra.mxu0 %v76
  %1204 = vmatpush.msra.mxu0 %v68
  %1205 = vmatpush.msra.mxu0 %v60
  %1206 = vmatpush.msra.mxu0 %v52
  %1207 = vmatpush.msra.mxu0 %v44
  %1208 = vmatpush.msra.mxu0 %v36
  %1209 = vmatpush.msra.mxu0 %v28
  %1210 = vmatpush.msra.mxu0 %v20
  %1211 = vmatmul.f32.gmra.mxu0 %v899
  %v1212 = vpop.f32.mrf.mxu0
  %v1213 = vadd.f32 %v886, %v1212
  %1214 = vdwg.mxu0
  %1215 = vmatpush.msra.mxu0 %v268
  %1216 = vmatpush.msra.mxu0 %v260
  %1217 = vmatpush.msra.mxu0 %v252
  %1218 = vmatpush.msra.mxu0 %v244
  %1219 = vmatpush.msra.mxu0 %v236
  %1220 = vmatpush.msra.mxu0 %v228
  %1221 = vmatpush.msra.mxu0 %v220
  %1222 = vmatpush.msra.mxu0 %v212
  %1223 = vmatpush.msra.mxu0 %v204
  %1224 = vmatpush.msra.mxu0 %v196
  %1225 = vmatpush.msra.mxu0 %v188
  %1226 = vmatpush.msra.mxu0 %v180
  %1227 = vmatpush.msra.mxu0 %v172
  %1228 = vmatpush.msra.mxu0 %v164
  %1229 = vmatpush.msra.mxu0 %v156
  %1230 = vmatpush.msra.mxu0 %v148
  %1231 = vmatmul.f32.gmra.mxu0 %v900
  %v1232 = vpop.f32.mrf.mxu0
  %v1233 = vadd.f32 %v1213, %v1232
  %1234 = vdwg.mxu0
  %1235 = vmatpush.msra.mxu0 %v396
  %1236 = vmatpush.msra.mxu0 %v388
  %1237 = vmatpush.msra.mxu0 %v380
  %1238 = vmatpush.msra.mxu0 %v372
  %1239 = vmatpush.msra.mxu0 %v364
  %1240 = vmatpush.msra.mxu0 %v356
  %1241 = vmatpush.msra.mxu0 %v348
  %1242 = vmatpush.msra.mxu0 %v340
  %1243 = vmatpush.msra.mxu0 %v332
  %1244 = vmatpush.msra.mxu0 %v324
  %1245 = vmatpush.msra.mxu0 %v316
  %1246 = vmatpush.msra.mxu0 %v308
  %1247 = vmatpush.msra.mxu0 %v300
  %1248 = vmatpush.msra.mxu0 %v292
  %1249 = vmatpush.msra.mxu0 %v284
  %1250 = vmatpush.msra.mxu0 %v276
  %1251 = vmatmul.f32.gmra.mxu0 %v901
  %v1252 = vpop.f32.mrf.mxu0
  %v1253 = vadd.f32 %v1233, %v1252
  %1254 = vdwg.mxu0
  %1255 = vmatpush.msra.mxu0 %v524
  %1256 = vmatpush.msra.mxu0 %v516
  %1257 = vmatpush.msra.mxu0 %v508
  %1258 = vmatpush.msra.mxu0 %v500
  %1259 = vmatpush.msra.mxu0 %v492
  %1260 = vmatpush.msra.mxu0 %v484
  %1261 = vmatpush.msra.mxu0 %v476
  %1262 = vmatpush.msra.mxu0 %v468
  %1263 = vmatpush.msra.mxu0 %v460
  %1264 = vmatpush.msra.mxu0 %v452
  %1265 = vmatpush.msra.mxu0 %v444
  %1266 = vmatpush.msra.mxu0 %v436
  %1267 = vmatpush.msra.mxu0 %v428
  %1268 = vmatpush.msra.mxu0 %v420
  %1269 = vmatpush.msra.mxu0 %v412
  %1270 = vmatpush.msra.mxu0 %v404
  %1271 = vmatmul.f32.gmra.mxu0 %v902
  %v1272 = vpop.f32.mrf.mxu0
  %v1273 = vadd.f32 %v1253, %v1272
  %1274 = vdwg.mxu0
  %1275 = vmatpush.msra.mxu0 %v652
  %1276 = vmatpush.msra.mxu0 %v644
  %1277 = vmatpush.msra.mxu0 %v636
  %1278 = vmatpush.msra.mxu0 %v628
  %1279 = vmatpush.msra.mxu0 %v620
  %1280 = vmatpush.msra.mxu0 %v612
  %1281 = vmatpush.msra.mxu0 %v604
  %1282 = vmatpush.msra.mxu0 %v596
  %1283 = vmatpush.msra.mxu0 %v588
  %1284 = vmatpush.msra.mxu0 %v580
  %1285 = vmatpush.msra.mxu0 %v572
  %1286 = vmatpush.msra.mxu0 %v564
  %1287 = vmatpush.msra.mxu0 %v556
  %1288 = vmatpush.msra.mxu0 %v548
  %1289 = vmatpush.msra.mxu0 %v540
  %1290 = vmatpush.msra.mxu0 %v532
  %1291 = vmatmul.f32.gmra.mxu0 %v903
  %v1292 = vpop.f32.mrf.mxu0
  %v1293 = vadd.f32 %v1273, %v1292
  %1294 = vdwg.mxu0
  %1295 = vmatpush.msra.mxu0 %v780
  %1296 = vmatpush.msra.mxu0 %v772
  %1297 = vmatpush.msra.mxu0 %v764
  %1298 = vmatpush.msra.mxu0 %v756
  %1299 = vmatpush.msra.mxu0 %v748
  %1300 = vmatpush.msra.mxu0 %v740
  %1301 = vmatpush.msra.mxu0 %v732
  %1302 = vmatpush.msra.mxu0 %v724
  %1303 = vmatpush.msra.mxu0 %v716
  %1304 = vmatpush.msra.mxu0 %v708
  %1305 = vmatpush.msra.mxu0 %v700
  %1306 = vmatpush.msra.mxu0 %v692
  %1307 = vmatpush.msra.mxu0 %v684
  %1308 = vmatpush.msra.mxu0 %v676
  %1309 = vmatpush.msra.mxu0 %v668
  %1310 = vmatpush.msra.mxu0 %v660
  %1311 = vmatmul.f32.gmra.mxu0 %v904
  %v1312 = vpop.f32.mrf.mxu0
  %v1313 = vadd.f32 %v1293, %v1312
  %1314 = vdwg.mxu0
  %1315 = vmatpush.msra.mxu0 0.0
  %1316 = vmatpush.msra.mxu0 0.0
  %1317 = vmatpush.msra.mxu0 0.0
  %1318 = vmatpush.msra.mxu0 0.0
  %1319 = vmatpush.msra.mxu0 %v876
  %1320 = vmatpush.msra.mxu0 %v868
  %1321 = vmatpush.msra.mxu0 %v860
  %1322 = vmatpush.msra.mxu0 %v852
  %1323 = vmatpush.msra.mxu0 %v844
  %1324 = vmatpush.msra.mxu0 %v836
  %1325 = vmatpush.msra.mxu0 %v828
  %1326 = vmatpush.msra.mxu0 %v820
  %1327 = vmatpush.msra.mxu0 %v812
  %1328 = vmatpush.msra.mxu0 %v804
  %1329 = vmatpush.msra.mxu0 %v796
  %1330 = vmatpush.msra.mxu0 %v788
  %1331 = vmatmul.f32.gmra.mxu0 %v913
  %v1332 = vpop.f32.mrf.mxu0
  %v1333 = vadd.f32 %v1313, %v1332
  %1334 = vdwg.mxu0
  %1335 = vmatpush.msra.mxu0 %v141
  %1336 = vmatpush.msra.mxu0 %v133
  %1337 = vmatpush.msra.mxu0 %v125
  %1338 = vmatpush.msra.mxu0 %v117
  %1339 = vmatpush.msra.mxu0 %v109
  %1340 = vmatpush.msra.mxu0 %v101
  %1341 = vmatpush.msra.mxu0 %v93
  %1342 = vmatpush.msra.mxu0 %v85
  %1343 = vmatpush.msra.mxu0 %v77
  %1344 = vmatpush.msra.mxu0 %v69
  %1345 = vmatpush.msra.mxu0 %v61
  %1346 = vmatpush.msra.mxu0 %v53
  %1347 = vmatpush.msra.mxu0 %v45
  %1348 = vmatpush.msra.mxu0 %v37
  %1349 = vmatpush.msra.mxu0 %v29
  %1350 = vmatpush.msra.mxu0 %v21
  %1351 = vmatmul.f32.gmra.mxu0 %v899
  %v1352 = vpop.f32.mrf.mxu0
  %v1353 = vadd.f32 %v886, %v1352
  %1354 = vdwg.mxu0
  %1355 = vmatpush.msra.mxu0 %v269
  %1356 = vmatpush.msra.mxu0 %v261
  %1357 = vmatpush.msra.mxu0 %v253
  %1358 = vmatpush.msra.mxu0 %v245
  %1359 = vmatpush.msra.mxu0 %v237
  %1360 = vmatpush.msra.mxu0 %v229
  %1361 = vmatpush.msra.mxu0 %v221
  %1362 = vmatpush.msra.mxu0 %v213
  %1363 = vmatpush.msra.mxu0 %v205
  %1364 = vmatpush.msra.mxu0 %v197
  %1365 = vmatpush.msra.mxu0 %v189
  %1366 = vmatpush.msra.mxu0 %v181
  %1367 = vmatpush.msra.mxu0 %v173
  %1368 = vmatpush.msra.mxu0 %v165
  %1369 = vmatpush.msra.mxu0 %v157
  %1370 = vmatpush.msra.mxu0 %v149
  %1371 = vmatmul.f32.gmra.mxu0 %v900
  %v1372 = vpop.f32.mrf.mxu0
  %v1373 = vadd.f32 %v1353, %v1372
  %1374 = vdwg.mxu0
  %1375 = vmatpush.msra.mxu0 %v397
  %1376 = vmatpush.msra.mxu0 %v389
  %1377 = vmatpush.msra.mxu0 %v381
  %1378 = vmatpush.msra.mxu0 %v373
  %1379 = vmatpush.msra.mxu0 %v365
  %1380 = vmatpush.msra.mxu0 %v357
  %1381 = vmatpush.msra.mxu0 %v349
  %1382 = vmatpush.msra.mxu0 %v341
  %1383 = vmatpush.msra.mxu0 %v333
  %1384 = vmatpush.msra.mxu0 %v325
  %1385 = vmatpush.msra.mxu0 %v317
  %1386 = vmatpush.msra.mxu0 %v309
  %1387 = vmatpush.msra.mxu0 %v301
  %1388 = vmatpush.msra.mxu0 %v293
  %1389 = vmatpush.msra.mxu0 %v285
  %1390 = vmatpush.msra.mxu0 %v277
  %1391 = vmatmul.f32.gmra.mxu0 %v901
  %v1392 = vpop.f32.mrf.mxu0
  %v1393 = vadd.f32 %v1373, %v1392
  %1394 = vdwg.mxu0
  %1395 = vmatpush.msra.mxu0 %v525
  %1396 = vmatpush.msra.mxu0 %v517
  %1397 = vmatpush.msra.mxu0 %v509
  %1398 = vmatpush.msra.mxu0 %v501
  %1399 = vmatpush.msra.mxu0 %v493
  %1400 = vmatpush.msra.mxu0 %v485
  %1401 = vmatpush.msra.mxu0 %v477
  %1402 = vmatpush.msra.mxu0 %v469
  %1403 = vmatpush.msra.mxu0 %v461
  %1404 = vmatpush.msra.mxu0 %v453
  %1405 = vmatpush.msra.mxu0 %v445
  %1406 = vmatpush.msra.mxu0 %v437
  %1407 = vmatpush.msra.mxu0 %v429
  %1408 = vmatpush.msra.mxu0 %v421
  %1409 = vmatpush.msra.mxu0 %v413
  %1410 = vmatpush.msra.mxu0 %v405
  %1411 = vmatmul.f32.gmra.mxu0 %v902
  %v1412 = vpop.f32.mrf.mxu0
  %v1413 = vadd.f32 %v1393, %v1412
  %1414 = vdwg.mxu0
  %1415 = vmatpush.msra.mxu0 %v653
  %1416 = vmatpush.msra.mxu0 %v645
  %1417 = vmatpush.msra.mxu0 %v637
  %1418 = vmatpush.msra.mxu0 %v629
  %1419 = vmatpush.msra.mxu0 %v621
  %1420 = vmatpush.msra.mxu0 %v613
  %1421 = vmatpush.msra.mxu0 %v605
  %1422 = vmatpush.msra.mxu0 %v597
  %1423 = vmatpush.msra.mxu0 %v589
  %1424 = vmatpush.msra.mxu0 %v581
  %1425 = vmatpush.msra.mxu0 %v573
  %1426 = vmatpush.msra.mxu0 %v565
  %1427 = vmatpush.msra.mxu0 %v557
  %1428 = vmatpush.msra.mxu0 %v549
  %1429 = vmatpush.msra.mxu0 %v541
  %1430 = vmatpush.msra.mxu0 %v533
  %1431 = vmatmul.f32.gmra.mxu0 %v903
  %v1432 = vpop.f32.mrf.mxu0
  %v1433 = vadd.f32 %v1413, %v1432
  %1434 = vdwg.mxu0
  %1435 = vmatpush.msra.mxu0 %v781
  %1436 = vmatpush.msra.mxu0 %v773
  %1437 = vmatpush.msra.mxu0 %v765
  %1438 = vmatpush.msra.mxu0 %v757
  %1439 = vmatpush.msra.mxu0 %v749
  %1440 = vmatpush.msra.mxu0 %v741
  %1441 = vmatpush.msra.mxu0 %v733
  %1442 = vmatpush.msra.mxu0 %v725
  %1443 = vmatpush.msra.mxu0 %v717
  %1444 = vmatpush.msra.mxu0 %v709
  %1445 = vmatpush.msra.mxu0 %v701
  %1446 = vmatpush.msra.mxu0 %v693
  %1447 = vmatpush.msra.mxu0 %v685
  %1448 = vmatpush.msra.mxu0 %v677
  %1449 = vmatpush.msra.mxu0 %v669
  %1450 = vmatpush.msra.mxu0 %v661
  %1451 = vmatmul.f32.gmra.mxu0 %v904
  %v1452 = vpop.f32.mrf.mxu0
  %v1453 = vadd.f32 %v1433, %v1452
  %1454 = vdwg.mxu0
  %1455 = vmatpush.msra.mxu0 0.0
  %1456 = vmatpush.msra.mxu0 0.0
  %1457 = vmatpush.msra.mxu0 0.0
  %1458 = vmatpush.msra.mxu0 0.0
  %1459 = vmatpush.msra.mxu0 %v877
  %1460 = vmatpush.msra.mxu0 %v869
  %1461 = vmatpush.msra.mxu0 %v861
  %1462 = vmatpush.msra.mxu0 %v853
  %1463 = vmatpush.msra.mxu0 %v845
  %1464 = vmatpush.msra.mxu0 %v837
  %1465 = vmatpush.msra.mxu0 %v829
  %1466 = vmatpush.msra.mxu0 %v821
  %1467 = vmatpush.msra.mxu0 %v813
  %1468 = vmatpush.msra.mxu0 %v805
  %1469 = vmatpush.msra.mxu0 %v797
  %1470 = vmatpush.msra.mxu0 %v789
  %1471 = vmatmul.f32.gmra.mxu0 %v913
  %v1472 = vpop.f32.mrf.mxu0
  %v1473 = vadd.f32 %v1453, %v1472
  %1474 = vdwg.mxu0
  %1475 = vmatpush.msra.mxu0 %v142
  %1476 = vmatpush.msra.mxu0 %v134
  %1477 = vmatpush.msra.mxu0 %v126
  %1478 = vmatpush.msra.mxu0 %v118
  %1479 = vmatpush.msra.mxu0 %v110
  %1480 = vmatpush.msra.mxu0 %v102
  %1481 = vmatpush.msra.mxu0 %v94
  %1482 = vmatpush.msra.mxu0 %v86
  %1483 = vmatpush.msra.mxu0 %v78
  %1484 = vmatpush.msra.mxu0 %v70
  %1485 = vmatpush.msra.mxu0 %v62
  %1486 = vmatpush.msra.mxu0 %v54
  %1487 = vmatpush.msra.mxu0 %v46
  %1488 = vmatpush.msra.mxu0 %v38
  %1489 = vmatpush.msra.mxu0 %v30
  %1490 = vmatpush.msra.mxu0 %v22
  %1491 = vmatmul.f32.gmra.mxu0 %v899
  %v1492 = vpop.f32.mrf.mxu0
  %v1493 = vadd.f32 %v886, %v1492
  %1494 = vdwg.mxu0
  %1495 = vmatpush.msra.mxu0 %v270
  %1496 = vmatpush.msra.mxu0 %v262
  %1497 = vmatpush.msra.mxu0 %v254
  %1498 = vmatpush.msra.mxu0 %v246
  %1499 = vmatpush.msra.mxu0 %v238
  %1500 = vmatpush.msra.mxu0 %v230
  %1501 = vmatpush.msra.mxu0 %v222
  %1502 = vmatpush.msra.mxu0 %v214
  %1503 = vmatpush.msra.mxu0 %v206
  %1504 = vmatpush.msra.mxu0 %v198
  %1505 = vmatpush.msra.mxu0 %v190
  %1506 = vmatpush.msra.mxu0 %v182
  %1507 = vmatpush.msra.mxu0 %v174
  %1508 = vmatpush.msra.mxu0 %v166
  %1509 = vmatpush.msra.mxu0 %v158
  %1510 = vmatpush.msra.mxu0 %v150
  %1511 = vmatmul.f32.gmra.mxu0 %v900
  %v1512 = vpop.f32.mrf.mxu0
  %v1513 = vadd.f32 %v1493, %v1512
  %1514 = vdwg.mxu0
  %1515 = vmatpush.msra.mxu0 %v398
  %1516 = vmatpush.msra.mxu0 %v390
  %1517 = vmatpush.msra.mxu0 %v382
  %1518 = vmatpush.msra.mxu0 %v374
  %1519 = vmatpush.msra.mxu0 %v366
  %1520 = vmatpush.msra.mxu0 %v358
  %1521 = vmatpush.msra.mxu0 %v350
  %1522 = vmatpush.msra.mxu0 %v342
  %1523 = vmatpush.msra.mxu0 %v334
  %1524 = vmatpush.msra.mxu0 %v326
  %1525 = vmatpush.msra.mxu0 %v318
  %1526 = vmatpush.msra.mxu0 %v310
  %1527 = vmatpush.msra.mxu0 %v302
  %1528 = vmatpush.msra.mxu0 %v294
  %1529 = vmatpush.msra.mxu0 %v286
  %1530 = vmatpush.msra.mxu0 %v278
  %1531 = vmatmul.f32.gmra.mxu0 %v901
  %v1532 = vpop.f32.mrf.mxu0
  %v1533 = vadd.f32 %v1513, %v1532
  %1534 = vdwg.mxu0
  %1535 = vmatpush.msra.mxu0 %v526
  %1536 = vmatpush.msra.mxu0 %v518
  %1537 = vmatpush.msra.mxu0 %v510
  %1538 = vmatpush.msra.mxu0 %v502
  %1539 = vmatpush.msra.mxu0 %v494
  %1540 = vmatpush.msra.mxu0 %v486
  %1541 = vmatpush.msra.mxu0 %v478
  %1542 = vmatpush.msra.mxu0 %v470
  %1543 = vmatpush.msra.mxu0 %v462
  %1544 = vmatpush.msra.mxu0 %v454
  %1545 = vmatpush.msra.mxu0 %v446
  %1546 = vmatpush.msra.mxu0 %v438
  %1547 = vmatpush.msra.mxu0 %v430
  %1548 = vmatpush.msra.mxu0 %v422
  %1549 = vmatpush.msra.mxu0 %v414
  %1550 = vmatpush.msra.mxu0 %v406
  %1551 = vmatmul.f32.gmra.mxu0 %v902
  %v1552 = vpop.f32.mrf.mxu0
  %v1553 = vadd.f32 %v1533, %v1552
  %1554 = vdwg.mxu0
  %1555 = vmatpush.msra.mxu0 %v654
  %1556 = vmatpush.msra.mxu0 %v646
  %1557 = vmatpush.msra.mxu0 %v638
  %1558 = vmatpush.msra.mxu0 %v630
  %1559 = vmatpush.msra.mxu0 %v622
  %1560 = vmatpush.msra.mxu0 %v614
  %1561 = vmatpush.msra.mxu0 %v606
  %1562 = vmatpush.msra.mxu0 %v598
  %1563 = vmatpush.msra.mxu0 %v590
  %1564 = vmatpush.msra.mxu0 %v582
  %1565 = vmatpush.msra.mxu0 %v574
  %1566 = vmatpush.msra.mxu0 %v566
  %1567 = vmatpush.msra.mxu0 %v558
  %1568 = vmatpush.msra.mxu0 %v550
  %1569 = vmatpush.msra.mxu0 %v542
  %1570 = vmatpush.msra.mxu0 %v534
  %1571 = vmatmul.f32.gmra.mxu0 %v903
  %v1572 = vpop.f32.mrf.mxu0
  %v1573 = vadd.f32 %v1553, %v1572
  %1574 = vdwg.mxu0
  %1575 = vmatpush.msra.mxu0 %v782
  %1576 = vmatpush.msra.mxu0 %v774
  %1577 = vmatpush.msra.mxu0 %v766
  %1578 = vmatpush.msra.mxu0 %v758
  %1579 = vmatpush.msra.mxu0 %v750
  %1580 = vmatpush.msra.mxu0 %v742
  %1581 = vmatpush.msra.mxu0 %v734
  %1582 = vmatpush.msra.mxu0 %v726
  %1583 = vmatpush.msra.mxu0 %v718
  %1584 = vmatpush.msra.mxu0 %v710
  %1585 = vmatpush.msra.mxu0 %v702
  %1586 = vmatpush.msra.mxu0 %v694
  %1587 = vmatpush.msra.mxu0 %v686
  %1588 = vmatpush.msra.mxu0 %v678
  %1589 = vmatpush.msra.mxu0 %v670
  %1590 = vmatpush.msra.mxu0 %v662
  %1591 = vmatmul.f32.gmra.mxu0 %v904
  %v1592 = vpop.f32.mrf.mxu0
  %v1593 = vadd.f32 %v1573, %v1592
  %1594 = vdwg.mxu0
  %1595 = vmatpush.msra.mxu0 0.0
  %1596 = vmatpush.msra.mxu0 0.0
  %1597 = vmatpush.msra.mxu0 0.0
  %1598 = vmatpush.msra.mxu0 0.0
  %1599 = vmatpush.msra.mxu0 %v878
  %1600 = vmatpush.msra.mxu0 %v870
  %1601 = vmatpush.msra.mxu0 %v862
  %1602 = vmatpush.msra.mxu0 %v854
  %1603 = vmatpush.msra.mxu0 %v846
  %1604 = vmatpush.msra.mxu0 %v838
  %1605 = vmatpush.msra.mxu0 %v830
  %1606 = vmatpush.msra.mxu0 %v822
  %1607 = vmatpush.msra.mxu0 %v814
  %1608 = vmatpush.msra.mxu0 %v806
  %1609 = vmatpush.msra.mxu0 %v798
  %1610 = vmatpush.msra.mxu0 %v790
  %1611 = vmatmul.f32.gmra.mxu0 %v913
  %v1612 = vpop.f32.mrf.mxu0
  %v1613 = vadd.f32 %v1593, %v1612
  %1614 = vdwg.mxu0
  %1615 = vmatpush.msra.mxu0 %v143
  %1616 = vmatpush.msra.mxu0 %v135
  %1617 = vmatpush.msra.mxu0 %v127
  %1618 = vmatpush.msra.mxu0 %v119
  %1619 = vmatpush.msra.mxu0 %v111
  %1620 = vmatpush.msra.mxu0 %v103
  %1621 = vmatpush.msra.mxu0 %v95
  %1622 = vmatpush.msra.mxu0 %v87
  %1623 = vmatpush.msra.mxu0 %v79
  %1624 = vmatpush.msra.mxu0 %v71
  %1625 = vmatpush.msra.mxu0 %v63
  %1626 = vmatpush.msra.mxu0 %v55
  %1627 = vmatpush.msra.mxu0 %v47
  %1628 = vmatpush.msra.mxu0 %v39
  %1629 = vmatpush.msra.mxu0 %v31
  %1630 = vmatpush.msra.mxu0 %v23
  %1631 = vmatmul.f32.gmra.mxu0 %v899
  %v1632 = vpop.f32.mrf.mxu0
  %v1633 = vadd.f32 %v886, %v1632
  %1634 = vdwg.mxu0
  %1635 = vmatpush.msra.mxu0 %v271
  %1636 = vmatpush.msra.mxu0 %v263
  %1637 = vmatpush.msra.mxu0 %v255
  %1638 = vmatpush.msra.mxu0 %v247
  %1639 = vmatpush.msra.mxu0 %v239
  %1640 = vmatpush.msra.mxu0 %v231
  %1641 = vmatpush.msra.mxu0 %v223
  %1642 = vmatpush.msra.mxu0 %v215
  %1643 = vmatpush.msra.mxu0 %v207
  %1644 = vmatpush.msra.mxu0 %v199
  %1645 = vmatpush.msra.mxu0 %v191
  %1646 = vmatpush.msra.mxu0 %v183
  %1647 = vmatpush.msra.mxu0 %v175
  %1648 = vmatpush.msra.mxu0 %v167
  %1649 = vmatpush.msra.mxu0 %v159
  %1650 = vmatpush.msra.mxu0 %v151
  %1651 = vmatmul.f32.gmra.mxu0 %v900
  %v1652 = vpop.f32.mrf.mxu0
  %v1653 = vadd.f32 %v1633, %v1652
  %1654 = vdwg.mxu0
  %1655 = vmatpush.msra.mxu0 %v399
  %1656 = vmatpush.msra.mxu0 %v391
  %1657 = vmatpush.msra.mxu0 %v383
  %1658 = vmatpush.msra.mxu0 %v375
  %1659 = vmatpush.msra.mxu0 %v367
  %1660 = vmatpush.msra.mxu0 %v359
  %1661 = vmatpush.msra.mxu0 %v351
  %1662 = vmatpush.msra.mxu0 %v343
  %1663 = vmatpush.msra.mxu0 %v335
  %1664 = vmatpush.msra.mxu0 %v327
  %1665 = vmatpush.msra.mxu0 %v319
  %1666 = vmatpush.msra.mxu0 %v311
  %1667 = vmatpush.msra.mxu0 %v303
  %1668 = vmatpush.msra.mxu0 %v295
  %1669 = vmatpush.msra.mxu0 %v287
  %1670 = vmatpush.msra.mxu0 %v279
  %1671 = vmatmul.f32.gmra.mxu0 %v901
  %v1672 = vpop.f32.mrf.mxu0
  %v1673 = vadd.f32 %v1653, %v1672
  %1674 = vdwg.mxu0
  %1675 = vmatpush.msra.mxu0 %v527
  %1676 = vmatpush.msra.mxu0 %v519
  %1677 = vmatpush.msra.mxu0 %v511
  %1678 = vmatpush.msra.mxu0 %v503
  %1679 = vmatpush.msra.mxu0 %v495
  %1680 = vmatpush.msra.mxu0 %v487
  %1681 = vmatpush.msra.mxu0 %v479
  %1682 = vmatpush.msra.mxu0 %v471
  %1683 = vmatpush.msra.mxu0 %v463
  %1684 = vmatpush.msra.mxu0 %v455
  %1685 = vmatpush.msra.mxu0 %v447
  %1686 = vmatpush.msra.mxu0 %v439
  %1687 = vmatpush.msra.mxu0 %v431
  %1688 = vmatpush.msra.mxu0 %v423
  %1689 = vmatpush.msra.mxu0 %v415
  %1690 = vmatpush.msra.mxu0 %v407
  %1691 = vmatmul.f32.gmra.mxu0 %v902
  %v1692 = vpop.f32.mrf.mxu0
  %v1693 = vadd.f32 %v1673, %v1692
  %1694 = vdwg.mxu0
  %1695 = vmatpush.msra.mxu0 %v655
  %1696 = vmatpush.msra.mxu0 %v647
  %1697 = vmatpush.msra.mxu0 %v639
  %1698 = vmatpush.msra.mxu0 %v631
  %1699 = vmatpush.msra.mxu0 %v623
  %1700 = vmatpush.msra.mxu0 %v615
  %1701 = vmatpush.msra.mxu0 %v607
  %1702 = vmatpush.msra.mxu0 %v599
  %1703 = vmatpush.msra.mxu0 %v591
  %1704 = vmatpush.msra.mxu0 %v583
  %1705 = vmatpush.msra.mxu0 %v575
  %1706 = vmatpush.msra.mxu0 %v567
  %1707 = vmatpush.msra.mxu0 %v559
  %1708 = vmatpush.msra.mxu0 %v551
  %1709 = vmatpush.msra.mxu0 %v543
  %1710 = vmatpush.msra.mxu0 %v535
  %1711 = vmatmul.f32.gmra.mxu0 %v903
  %v1712 = vpop.f32.mrf.mxu0
  %v1713 = vadd.f32 %v1693, %v1712
  %1714 = vdwg.mxu0
  %1715 = vmatpush.msra.mxu0 %v783
  %1716 = vmatpush.msra.mxu0 %v775
  %1717 = vmatpush.msra.mxu0 %v767
  %1718 = vmatpush.msra.mxu0 %v759
  %1719 = vmatpush.msra.mxu0 %v751
  %1720 = vmatpush.msra.mxu0 %v743
  %1721 = vmatpush.msra.mxu0 %v735
  %1722 = vmatpush.msra.mxu0 %v727
  %1723 = vmatpush.msra.mxu0 %v719
  %1724 = vmatpush.msra.mxu0 %v711
  %1725 = vmatpush.msra.mxu0 %v703
  %1726 = vmatpush.msra.mxu0 %v695
  %1727 = vmatpush.msra.mxu0 %v687
  %1728 = vmatpush.msra.mxu0 %v679
  %1729 = vmatpush.msra.mxu0 %v671
  %1730 = vmatpush.msra.mxu0 %v663
  %1731 = vmatmul.f32.gmra.mxu0 %v904
  %v1732 = vpop.f32.mrf.mxu0
  %v1733 = vadd.f32 %v1713, %v1732
  %1734 = vdwg.mxu0
  %1735 = vmatpush.msra.mxu0 0.0
  %1736 = vmatpush.msra.mxu0 0.0
  %1737 = vmatpush.msra.mxu0 0.0
  %1738 = vmatpush.msra.mxu0 0.0
  %1739 = vmatpush.msra.mxu0 %v879
  %1740 = vmatpush.msra.mxu0 %v871
  %1741 = vmatpush.msra.mxu0 %v863
  %1742 = vmatpush.msra.mxu0 %v855
  %1743 = vmatpush.msra.mxu0 %v847
  %1744 = vmatpush.msra.mxu0 %v839
  %1745 = vmatpush.msra.mxu0 %v831
  %1746 = vmatpush.msra.mxu0 %v823
  %1747 = vmatpush.msra.mxu0 %v815
  %1748 = vmatpush.msra.mxu0 %v807
  %1749 = vmatpush.msra.mxu0 %v799
  %1750 = vmatpush.msra.mxu0 %v791
  %1751 = vmatmul.f32.gmra.mxu0 %v913
  %v1752 = vpop.f32.mrf.mxu0
  %v1753 = vadd.f32 %v1733, %v1752
  %1754 = vdwg.mxu0
  %1755 = vmatpush.msra.mxu0 %v144
  %1756 = vmatpush.msra.mxu0 %v136
  %1757 = vmatpush.msra.mxu0 %v128
  %1758 = vmatpush.msra.mxu0 %v120
  %1759 = vmatpush.msra.mxu0 %v112
  %1760 = vmatpush.msra.mxu0 %v104
  %1761 = vmatpush.msra.mxu0 %v96
  %1762 = vmatpush.msra.mxu0 %v88
  %1763 = vmatpush.msra.mxu0 %v80
  %1764 = vmatpush.msra.mxu0 %v72
  %1765 = vmatpush.msra.mxu0 %v64
  %1766 = vmatpush.msra.mxu0 %v56
  %1767 = vmatpush.msra.mxu0 %v48
  %1768 = vmatpush.msra.mxu0 %v40
  %1769 = vmatpush.msra.mxu0 %v32
  %1770 = vmatpush.msra.mxu0 %v24
  %1771 = vmatmul.f32.gmra.mxu0 %v899
  %v1772 = vpop.f32.mrf.mxu0
  %v1773 = vadd.f32 %v886, %v1772
  %1774 = vdwg.mxu0
  %1775 = vmatpush.msra.mxu0 %v272
  %1776 = vmatpush.msra.mxu0 %v264
  %1777 = vmatpush.msra.mxu0 %v256
  %1778 = vmatpush.msra.mxu0 %v248
  %1779 = vmatpush.msra.mxu0 %v240
  %1780 = vmatpush.msra.mxu0 %v232
  %1781 = vmatpush.msra.mxu0 %v224
  %1782 = vmatpush.msra.mxu0 %v216
  %1783 = vmatpush.msra.mxu0 %v208
  %1784 = vmatpush.msra.mxu0 %v200
  %1785 = vmatpush.msra.mxu0 %v192
  %1786 = vmatpush.msra.mxu0 %v184
  %1787 = vmatpush.msra.mxu0 %v176
  %1788 = vmatpush.msra.mxu0 %v168
  %1789 = vmatpush.msra.mxu0 %v160
  %1790 = vmatpush.msra.mxu0 %v152
  %1791 = vmatmul.f32.gmra.mxu0 %v900
  %v1792 = vpop.f32.mrf.mxu0
  %v1793 = vadd.f32 %v1773, %v1792
  %1794 = vdwg.mxu0
  %1795 = vmatpush.msra.mxu0 %v400
  %1796 = vmatpush.msra.mxu0 %v392
  %1797 = vmatpush.msra.mxu0 %v384
  %1798 = vmatpush.msra.mxu0 %v376
  %1799 = vmatpush.msra.mxu0 %v368
  %1800 = vmatpush.msra.mxu0 %v360
  %1801 = vmatpush.msra.mxu0 %v352
  %1802 = vmatpush.msra.mxu0 %v344
  %1803 = vmatpush.msra.mxu0 %v336
  %1804 = vmatpush.msra.mxu0 %v328
  %1805 = vmatpush.msra.mxu0 %v320
  %1806 = vmatpush.msra.mxu0 %v312
  %1807 = vmatpush.msra.mxu0 %v304
  %1808 = vmatpush.msra.mxu0 %v296
  %1809 = vmatpush.msra.mxu0 %v288
  %1810 = vmatpush.msra.mxu0 %v280
  %1811 = vmatmul.f32.gmra.mxu0 %v901
  %v1812 = vpop.f32.mrf.mxu0
  %v1813 = vadd.f32 %v1793, %v1812
  %1814 = vdwg.mxu0
  %1815 = vmatpush.msra.mxu0 %v528
  %1816 = vmatpush.msra.mxu0 %v520
  %1817 = vmatpush.msra.mxu0 %v512
  %1818 = vmatpush.msra.mxu0 %v504
  %1819 = vmatpush.msra.mxu0 %v496
  %1820 = vmatpush.msra.mxu0 %v488
  %1821 = vmatpush.msra.mxu0 %v480
  %1822 = vmatpush.msra.mxu0 %v472
  %1823 = vmatpush.msra.mxu0 %v464
  %1824 = vmatpush.msra.mxu0 %v456
  %1825 = vmatpush.msra.mxu0 %v448
  %1826 = vmatpush.msra.mxu0 %v440
  %1827 = vmatpush.msra.mxu0 %v432
  %1828 = vmatpush.msra.mxu0 %v424
  %1829 = vmatpush.msra.mxu0 %v416
  %1830 = vmatpush.msra.mxu0 %v408
  %1831 = vmatmul.f32.gmra.mxu0 %v902
  %v1832 = vpop.f32.mrf.mxu0
  %v1833 = vadd.f32 %v1813, %v1832
  %1834 = vdwg.mxu0
  %1835 = vmatpush.msra.mxu0 %v656
  %1836 = vmatpush.msra.mxu0 %v648
  %1837 = vmatpush.msra.mxu0 %v640
  %1838 = vmatpush.msra.mxu0 %v632
  %1839 = vmatpush.msra.mxu0 %v624
  %1840 = vmatpush.msra.mxu0 %v616
  %1841 = vmatpush.msra.mxu0 %v608
  %1842 = vmatpush.msra.mxu0 %v600
  %1843 = vmatpush.msra.mxu0 %v592
  %1844 = vmatpush.msra.mxu0 %v584
  %1845 = vmatpush.msra.mxu0 %v576
  %1846 = vmatpush.msra.mxu0 %v568
  %1847 = vmatpush.msra.mxu0 %v560
  %1848 = vmatpush.msra.mxu0 %v552
  %1849 = vmatpush.msra.mxu0 %v544
  %1850 = vmatpush.msra.mxu0 %v536
  %1851 = vmatmul.f32.gmra.mxu0 %v903
  %v1852 = vpop.f32.mrf.mxu0
  %v1853 = vadd.f32 %v1833, %v1852
  %1854 = vdwg.mxu0
  %1855 = vmatpush.msra.mxu0 %v784
  %1856 = vmatpush.msra.mxu0 %v776
  %1857 = vmatpush.msra.mxu0 %v768
  %1858 = vmatpush.msra.mxu0 %v760
  %1859 = vmatpush.msra.mxu0 %v752
  %1860 = vmatpush.msra.mxu0 %v744
  %1861 = vmatpush.msra.mxu0 %v736
  %1862 = vmatpush.msra.mxu0 %v728
  %1863 = vmatpush.msra.mxu0 %v720
  %1864 = vmatpush.msra.mxu0 %v712
  %1865 = vmatpush.msra.mxu0 %v704
  %1866 = vmatpush.msra.mxu0 %v696
  %1867 = vmatpush.msra.mxu0 %v688
  %1868 = vmatpush.msra.mxu0 %v680
  %1869 = vmatpush.msra.mxu0 %v672
  %1870 = vmatpush.msra.mxu0 %v664
  %1871 = vmatmul.f32.gmra.mxu0 %v904
  %v1872 = vpop.f32.mrf.mxu0
  %v1873 = vadd.f32 %v1853, %v1872
  %1874 = vdwg.mxu0
  %1875 = vmatpush.msra.mxu0 0.0
  %1876 = vmatpush.msra.mxu0 0.0
  %1877 = vmatpush.msra.mxu0 0.0
  %1878 = vmatpush.msra.mxu0 0.0
  %1879 = vmatpush.msra.mxu0 %v880
  %1880 = vmatpush.msra.mxu0 %v872
  %1881 = vmatpush.msra.mxu0 %v864
  %1882 = vmatpush.msra.mxu0 %v856
  %1883 = vmatpush.msra.mxu0 %v848
  %1884 = vmatpush.msra.mxu0 %v840
  %1885 = vmatpush.msra.mxu0 %v832
  %1886 = vmatpush.msra.mxu0 %v824
  %1887 = vmatpush.msra.mxu0 %v816
  %1888 = vmatpush.msra.mxu0 %v808
  %1889 = vmatpush.msra.mxu0 %v800
  %1890 = vmatpush.msra.mxu0 %v792
  %1891 = vmatmul.f32.gmra.mxu0 %v913
  %v1892 = vpop.f32.mrf.mxu0
  %v1893 = vadd.f32 %v1873, %v1892
  %1894 = vdwg.mxu0
  %1895 = vmatpush.msra.mxu0 %v145
  %1896 = vmatpush.msra.mxu0 %v137
  %1897 = vmatpush.msra.mxu0 %v129
  %1898 = vmatpush.msra.mxu0 %v121
  %1899 = vmatpush.msra.mxu0 %v113
  %1900 = vmatpush.msra.mxu0 %v105
  %1901 = vmatpush.msra.mxu0 %v97
  %1902 = vmatpush.msra.mxu0 %v89
  %1903 = vmatpush.msra.mxu0 %v81
  %1904 = vmatpush.msra.mxu0 %v73
  %1905 = vmatpush.msra.mxu0 %v65
  %1906 = vmatpush.msra.mxu0 %v57
  %1907 = vmatpush.msra.mxu0 %v49
  %1908 = vmatpush.msra.mxu0 %v41
  %1909 = vmatpush.msra.mxu0 %v33
  %1910 = vmatpush.msra.mxu0 %v25
  %1911 = vmatmul.f32.gmra.mxu0 %v899
  %v1912 = vpop.f32.mrf.mxu0
  %v1913 = vadd.f32 %v886, %v1912
  %1914 = vdwg.mxu0
  %1915 = vmatpush.msra.mxu0 %v273
  %1916 = vmatpush.msra.mxu0 %v265
  %1917 = vmatpush.msra.mxu0 %v257
  %1918 = vmatpush.msra.mxu0 %v249
  %1919 = vmatpush.msra.mxu0 %v241
  %1920 = vmatpush.msra.mxu0 %v233
  %1921 = vmatpush.msra.mxu0 %v225
  %1922 = vmatpush.msra.mxu0 %v217
  %1923 = vmatpush.msra.mxu0 %v209
  %1924 = vmatpush.msra.mxu0 %v201
  %1925 = vmatpush.msra.mxu0 %v193
  %1926 = vmatpush.msra.mxu0 %v185
  %1927 = vmatpush.msra.mxu0 %v177
  %1928 = vmatpush.msra.mxu0 %v169
  %1929 = vmatpush.msra.mxu0 %v161
  %1930 = vmatpush.msra.mxu0 %v153
  %1931 = vmatmul.f32.gmra.mxu0 %v900
  %v1932 = vpop.f32.mrf.mxu0
  %v1933 = vadd.f32 %v1913, %v1932
  %1934 = vdwg.mxu0
  %1935 = vmatpush.msra.mxu0 %v401
  %1936 = vmatpush.msra.mxu0 %v393
  %1937 = vmatpush.msra.mxu0 %v385
  %1938 = vmatpush.msra.mxu0 %v377
  %1939 = vmatpush.msra.mxu0 %v369
  %1940 = vmatpush.msra.mxu0 %v361
  %1941 = vmatpush.msra.mxu0 %v353
  %1942 = vmatpush.msra.mxu0 %v345
  %1943 = vmatpush.msra.mxu0 %v337
  %1944 = vmatpush.msra.mxu0 %v329
  %1945 = vmatpush.msra.mxu0 %v321
  %1946 = vmatpush.msra.mxu0 %v313
  %1947 = vmatpush.msra.mxu0 %v305
  %1948 = vmatpush.msra.mxu0 %v297
  %1949 = vmatpush.msra.mxu0 %v289
  %1950 = vmatpush.msra.mxu0 %v281
  %1951 = vmatmul.f32.gmra.mxu0 %v901
  %v1952 = vpop.f32.mrf.mxu0
  %v1953 = vadd.f32 %v1933, %v1952
  %1954 = vdwg.mxu0
  %1955 = vmatpush.msra.mxu0 %v529
  %1956 = vmatpush.msra.mxu0 %v521
  %1957 = vmatpush.msra.mxu0 %v513
  %1958 = vmatpush.msra.mxu0 %v505
  %1959 = vmatpush.msra.mxu0 %v497
  %1960 = vmatpush.msra.mxu0 %v489
  %1961 = vmatpush.msra.mxu0 %v481
  %1962 = vmatpush.msra.mxu0 %v473
  %1963 = vmatpush.msra.mxu0 %v465
  %1964 = vmatpush.msra.mxu0 %v457
  %1965 = vmatpush.msra.mxu0 %v449
  %1966 = vmatpush.msra.mxu0 %v441
  %1967 = vmatpush.msra.mxu0 %v433
  %1968 = vmatpush.msra.mxu0 %v425
  %1969 = vmatpush.msra.mxu0 %v417
  %1970 = vmatpush.msra.mxu0 %v409
  %1971 = vmatmul.f32.gmra.mxu0 %v902
  %v1972 = vpop.f32.mrf.mxu0
  %v1973 = vadd.f32 %v1953, %v1972
  %1974 = vdwg.mxu0
  %1975 = vmatpush.msra.mxu0 %v657
  %1976 = vmatpush.msra.mxu0 %v649
  %1977 = vmatpush.msra.mxu0 %v641
  %1978 = vmatpush.msra.mxu0 %v633
  %1979 = vmatpush.msra.mxu0 %v625
  %1980 = vmatpush.msra.mxu0 %v617
  %1981 = vmatpush.msra.mxu0 %v609
  %1982 = vmatpush.msra.mxu0 %v601
  %1983 = vmatpush.msra.mxu0 %v593
  %1984 = vmatpush.msra.mxu0 %v585
  %1985 = vmatpush.msra.mxu0 %v577
  %1986 = vmatpush.msra.mxu0 %v569
  %1987 = vmatpush.msra.mxu0 %v561
  %1988 = vmatpush.msra.mxu0 %v553
  %1989 = vmatpush.msra.mxu0 %v545
  %1990 = vmatpush.msra.mxu0 %v537
  %1991 = vmatmul.f32.gmra.mxu0 %v903
  %v1992 = vpop.f32.mrf.mxu0
  %v1993 = vadd.f32 %v1973, %v1992
  %1994 = vdwg.mxu0
  %1995 = vmatpush.msra.mxu0 %v785
  %1996 = vmatpush.msra.mxu0 %v777
  %1997 = vmatpush.msra.mxu0 %v769
  %1998 = vmatpush.msra.mxu0 %v761
  %1999 = vmatpush.msra.mxu0 %v753
  %2000 = vmatpush.msra.mxu0 %v745
  %2001 = vmatpush.msra.mxu0 %v737
  %2002 = vmatpush.msra.mxu0 %v729
  %2003 = vmatpush.msra.mxu0 %v721
  %2004 = vmatpush.msra.mxu0 %v713
  %2005 = vmatpush.msra.mxu0 %v705
  %2006 = vmatpush.msra.mxu0 %v697
  %2007 = vmatpush.msra.mxu0 %v689
  %2008 = vmatpush.msra.mxu0 %v681
  %2009 = vmatpush.msra.mxu0 %v673
  %2010 = vmatpush.msra.mxu0 %v665
  %2011 = vmatmul.f32.gmra.mxu0 %v904
  %v2012 = vpop.f32.mrf.mxu0
  %v2013 = vadd.f32 %v1993, %v2012
  %2014 = vdwg.mxu0
  %2015 = vmatpush.msra.mxu0 0.0
  %2016 = vmatpush.msra.mxu0 0.0
  %2017 = vmatpush.msra.mxu0 0.0
  %2018 = vmatpush.msra.mxu0 0.0
  %2019 = vmatpush.msra.mxu0 %v881
  %2020 = vmatpush.msra.mxu0 %v873
  %2021 = vmatpush.msra.mxu0 %v865
  %2022 = vmatpush.msra.mxu0 %v857
  %2023 = vmatpush.msra.mxu0 %v849
  %2024 = vmatpush.msra.mxu0 %v841
  %2025 = vmatpush.msra.mxu0 %v833
  %2026 = vmatpush.msra.mxu0 %v825
  %2027 = vmatpush.msra.mxu0 %v817
  %2028 = vmatpush.msra.mxu0 %v809
  %2029 = vmatpush.msra.mxu0 %v801
  %2030 = vmatpush.msra.mxu0 %v793
  %2031 = vmatmul.f32.gmra.mxu0 %v913
  %v2032 = vpop.f32.mrf.mxu0
  %v2033 = vadd.f32 %v2013, %v2032
  %2034 = vdwg.mxu0
  %v2035 = vmax.f32 %v1053, 0.0
  %v2036 = vmax.f32 %v1193, 0.0
  %v2037 = vmax.f32 %v1333, 0.0
  %v2038 = vmax.f32 %v1473, 0.0
  %v2039 = vmax.f32 %v1613, 0.0
  %v2040 = vmax.f32 %v1753, 0.0
  %v2041 = vmax.f32 %v1893, 0.0
  %v2042 = vmax.f32 %v2033, 0.0
  %v2051 = vrot.slane %v2036, 4
  %v2052 = vrot.slane %v2038, 4
  %v2053 = vrot.slane %v2040, 4
  %v2054 = vrot.slane %v2042, 4
  %vm2055 = vcmask 1043456
  %v2056 = vsel %vm2055, %v2035, %v2051
  %v2057 = vsel %vm2055, %v2037, %v2052
  %v2058 = vsel %vm2055, %v2039, %v2053
  %v2059 = vsel %vm2055, %v2041, %v2054
  %2064 = vst [vmem:[%s3] sm:$0xff] %v2056
  %2065 = vst [vmem:[%s3 + $0x8] sm:$0xff] %v2057
  %2066 = vst [vmem:[%s3 + $0x10] sm:$0xff] %v2058
  %2067 = vst [vmem:[%s3 + $0x18] sm:$0xff] %v2059
  // Predicated region
  $region14: #{_lambda_.13} parent=0 // pred_check
    _
  $region15: #{_lambda_.13} parent=0 // pred_check_branch
    %2069 = sbr.rel (0) target = $region17
  $region16: #{_lambda_.13} parent=0 // pred_region
    _
  $region17: #{_lambda_.13} parent=0 // pred_fallthru
    _
  // Predicated region
  $region18: #{_lambda_.13} parent=0 // pred_check
    _
  $region19: #{_lambda_.13} parent=0 // pred_check_branch
    %2071 = sbr.rel (0) target = $region21
  $region20: #{_lambda_.13} parent=0 // pred_region
    _
  $region21: #{_lambda_.13} parent=0 // pred_fallthru
    _

</llo_original>
